<compile_context>
chip_gen: v7x
topology: tpu7x:2x2x1
jax: 0.10.0
libtpu: 0.0.40
codegen_flags: <defaults>
</compile_context>

<pallas_src>
import jax
import jax.numpy as jnp
from jax import lax
from jax.experimental import pallas as pl
from jax.experimental.pallas import tpu as pltpu

N = 2  # demo batch size


# ----------------------------------------------------------------------------
# Parameters (deterministic synthetic init, PyTorch shapes: OIHW convs,
# (out,in) linears, scalar PReLU slopes).
# ----------------------------------------------------------------------------
def make_params(key):
    ks = jax.random.split(key, 12)
    nrm = lambda k, shape, s: jax.random.normal(k, shape, jnp.float32) * s
    return dict(
        w1=nrm(ks[0], (28, 3, 3, 3), 0.15), b1=nrm(ks[1], (28,), 0.1),
        w2=nrm(ks[2], (48, 28, 3, 3), 0.08), b2=nrm(ks[3], (48,), 0.1),
        w3=nrm(ks[4], (64, 48, 2, 2), 0.08), b3=nrm(ks[5], (64,), 0.1),
        wfc=nrm(ks[6], (128, 576), 0.04), bfc=nrm(ks[7], (128,), 0.1),
        wdet=nrm(ks[8], (1, 128), 0.08), bdet=nrm(ks[9], (1,), 0.1),
        woff=nrm(ks[10], (4, 128), 0.08), boff=nrm(ks[11], (4,), 0.1),
        alphas=jnp.array([0.25, 0.20, 0.15, 0.10], jnp.float32),  # 4 PReLUs
    )


# ----------------------------------------------------------------------------
# Chip-aware sizing helpers.
# ----------------------------------------------------------------------------
def _vmem_capacity_bytes():
    try:
        return int(pltpu.get_tpu_info().vmem_capacity_bytes)
    except Exception:
        return 64 * 1024 * 1024  # conservative fallback (v7x-sized)


def _pick_batch_tile(n, vmem_cap_bytes):
    # ~1.3 MB live VMEM per sample (bf16, 128-lane-padded slabs) + ~0.6 MB
    # double-buffered weights.  Conservative caps: 16 for 64-MiB chips (v7x),
    # 32 for 128-MiB chips (v5e/v6e).  Tunable via batch_tile=.
    cap = 16 if vmem_cap_bytes <= (72 << 20) else 32
    if n <= 8:
        return n
    upper = min(cap, max(8, n // 2))  # >=2 grid steps -> v7x megacore + pipelining
    best = 0
    for t in range(8, upper + 1, 8):
        if n % t == 0:
            best = t
    return best if best else n  # no 8-aligned divisor: fall back to one tile


# ----------------------------------------------------------------------------
# Pallas kernel: whole RNet forward for one batch tile per grid step.
# ----------------------------------------------------------------------------
def rnet_forward_pallas(x_nchw, p, batch_tile=None):
    n = x_nchw.shape[0]
    assert x_nchw.shape[1:] == (3, 24, 24), "RNet expects 3x24x24 inputs"
    f32, bf16 = jnp.float32, jnp.bfloat16

    vmem_cap = _vmem_capacity_bytes()
    TB = batch_tile if batch_tile is not None else _pick_batch_tile(n, vmem_cap)
    # output block is (TB, 8): second-to-last dim must be full or 8-aligned.
    assert n % TB == 0 and (TB == n or TB % 8 == 0)

    def prelu(v, a):
        return jnp.where(v >= 0.0, v, a * v)

    def kernel(alpha_ref, x_ref, w1_ref, b1_ref, w2_ref, b2_ref,
               w3_ref, b3_ref, wfc_ref, bfc_ref, whead_ref, bhead_ref,
               out_ref, p1_s, p2_s):
        a1, a2, a3, a4 = (alpha_ref[0], alpha_ref[1],
                          alpha_ref[2], alpha_ref[3])

        # One-time zero of the padded tail columns of both pool scratches.
        # Every step only writes the real columns; the padded columns only
        # ever feed conv2/conv3 output columns that are never read downstream.
        @pl.when(pl.program_id(0) == 0)
        def _():
            p1_s[...] = jnp.zeros_like(p1_s)
            p2_s[...] = jnp.zeros_like(p2_s)

        # ---- conv1: 3x3 pad=1, 3->28.  im2col was done in the wrapper, so
        # this is a single (TB*576, 27) x (27, 28) bf16 matmul, f32 accum. ----
        c1 = jnp.dot(x_ref[...], w1_ref[...], preferred_element_type=f32)
        c1 = prelu(c1 + b1_ref[...], a1)                      # f32 (TB*576,28)
        c1 = c1.reshape(TB, 24, 24, 28).astype(bf16)          # bf16 from here

        # ---- maxpool 3x3 / stride 2: 24x24 -> 11x11 ------------------------
        r = c1.reshape(TB, 12, 2, 24, 28)                     # split H (outer)
        ev, od = r[:, :, 0], r[:, :, 1]                       # even / odd rows
        hm = jnp.maximum(jnp.maximum(ev[:, 0:11], od[:, 0:11]), ev[:, 1:12])
        wm = jnp.maximum(jnp.maximum(hm[:, :, 0:22, :], hm[:, :, 1:23, :]),
                         hm[:, :, 2:24, :])                   # (TB,11,22,28)
        cols = [wm[:, :, 2 * j:2 * j + 1, :] for j in range(11)]
        # dummy 12th column -> even (packed-bf16 aligned) store width; it only
        # feeds conv2 output columns >= 9, which are never read.
        cols.append(wm[:, :, 0:1, :])
        p1_s[:, :, 0:12, :] = jnp.concatenate(cols, axis=2)

        # ---- conv2: 3x3 valid, 28->48 (out W padded to 16, cols>=9 unused) --
        patches = jnp.concatenate(
            [p1_s[:, kh:kh + 9, kw:kw + 16, :]
             for kh in range(3) for kw in range(3)], axis=-1)  # (TB,9,16,252)
        c2 = jnp.dot(patches.reshape(TB * 144, 252), w2_ref[...],
                     preferred_element_type=f32)
        c2 = prelu(c2 + b2_ref[...], a2)
        c2 = c2.reshape(TB, 9, 16, 48).astype(bf16)

        # ---- maxpool 3x3 / stride 2: 9x9 -> 4x4 -----------------------------
        ra = c2[:, 0:8].reshape(TB, 4, 2, 16, 48)
        rb = c2[:, 1:9].reshape(TB, 4, 2, 16, 48)
        hm2 = jnp.maximum(jnp.maximum(ra[:, :, 0], ra[:, :, 1]), rb[:, :, 1])
        wm2 = jnp.maximum(jnp.maximum(hm2[:, :, 0:7, :], hm2[:, :, 1:8, :]),
                          hm2[:, :, 2:9, :])                  # (TB,4,7,48)
        p2_s[:, :, 0:4, :] = jnp.concatenate(
            [wm2[:, :, 2 * j:2 * j + 1, :] for j in range(4)], axis=2)

        # ---- conv3: 2x2 valid, 48->64 (out W padded to 16, cols>=3 unused) --
        patches = jnp.concatenate(
            [p2_s[:, kh:kh + 3, kw:kw + 16, :]
             for kh in range(2) for kw in range(2)], axis=-1)  # (TB,3,16,192)
        c3 = jnp.dot(patches.reshape(TB * 48, 192), w3_ref[...],
                     preferred_element_type=f32)
        c3 = prelu(c3 + b3_ref[...], a3)
        c3 = c3.reshape(TB, 3, 16, 64).astype(bf16)

        # ---- fc 576->128 as one matmul, PReLU, fused detect/offset heads ----
        feat = jnp.concatenate(
            [c3[:, hh, ww, :] for hh in range(3) for ww in range(3)],
            axis=-1)                                          # (TB,576) bf16
        h = jnp.dot(feat, wfc_ref[...], preferred_element_type=f32)
        h = prelu(h + bfc_ref[...], a4)                       # (TB,128) f32

        out = jnp.dot(h.astype(bf16), whead_ref[...],
                      preferred_element_type=f32) + bhead_ref[...]  # (TB,8)
        lane = lax.broadcasted_iota(jnp.int32, out.shape, 1)
        out_ref[...] = jnp.where(lane == 0, jax.nn.sigmoid(out), out)

    # ------------------------- wrapper-side glue -----------------------------
    # Host/XLA-side im2col for conv1 (layout plumbing only, done once in HBM):
    # rows ordered (b, h, w), K ordered (kh, kw, cin) -- matches w1 below.
    x = jnp.transpose(x_nchw, (0, 2, 3, 1))                   # NHWC (n,24,24,3)
    xp = jnp.pad(x, ((0, 0), (1, 1), (1, 1), (0, 0)))         # conv1 padding=1
    xcol = jnp.concatenate(
        [xp[:, kh:kh + 24, kw:kw + 24, :]
         for kh in range(3) for kw in range(3)], axis=-1)     # (n,24,24,27)
    xcol = xcol.reshape(n * 576, 27).astype(bf16)

    # Conv weights -> im2col matrices with rows ordered (kh, kw, cin) to match
    # the in-kernel channel-concat order.  MXU operands in bf16, biases f32.
    w1 = jnp.transpose(p['w1'], (2, 3, 1, 0)).reshape(27, 28).astype(bf16)
    w2 = jnp.transpose(p['w2'], (2, 3, 1, 0)).reshape(252, 48).astype(bf16)
    w3 = jnp.transpose(p['w3'], (2, 3, 1, 0)).reshape(192, 64).astype(bf16)
    # PyTorch flattens NCHW (c*9 + h*3 + w); kernel builds NHWC-ordered feats.
    wfc = (p['wfc'].T.reshape(64, 3, 3, 128).transpose(1, 2, 0, 3)
           .reshape(576, 128).astype(bf16))
    # detect (1) + offset (4) heads fused into one lane-padded (128, 8) matmul.
    whead = jnp.pad(jnp.concatenate([p['wdet'].T, p['woff'].T], axis=1),
                    ((0, 0), (0, 3))).astype(bf16)            # (128,8) bf16
    bhead = jnp.pad(jnp.concatenate([p['bdet'], p['boff']]), (0, 3))[None, :]

    vm = pltpu.MemorySpace.VMEM
    sm = pltpu.MemorySpace.SMEM
    rep2 = lambda i: (0, 0)
    vmem_limit = int(min(vmem_cap * 3 // 4, 100 * 1024 * 1024))

    out = pl.pallas_call(
        kernel,
        out_shape=jax.ShapeDtypeStruct((n, 8), f32),
        grid=(n // TB,),
        in_specs=[
            pl.BlockSpec(memory_space=sm),                          # PReLU alphas
            pl.BlockSpec((TB * 576, 27), lambda i: (i, 0),
                         memory_space=vm),                          # im2col input
            pl.BlockSpec((27, 28), rep2, memory_space=vm),          # w1 im2col
            pl.BlockSpec((1, 28), rep2, memory_space=vm),           # b1
            pl.BlockSpec((252, 48), rep2, memory_space=vm),         # w2 im2col
            pl.BlockSpec((1, 48), rep2, memory_space=vm),           # b2
            pl.BlockSpec((192, 64), rep2, memory_space=vm),         # w3 im2col
            pl.BlockSpec((1, 64), rep2, memory_space=vm),           # b3
            pl.BlockSpec((576, 128), rep2, memory_space=vm),        # wfc
            pl.BlockSpec((1, 128), rep2, memory_space=vm),          # bfc
            pl.BlockSpec((128, 8), rep2, memory_space=vm),          # fused head W
            pl.BlockSpec((1, 8), rep2, memory_space=vm),            # fused head b
        ],
        out_specs=pl.BlockSpec((TB, 8), lambda i: (i, 0), memory_space=vm),
        scratch_shapes=[
            pltpu.VMEM((TB, 11, 24, 28), bf16),  # pool1 out (W 11 real, padded)
            pltpu.VMEM((TB, 4, 24, 48), bf16),   # pool2 out (W 4 real, padded)
        ],
        compiler_params=pltpu.CompilerParams(
            dimension_semantics=("parallel",),
            vmem_limit_bytes=vmem_limit),
    )(p['alphas'], xcol, w1, p['b1'][None, :], w2, p['b2'][None, :],
      w3, p['b3'][None, :], wfc, p['bfc'][None, :], whead, bhead)

    return out[:, 0:1], out[:, 1:5]


# ----------------------------------------------------------------------------
# Pure-JAX reference with PyTorch (NCHW) semantics, for verification.
# ----------------------------------------------------------------------------
def rnet_forward_ref(x_nchw, p):
    def conv(x, w, b, pad):
        y = lax.conv_general_dilated(
            x, w, window_strides=(1, 1), padding=pad,
            dimension_numbers=('NCHW', 'OIHW', 'NCHW'),
            precision=lax.Precision.HIGHEST)
        return y + b.reshape(1, -1, 1, 1)

    def prelu(v, a):
        return jnp.where(v >= 0.0, v, a * v)

    def maxpool(x):
        return lax.reduce_window(x, -jnp.inf, lax.max,
                                 (1, 1, 3, 3), (1, 1, 2, 2), 'VALID')

    a = p['alphas']
    h = prelu(conv(x_nchw, p['w1'], p['b1'], [(1, 1), (1, 1)]), a[0])
    h = maxpool(h)
    h = prelu(conv(h, p['w2'], p['b2'], [(0, 0), (0, 0)]), a[1])
    h = maxpool(h)
    h = prelu(conv(h, p['w3'], p['b3'], [(0, 0), (0, 0)]), a[2])
    h = h.reshape(h.shape[0], -1)                      # NCHW flatten
    h = prelu(h @ p['wfc'].T + p['bfc'], a[3])
    label = jax.nn.sigmoid(h @ p['wdet'].T + p['bdet'])
    offset = h @ p['woff'].T + p['boff']
    return label, offset


if __name__ == "__main__":
    key = jax.random.PRNGKey(0)
    kx, kp = jax.random.split(key)
    params = make_params(kp)
    x = jax.random.normal(kx, (N, 3, 24, 24), jnp.float32)

    label, offset = jax.block_until_ready(rnet_forward_pallas(x, params))
    ref_label, ref_offset = rnet_forward_ref(x, params)

    assert label.shape == (N, 1) and offset.shape == (N, 4)
    # bf16 MXU operands / bf16 activation storage (f32 accumulation) ->
    # slightly looser tolerance.
    assert jnp.allclose(label, ref_label, atol=4e-2, rtol=4e-2), \
        (label, ref_label)
    assert jnp.allclose(offset, ref_offset, atol=4e-2, rtol=4e-2), \
        (offset, ref_offset)
    print("KERNEL_OK")
</pallas_src>

<mosaic_0001>
module attributes {stable_mosaic.version = 11 : i64} {
  func.func @kernel(%arg0: i32, %arg1: memref<4xf32, #tpu.memory_space<smem>>, %arg2: memref<1152x27xbf16, #tpu.memory_space<vmem>>, %arg3: memref<27x28xbf16, #tpu.memory_space<vmem>>, %arg4: memref<1x28xf32, #tpu.memory_space<vmem>>, %arg5: memref<252x48xbf16, #tpu.memory_space<vmem>>, %arg6: memref<1x48xf32, #tpu.memory_space<vmem>>, %arg7: memref<192x64xbf16, #tpu.memory_space<vmem>>, %arg8: memref<1x64xf32, #tpu.memory_space<vmem>>, %arg9: memref<576x128xbf16, #tpu.memory_space<vmem>>, %arg10: memref<1x128xf32, #tpu.memory_space<vmem>>, %arg11: memref<128x8xbf16, #tpu.memory_space<vmem>>, %arg12: memref<1x8xf32, #tpu.memory_space<vmem>>, %arg13: memref<2x8xf32, #tpu.memory_space<vmem>>, %arg14: memref<2x11x24x28xbf16, #tpu.memory_space<vmem>>, %arg15: memref<2x4x24x48xbf16, #tpu.memory_space<vmem>>) attributes {dimension_semantics = [#tpu.dimension_semantics<parallel>], iteration_bounds = array<i64: 1>, scalar_prefetch = 0 : i64, scratch_operands = 2 : i64, tpu.core_type = #tpu.core_type<tc>, window_params = [{transform_indices = @transform_0, window_bounds = array<i64: 4>}, {transform_indices = @transform_1, window_bounds = array<i64: 1152, 27>}, {pipeline_mode = #tpu.pipeline_mode<synchronous>, transform_indices = @transform_2, window_bounds = array<i64: 27, 28>}, {pipeline_mode = #tpu.pipeline_mode<synchronous>, transform_indices = @transform_3, window_bounds = array<i64: 1, 28>}, {pipeline_mode = #tpu.pipeline_mode<synchronous>, transform_indices = @transform_4, window_bounds = array<i64: 252, 48>}, {pipeline_mode = #tpu.pipeline_mode<synchronous>, transform_indices = @transform_5, window_bounds = array<i64: 1, 48>}, {pipeline_mode = #tpu.pipeline_mode<synchronous>, transform_indices = @transform_6, window_bounds = array<i64: 192, 64>}, {pipeline_mode = #tpu.pipeline_mode<synchronous>, transform_indices = @transform_7, window_bounds = array<i64: 1, 64>}, {pipeline_mode = #tpu.pipeline_mode<synchronous>, transform_indices = @transform_8, window_bounds = array<i64: 576, 128>}, {pipeline_mode = #tpu.pipeline_mode<synchronous>, transform_indices = @transform_9, window_bounds = array<i64: 1, 128>}, {pipeline_mode = #tpu.pipeline_mode<synchronous>, transform_indices = @transform_10, window_bounds = array<i64: 128, 8>}, {pipeline_mode = #tpu.pipeline_mode<synchronous>, transform_indices = @transform_11, window_bounds = array<i64: 1, 8>}, {transform_indices = @transform_12, window_bounds = array<i64: 2, 8>}]} {
    %c0 = arith.constant 0 : index
    %0 = memref.load %arg1[%c0] : memref<4xf32, #tpu.memory_space<smem>>
    %c1 = arith.constant 1 : index
    %1 = memref.load %arg1[%c1] : memref<4xf32, #tpu.memory_space<smem>>
    %c2 = arith.constant 2 : index
    %2 = memref.load %arg1[%c2] : memref<4xf32, #tpu.memory_space<smem>>
    %c3 = arith.constant 3 : index
    %3 = memref.load %arg1[%c3] : memref<4xf32, #tpu.memory_space<smem>>
    %c0_i32 = arith.constant 0 : i32
    %4 = arith.cmpi eq, %arg0, %c0_i32 : i32
    %5 = arith.extui %4 : i1 to i32
    %c0_i32_0 = arith.constant 0 : i32
    %6 = arith.cmpi ne, %5, %c0_i32_0 : i32
    scf.if %6 {
      %cst_95 = arith.constant 0.000000e+00 : bf16
      %158 = vector.broadcast %cst_95 : bf16 to vector<2x11x24x28xbf16>
      %c0_96 = arith.constant 0 : index
      %c0_97 = arith.constant 0 : index
      %c0_98 = arith.constant 0 : index
      %c0_99 = arith.constant 0 : index
      %159 = vector.load %arg14[%c0_96, %c0_97, %c0_98, %c0_99] : memref<2x11x24x28xbf16, #tpu.memory_space<vmem>>, vector<2x11x24x28xbf16>
      tpu.vector_store %arg14[%c0_96, %c0_97, %c0_98, %c0_99], %158 {strides = array<i32>} : memref<2x11x24x28xbf16, #tpu.memory_space<vmem>>, vector<2x11x24x28xbf16>,
      %cst_100 = arith.constant 0.000000e+00 : bf16
      %160 = vector.broadcast %cst_100 : bf16 to vector<2x4x24x48xbf16>
      %c0_101 = arith.constant 0 : index
      %c0_102 = arith.constant 0 : index
      %c0_103 = arith.constant 0 : index
      %c0_104 = arith.constant 0 : index
      %161 = vector.load %arg15[%c0_101, %c0_102, %c0_103, %c0_104] : memref<2x4x24x48xbf16, #tpu.memory_space<vmem>>, vector<2x4x24x48xbf16>
      tpu.vector_store %arg15[%c0_101, %c0_102, %c0_103, %c0_104], %160 {strides = array<i32>} : memref<2x4x24x48xbf16, #tpu.memory_space<vmem>>, vector<2x4x24x48xbf16>,
    } else {
    }
    %c0_1 = arith.constant 0 : index
    %c0_2 = arith.constant 0 : index
    %7 = vector.load %arg2[%c0_1, %c0_2] : memref<1152x27xbf16, #tpu.memory_space<vmem>>, vector<1152x27xbf16>
    %c0_3 = arith.constant 0 : index
    %c0_4 = arith.constant 0 : index
    %8 = vector.load %arg3[%c0_3, %c0_4] : memref<27x28xbf16, #tpu.memory_space<vmem>>, vector<27x28xbf16>
    %cst = arith.constant dense<0.000000e+00> : vector<1152x28xf32>
    %9 = tpu.matmul %7, %8, %cst {dimension_numbers = #tpu.dot_dimension_numbers<[1], [0], [0], [1], [0, 0, 1, 1], [], []>} : vector<1152x27xbf16>, vector<27x28xbf16>, vector<1152x28xf32> -> vector<1152x28xf32>
    %c0_5 = arith.constant 0 : index
    %c0_6 = arith.constant 0 : index
    %10 = vector.load %arg4[%c0_5, %c0_6] : memref<1x28xf32, #tpu.memory_space<vmem>>, vector<1x28xf32>
    %11 = vector.broadcast %10 : vector<1x28xf32> to vector<1152x28xf32>
    %12 = arith.addf %9, %11 : vector<1152x28xf32>
    %cst_7 = arith.constant 0.000000e+00 : f32
    %13 = vector.broadcast %cst_7 : f32 to vector<1152x28xf32>
    %14 = arith.cmpf oge, %12, %13 : vector<1152x28xf32>
    %15 = vector.broadcast %0 : f32 to vector<1152x28xf32>
    %16 = arith.mulf %15, %12 : vector<1152x28xf32>
    %17 = arith.select %14, %12, %16 : vector<1152x28xi1>, vector<1152x28xf32>
    %18 = vector.shape_cast %17 : vector<1152x28xf32> to vector<2x24x24x28xf32>
    %19 = arith.truncf %18 : vector<2x24x24x28xf32> to vector<2x24x24x28xbf16>
    %20 = vector.shape_cast %19 : vector<2x24x24x28xbf16> to vector<2x12x2x24x28xbf16>
    %21 = vector.extract_strided_slice %20 {offsets = [0, 0, 0, 0, 0], sizes = [2, 12, 1, 24, 28], strides = [1, 1, 1, 1, 1]} : vector<2x12x2x24x28xbf16> to vector<2x12x1x24x28xbf16>
    %22 = vector.shape_cast %21 : vector<2x12x1x24x28xbf16> to vector<2x12x24x28xbf16>
    %23 = vector.extract_strided_slice %20 {offsets = [0, 0, 1, 0, 0], sizes = [2, 12, 1, 24, 28], strides = [1, 1, 1, 1, 1]} : vector<2x12x2x24x28xbf16> to vector<2x12x1x24x28xbf16>
    %24 = vector.shape_cast %23 : vector<2x12x1x24x28xbf16> to vector<2x12x24x28xbf16>
    %25 = vector.extract_strided_slice %22 {offsets = [0, 0, 0, 0], sizes = [2, 11, 24, 28], strides = [1, 1, 1, 1]} : vector<2x12x24x28xbf16> to vector<2x11x24x28xbf16>
    %26 = vector.extract_strided_slice %24 {offsets = [0, 0, 0, 0], sizes = [2, 11, 24, 28], strides = [1, 1, 1, 1]} : vector<2x12x24x28xbf16> to vector<2x11x24x28xbf16>
    %27 = arith.maximumf %25, %26 : vector<2x11x24x28xbf16>
    %28 = vector.extract_strided_slice %22 {offsets = [0, 1, 0, 0], sizes = [2, 11, 24, 28], strides = [1, 1, 1, 1]} : vector<2x12x24x28xbf16> to vector<2x11x24x28xbf16>
    %29 = arith.maximumf %27, %28 : vector<2x11x24x28xbf16>
    %30 = vector.extract_strided_slice %29 {offsets = [0, 0, 0, 0], sizes = [2, 11, 22, 28], strides = [1, 1, 1, 1]} : vector<2x11x24x28xbf16> to vector<2x11x22x28xbf16>
    %31 = vector.extract_strided_slice %29 {offsets = [0, 0, 1, 0], sizes = [2, 11, 22, 28], strides = [1, 1, 1, 1]} : vector<2x11x24x28xbf16> to vector<2x11x22x28xbf16>
    %32 = arith.maximumf %30, %31 : vector<2x11x22x28xbf16>
    %33 = vector.extract_strided_slice %29 {offsets = [0, 0, 2, 0], sizes = [2, 11, 22, 28], strides = [1, 1, 1, 1]} : vector<2x11x24x28xbf16> to vector<2x11x22x28xbf16>
    %34 = arith.maximumf %32, %33 : vector<2x11x22x28xbf16>
    %35 = vector.extract_strided_slice %34 {offsets = [0, 0, 0, 0], sizes = [2, 11, 1, 28], strides = [1, 1, 1, 1]} : vector<2x11x22x28xbf16> to vector<2x11x1x28xbf16>
    %36 = vector.extract_strided_slice %34 {offsets = [0, 0, 2, 0], sizes = [2, 11, 1, 28], strides = [1, 1, 1, 1]} : vector<2x11x22x28xbf16> to vector<2x11x1x28xbf16>
    %37 = vector.extract_strided_slice %34 {offsets = [0, 0, 4, 0], sizes = [2, 11, 1, 28], strides = [1, 1, 1, 1]} : vector<2x11x22x28xbf16> to vector<2x11x1x28xbf16>
    %38 = vector.extract_strided_slice %34 {offsets = [0, 0, 6, 0], sizes = [2, 11, 1, 28], strides = [1, 1, 1, 1]} : vector<2x11x22x28xbf16> to vector<2x11x1x28xbf16>
    %39 = vector.extract_strided_slice %34 {offsets = [0, 0, 8, 0], sizes = [2, 11, 1, 28], strides = [1, 1, 1, 1]} : vector<2x11x22x28xbf16> to vector<2x11x1x28xbf16>
    %40 = vector.extract_strided_slice %34 {offsets = [0, 0, 10, 0], sizes = [2, 11, 1, 28], strides = [1, 1, 1, 1]} : vector<2x11x22x28xbf16> to vector<2x11x1x28xbf16>
    %41 = vector.extract_strided_slice %34 {offsets = [0, 0, 12, 0], sizes = [2, 11, 1, 28], strides = [1, 1, 1, 1]} : vector<2x11x22x28xbf16> to vector<2x11x1x28xbf16>
    %42 = vector.extract_strided_slice %34 {offsets = [0, 0, 14, 0], sizes = [2, 11, 1, 28], strides = [1, 1, 1, 1]} : vector<2x11x22x28xbf16> to vector<2x11x1x28xbf16>
    %43 = vector.extract_strided_slice %34 {offsets = [0, 0, 16, 0], sizes = [2, 11, 1, 28], strides = [1, 1, 1, 1]} : vector<2x11x22x28xbf16> to vector<2x11x1x28xbf16>
    %44 = vector.extract_strided_slice %34 {offsets = [0, 0, 18, 0], sizes = [2, 11, 1, 28], strides = [1, 1, 1, 1]} : vector<2x11x22x28xbf16> to vector<2x11x1x28xbf16>
    %45 = vector.extract_strided_slice %34 {offsets = [0, 0, 20, 0], sizes = [2, 11, 1, 28], strides = [1, 1, 1, 1]} : vector<2x11x22x28xbf16> to vector<2x11x1x28xbf16>
    %46 = vector.extract_strided_slice %34 {offsets = [0, 0, 0, 0], sizes = [2, 11, 1, 28], strides = [1, 1, 1, 1]} : vector<2x11x22x28xbf16> to vector<2x11x1x28xbf16>
    %47 = tpu.concatenate %35, %36, %37, %38, %39, %40, %41, %42, %43, %44, %45, %46 in 2 : vector<2x11x1x28xbf16>, vector<2x11x1x28xbf16>, vector<2x11x1x28xbf16>, vector<2x11x1x28xbf16>, vector<2x11x1x28xbf16>, vector<2x11x1x28xbf16>, vector<2x11x1x28xbf16>, vector<2x11x1x28xbf16>, vector<2x11x1x28xbf16>, vector<2x11x1x28xbf16>, vector<2x11x1x28xbf16>, vector<2x11x1x28xbf16> -> vector<2x11x12x28xbf16>
    %c0_8 = arith.constant 0 : index
    %c0_9 = arith.constant 0 : index
    %c0_10 = arith.constant 0 : index
    %c0_11 = arith.constant 0 : index
    %48 = vector.load %arg14[%c0_8, %c0_9, %c0_10, %c0_11] : memref<2x11x24x28xbf16, #tpu.memory_space<vmem>>, vector<2x11x12x28xbf16>
    tpu.vector_store %arg14[%c0_8, %c0_9, %c0_10, %c0_11], %47 {strides = array<i32>} : memref<2x11x24x28xbf16, #tpu.memory_space<vmem>>, vector<2x11x12x28xbf16>,
    %c0_12 = arith.constant 0 : index
    %c0_13 = arith.constant 0 : index
    %c0_14 = arith.constant 0 : index
    %c0_15 = arith.constant 0 : index
    %49 = vector.load %arg14[%c0_12, %c0_13, %c0_14, %c0_15] : memref<2x11x24x28xbf16, #tpu.memory_space<vmem>>, vector<2x9x16x28xbf16>
    %c0_16 = arith.constant 0 : index
    %c0_17 = arith.constant 0 : index
    %c1_18 = arith.constant 1 : index
    %c0_19 = arith.constant 0 : index
    %50 = vector.load %arg14[%c0_16, %c0_17, %c1_18, %c0_19] : memref<2x11x24x28xbf16, #tpu.memory_space<vmem>>, vector<2x9x16x28xbf16>
    %c0_20 = arith.constant 0 : index
    %c0_21 = arith.constant 0 : index
    %c2_22 = arith.constant 2 : index
    %c0_23 = arith.constant 0 : index
    %51 = vector.load %arg14[%c0_20, %c0_21, %c2_22, %c0_23] : memref<2x11x24x28xbf16, #tpu.memory_space<vmem>>, vector<2x9x16x28xbf16>
    %c0_24 = arith.constant 0 : index
    %c1_25 = arith.constant 1 : index
    %c0_26 = arith.constant 0 : index
    %c0_27 = arith.constant 0 : index
    %52 = vector.load %arg14[%c0_24, %c1_25, %c0_26, %c0_27] : memref<2x11x24x28xbf16, #tpu.memory_space<vmem>>, vector<2x9x16x28xbf16>
    %c0_28 = arith.constant 0 : index
    %c1_29 = arith.constant 1 : index
    %c1_30 = arith.constant 1 : index
    %c0_31 = arith.constant 0 : index
    %53 = vector.load %arg14[%c0_28, %c1_29, %c1_30, %c0_31] : memref<2x11x24x28xbf16, #tpu.memory_space<vmem>>, vector<2x9x16x28xbf16>
    %c0_32 = arith.constant 0 : index
    %c1_33 = arith.constant 1 : index
    %c2_34 = arith.constant 2 : index
    %c0_35 = arith.constant 0 : index
    %54 = vector.load %arg14[%c0_32, %c1_33, %c2_34, %c0_35] : memref<2x11x24x28xbf16, #tpu.memory_space<vmem>>, vector<2x9x16x28xbf16>
    %c0_36 = arith.constant 0 : index
    %c2_37 = arith.constant 2 : index
    %c0_38 = arith.constant 0 : index
    %c0_39 = arith.constant 0 : index
    %55 = vector.load %arg14[%c0_36, %c2_37, %c0_38, %c0_39] : memref<2x11x24x28xbf16, #tpu.memory_space<vmem>>, vector<2x9x16x28xbf16>
    %c0_40 = arith.constant 0 : index
    %c2_41 = arith.constant 2 : index
    %c1_42 = arith.constant 1 : index
    %c0_43 = arith.constant 0 : index
    %56 = vector.load %arg14[%c0_40, %c2_41, %c1_42, %c0_43] : memref<2x11x24x28xbf16, #tpu.memory_space<vmem>>, vector<2x9x16x28xbf16>
    %c0_44 = arith.constant 0 : index
    %c2_45 = arith.constant 2 : index
    %c2_46 = arith.constant 2 : index
    %c0_47 = arith.constant 0 : index
    %57 = vector.load %arg14[%c0_44, %c2_45, %c2_46, %c0_47] : memref<2x11x24x28xbf16, #tpu.memory_space<vmem>>, vector<2x9x16x28xbf16>
    %58 = tpu.concatenate %49, %50, %51, %52, %53, %54, %55, %56, %57 in 3 : vector<2x9x16x28xbf16>, vector<2x9x16x28xbf16>, vector<2x9x16x28xbf16>, vector<2x9x16x28xbf16>, vector<2x9x16x28xbf16>, vector<2x9x16x28xbf16>, vector<2x9x16x28xbf16>, vector<2x9x16x28xbf16>, vector<2x9x16x28xbf16> -> vector<2x9x16x252xbf16>
    %59 = vector.shape_cast %58 : vector<2x9x16x252xbf16> to vector<288x252xbf16>
    %c0_48 = arith.constant 0 : index
    %c0_49 = arith.constant 0 : index
    %60 = vector.load %arg5[%c0_48, %c0_49] : memref<252x48xbf16, #tpu.memory_space<vmem>>, vector<252x48xbf16>
    %cst_50 = arith.constant dense<0.000000e+00> : vector<288x48xf32>
    %61 = tpu.matmul %59, %60, %cst_50 {dimension_numbers = #tpu.dot_dimension_numbers<[1], [0], [0], [1], [0, 0, 1, 1], [], []>} : vector<288x252xbf16>, vector<252x48xbf16>, vector<288x48xf32> -> vector<288x48xf32>
    %c0_51 = arith.constant 0 : index
    %c0_52 = arith.constant 0 : index
    %62 = vector.load %arg6[%c0_51, %c0_52] : memref<1x48xf32, #tpu.memory_space<vmem>>, vector<1x48xf32>
    %63 = vector.broadcast %62 : vector<1x48xf32> to vector<288x48xf32>
    %64 = arith.addf %61, %63 : vector<288x48xf32>
    %cst_53 = arith.constant 0.000000e+00 : f32
    %65 = vector.broadcast %cst_53 : f32 to vector<288x48xf32>
    %66 = arith.cmpf oge, %64, %65 : vector<288x48xf32>
    %67 = vector.broadcast %1 : f32 to vector<288x48xf32>
    %68 = arith.mulf %67, %64 : vector<288x48xf32>
    %69 = arith.select %66, %64, %68 : vector<288x48xi1>, vector<288x48xf32>
    %70 = vector.shape_cast %69 : vector<288x48xf32> to vector<2x9x16x48xf32>
    %71 = arith.truncf %70 : vector<2x9x16x48xf32> to vector<2x9x16x48xbf16>
    %72 = vector.extract_strided_slice %71 {offsets = [0, 0, 0, 0], sizes = [2, 8, 16, 48], strides = [1, 1, 1, 1]} : vector<2x9x16x48xbf16> to vector<2x8x16x48xbf16>
    %73 = vector.shape_cast %72 : vector<2x8x16x48xbf16> to vector<2x4x2x16x48xbf16>
    %74 = vector.extract_strided_slice %71 {offsets = [0, 1, 0, 0], sizes = [2, 8, 16, 48], strides = [1, 1, 1, 1]} : vector<2x9x16x48xbf16> to vector<2x8x16x48xbf16>
    %75 = vector.shape_cast %74 : vector<2x8x16x48xbf16> to vector<2x4x2x16x48xbf16>
    %76 = vector.extract_strided_slice %73 {offsets = [0, 0, 0, 0, 0], sizes = [2, 4, 1, 16, 48], strides = [1, 1, 1, 1, 1]} : vector<2x4x2x16x48xbf16> to vector<2x4x1x16x48xbf16>
    %77 = vector.shape_cast %76 : vector<2x4x1x16x48xbf16> to vector<2x4x16x48xbf16>
    %78 = vector.extract_strided_slice %73 {offsets = [0, 0, 1, 0, 0], sizes = [2, 4, 1, 16, 48], strides = [1, 1, 1, 1, 1]} : vector<2x4x2x16x48xbf16> to vector<2x4x1x16x48xbf16>
    %79 = vector.shape_cast %78 : vector<2x4x1x16x48xbf16> to vector<2x4x16x48xbf16>
    %80 = arith.maximumf %77, %79 : vector<2x4x16x48xbf16>
    %81 = vector.extract_strided_slice %75 {offsets = [0, 0, 1, 0, 0], sizes = [2, 4, 1, 16, 48], strides = [1, 1, 1, 1, 1]} : vector<2x4x2x16x48xbf16> to vector<2x4x1x16x48xbf16>
    %82 = vector.shape_cast %81 : vector<2x4x1x16x48xbf16> to vector<2x4x16x48xbf16>
    %83 = arith.maximumf %80, %82 : vector<2x4x16x48xbf16>
    %84 = vector.extract_strided_slice %83 {offsets = [0, 0, 0, 0], sizes = [2, 4, 7, 48], strides = [1, 1, 1, 1]} : vector<2x4x16x48xbf16> to vector<2x4x7x48xbf16>
    %85 = vector.extract_strided_slice %83 {offsets = [0, 0, 1, 0], sizes = [2, 4, 7, 48], strides = [1, 1, 1, 1]} : vector<2x4x16x48xbf16> to vector<2x4x7x48xbf16>
    %86 = arith.maximumf %84, %85 : vector<2x4x7x48xbf16>
    %87 = vector.extract_strided_slice %83 {offsets = [0, 0, 2, 0], sizes = [2, 4, 7, 48], strides = [1, 1, 1, 1]} : vector<2x4x16x48xbf16> to vector<2x4x7x48xbf16>
    %88 = arith.maximumf %86, %87 : vector<2x4x7x48xbf16>
    %89 = vector.extract_strided_slice %88 {offsets = [0, 0, 0, 0], sizes = [2, 4, 1, 48], strides = [1, 1, 1, 1]} : vector<2x4x7x48xbf16> to vector<2x4x1x48xbf16>
    %90 = vector.extract_strided_slice %88 {offsets = [0, 0, 2, 0], sizes = [2, 4, 1, 48], strides = [1, 1, 1, 1]} : vector<2x4x7x48xbf16> to vector<2x4x1x48xbf16>
    %91 = vector.extract_strided_slice %88 {offsets = [0, 0, 4, 0], sizes = [2, 4, 1, 48], strides = [1, 1, 1, 1]} : vector<2x4x7x48xbf16> to vector<2x4x1x48xbf16>
    %92 = vector.extract_strided_slice %88 {offsets = [0, 0, 6, 0], sizes = [2, 4, 1, 48], strides = [1, 1, 1, 1]} : vector<2x4x7x48xbf16> to vector<2x4x1x48xbf16>
    %93 = tpu.concatenate %89, %90, %91, %92 in 2 : vector<2x4x1x48xbf16>, vector<2x4x1x48xbf16>, vector<2x4x1x48xbf16>, vector<2x4x1x48xbf16> -> vector<2x4x4x48xbf16>
    %c0_54 = arith.constant 0 : index
    %c0_55 = arith.constant 0 : index
    %c0_56 = arith.constant 0 : index
    %c0_57 = arith.constant 0 : index
    %94 = vector.load %arg15[%c0_54, %c0_55, %c0_56, %c0_57] : memref<2x4x24x48xbf16, #tpu.memory_space<vmem>>, vector<2x4x4x48xbf16>
    tpu.vector_store %arg15[%c0_54, %c0_55, %c0_56, %c0_57], %93 {strides = array<i32>} : memref<2x4x24x48xbf16, #tpu.memory_space<vmem>>, vector<2x4x4x48xbf16>,
    %c0_58 = arith.constant 0 : index
    %c0_59 = arith.constant 0 : index
    %c0_60 = arith.constant 0 : index
    %c0_61 = arith.constant 0 : index
    %95 = vector.load %arg15[%c0_58, %c0_59, %c0_60, %c0_61] : memref<2x4x24x48xbf16, #tpu.memory_space<vmem>>, vector<2x3x16x48xbf16>
    %c0_62 = arith.constant 0 : index
    %c0_63 = arith.constant 0 : index
    %c1_64 = arith.constant 1 : index
    %c0_65 = arith.constant 0 : index
    %96 = vector.load %arg15[%c0_62, %c0_63, %c1_64, %c0_65] : memref<2x4x24x48xbf16, #tpu.memory_space<vmem>>, vector<2x3x16x48xbf16>
    %c0_66 = arith.constant 0 : index
    %c1_67 = arith.constant 1 : index
    %c0_68 = arith.constant 0 : index
    %c0_69 = arith.constant 0 : index
    %97 = vector.load %arg15[%c0_66, %c1_67, %c0_68, %c0_69] : memref<2x4x24x48xbf16, #tpu.memory_space<vmem>>, vector<2x3x16x48xbf16>
    %c0_70 = arith.constant 0 : index
    %c1_71 = arith.constant 1 : index
    %c1_72 = arith.constant 1 : index
    %c0_73 = arith.constant 0 : index
    %98 = vector.load %arg15[%c0_70, %c1_71, %c1_72, %c0_73] : memref<2x4x24x48xbf16, #tpu.memory_space<vmem>>, vector<2x3x16x48xbf16>
    %99 = tpu.concatenate %95, %96, %97, %98 in 3 : vector<2x3x16x48xbf16>, vector<2x3x16x48xbf16>, vector<2x3x16x48xbf16>, vector<2x3x16x48xbf16> -> vector<2x3x16x192xbf16>
    %100 = vector.shape_cast %99 : vector<2x3x16x192xbf16> to vector<96x192xbf16>
    %c0_74 = arith.constant 0 : index
    %c0_75 = arith.constant 0 : index
    %101 = vector.load %arg7[%c0_74, %c0_75] : memref<192x64xbf16, #tpu.memory_space<vmem>>, vector<192x64xbf16>
    %cst_76 = arith.constant dense<0.000000e+00> : vector<96x64xf32>
    %102 = tpu.matmul %100, %101, %cst_76 {dimension_numbers = #tpu.dot_dimension_numbers<[1], [0], [0], [1], [0, 0, 1, 1], [], []>} : vector<96x192xbf16>, vector<192x64xbf16>, vector<96x64xf32> -> vector<96x64xf32>
    %c0_77 = arith.constant 0 : index
    %c0_78 = arith.constant 0 : index
    %103 = vector.load %arg8[%c0_77, %c0_78] : memref<1x64xf32, #tpu.memory_space<vmem>>, vector<1x64xf32>
    %104 = vector.broadcast %103 : vector<1x64xf32> to vector<96x64xf32>
    %105 = arith.addf %102, %104 : vector<96x64xf32>
    %cst_79 = arith.constant 0.000000e+00 : f32
    %106 = vector.broadcast %cst_79 : f32 to vector<96x64xf32>
    %107 = arith.cmpf oge, %105, %106 : vector<96x64xf32>
    %108 = vector.broadcast %2 : f32 to vector<96x64xf32>
    %109 = arith.mulf %108, %105 : vector<96x64xf32>
    %110 = arith.select %107, %105, %109 : vector<96x64xi1>, vector<96x64xf32>
    %111 = vector.shape_cast %110 : vector<96x64xf32> to vector<2x3x16x64xf32>
    %112 = arith.truncf %111 : vector<2x3x16x64xf32> to vector<2x3x16x64xbf16>
    %113 = vector.extract_strided_slice %112 {offsets = [0, 0, 0, 0], sizes = [2, 1, 1, 64], strides = [1, 1, 1, 1]} : vector<2x3x16x64xbf16> to vector<2x1x1x64xbf16>
    %114 = vector.shape_cast %113 : vector<2x1x1x64xbf16> to vector<2x64xbf16>
    %115 = vector.extract_strided_slice %112 {offsets = [0, 0, 1, 0], sizes = [2, 1, 1, 64], strides = [1, 1, 1, 1]} : vector<2x3x16x64xbf16> to vector<2x1x1x64xbf16>
    %116 = vector.shape_cast %115 : vector<2x1x1x64xbf16> to vector<2x64xbf16>
    %117 = vector.extract_strided_slice %112 {offsets = [0, 0, 2, 0], sizes = [2, 1, 1, 64], strides = [1, 1, 1, 1]} : vector<2x3x16x64xbf16> to vector<2x1x1x64xbf16>
    %118 = vector.shape_cast %117 : vector<2x1x1x64xbf16> to vector<2x64xbf16>
    %119 = vector.extract_strided_slice %112 {offsets = [0, 1, 0, 0], sizes = [2, 1, 1, 64], strides = [1, 1, 1, 1]} : vector<2x3x16x64xbf16> to vector<2x1x1x64xbf16>
    %120 = vector.shape_cast %119 : vector<2x1x1x64xbf16> to vector<2x64xbf16>
    %121 = vector.extract_strided_slice %112 {offsets = [0, 1, 1, 0], sizes = [2, 1, 1, 64], strides = [1, 1, 1, 1]} : vector<2x3x16x64xbf16> to vector<2x1x1x64xbf16>
    %122 = vector.shape_cast %121 : vector<2x1x1x64xbf16> to vector<2x64xbf16>
    %123 = vector.extract_strided_slice %112 {offsets = [0, 1, 2, 0], sizes = [2, 1, 1, 64], strides = [1, 1, 1, 1]} : vector<2x3x16x64xbf16> to vector<2x1x1x64xbf16>
    %124 = vector.shape_cast %123 : vector<2x1x1x64xbf16> to vector<2x64xbf16>
    %125 = vector.extract_strided_slice %112 {offsets = [0, 2, 0, 0], sizes = [2, 1, 1, 64], strides = [1, 1, 1, 1]} : vector<2x3x16x64xbf16> to vector<2x1x1x64xbf16>
    %126 = vector.shape_cast %125 : vector<2x1x1x64xbf16> to vector<2x64xbf16>
    %127 = vector.extract_strided_slice %112 {offsets = [0, 2, 1, 0], sizes = [2, 1, 1, 64], strides = [1, 1, 1, 1]} : vector<2x3x16x64xbf16> to vector<2x1x1x64xbf16>
    %128 = vector.shape_cast %127 : vector<2x1x1x64xbf16> to vector<2x64xbf16>
    %129 = vector.extract_strided_slice %112 {offsets = [0, 2, 2, 0], sizes = [2, 1, 1, 64], strides = [1, 1, 1, 1]} : vector<2x3x16x64xbf16> to vector<2x1x1x64xbf16>
    %130 = vector.shape_cast %129 : vector<2x1x1x64xbf16> to vector<2x64xbf16>
    %131 = tpu.concatenate %114, %116, %118, %120, %122, %124, %126, %128, %130 in 1 : vector<2x64xbf16>, vector<2x64xbf16>, vector<2x64xbf16>, vector<2x64xbf16>, vector<2x64xbf16>, vector<2x64xbf16>, vector<2x64xbf16>, vector<2x64xbf16>, vector<2x64xbf16> -> vector<2x576xbf16>
    %c0_80 = arith.constant 0 : index
    %c0_81 = arith.constant 0 : index
    %132 = vector.load %arg9[%c0_80, %c0_81] : memref<576x128xbf16, #tpu.memory_space<vmem>>, vector<576x128xbf16>
    %cst_82 = arith.constant dense<0.000000e+00> : vector<2x128xf32>
    %133 = tpu.matmul %131, %132, %cst_82 {dimension_numbers = #tpu.dot_dimension_numbers<[1], [0], [0], [1], [0, 0, 1, 1], [], []>} : vector<2x576xbf16>, vector<576x128xbf16>, vector<2x128xf32> -> vector<2x128xf32>
    %c0_83 = arith.constant 0 : index
    %c0_84 = arith.constant 0 : index
    %134 = vector.load %arg10[%c0_83, %c0_84] : memref<1x128xf32, #tpu.memory_space<vmem>>, vector<1x128xf32>
    %135 = vector.broadcast %134 : vector<1x128xf32> to vector<2x128xf32>
    %136 = arith.addf %133, %135 : vector<2x128xf32>
    %cst_85 = arith.constant 0.000000e+00 : f32
    %137 = vector.broadcast %cst_85 : f32 to vector<2x128xf32>
    %138 = arith.cmpf oge, %136, %137 : vector<2x128xf32>
    %139 = vector.broadcast %3 : f32 to vector<2x128xf32>
    %140 = arith.mulf %139, %136 : vector<2x128xf32>
    %141 = arith.select %138, %136, %140 : vector<2x128xi1>, vector<2x128xf32>
    %142 = arith.truncf %141 : vector<2x128xf32> to vector<2x128xbf16>
    %c0_86 = arith.constant 0 : index
    %c0_87 = arith.constant 0 : index
    %143 = vector.load %arg11[%c0_86, %c0_87] : memref<128x8xbf16, #tpu.memory_space<vmem>>, vector<128x8xbf16>
    %cst_88 = arith.constant dense<0.000000e+00> : vector<2x8xf32>
    %144 = tpu.matmul %142, %143, %cst_88 {dimension_numbers = #tpu.dot_dimension_numbers<[1], [0], [0], [1], [0, 0, 1, 1], [], []>} : vector<2x128xbf16>, vector<128x8xbf16>, vector<2x8xf32> -> vector<2x8xf32>
    %c0_89 = arith.constant 0 : index
    %c0_90 = arith.constant 0 : index
    %145 = vector.load %arg12[%c0_89, %c0_90] : memref<1x8xf32, #tpu.memory_space<vmem>>, vector<1x8xf32>
    %146 = vector.broadcast %145 : vector<1x8xf32> to vector<2x8xf32>
    %147 = arith.addf %144, %146 : vector<2x8xf32>
    %148 = tpu.iota {dimensions = array<i32: 1>} : vector<2x8xi32>
    %c0_i32_91 = arith.constant 0 : i32
    %149 = vector.broadcast %c0_i32_91 : i32 to vector<2x8xi32>
    %150 = arith.cmpi eq, %148, %149 : vector<2x8xi32>
    %151 = arith.negf %147 : vector<2x8xf32>
    %152 = math.exp %151 : vector<2x8xf32>
    %cst_92 = arith.constant 1.000000e+00 : f32
    %153 = vector.broadcast %cst_92 : f32 to vector<2x8xf32>
    %154 = arith.addf %153, %152 : vector<2x8xf32>
    %155 = arith.divf %153, %154 : vector<2x8xf32>
    %156 = arith.select %150, %155, %147 : vector<2x8xi1>, vector<2x8xf32>
    %c0_93 = arith.constant 0 : index
    %c0_94 = arith.constant 0 : index
    %157 = vector.load %arg13[%c0_93, %c0_94] : memref<2x8xf32, #tpu.memory_space<vmem>>, vector<2x8xf32>
    tpu.vector_store %arg13[%c0_93, %c0_94], %156 {strides = array<i32>} : memref<2x8xf32, #tpu.memory_space<vmem>>, vector<2x8xf32>,
    return
  }
  func.func @transform_0(%arg0: i32) -> i32 {
    %c0_i32 = arith.constant 0 : i32
    %c0_i32_0 = arith.constant 0 : i32
    return %c0_i32 : i32
  }
  func.func @transform_1(%arg0: i32) -> (i32, i32) {
    %c0_i32 = arith.constant 0 : i32
    %c0_i32_0 = arith.constant 0 : i32
    return %arg0, %c0_i32 : i32, i32
  }
  func.func @transform_2(%arg0: i32) -> (i32, i32) {
    %c0_i32 = arith.constant 0 : i32
    %c0_i32_0 = arith.constant 0 : i32
    %c0_i32_1 = arith.constant 0 : i32
    return %c0_i32, %c0_i32_0 : i32, i32
  }
  func.func @transform_3(%arg0: i32) -> (i32, i32) {
    %c0_i32 = arith.constant 0 : i32
    %c0_i32_0 = arith.constant 0 : i32
    %c0_i32_1 = arith.constant 0 : i32
    return %c0_i32, %c0_i32_0 : i32, i32
  }
  func.func @transform_4(%arg0: i32) -> (i32, i32) {
    %c0_i32 = arith.constant 0 : i32
    %c0_i32_0 = arith.constant 0 : i32
    %c0_i32_1 = arith.constant 0 : i32
    return %c0_i32, %c0_i32_0 : i32, i32
  }
  func.func @transform_5(%arg0: i32) -> (i32, i32) {
    %c0_i32 = arith.constant 0 : i32
    %c0_i32_0 = arith.constant 0 : i32
    %c0_i32_1 = arith.constant 0 : i32
    return %c0_i32, %c0_i32_0 : i32, i32
  }
  func.func @transform_6(%arg0: i32) -> (i32, i32) {
    %c0_i32 = arith.constant 0 : i32
    %c0_i32_0 = arith.constant 0 : i32
    %c0_i32_1 = arith.constant 0 : i32
    return %c0_i32, %c0_i32_0 : i32, i32
  }
  func.func @transform_7(%arg0: i32) -> (i32, i32) {
    %c0_i32 = arith.constant 0 : i32
    %c0_i32_0 = arith.constant 0 : i32
    %c0_i32_1 = arith.constant 0 : i32
    return %c0_i32, %c0_i32_0 : i32, i32
  }
  func.func @transform_8(%arg0: i32) -> (i32, i32) {
    %c0_i32 = arith.constant 0 : i32
    %c0_i32_0 = arith.constant 0 : i32
    %c0_i32_1 = arith.constant 0 : i32
    return %c0_i32, %c0_i32_0 : i32, i32
  }
  func.func @transform_9(%arg0: i32) -> (i32, i32) {
    %c0_i32 = arith.constant 0 : i32
    %c0_i32_0 = arith.constant 0 : i32
    %c0_i32_1 = arith.constant 0 : i32
    return %c0_i32, %c0_i32_0 : i32, i32
  }
  func.func @transform_10(%arg0: i32) -> (i32, i32) {
    %c0_i32 = arith.constant 0 : i32
    %c0_i32_0 = arith.constant 0 : i32
    %c0_i32_1 = arith.constant 0 : i32
    return %c0_i32, %c0_i32_0 : i32, i32
  }
  func.func @transform_11(%arg0: i32) -> (i32, i32) {
    %c0_i32 = arith.constant 0 : i32
    %c0_i32_0 = arith.constant 0 : i32
    %c0_i32_1 = arith.constant 0 : i32
    return %c0_i32, %c0_i32_0 : i32, i32
  }
  func.func @transform_12(%arg0: i32) -> (i32, i32) {
    %c0_i32 = arith.constant 0 : i32
    %c0_i32_0 = arith.constant 0 : i32
    return %arg0, %c0_i32 : i32, i32
  }
}

</mosaic_0001>

<llo_original>
// kernel: tpu_custom_call.1
$region0: #{tpu_custom_call.1}
  #allocation0 [shape = 'u32[]', space=smem, size = 0x4, offset = 0x4, fixed_abs, tag = 'smem constant byte address 0x4 - core index']
  #allocation1 [shape = 'u32[144,128]{1,0:T(1,128)}', space=vmem, size = 0x12000, scoped, tag = 'internal scratch']
  #allocation2 [shape = 'bf16[2,11,24,28]{3,2,1,0:T(8,128)(2,1)}', space=vmem, size = 0x21000, scoped, tag = 'scratch operand']
  #allocation3 [shape = 'bf16[2,4,24,48]{3,2,1,0:T(8,128)(2,1)}', space=vmem, size = 0xc000, scoped, tag = 'scratch operand']
  %s0 = inlined_call_operand.vmem [shape: f32[4], index: 0, kind: input, shape index: {}]
  %s1 = inlined_call_operand.vmem [shape: bf16[1152,27], index: 1, kind: input, shape index: {}]
  %s2 = inlined_call_operand.vmem [shape: bf16[27,28], index: 2, kind: input, shape index: {}]
  %s3 = inlined_call_operand.vmem [shape: f32[1,28], index: 3, kind: input, shape index: {}]
  %s4 = inlined_call_operand.vmem [shape: bf16[252,48], index: 4, kind: input, shape index: {}]
  %s5 = inlined_call_operand.vmem [shape: f32[1,48], index: 5, kind: input, shape index: {}]
  %s6 = inlined_call_operand.vmem [shape: bf16[192,64], index: 6, kind: input, shape index: {}]
  %s7 = inlined_call_operand.vmem [shape: f32[1,64], index: 7, kind: input, shape index: {}]
  %s8 = inlined_call_operand.vmem [shape: bf16[576,128], index: 8, kind: input, shape index: {}]
  %s9 = inlined_call_operand.vmem [shape: f32[1,128], index: 9, kind: input, shape index: {}]
  %s10 = inlined_call_operand.vmem [shape: bf16[128,8], index: 10, kind: input, shape index: {}]
  %s11 = inlined_call_operand.vmem [shape: f32[1,8], index: 11, kind: input, shape index: {}]
  %s12 = inlined_call_operand.hbm [shape: f32[2,8], index: 12, kind: output, shape index: {}]
  %s13 = sld [smem:[#allocation0]]
  $region66: #{tpu_custom_call.1} parent=0
    _
  %s15 = ssub.s32 1, %s13
  %s16 = scalar_select 0, %s15, %s13
  $region1: #{tpu_custom_call.1} parent=0
    #allocation4 [shape = 'u8[512]{0}', space=smem, size = 0x200, scoped, tag = 'input window, operand 0, single buffered']
    #allocation5 [shape = 's32[1]{0}', space=sflag, size = 0x4, scoped, tag = 'scoped memory for tpu_custom_call.1']
    #allocation6 [shape = 's32[1]{0}', space=sflag, size = 0x4, scoped, tag = 'scoped memory for tpu_custom_call.1']
    #allocation7 [shape = 'u8[1024]{0}', space=vmem, size = 0x400, scoped, tag = 'output window, operand 0, single buffered']
    %17 = vsyncpa [#allocation6], 0
    %18 = vsyncpa [#allocation5], 0
    // Predicated region
    $region2: #{tpu_custom_call.1} parent=1 // pred_check
      _
    $region3: #{tpu_custom_call.1} parent=1 // pred_check_branch
      %20 = sbr.rel (0) target = $region5
    $region4: #{tpu_custom_call.1} parent=1 // pred_region
      %s22 = ssub.s32 16, 16
      %23 = vsyncadd [#allocation6], %s22
      %s25 = sshll.u32 %s0, 4
      %s26 = int_to_ptr.vmem [resolvable:$true] %s25
      %28 = dma.vmem_to_smem %s26, 16, [#allocation4], [#allocation6]
    $region5: #{tpu_custom_call.1} parent=1 // pred_fallthru
      _
    // Predicated region
    $region6: #{tpu_custom_call.1} parent=1 // pred_check
      _
    $region7: #{tpu_custom_call.1} parent=1 // pred_check_branch
      %30 = sbr.rel (0) target = $region9
    $region8: #{tpu_custom_call.1} parent=1 // pred_region
      _
    $region9: #{tpu_custom_call.1} parent=1 // pred_fallthru
      _
    // Predicated region
    $region10: #{tpu_custom_call.1} parent=1 // pred_check
      _
    $region11: #{tpu_custom_call.1} parent=1 // pred_check_branch
      %32 = sbr.rel (0) target = $region13
    $region12: #{tpu_custom_call.1} parent=1 // pred_region
      _
    $region13: #{tpu_custom_call.1} parent=1 // pred_fallthru
      _
    // Predicated region
    $region14: #{tpu_custom_call.1} parent=1 // pred_check
      _
    $region15: #{tpu_custom_call.1} parent=1 // pred_check_branch
      %34 = sbr.rel (0) target = $region17
    $region16: #{tpu_custom_call.1} parent=1 // pred_region
      _
    $region17: #{tpu_custom_call.1} parent=1 // pred_fallthru
      _
    // Predicated region
    $region18: #{tpu_custom_call.1} parent=1 // pred_check
      _
    $region19: #{tpu_custom_call.1} parent=1 // pred_check_branch
      %36 = sbr.rel (0) target = $region21
    $region20: #{tpu_custom_call.1} parent=1 // pred_region
      _
    $region21: #{tpu_custom_call.1} parent=1 // pred_fallthru
      _
    // Predicated region
    $region22: #{tpu_custom_call.1} parent=1 // pred_check
      _
    $region23: #{tpu_custom_call.1} parent=1 // pred_check_branch
      %38 = sbr.rel (0) target = $region25
    $region24: #{tpu_custom_call.1} parent=1 // pred_region
      _
    $region25: #{tpu_custom_call.1} parent=1 // pred_fallthru
      _
    // Predicated region
    $region26: #{tpu_custom_call.1} parent=1 // pred_check
      _
    $region27: #{tpu_custom_call.1} parent=1 // pred_check_branch
      %40 = sbr.rel (0) target = $region29
    $region28: #{tpu_custom_call.1} parent=1 // pred_region
      _
    $region29: #{tpu_custom_call.1} parent=1 // pred_fallthru
      _
    // Predicated region
    $region30: #{tpu_custom_call.1} parent=1 // pred_check
      _
    $region31: #{tpu_custom_call.1} parent=1 // pred_check_branch
      %42 = sbr.rel (0) target = $region33
    $region32: #{tpu_custom_call.1} parent=1 // pred_region
      _
    $region33: #{tpu_custom_call.1} parent=1 // pred_fallthru
      _
    // Predicated region
    $region34: #{tpu_custom_call.1} parent=1 // pred_check
      _
    $region35: #{tpu_custom_call.1} parent=1 // pred_check_branch
      %44 = sbr.rel (0) target = $region37
    $region36: #{tpu_custom_call.1} parent=1 // pred_region
      _
    $region37: #{tpu_custom_call.1} parent=1 // pred_fallthru
      _
    // Predicated region
    $region38: #{tpu_custom_call.1} parent=1 // pred_check
      _
    $region39: #{tpu_custom_call.1} parent=1 // pred_check_branch
      %46 = sbr.rel (0) target = $region41
    $region40: #{tpu_custom_call.1} parent=1 // pred_region
      _
    $region41: #{tpu_custom_call.1} parent=1 // pred_fallthru
      _
    // Predicated region
    $region42: #{tpu_custom_call.1} parent=1 // pred_check
      _
    $region43: #{tpu_custom_call.1} parent=1 // pred_check_branch
      %48 = sbr.rel (0) target = $region45
    $region44: #{tpu_custom_call.1} parent=1 // pred_region
      _
    $region45: #{tpu_custom_call.1} parent=1 // pred_fallthru
      _
    // Predicated region
    $region46: #{tpu_custom_call.1} parent=1 // pred_check
      _
    $region47: #{tpu_custom_call.1} parent=1 // pred_check_branch
      %50 = sbr.rel (0) target = $region49
    $region48: #{tpu_custom_call.1} parent=1 // pred_region
      _
    $region49: #{tpu_custom_call.1} parent=1 // pred_fallthru
      _
    // Predicated region
    $region50: #{tpu_custom_call.1} parent=1 // pred_check
      _
    $region51: #{tpu_custom_call.1} parent=1 // pred_check_branch
      %52 = sbr.rel (0) target = $region53
    $region52: #{tpu_custom_call.1} parent=1 // pred_region
      %53 = dma.done [#allocation6], 16
    $region53: #{tpu_custom_call.1} parent=1 // pred_fallthru
      _
    %54 = sfence
    %s56 = sld [smem:[#allocation4]]
    %s57 = sld [smem:[#allocation4 + $0x1]]
    %s58 = sld [smem:[#allocation4 + $0x2]]
    %s59 = sld [smem:[#allocation4 + $0x3]]
    %p60 = scmp.eq.s32.totalorder 0, 0
    // Predicated region
    $region54: #{tpu_custom_call.1} parent=1 // pred_check
      %p61 = pneg %p60
    $region55: #{tpu_custom_call.1} parent=1 // pred_check_branch
      %63 = sbr.rel (%p61) target = $region57
    $region56: #{tpu_custom_call.1} parent=1 // pred_region
      %vm64 = vcmask 224256
      %65 = vst.msk [vmem:[#allocation2] sm:$0xf] %vm64, 0
      %66 = vst.msk [vmem:[#allocation2 + $0x4] sm:$0xf] %vm64, 0
      %67 = vst.msk [vmem:[#allocation2 + $0x8] sm:$0xf] %vm64, 0
      %68 = vst.msk [vmem:[#allocation2 + $0xc] sm:$0xf] %vm64, 0
      %69 = vst.msk [vmem:[#allocation2 + $0x10] sm:$0xf] %vm64, 0
      %70 = vst.msk [vmem:[#allocation2 + $0x14] sm:$0xf] %vm64, 0
      %71 = vst.msk [vmem:[#allocation2 + $0x18] sm:$0xf] %vm64, 0
      %72 = vst.msk [vmem:[#allocation2 + $0x1c] sm:$0xf] %vm64, 0
      %73 = vst.msk [vmem:[#allocation2 + $0x20] sm:$0xf] %vm64, 0
      %74 = vst.msk [vmem:[#allocation2 + $0x24] sm:$0xf] %vm64, 0
      %75 = vst.msk [vmem:[#allocation2 + $0x28] sm:$0xf] %vm64, 0
      %76 = vst.msk [vmem:[#allocation2 + $0x2c] sm:$0xf] %vm64, 0
      %77 = vst.msk [vmem:[#allocation2 + $0x30] sm:$0xf] %vm64, 0
      %78 = vst.msk [vmem:[#allocation2 + $0x34] sm:$0xf] %vm64, 0
      %79 = vst.msk [vmem:[#allocation2 + $0x38] sm:$0xf] %vm64, 0
      %80 = vst.msk [vmem:[#allocation2 + $0x3c] sm:$0xf] %vm64, 0
      %81 = vst.msk [vmem:[#allocation2 + $0x40] sm:$0xf] %vm64, 0
      %82 = vst.msk [vmem:[#allocation2 + $0x44] sm:$0xf] %vm64, 0
      %83 = vst.msk [vmem:[#allocation2 + $0x48] sm:$0xf] %vm64, 0
      %84 = vst.msk [vmem:[#allocation2 + $0x4c] sm:$0xf] %vm64, 0
      %85 = vst.msk [vmem:[#allocation2 + $0x50] sm:$0xf] %vm64, 0
      %86 = vst.msk [vmem:[#allocation2 + $0x54] sm:$0xf] %vm64, 0
      %87 = vst.msk [vmem:[#allocation2 + $0x58] sm:$0xf] %vm64, 0
      %88 = vst.msk [vmem:[#allocation2 + $0x5c] sm:$0xf] %vm64, 0
      %89 = vst.msk [vmem:[#allocation2 + $0x60] sm:$0xf] %vm64, 0
      %90 = vst.msk [vmem:[#allocation2 + $0x64] sm:$0xf] %vm64, 0
      %91 = vst.msk [vmem:[#allocation2 + $0x68] sm:$0xf] %vm64, 0
      %92 = vst.msk [vmem:[#allocation2 + $0x6c] sm:$0xf] %vm64, 0
      %93 = vst.msk [vmem:[#allocation2 + $0x70] sm:$0xf] %vm64, 0
      %94 = vst.msk [vmem:[#allocation2 + $0x74] sm:$0xf] %vm64, 0
      %95 = vst.msk [vmem:[#allocation2 + $0x78] sm:$0xf] %vm64, 0
      %96 = vst.msk [vmem:[#allocation2 + $0x7c] sm:$0xf] %vm64, 0
      %97 = vst.msk [vmem:[#allocation2 + $0x80] sm:$0xf] %vm64, 0
      %98 = vst.msk [vmem:[#allocation2 + $0x84] sm:$0xf] %vm64, 0
      %99 = vst.msk [vmem:[#allocation2 + $0x88] sm:$0xf] %vm64, 0
      %100 = vst.msk [vmem:[#allocation2 + $0x8c] sm:$0xf] %vm64, 0
      %101 = vst.msk [vmem:[#allocation2 + $0x90] sm:$0xf] %vm64, 0
      %102 = vst.msk [vmem:[#allocation2 + $0x94] sm:$0xf] %vm64, 0
      %103 = vst.msk [vmem:[#allocation2 + $0x98] sm:$0xf] %vm64, 0
      %104 = vst.msk [vmem:[#allocation2 + $0x9c] sm:$0xf] %vm64, 0
      %105 = vst.msk [vmem:[#allocation2 + $0xa0] sm:$0xf] %vm64, 0
      %106 = vst.msk [vmem:[#allocation2 + $0xa4] sm:$0xf] %vm64, 0
      %107 = vst.msk [vmem:[#allocation2 + $0xa8] sm:$0xf] %vm64, 0
      %108 = vst.msk [vmem:[#allocation2 + $0xac] sm:$0xf] %vm64, 0
      %109 = vst.msk [vmem:[#allocation2 + $0xb0] sm:$0xf] %vm64, 0
      %110 = vst.msk [vmem:[#allocation2 + $0xb4] sm:$0xf] %vm64, 0
      %111 = vst.msk [vmem:[#allocation2 + $0xb8] sm:$0xf] %vm64, 0
      %112 = vst.msk [vmem:[#allocation2 + $0xbc] sm:$0xf] %vm64, 0
      %113 = vst.msk [vmem:[#allocation2 + $0xc0] sm:$0xf] %vm64, 0
      %114 = vst.msk [vmem:[#allocation2 + $0xc4] sm:$0xf] %vm64, 0
      %115 = vst.msk [vmem:[#allocation2 + $0xc8] sm:$0xf] %vm64, 0
      %116 = vst.msk [vmem:[#allocation2 + $0xcc] sm:$0xf] %vm64, 0
      %117 = vst.msk [vmem:[#allocation2 + $0xd0] sm:$0xf] %vm64, 0
      %118 = vst.msk [vmem:[#allocation2 + $0xd4] sm:$0xf] %vm64, 0
      %119 = vst.msk [vmem:[#allocation2 + $0xd8] sm:$0xf] %vm64, 0
      %120 = vst.msk [vmem:[#allocation2 + $0xdc] sm:$0xf] %vm64, 0
      %121 = vst.msk [vmem:[#allocation2 + $0xe0] sm:$0xf] %vm64, 0
      %122 = vst.msk [vmem:[#allocation2 + $0xe4] sm:$0xf] %vm64, 0
      %123 = vst.msk [vmem:[#allocation2 + $0xe8] sm:$0xf] %vm64, 0
      %124 = vst.msk [vmem:[#allocation2 + $0xec] sm:$0xf] %vm64, 0
      %125 = vst.msk [vmem:[#allocation2 + $0xf0] sm:$0xf] %vm64, 0
      %126 = vst.msk [vmem:[#allocation2 + $0xf4] sm:$0xf] %vm64, 0
      %127 = vst.msk [vmem:[#allocation2 + $0xf8] sm:$0xf] %vm64, 0
      %128 = vst.msk [vmem:[#allocation2 + $0xfc] sm:$0xf] %vm64, 0
      %129 = vst.msk [vmem:[#allocation2 + $0x100] sm:$0xf] %vm64, 0
      %130 = vst.msk [vmem:[#allocation2 + $0x104] sm:$0xf] %vm64, 0
      %vm131 = vcmask 388096
      %132 = vst.msk [vmem:[#allocation3] sm:$0xf] %vm131, 0
      %133 = vst.msk [vmem:[#allocation3 + $0x4] sm:$0xf] %vm131, 0
      %134 = vst.msk [vmem:[#allocation3 + $0x8] sm:$0xf] %vm131, 0
      %135 = vst.msk [vmem:[#allocation3 + $0xc] sm:$0xf] %vm131, 0
      %136 = vst.msk [vmem:[#allocation3 + $0x10] sm:$0xf] %vm131, 0
      %137 = vst.msk [vmem:[#allocation3 + $0x14] sm:$0xf] %vm131, 0
      %138 = vst.msk [vmem:[#allocation3 + $0x18] sm:$0xf] %vm131, 0
      %139 = vst.msk [vmem:[#allocation3 + $0x1c] sm:$0xf] %vm131, 0
      %140 = vst.msk [vmem:[#allocation3 + $0x20] sm:$0xf] %vm131, 0
      %141 = vst.msk [vmem:[#allocation3 + $0x24] sm:$0xf] %vm131, 0
      %142 = vst.msk [vmem:[#allocation3 + $0x28] sm:$0xf] %vm131, 0
      %143 = vst.msk [vmem:[#allocation3 + $0x2c] sm:$0xf] %vm131, 0
      %144 = vst.msk [vmem:[#allocation3 + $0x30] sm:$0xf] %vm131, 0
      %145 = vst.msk [vmem:[#allocation3 + $0x34] sm:$0xf] %vm131, 0
      %146 = vst.msk [vmem:[#allocation3 + $0x38] sm:$0xf] %vm131, 0
      %147 = vst.msk [vmem:[#allocation3 + $0x3c] sm:$0xf] %vm131, 0
      %148 = vst.msk [vmem:[#allocation3 + $0x40] sm:$0xf] %vm131, 0
      %149 = vst.msk [vmem:[#allocation3 + $0x44] sm:$0xf] %vm131, 0
      %150 = vst.msk [vmem:[#allocation3 + $0x48] sm:$0xf] %vm131, 0
      %151 = vst.msk [vmem:[#allocation3 + $0x4c] sm:$0xf] %vm131, 0
      %152 = vst.msk [vmem:[#allocation3 + $0x50] sm:$0xf] %vm131, 0
      %153 = vst.msk [vmem:[#allocation3 + $0x54] sm:$0xf] %vm131, 0
      %154 = vst.msk [vmem:[#allocation3 + $0x58] sm:$0xf] %vm131, 0
      %155 = vst.msk [vmem:[#allocation3 + $0x5c] sm:$0xf] %vm131, 0
    $region57: #{tpu_custom_call.1} parent=1 // pred_fallthru
      _
    %v156 = vld [vmem:[%s1] sm:$0xf]
    %v157 = vld [vmem:[%s1 + $0x4] sm:$0xf]
    %v158 = vld [vmem:[%s1 + $0x8] sm:$0xf]
    %v159 = vld [vmem:[%s1 + $0xc] sm:$0xf]
    %v160 = vld [vmem:[%s1 + $0x10] sm:$0xf]
    %v161 = vld [vmem:[%s1 + $0x14] sm:$0xf]
    %v162 = vld [vmem:[%s1 + $0x18] sm:$0xf]
    %v163 = vld [vmem:[%s1 + $0x1c] sm:$0xf]
    %v164 = vld [vmem:[%s1 + $0x20] sm:$0xf]
    %v165 = vld [vmem:[%s1 + $0x24] sm:$0xf]
    %v166 = vld [vmem:[%s1 + $0x28] sm:$0xf]
    %v167 = vld [vmem:[%s1 + $0x2c] sm:$0xf]
    %v168 = vld [vmem:[%s1 + $0x30] sm:$0xf]
    %v169 = vld [vmem:[%s1 + $0x34] sm:$0xf]
    %v170 = vld [vmem:[%s1 + $0x38] sm:$0xf]
    %v171 = vld [vmem:[%s1 + $0x3c] sm:$0xf]
    %v172 = vld [vmem:[%s1 + $0x40] sm:$0xf]
    %v173 = vld [vmem:[%s1 + $0x44] sm:$0xf]
    %v174 = vld [vmem:[%s1 + $0x48] sm:$0xf]
    %v175 = vld [vmem:[%s1 + $0x4c] sm:$0xf]
    %v176 = vld [vmem:[%s1 + $0x50] sm:$0xf]
    %v177 = vld [vmem:[%s1 + $0x54] sm:$0xf]
    %v178 = vld [vmem:[%s1 + $0x58] sm:$0xf]
    %v179 = vld [vmem:[%s1 + $0x5c] sm:$0xf]
    %v180 = vld [vmem:[%s1 + $0x60] sm:$0xf]
    %v181 = vld [vmem:[%s1 + $0x64] sm:$0xf]
    %v182 = vld [vmem:[%s1 + $0x68] sm:$0xf]
    %v183 = vld [vmem:[%s1 + $0x6c] sm:$0xf]
    %v184 = vld [vmem:[%s1 + $0x70] sm:$0xf]
    %v185 = vld [vmem:[%s1 + $0x74] sm:$0xf]
    %v186 = vld [vmem:[%s1 + $0x78] sm:$0xf]
    %v187 = vld [vmem:[%s1 + $0x7c] sm:$0xf]
    %v188 = vld [vmem:[%s1 + $0x80] sm:$0xf]
    %v189 = vld [vmem:[%s1 + $0x84] sm:$0xf]
    %v190 = vld [vmem:[%s1 + $0x88] sm:$0xf]
    %v191 = vld [vmem:[%s1 + $0x8c] sm:$0xf]
    %v192 = vld [vmem:[%s1 + $0x90] sm:$0xf]
    %v193 = vld [vmem:[%s1 + $0x94] sm:$0xf]
    %v194 = vld [vmem:[%s1 + $0x98] sm:$0xf]
    %v195 = vld [vmem:[%s1 + $0x9c] sm:$0xf]
    %v196 = vld [vmem:[%s1 + $0xa0] sm:$0xf]
    %v197 = vld [vmem:[%s1 + $0xa4] sm:$0xf]
    %v198 = vld [vmem:[%s1 + $0xa8] sm:$0xf]
    %v199 = vld [vmem:[%s1 + $0xac] sm:$0xf]
    %v200 = vld [vmem:[%s1 + $0xb0] sm:$0xf]
    %v201 = vld [vmem:[%s1 + $0xb4] sm:$0xf]
    %v202 = vld [vmem:[%s1 + $0xb8] sm:$0xf]
    %v203 = vld [vmem:[%s1 + $0xbc] sm:$0xf]
    %v204 = vld [vmem:[%s1 + $0xc0] sm:$0xf]
    %v205 = vld [vmem:[%s1 + $0xc4] sm:$0xf]
    %v206 = vld [vmem:[%s1 + $0xc8] sm:$0xf]
    %v207 = vld [vmem:[%s1 + $0xcc] sm:$0xf]
    %v208 = vld [vmem:[%s1 + $0xd0] sm:$0xf]
    %v209 = vld [vmem:[%s1 + $0xd4] sm:$0xf]
    %v210 = vld [vmem:[%s1 + $0xd8] sm:$0xf]
    %v211 = vld [vmem:[%s1 + $0xdc] sm:$0xf]
    %v212 = vld [vmem:[%s1 + $0xe0] sm:$0xf]
    %v213 = vld [vmem:[%s1 + $0xe4] sm:$0xf]
    %v214 = vld [vmem:[%s1 + $0xe8] sm:$0xf]
    %v215 = vld [vmem:[%s1 + $0xec] sm:$0xf]
    %v216 = vld [vmem:[%s1 + $0xf0] sm:$0xf]
    %v217 = vld [vmem:[%s1 + $0xf4] sm:$0xf]
    %v218 = vld [vmem:[%s1 + $0xf8] sm:$0xf]
    %v219 = vld [vmem:[%s1 + $0xfc] sm:$0xf]
    %v220 = vld [vmem:[%s1 + $0x100] sm:$0xf]
    %v221 = vld [vmem:[%s1 + $0x104] sm:$0xf]
    %v222 = vld [vmem:[%s1 + $0x108] sm:$0xf]
    %v223 = vld [vmem:[%s1 + $0x10c] sm:$0xf]
    %v224 = vld [vmem:[%s1 + $0x110] sm:$0xf]
    %v225 = vld [vmem:[%s1 + $0x114] sm:$0xf]
    %v226 = vld [vmem:[%s1 + $0x118] sm:$0xf]
    %v227 = vld [vmem:[%s1 + $0x11c] sm:$0xf]
    %v228 = vld [vmem:[%s1 + $0x120] sm:$0xf]
    %v229 = vld [vmem:[%s1 + $0x124] sm:$0xf]
    %v230 = vld [vmem:[%s1 + $0x128] sm:$0xf]
    %v231 = vld [vmem:[%s1 + $0x12c] sm:$0xf]
    %v232 = vld [vmem:[%s1 + $0x130] sm:$0xf]
    %v233 = vld [vmem:[%s1 + $0x134] sm:$0xf]
    %v234 = vld [vmem:[%s1 + $0x138] sm:$0xf]
    %v235 = vld [vmem:[%s1 + $0x13c] sm:$0xf]
    %v236 = vld [vmem:[%s1 + $0x140] sm:$0xf]
    %v237 = vld [vmem:[%s1 + $0x144] sm:$0xf]
    %v238 = vld [vmem:[%s1 + $0x148] sm:$0xf]
    %v239 = vld [vmem:[%s1 + $0x14c] sm:$0xf]
    %v240 = vld [vmem:[%s1 + $0x150] sm:$0xf]
    %v241 = vld [vmem:[%s1 + $0x154] sm:$0xf]
    %v242 = vld [vmem:[%s1 + $0x158] sm:$0xf]
    %v243 = vld [vmem:[%s1 + $0x15c] sm:$0xf]
    %v244 = vld [vmem:[%s1 + $0x160] sm:$0xf]
    %v245 = vld [vmem:[%s1 + $0x164] sm:$0xf]
    %v246 = vld [vmem:[%s1 + $0x168] sm:$0xf]
    %v247 = vld [vmem:[%s1 + $0x16c] sm:$0xf]
    %v248 = vld [vmem:[%s1 + $0x170] sm:$0xf]
    %v249 = vld [vmem:[%s1 + $0x174] sm:$0xf]
    %v250 = vld [vmem:[%s1 + $0x178] sm:$0xf]
    %v251 = vld [vmem:[%s1 + $0x17c] sm:$0xf]
    %v252 = vld [vmem:[%s1 + $0x180] sm:$0xf]
    %v253 = vld [vmem:[%s1 + $0x184] sm:$0xf]
    %v254 = vld [vmem:[%s1 + $0x188] sm:$0xf]
    %v255 = vld [vmem:[%s1 + $0x18c] sm:$0xf]
    %v256 = vld [vmem:[%s1 + $0x190] sm:$0xf]
    %v257 = vld [vmem:[%s1 + $0x194] sm:$0xf]
    %v258 = vld [vmem:[%s1 + $0x198] sm:$0xf]
    %v259 = vld [vmem:[%s1 + $0x19c] sm:$0xf]
    %v260 = vld [vmem:[%s1 + $0x1a0] sm:$0xf]
    %v261 = vld [vmem:[%s1 + $0x1a4] sm:$0xf]
    %v262 = vld [vmem:[%s1 + $0x1a8] sm:$0xf]
    %v263 = vld [vmem:[%s1 + $0x1ac] sm:$0xf]
    %v264 = vld [vmem:[%s1 + $0x1b0] sm:$0xf]
    %v265 = vld [vmem:[%s1 + $0x1b4] sm:$0xf]
    %v266 = vld [vmem:[%s1 + $0x1b8] sm:$0xf]
    %v267 = vld [vmem:[%s1 + $0x1bc] sm:$0xf]
    %v268 = vld [vmem:[%s1 + $0x1c0] sm:$0xf]
    %v269 = vld [vmem:[%s1 + $0x1c4] sm:$0xf]
    %v270 = vld [vmem:[%s1 + $0x1c8] sm:$0xf]
    %v271 = vld [vmem:[%s1 + $0x1cc] sm:$0xf]
    %v272 = vld [vmem:[%s1 + $0x1d0] sm:$0xf]
    %v273 = vld [vmem:[%s1 + $0x1d4] sm:$0xf]
    %v274 = vld [vmem:[%s1 + $0x1d8] sm:$0xf]
    %v275 = vld [vmem:[%s1 + $0x1dc] sm:$0xf]
    %v276 = vld [vmem:[%s1 + $0x1e0] sm:$0xf]
    %v277 = vld [vmem:[%s1 + $0x1e4] sm:$0xf]
    %v278 = vld [vmem:[%s1 + $0x1e8] sm:$0xf]
    %v279 = vld [vmem:[%s1 + $0x1ec] sm:$0xf]
    %v280 = vld [vmem:[%s1 + $0x1f0] sm:$0xf]
    %v281 = vld [vmem:[%s1 + $0x1f4] sm:$0xf]
    %v282 = vld [vmem:[%s1 + $0x1f8] sm:$0xf]
    %v283 = vld [vmem:[%s1 + $0x1fc] sm:$0xf]
    %v284 = vld [vmem:[%s1 + $0x200] sm:$0xf]
    %v285 = vld [vmem:[%s1 + $0x204] sm:$0xf]
    %v286 = vld [vmem:[%s1 + $0x208] sm:$0xf]
    %v287 = vld [vmem:[%s1 + $0x20c] sm:$0xf]
    %v288 = vld [vmem:[%s1 + $0x210] sm:$0xf]
    %v289 = vld [vmem:[%s1 + $0x214] sm:$0xf]
    %v290 = vld [vmem:[%s1 + $0x218] sm:$0xf]
    %v291 = vld [vmem:[%s1 + $0x21c] sm:$0xf]
    %v292 = vld [vmem:[%s1 + $0x220] sm:$0xf]
    %v293 = vld [vmem:[%s1 + $0x224] sm:$0xf]
    %v294 = vld [vmem:[%s1 + $0x228] sm:$0xf]
    %v295 = vld [vmem:[%s1 + $0x22c] sm:$0xf]
    %v296 = vld [vmem:[%s1 + $0x230] sm:$0xf]
    %v297 = vld [vmem:[%s1 + $0x234] sm:$0xf]
    %v298 = vld [vmem:[%s1 + $0x238] sm:$0xf]
    %v299 = vld [vmem:[%s1 + $0x23c] sm:$0xf]
    %v300 = vld [vmem:[%s2] sm:$0xf]
    %v301 = vld [vmem:[%s2 + $0x4] sm:$0xf]
    %v302 = vld [vmem:[%s2 + $0x8] sm:$0xf]
    %v303 = vld [vmem:[%s2 + $0xc] sm:$0x3]
    %v304 = vld [vmem:[%s3] sm:$0x1]
    %v306 = vlaneseq
    %v307 = vshrl.u32 %v306, 7
    %v308 = vsub.s32 0, %v307
    %v309 = vrot.slane %v304, %v308
    %v455 = vunpack.c.l.b16 %v156
    %v456 = vunpack.c.l.b16 %v157
    %v457 = vunpack.c.l.b16 %v158
    %v458 = vunpack.c.l.b16 %v159
    %v459 = vunpack.c.l.b16 %v160
    %v460 = vunpack.c.l.b16 %v161
    %v461 = vunpack.c.l.b16 %v162
    %v462 = vunpack.c.l.b16 %v163
    %v463 = vunpack.c.l.b16 %v164
    %v464 = vunpack.c.l.b16 %v165
    %v465 = vunpack.c.l.b16 %v166
    %v466 = vunpack.c.l.b16 %v167
    %v467 = vunpack.c.l.b16 %v168
    %v468 = vunpack.c.l.b16 %v169
    %v469 = vunpack.c.l.b16 %v170
    %v470 = vunpack.c.l.b16 %v171
    %v471 = vunpack.c.l.b16 %v172
    %v472 = vunpack.c.l.b16 %v173
    %v473 = vunpack.c.l.b16 %v174
    %v474 = vunpack.c.l.b16 %v175
    %v475 = vunpack.c.l.b16 %v176
    %v476 = vunpack.c.l.b16 %v177
    %v477 = vunpack.c.l.b16 %v178
    %v478 = vunpack.c.l.b16 %v179
    %v479 = vunpack.c.l.b16 %v180
    %v480 = vunpack.c.l.b16 %v181
    %v481 = vunpack.c.l.b16 %v182
    %v482 = vunpack.c.l.b16 %v183
    %v483 = vunpack.c.l.b16 %v184
    %v484 = vunpack.c.l.b16 %v185
    %v485 = vunpack.c.l.b16 %v186
    %v486 = vunpack.c.l.b16 %v187
    %v487 = vunpack.c.l.b16 %v188
    %v488 = vunpack.c.l.b16 %v189
    %v489 = vunpack.c.l.b16 %v190
    %v490 = vunpack.c.l.b16 %v191
    %v491 = vunpack.c.l.b16 %v192
    %v492 = vunpack.c.l.b16 %v193
    %v493 = vunpack.c.l.b16 %v194
    %v494 = vunpack.c.l.b16 %v195
    %v495 = vunpack.c.l.b16 %v196
    %v496 = vunpack.c.l.b16 %v197
    %v497 = vunpack.c.l.b16 %v198
    %v498 = vunpack.c.l.b16 %v199
    %v499 = vunpack.c.l.b16 %v200
    %v500 = vunpack.c.l.b16 %v201
    %v501 = vunpack.c.l.b16 %v202
    %v502 = vunpack.c.l.b16 %v203
    %v503 = vunpack.c.l.b16 %v204
    %v504 = vunpack.c.l.b16 %v205
    %v505 = vunpack.c.l.b16 %v206
    %v506 = vunpack.c.l.b16 %v207
    %v507 = vunpack.c.l.b16 %v208
    %v508 = vunpack.c.l.b16 %v209
    %v509 = vunpack.c.l.b16 %v210
    %v510 = vunpack.c.l.b16 %v211
    %v511 = vunpack.c.l.b16 %v212
    %v512 = vunpack.c.l.b16 %v213
    %v513 = vunpack.c.l.b16 %v214
    %v514 = vunpack.c.l.b16 %v215
    %v515 = vunpack.c.l.b16 %v216
    %v516 = vunpack.c.l.b16 %v217
    %v517 = vunpack.c.l.b16 %v218
    %v518 = vunpack.c.l.b16 %v219
    %v519 = vunpack.c.l.b16 %v220
    %v520 = vunpack.c.l.b16 %v221
    %v521 = vunpack.c.l.b16 %v222
    %v522 = vunpack.c.l.b16 %v223
    %v523 = vunpack.c.l.b16 %v224
    %v524 = vunpack.c.l.b16 %v225
    %v525 = vunpack.c.l.b16 %v226
    %v526 = vunpack.c.l.b16 %v227
    %v527 = vunpack.c.l.b16 %v228
    %v528 = vunpack.c.l.b16 %v229
    %v529 = vunpack.c.l.b16 %v230
    %v530 = vunpack.c.l.b16 %v231
    %v531 = vunpack.c.l.b16 %v232
    %v532 = vunpack.c.l.b16 %v233
    %v533 = vunpack.c.l.b16 %v234
    %v534 = vunpack.c.l.b16 %v235
    %v535 = vunpack.c.l.b16 %v236
    %v536 = vunpack.c.l.b16 %v237
    %v537 = vunpack.c.l.b16 %v238
    %v538 = vunpack.c.l.b16 %v239
    %v539 = vunpack.c.l.b16 %v240
    %v540 = vunpack.c.l.b16 %v241
    %v541 = vunpack.c.l.b16 %v242
    %v542 = vunpack.c.l.b16 %v243
    %v543 = vunpack.c.l.b16 %v244
    %v544 = vunpack.c.l.b16 %v245
    %v545 = vunpack.c.l.b16 %v246
    %v546 = vunpack.c.l.b16 %v247
    %v547 = vunpack.c.l.b16 %v248
    %v548 = vunpack.c.l.b16 %v249
    %v549 = vunpack.c.l.b16 %v250
    %v550 = vunpack.c.l.b16 %v251
    %v551 = vunpack.c.l.b16 %v252
    %v552 = vunpack.c.l.b16 %v253
    %v553 = vunpack.c.l.b16 %v254
    %v554 = vunpack.c.l.b16 %v255
    %v555 = vunpack.c.l.b16 %v256
    %v556 = vunpack.c.l.b16 %v257
    %v557 = vunpack.c.l.b16 %v258
    %v558 = vunpack.c.l.b16 %v259
    %v559 = vunpack.c.l.b16 %v260
    %v560 = vunpack.c.l.b16 %v261
    %v561 = vunpack.c.l.b16 %v262
    %v562 = vunpack.c.l.b16 %v263
    %v563 = vunpack.c.l.b16 %v264
    %v564 = vunpack.c.l.b16 %v265
    %v565 = vunpack.c.l.b16 %v266
    %v566 = vunpack.c.l.b16 %v267
    %v567 = vunpack.c.l.b16 %v268
    %v568 = vunpack.c.l.b16 %v269
    %v569 = vunpack.c.l.b16 %v270
    %v570 = vunpack.c.l.b16 %v271
    %v571 = vunpack.c.l.b16 %v272
    %v572 = vunpack.c.l.b16 %v273
    %v573 = vunpack.c.l.b16 %v274
    %v574 = vunpack.c.l.b16 %v275
    %v575 = vunpack.c.l.b16 %v276
    %v576 = vunpack.c.l.b16 %v277
    %v577 = vunpack.c.l.b16 %v278
    %v578 = vunpack.c.l.b16 %v279
    %v579 = vunpack.c.l.b16 %v280
    %v580 = vunpack.c.l.b16 %v281
    %v581 = vunpack.c.l.b16 %v282
    %v582 = vunpack.c.l.b16 %v283
    %v583 = vunpack.c.l.b16 %v284
    %v584 = vunpack.c.l.b16 %v285
    %v585 = vunpack.c.l.b16 %v286
    %v586 = vunpack.c.l.b16 %v287
    %v587 = vunpack.c.l.b16 %v288
    %v588 = vunpack.c.l.b16 %v289
    %v589 = vunpack.c.l.b16 %v290
    %v590 = vunpack.c.l.b16 %v291
    %v591 = vunpack.c.l.b16 %v292
    %v592 = vunpack.c.l.b16 %v293
    %v593 = vunpack.c.l.b16 %v294
    %v594 = vunpack.c.l.b16 %v295
    %v595 = vunpack.c.l.b16 %v296
    %v596 = vunpack.c.l.b16 %v297
    %v597 = vunpack.c.l.b16 %v298
    %v598 = vunpack.c.l.b16 %v299
    %v599 = vpack.c.b16 %v456, %v455
    %v600 = vpack.c.b16 %v458, %v457
    %v601 = vpack.c.b16 %v460, %v459
    %v602 = vpack.c.b16 %v462, %v461
    %v603 = vpack.c.b16 %v464, %v463
    %v604 = vpack.c.b16 %v466, %v465
    %v605 = vpack.c.b16 %v468, %v467
    %v606 = vpack.c.b16 %v470, %v469
    %v607 = vpack.c.b16 %v472, %v471
    %v608 = vpack.c.b16 %v474, %v473
    %v609 = vpack.c.b16 %v476, %v475
    %v610 = vpack.c.b16 %v478, %v477
    %v611 = vpack.c.b16 %v480, %v479
    %v612 = vpack.c.b16 %v482, %v481
    %v613 = vpack.c.b16 %v484, %v483
    %v614 = vpack.c.b16 %v486, %v485
    %v615 = vpack.c.b16 %v488, %v487
    %v616 = vpack.c.b16 %v490, %v489
    %v617 = vpack.c.b16 %v492, %v491
    %v618 = vpack.c.b16 %v494, %v493
    %v619 = vpack.c.b16 %v496, %v495
    %v620 = vpack.c.b16 %v498, %v497
    %v621 = vpack.c.b16 %v500, %v499
    %v622 = vpack.c.b16 %v502, %v501
    %v623 = vpack.c.b16 %v504, %v503
    %v624 = vpack.c.b16 %v506, %v505
    %v625 = vpack.c.b16 %v508, %v507
    %v626 = vpack.c.b16 %v510, %v509
    %v627 = vpack.c.b16 %v512, %v511
    %v628 = vpack.c.b16 %v514, %v513
    %v629 = vpack.c.b16 %v516, %v515
    %v630 = vpack.c.b16 %v518, %v517
    %v631 = vpack.c.b16 %v520, %v519
    %v632 = vpack.c.b16 %v522, %v521
    %v633 = vpack.c.b16 %v524, %v523
    %v634 = vpack.c.b16 %v526, %v525
    %v635 = vpack.c.b16 %v528, %v527
    %v636 = vpack.c.b16 %v530, %v529
    %v637 = vpack.c.b16 %v532, %v531
    %v638 = vpack.c.b16 %v534, %v533
    %v639 = vpack.c.b16 %v536, %v535
    %v640 = vpack.c.b16 %v538, %v537
    %v641 = vpack.c.b16 %v540, %v539
    %v642 = vpack.c.b16 %v542, %v541
    %v643 = vpack.c.b16 %v544, %v543
    %v644 = vpack.c.b16 %v546, %v545
    %v645 = vpack.c.b16 %v548, %v547
    %v646 = vpack.c.b16 %v550, %v549
    %v647 = vpack.c.b16 %v552, %v551
    %v648 = vpack.c.b16 %v554, %v553
    %v649 = vpack.c.b16 %v556, %v555
    %v650 = vpack.c.b16 %v558, %v557
    %v651 = vpack.c.b16 %v560, %v559
    %v652 = vpack.c.b16 %v562, %v561
    %v653 = vpack.c.b16 %v564, %v563
    %v654 = vpack.c.b16 %v566, %v565
    %v655 = vpack.c.b16 %v568, %v567
    %v656 = vpack.c.b16 %v570, %v569
    %v657 = vpack.c.b16 %v572, %v571
    %v658 = vpack.c.b16 %v574, %v573
    %v659 = vpack.c.b16 %v576, %v575
    %v660 = vpack.c.b16 %v578, %v577
    %v661 = vpack.c.b16 %v580, %v579
    %v662 = vpack.c.b16 %v582, %v581
    %v663 = vpack.c.b16 %v584, %v583
    %v664 = vpack.c.b16 %v586, %v585
    %v665 = vpack.c.b16 %v588, %v587
    %v666 = vpack.c.b16 %v590, %v589
    %v667 = vpack.c.b16 %v592, %v591
    %v668 = vpack.c.b16 %v594, %v593
    %v669 = vpack.c.b16 %v596, %v595
    %v670 = vpack.c.b16 %v598, %v597
    %v675 = vunpack.c.l.b16 %v300
    %v676 = vunpack.c.l.b16 %v301
    %v677 = vunpack.c.l.b16 %v302
    %v678 = vunpack.c.l.b16 %v303
    %v679 = vpack.c.b16 %v676, %v675
    %v680 = vpack.c.b16 %v678, %v677
    %vm682 = vcmask 220160
    %v684 = vsel %vm682, %v599, 0
    %v687 = vsel %vm682, %v600, 0
    %v690 = vsel %vm682, %v601, 0
    %v693 = vsel %vm682, %v602, 0
    %v696 = vsel %vm682, %v603, 0
    %v699 = vsel %vm682, %v604, 0
    %v702 = vsel %vm682, %v605, 0
    %v705 = vsel %vm682, %v606, 0
    %v708 = vsel %vm682, %v607, 0
    %v711 = vsel %vm682, %v608, 0
    %v714 = vsel %vm682, %v609, 0
    %v717 = vsel %vm682, %v610, 0
    %v720 = vsel %vm682, %v611, 0
    %v723 = vsel %vm682, %v612, 0
    %v726 = vsel %vm682, %v613, 0
    %v729 = vsel %vm682, %v614, 0
    %v732 = vsel %vm682, %v615, 0
    %v735 = vsel %vm682, %v616, 0
    %v738 = vsel %vm682, %v617, 0
    %v741 = vsel %vm682, %v618, 0
    %v744 = vsel %vm682, %v619, 0
    %v747 = vsel %vm682, %v620, 0
    %v750 = vsel %vm682, %v621, 0
    %v753 = vsel %vm682, %v622, 0
    %v756 = vsel %vm682, %v623, 0
    %v759 = vsel %vm682, %v624, 0
    %v762 = vsel %vm682, %v625, 0
    %v765 = vsel %vm682, %v626, 0
    %v768 = vsel %vm682, %v627, 0
    %v771 = vsel %vm682, %v628, 0
    %v774 = vsel %vm682, %v629, 0
    %v777 = vsel %vm682, %v630, 0
    %v780 = vsel %vm682, %v631, 0
    %v783 = vsel %vm682, %v632, 0
    %v786 = vsel %vm682, %v633, 0
    %v789 = vsel %vm682, %v634, 0
    %v792 = vsel %vm682, %v635, 0
    %v795 = vsel %vm682, %v636, 0
    %v798 = vsel %vm682, %v637, 0
    %v801 = vsel %vm682, %v638, 0
    %v804 = vsel %vm682, %v639, 0
    %v807 = vsel %vm682, %v640, 0
    %v810 = vsel %vm682, %v641, 0
    %v813 = vsel %vm682, %v642, 0
    %v816 = vsel %vm682, %v643, 0
    %v819 = vsel %vm682, %v644, 0
    %v822 = vsel %vm682, %v645, 0
    %v825 = vsel %vm682, %v646, 0
    %v828 = vsel %vm682, %v647, 0
    %v831 = vsel %vm682, %v648, 0
    %v834 = vsel %vm682, %v649, 0
    %v837 = vsel %vm682, %v650, 0
    %v840 = vsel %vm682, %v651, 0
    %v843 = vsel %vm682, %v652, 0
    %v846 = vsel %vm682, %v653, 0
    %v849 = vsel %vm682, %v654, 0
    %v852 = vsel %vm682, %v655, 0
    %v855 = vsel %vm682, %v656, 0
    %v858 = vsel %vm682, %v657, 0
    %v861 = vsel %vm682, %v658, 0
    %v864 = vsel %vm682, %v659, 0
    %v867 = vsel %vm682, %v660, 0
    %v870 = vsel %vm682, %v661, 0
    %v873 = vsel %vm682, %v662, 0
    %v876 = vsel %vm682, %v663, 0
    %v879 = vsel %vm682, %v664, 0
    %v882 = vsel %vm682, %v665, 0
    %v885 = vsel %vm682, %v666, 0
    %v888 = vsel %vm682, %v667, 0
    %v891 = vsel %vm682, %v668, 0
    %v894 = vsel %vm682, %v669, 0
    %v897 = vsel %vm682, %v670, 0
    %vm899 = vcmask 1044480
    %vm900 = vcmask 1045504
    %v901 = vsel %vm899, 4294967295, 65535
    %v902 = vsel %vm900, %v901, 0
    %v904 = vand.u32 %v680, %v902
    %906 = vmatprep.subr.bf16.mxu0 0
    %907 = vmatpush1.bf16.msra.mxu0 %v679
    %908 = vmatprep.subr.bf16.mxu0 0
    %909 = vmatpush1.bf16.msra.mxu0 %v904
    %910 = vmatprep.subr.bf16.mxu0 0
    %911 = vmatpush1.bf16.msra.mxu0 0
    %912 = vmatprep.subr.bf16.mxu0 0
    %913 = vmatpush1.bf16.msra.mxu0 0
    %914 = vmatprep.subr.bf16.mxu0 0
    %915 = vmatpush1.bf16.msra.mxu0 0
    %916 = vmatprep.subr.bf16.mxu0 0
    %917 = vmatpush1.bf16.msra.mxu0 0
    %918 = vmatprep.subr.bf16.mxu0 0
    %919 = vmatpush1.bf16.msra.mxu0 0
    %920 = vmatprep.subr.bf16.mxu0 0
    %921 = vmatpush1.bf16.msra.mxu0 0
    %922 = vmatprep.subr.bf16.mxu0 0
    %923 = vmatpush1.bf16.msra.mxu0 0
    %924 = vmatprep.subr.bf16.mxu0 0
    %925 = vmatpush1.bf16.msra.mxu0 0
    %926 = vmatprep.subr.bf16.mxu0 0
    %927 = vmatpush1.bf16.msra.mxu0 0
    %928 = vmatprep.subr.bf16.mxu0 0
    %929 = vmatpush1.bf16.msra.mxu0 0
    %930 = vmatprep.subr.bf16.mxu0 0
    %931 = vmatpush1.bf16.msra.mxu0 0
    %932 = vmatprep.subr.bf16.mxu0 0
    %933 = vmatpush1.bf16.msra.mxu0 0
    %934 = vmatprep.subr.bf16.mxu0 0
    %935 = vmatpush1.bf16.msra.mxu0 0
    %936 = vmatprep.subr.bf16.mxu0 0
    %937 = vmatpush1.bf16.msra.mxu0 0
    %938 = vmatprep.mubr.bf16.mxu0 0
    %939 = vmatmul.mubr.bf16.gmra.mrb[0].mxu0 %v684
    %v940 = vpop.f32.mrb[0].mxu0
    %v941 = vadd.f32 %v309, %v940
    %v942 = vpop.f32.mrb[0].mxu0
    %v943 = vpop.f32.mrb[0].mxu0
    %v944 = vadd.f32 %v309, %v943
    %v945 = vpop.f32.mrb[0].mxu0
    %946 = vmatprep.mubr.bf16.mxu0 0
    %947 = vmatmul.mubr.bf16.gmra.mrb[0].mxu0 %v687
    %v948 = vpop.f32.mrb[0].mxu0
    %v949 = vadd.f32 %v309, %v948
    %v950 = vpop.f32.mrb[0].mxu0
    %v951 = vpop.f32.mrb[0].mxu0
    %v952 = vadd.f32 %v309, %v951
    %v953 = vpop.f32.mrb[0].mxu0
    %954 = vmatprep.mubr.bf16.mxu0 0
    %955 = vmatmul.mubr.bf16.gmra.mrb[0].mxu0 %v690
    %v956 = vpop.f32.mrb[0].mxu0
    %v957 = vadd.f32 %v309, %v956
    %v958 = vpop.f32.mrb[0].mxu0
    %v959 = vpop.f32.mrb[0].mxu0
    %v960 = vadd.f32 %v309, %v959
    %v961 = vpop.f32.mrb[0].mxu0
    %962 = vmatprep.mubr.bf16.mxu0 0
    %963 = vmatmul.mubr.bf16.gmra.mrb[0].mxu0 %v693
    %v964 = vpop.f32.mrb[0].mxu0
    %v965 = vadd.f32 %v309, %v964
    %v966 = vpop.f32.mrb[0].mxu0
    %v967 = vpop.f32.mrb[0].mxu0
    %v968 = vadd.f32 %v309, %v967
    %v969 = vpop.f32.mrb[0].mxu0
    %970 = vmatprep.mubr.bf16.mxu0 0
    %971 = vmatmul.mubr.bf16.gmra.mrb[0].mxu0 %v696
    %v972 = vpop.f32.mrb[0].mxu0
    %v973 = vadd.f32 %v309, %v972
    %v974 = vpop.f32.mrb[0].mxu0
    %v975 = vpop.f32.mrb[0].mxu0
    %v976 = vadd.f32 %v309, %v975
    %v977 = vpop.f32.mrb[0].mxu0
    %978 = vmatprep.mubr.bf16.mxu0 0
    %979 = vmatmul.mubr.bf16.gmra.mrb[0].mxu0 %v699
    %v980 = vpop.f32.mrb[0].mxu0
    %v981 = vadd.f32 %v309, %v980
    %v982 = vpop.f32.mrb[0].mxu0
    %v983 = vpop.f32.mrb[0].mxu0
    %v984 = vadd.f32 %v309, %v983
    %v985 = vpop.f32.mrb[0].mxu0
    %986 = vmatprep.mubr.bf16.mxu0 0
    %987 = vmatmul.mubr.bf16.gmra.mrb[0].mxu0 %v702
    %v988 = vpop.f32.mrb[0].mxu0
    %v989 = vadd.f32 %v309, %v988
    %v990 = vpop.f32.mrb[0].mxu0
    %v991 = vpop.f32.mrb[0].mxu0
    %v992 = vadd.f32 %v309, %v991
    %v993 = vpop.f32.mrb[0].mxu0
    %994 = vmatprep.mubr.bf16.mxu0 0
    %995 = vmatmul.mubr.bf16.gmra.mrb[0].mxu0 %v705
    %v996 = vpop.f32.mrb[0].mxu0
    %v997 = vadd.f32 %v309, %v996
    %v998 = vpop.f32.mrb[0].mxu0
    %v999 = vpop.f32.mrb[0].mxu0
    %v1000 = vadd.f32 %v309, %v999
    %v1001 = vpop.f32.mrb[0].mxu0
    %1002 = vmatprep.mubr.bf16.mxu0 0
    %1003 = vmatmul.mubr.bf16.gmra.mrb[0].mxu0 %v708
    %v1004 = vpop.f32.mrb[0].mxu0
    %v1005 = vadd.f32 %v309, %v1004
    %v1006 = vpop.f32.mrb[0].mxu0
    %v1007 = vpop.f32.mrb[0].mxu0
    %v1008 = vadd.f32 %v309, %v1007
    %v1009 = vpop.f32.mrb[0].mxu0
    %1010 = vmatprep.mubr.bf16.mxu0 0
    %1011 = vmatmul.mubr.bf16.gmra.mrb[0].mxu0 %v711
    %v1012 = vpop.f32.mrb[0].mxu0
    %v1013 = vadd.f32 %v309, %v1012
    %v1014 = vpop.f32.mrb[0].mxu0
    %v1015 = vpop.f32.mrb[0].mxu0
    %v1016 = vadd.f32 %v309, %v1015
    %v1017 = vpop.f32.mrb[0].mxu0
    %1018 = vmatprep.mubr.bf16.mxu0 0
    %1019 = vmatmul.mubr.bf16.gmra.mrb[0].mxu0 %v714
    %v1020 = vpop.f32.mrb[0].mxu0
    %v1021 = vadd.f32 %v309, %v1020
    %v1022 = vpop.f32.mrb[0].mxu0
    %v1023 = vpop.f32.mrb[0].mxu0
    %v1024 = vadd.f32 %v309, %v1023
    %v1025 = vpop.f32.mrb[0].mxu0
    %1026 = vmatprep.mubr.bf16.mxu0 0
    %1027 = vmatmul.mubr.bf16.gmra.mrb[0].mxu0 %v717
    %v1028 = vpop.f32.mrb[0].mxu0
    %v1029 = vadd.f32 %v309, %v1028
    %v1030 = vpop.f32.mrb[0].mxu0
    %v1031 = vpop.f32.mrb[0].mxu0
    %v1032 = vadd.f32 %v309, %v1031
    %v1033 = vpop.f32.mrb[0].mxu0
    %1034 = vmatprep.mubr.bf16.mxu0 0
    %1035 = vmatmul.mubr.bf16.gmra.mrb[0].mxu0 %v720
    %v1036 = vpop.f32.mrb[0].mxu0
    %v1037 = vadd.f32 %v309, %v1036
    %v1038 = vpop.f32.mrb[0].mxu0
    %v1039 = vpop.f32.mrb[0].mxu0
    %v1040 = vadd.f32 %v309, %v1039
    %v1041 = vpop.f32.mrb[0].mxu0
    %1042 = vmatprep.mubr.bf16.mxu0 0
    %1043 = vmatmul.mubr.bf16.gmra.mrb[0].mxu0 %v723
    %v1044 = vpop.f32.mrb[0].mxu0
    %v1045 = vadd.f32 %v309, %v1044
    %v1046 = vpop.f32.mrb[0].mxu0
    %v1047 = vpop.f32.mrb[0].mxu0
    %v1048 = vadd.f32 %v309, %v1047
    %v1049 = vpop.f32.mrb[0].mxu0
    %1050 = vmatprep.mubr.bf16.mxu0 0
    %1051 = vmatmul.mubr.bf16.gmra.mrb[0].mxu0 %v726
    %v1052 = vpop.f32.mrb[0].mxu0
    %v1053 = vadd.f32 %v309, %v1052
    %v1054 = vpop.f32.mrb[0].mxu0
    %v1055 = vpop.f32.mrb[0].mxu0
    %v1056 = vadd.f32 %v309, %v1055
    %v1057 = vpop.f32.mrb[0].mxu0
    %1058 = vmatprep.mubr.bf16.mxu0 0
    %1059 = vmatmul.mubr.bf16.gmra.mrb[0].mxu0 %v729
    %v1060 = vpop.f32.mrb[0].mxu0
    %v1061 = vadd.f32 %v309, %v1060
    %v1062 = vpop.f32.mrb[0].mxu0
    %v1063 = vpop.f32.mrb[0].mxu0
    %v1064 = vadd.f32 %v309, %v1063
    %v1065 = vpop.f32.mrb[0].mxu0
    %1066 = vmatprep.mubr.bf16.mxu0 0
    %1067 = vmatmul.mubr.bf16.gmra.mrb[0].mxu0 %v732
    %v1068 = vpop.f32.mrb[0].mxu0
    %v1069 = vadd.f32 %v309, %v1068
    %v1070 = vpop.f32.mrb[0].mxu0
    %v1071 = vpop.f32.mrb[0].mxu0
    %v1072 = vadd.f32 %v309, %v1071
    %v1073 = vpop.f32.mrb[0].mxu0
    %1074 = vmatprep.mubr.bf16.mxu0 0
    %1075 = vmatmul.mubr.bf16.gmra.mrb[0].mxu0 %v735
    %v1076 = vpop.f32.mrb[0].mxu0
    %v1077 = vadd.f32 %v309, %v1076
    %v1078 = vpop.f32.mrb[0].mxu0
    %v1079 = vpop.f32.mrb[0].mxu0
    %v1080 = vadd.f32 %v309, %v1079
    %v1081 = vpop.f32.mrb[0].mxu0
    %1082 = vmatprep.mubr.bf16.mxu0 0
    %1083 = vmatmul.mubr.bf16.gmra.mrb[0].mxu0 %v738
    %v1084 = vpop.f32.mrb[0].mxu0
    %v1085 = vadd.f32 %v309, %v1084
    %v1086 = vpop.f32.mrb[0].mxu0
    %v1087 = vpop.f32.mrb[0].mxu0
    %v1088 = vadd.f32 %v309, %v1087
    %v1089 = vpop.f32.mrb[0].mxu0
    %1090 = vmatprep.mubr.bf16.mxu0 0
    %1091 = vmatmul.mubr.bf16.gmra.mrb[0].mxu0 %v741
    %v1092 = vpop.f32.mrb[0].mxu0
    %v1093 = vadd.f32 %v309, %v1092
    %v1094 = vpop.f32.mrb[0].mxu0
    %v1095 = vpop.f32.mrb[0].mxu0
    %v1096 = vadd.f32 %v309, %v1095
    %v1097 = vpop.f32.mrb[0].mxu0
    %1098 = vmatprep.mubr.bf16.mxu0 0
    %1099 = vmatmul.mubr.bf16.gmra.mrb[0].mxu0 %v744
    %v1100 = vpop.f32.mrb[0].mxu0
    %v1101 = vadd.f32 %v309, %v1100
    %v1102 = vpop.f32.mrb[0].mxu0
    %v1103 = vpop.f32.mrb[0].mxu0
    %v1104 = vadd.f32 %v309, %v1103
    %v1105 = vpop.f32.mrb[0].mxu0
    %1106 = vmatprep.mubr.bf16.mxu0 0
    %1107 = vmatmul.mubr.bf16.gmra.mrb[0].mxu0 %v747
    %v1108 = vpop.f32.mrb[0].mxu0
    %v1109 = vadd.f32 %v309, %v1108
    %v1110 = vpop.f32.mrb[0].mxu0
    %v1111 = vpop.f32.mrb[0].mxu0
    %v1112 = vadd.f32 %v309, %v1111
    %v1113 = vpop.f32.mrb[0].mxu0
    %1114 = vmatprep.mubr.bf16.mxu0 0
    %1115 = vmatmul.mubr.bf16.gmra.mrb[0].mxu0 %v750
    %v1116 = vpop.f32.mrb[0].mxu0
    %v1117 = vadd.f32 %v309, %v1116
    %v1118 = vpop.f32.mrb[0].mxu0
    %v1119 = vpop.f32.mrb[0].mxu0
    %v1120 = vadd.f32 %v309, %v1119
    %v1121 = vpop.f32.mrb[0].mxu0
    %1122 = vmatprep.mubr.bf16.mxu0 0
    %1123 = vmatmul.mubr.bf16.gmra.mrb[0].mxu0 %v753
    %v1124 = vpop.f32.mrb[0].mxu0
    %v1125 = vadd.f32 %v309, %v1124
    %v1126 = vpop.f32.mrb[0].mxu0
    %v1127 = vpop.f32.mrb[0].mxu0
    %v1128 = vadd.f32 %v309, %v1127
    %v1129 = vpop.f32.mrb[0].mxu0
    %1130 = vmatprep.mubr.bf16.mxu0 0
    %1131 = vmatmul.mubr.bf16.gmra.mrb[0].mxu0 %v756
    %v1132 = vpop.f32.mrb[0].mxu0
    %v1133 = vadd.f32 %v309, %v1132
    %v1134 = vpop.f32.mrb[0].mxu0
    %v1135 = vpop.f32.mrb[0].mxu0
    %v1136 = vadd.f32 %v309, %v1135
    %v1137 = vpop.f32.mrb[0].mxu0
    %1138 = vmatprep.mubr.bf16.mxu0 0
    %1139 = vmatmul.mubr.bf16.gmra.mrb[0].mxu0 %v759
    %v1140 = vpop.f32.mrb[0].mxu0
    %v1141 = vadd.f32 %v309, %v1140
    %v1142 = vpop.f32.mrb[0].mxu0
    %v1143 = vpop.f32.mrb[0].mxu0
    %v1144 = vadd.f32 %v309, %v1143
    %v1145 = vpop.f32.mrb[0].mxu0
    %1146 = vmatprep.mubr.bf16.mxu0 0
    %1147 = vmatmul.mubr.bf16.gmra.mrb[0].mxu0 %v762
    %v1148 = vpop.f32.mrb[0].mxu0
    %v1149 = vadd.f32 %v309, %v1148
    %v1150 = vpop.f32.mrb[0].mxu0
    %v1151 = vpop.f32.mrb[0].mxu0
    %v1152 = vadd.f32 %v309, %v1151
    %v1153 = vpop.f32.mrb[0].mxu0
    %1154 = vmatprep.mubr.bf16.mxu0 0
    %1155 = vmatmul.mubr.bf16.gmra.mrb[0].mxu0 %v765
    %v1156 = vpop.f32.mrb[0].mxu0
    %v1157 = vadd.f32 %v309, %v1156
    %v1158 = vpop.f32.mrb[0].mxu0
    %v1159 = vpop.f32.mrb[0].mxu0
    %v1160 = vadd.f32 %v309, %v1159
    %v1161 = vpop.f32.mrb[0].mxu0
    %1162 = vmatprep.mubr.bf16.mxu0 0
    %1163 = vmatmul.mubr.bf16.gmra.mrb[0].mxu0 %v768
    %v1164 = vpop.f32.mrb[0].mxu0
    %v1165 = vadd.f32 %v309, %v1164
    %v1166 = vpop.f32.mrb[0].mxu0
    %v1167 = vpop.f32.mrb[0].mxu0
    %v1168 = vadd.f32 %v309, %v1167
    %v1169 = vpop.f32.mrb[0].mxu0
    %1170 = vmatprep.mubr.bf16.mxu0 0
    %1171 = vmatmul.mubr.bf16.gmra.mrb[0].mxu0 %v771
    %v1172 = vpop.f32.mrb[0].mxu0
    %v1173 = vadd.f32 %v309, %v1172
    %v1174 = vpop.f32.mrb[0].mxu0
    %v1175 = vpop.f32.mrb[0].mxu0
    %v1176 = vadd.f32 %v309, %v1175
    %v1177 = vpop.f32.mrb[0].mxu0
    %1178 = vmatprep.mubr.bf16.mxu0 0
    %1179 = vmatmul.mubr.bf16.gmra.mrb[0].mxu0 %v774
    %v1180 = vpop.f32.mrb[0].mxu0
    %v1181 = vadd.f32 %v309, %v1180
    %v1182 = vpop.f32.mrb[0].mxu0
    %v1183 = vpop.f32.mrb[0].mxu0
    %v1184 = vadd.f32 %v309, %v1183
    %v1185 = vpop.f32.mrb[0].mxu0
    %1186 = vmatprep.mubr.bf16.mxu0 0
    %1187 = vmatmul.mubr.bf16.gmra.mrb[0].mxu0 %v777
    %v1188 = vpop.f32.mrb[0].mxu0
    %v1189 = vadd.f32 %v309, %v1188
    %v1190 = vpop.f32.mrb[0].mxu0
    %v1191 = vpop.f32.mrb[0].mxu0
    %v1192 = vadd.f32 %v309, %v1191
    %v1193 = vpop.f32.mrb[0].mxu0
    %1194 = vmatprep.mubr.bf16.mxu0 0
    %1195 = vmatmul.mubr.bf16.gmra.mrb[0].mxu0 %v780
    %v1196 = vpop.f32.mrb[0].mxu0
    %v1197 = vadd.f32 %v309, %v1196
    %v1198 = vpop.f32.mrb[0].mxu0
    %v1199 = vpop.f32.mrb[0].mxu0
    %v1200 = vadd.f32 %v309, %v1199
    %v1201 = vpop.f32.mrb[0].mxu0
    %1202 = vmatprep.mubr.bf16.mxu0 0
    %1203 = vmatmul.mubr.bf16.gmra.mrb[0].mxu0 %v783
    %v1204 = vpop.f32.mrb[0].mxu0
    %v1205 = vadd.f32 %v309, %v1204
    %v1206 = vpop.f32.mrb[0].mxu0
    %v1207 = vpop.f32.mrb[0].mxu0
    %v1208 = vadd.f32 %v309, %v1207
    %v1209 = vpop.f32.mrb[0].mxu0
    %1210 = vmatprep.mubr.bf16.mxu0 0
    %1211 = vmatmul.mubr.bf16.gmra.mrb[0].mxu0 %v786
    %v1212 = vpop.f32.mrb[0].mxu0
    %v1213 = vadd.f32 %v309, %v1212
    %v1214 = vpop.f32.mrb[0].mxu0
    %v1215 = vpop.f32.mrb[0].mxu0
    %v1216 = vpop.f32.mrb[0].mxu0
    %1217 = vmatprep.mubr.bf16.mxu0 0
    %1218 = vmatmul.mubr.bf16.gmra.mrb[0].mxu0 %v789
    %v1219 = vpop.f32.mrb[0].mxu0
    %v1220 = vpop.f32.mrb[0].mxu0
    %v1221 = vpop.f32.mrb[0].mxu0
    %v1222 = vpop.f32.mrb[0].mxu0
    %1223 = vmatprep.mubr.bf16.mxu0 0
    %1224 = vmatmul.mubr.bf16.gmra.mrb[0].mxu0 %v792
    %v1225 = vpop.f32.mrb[0].mxu0
    %v1226 = vadd.f32 %v309, %v1225
    %v1227 = vpop.f32.mrb[0].mxu0
    %v1228 = vpop.f32.mrb[0].mxu0
    %v1229 = vadd.f32 %v309, %v1228
    %v1230 = vpop.f32.mrb[0].mxu0
    %1231 = vmatprep.mubr.bf16.mxu0 0
    %1232 = vmatmul.mubr.bf16.gmra.mrb[0].mxu0 %v795
    %v1233 = vpop.f32.mrb[0].mxu0
    %v1234 = vadd.f32 %v309, %v1233
    %v1235 = vpop.f32.mrb[0].mxu0
    %v1236 = vpop.f32.mrb[0].mxu0
    %v1237 = vadd.f32 %v309, %v1236
    %v1238 = vpop.f32.mrb[0].mxu0
    %1239 = vmatprep.mubr.bf16.mxu0 0
    %1240 = vmatmul.mubr.bf16.gmra.mrb[0].mxu0 %v798
    %v1241 = vpop.f32.mrb[0].mxu0
    %v1242 = vadd.f32 %v309, %v1241
    %v1243 = vpop.f32.mrb[0].mxu0
    %v1244 = vpop.f32.mrb[0].mxu0
    %v1245 = vadd.f32 %v309, %v1244
    %v1246 = vpop.f32.mrb[0].mxu0
    %1247 = vmatprep.mubr.bf16.mxu0 0
    %1248 = vmatmul.mubr.bf16.gmra.mrb[0].mxu0 %v801
    %v1249 = vpop.f32.mrb[0].mxu0
    %v1250 = vadd.f32 %v309, %v1249
    %v1251 = vpop.f32.mrb[0].mxu0
    %v1252 = vpop.f32.mrb[0].mxu0
    %v1253 = vadd.f32 %v309, %v1252
    %v1254 = vpop.f32.mrb[0].mxu0
    %1255 = vmatprep.mubr.bf16.mxu0 0
    %1256 = vmatmul.mubr.bf16.gmra.mrb[0].mxu0 %v804
    %v1257 = vpop.f32.mrb[0].mxu0
    %v1258 = vadd.f32 %v309, %v1257
    %v1259 = vpop.f32.mrb[0].mxu0
    %v1260 = vpop.f32.mrb[0].mxu0
    %v1261 = vadd.f32 %v309, %v1260
    %v1262 = vpop.f32.mrb[0].mxu0
    %1263 = vmatprep.mubr.bf16.mxu0 0
    %1264 = vmatmul.mubr.bf16.gmra.mrb[0].mxu0 %v807
    %v1265 = vpop.f32.mrb[0].mxu0
    %v1266 = vadd.f32 %v309, %v1265
    %v1267 = vpop.f32.mrb[0].mxu0
    %v1268 = vpop.f32.mrb[0].mxu0
    %v1269 = vadd.f32 %v309, %v1268
    %v1270 = vpop.f32.mrb[0].mxu0
    %1271 = vmatprep.mubr.bf16.mxu0 0
    %1272 = vmatmul.mubr.bf16.gmra.mrb[0].mxu0 %v810
    %v1273 = vpop.f32.mrb[0].mxu0
    %v1274 = vadd.f32 %v309, %v1273
    %v1275 = vpop.f32.mrb[0].mxu0
    %v1276 = vpop.f32.mrb[0].mxu0
    %v1277 = vadd.f32 %v309, %v1276
    %v1278 = vpop.f32.mrb[0].mxu0
    %1279 = vmatprep.mubr.bf16.mxu0 0
    %1280 = vmatmul.mubr.bf16.gmra.mrb[0].mxu0 %v813
    %v1281 = vpop.f32.mrb[0].mxu0
    %v1282 = vadd.f32 %v309, %v1281
    %v1283 = vpop.f32.mrb[0].mxu0
    %v1284 = vpop.f32.mrb[0].mxu0
    %v1285 = vadd.f32 %v309, %v1284
    %v1286 = vpop.f32.mrb[0].mxu0
    %1287 = vmatprep.mubr.bf16.mxu0 0
    %1288 = vmatmul.mubr.bf16.gmra.mrb[0].mxu0 %v816
    %v1289 = vpop.f32.mrb[0].mxu0
    %v1290 = vadd.f32 %v309, %v1289
    %v1291 = vpop.f32.mrb[0].mxu0
    %v1292 = vpop.f32.mrb[0].mxu0
    %v1293 = vadd.f32 %v309, %v1292
    %v1294 = vpop.f32.mrb[0].mxu0
    %1295 = vmatprep.mubr.bf16.mxu0 0
    %1296 = vmatmul.mubr.bf16.gmra.mrb[0].mxu0 %v819
    %v1297 = vpop.f32.mrb[0].mxu0
    %v1298 = vadd.f32 %v309, %v1297
    %v1299 = vpop.f32.mrb[0].mxu0
    %v1300 = vpop.f32.mrb[0].mxu0
    %v1301 = vadd.f32 %v309, %v1300
    %v1302 = vpop.f32.mrb[0].mxu0
    %1303 = vmatprep.mubr.bf16.mxu0 0
    %1304 = vmatmul.mubr.bf16.gmra.mrb[0].mxu0 %v822
    %v1305 = vpop.f32.mrb[0].mxu0
    %v1306 = vadd.f32 %v309, %v1305
    %v1307 = vpop.f32.mrb[0].mxu0
    %v1308 = vpop.f32.mrb[0].mxu0
    %v1309 = vadd.f32 %v309, %v1308
    %v1310 = vpop.f32.mrb[0].mxu0
    %1311 = vmatprep.mubr.bf16.mxu0 0
    %1312 = vmatmul.mubr.bf16.gmra.mrb[0].mxu0 %v825
    %v1313 = vpop.f32.mrb[0].mxu0
    %v1314 = vadd.f32 %v309, %v1313
    %v1315 = vpop.f32.mrb[0].mxu0
    %v1316 = vpop.f32.mrb[0].mxu0
    %v1317 = vadd.f32 %v309, %v1316
    %v1318 = vpop.f32.mrb[0].mxu0
    %1319 = vmatprep.mubr.bf16.mxu0 0
    %1320 = vmatmul.mubr.bf16.gmra.mrb[0].mxu0 %v828
    %v1321 = vpop.f32.mrb[0].mxu0
    %v1322 = vadd.f32 %v309, %v1321
    %v1323 = vpop.f32.mrb[0].mxu0
    %v1324 = vpop.f32.mrb[0].mxu0
    %v1325 = vadd.f32 %v309, %v1324
    %v1326 = vpop.f32.mrb[0].mxu0
    %1327 = vmatprep.mubr.bf16.mxu0 0
    %1328 = vmatmul.mubr.bf16.gmra.mrb[0].mxu0 %v831
    %v1329 = vpop.f32.mrb[0].mxu0
    %v1330 = vadd.f32 %v309, %v1329
    %v1331 = vpop.f32.mrb[0].mxu0
    %v1332 = vpop.f32.mrb[0].mxu0
    %v1333 = vadd.f32 %v309, %v1332
    %v1334 = vpop.f32.mrb[0].mxu0
    %1335 = vmatprep.mubr.bf16.mxu0 0
    %1336 = vmatmul.mubr.bf16.gmra.mrb[0].mxu0 %v834
    %v1337 = vpop.f32.mrb[0].mxu0
    %v1338 = vadd.f32 %v309, %v1337
    %v1339 = vpop.f32.mrb[0].mxu0
    %v1340 = vpop.f32.mrb[0].mxu0
    %v1341 = vadd.f32 %v309, %v1340
    %v1342 = vpop.f32.mrb[0].mxu0
    %1343 = vmatprep.mubr.bf16.mxu0 0
    %1344 = vmatmul.mubr.bf16.gmra.mrb[0].mxu0 %v837
    %v1345 = vpop.f32.mrb[0].mxu0
    %v1346 = vadd.f32 %v309, %v1345
    %v1347 = vpop.f32.mrb[0].mxu0
    %v1348 = vpop.f32.mrb[0].mxu0
    %v1349 = vadd.f32 %v309, %v1348
    %v1350 = vpop.f32.mrb[0].mxu0
    %1351 = vmatprep.mubr.bf16.mxu0 0
    %1352 = vmatmul.mubr.bf16.gmra.mrb[0].mxu0 %v840
    %v1353 = vpop.f32.mrb[0].mxu0
    %v1354 = vadd.f32 %v309, %v1353
    %v1355 = vpop.f32.mrb[0].mxu0
    %v1356 = vpop.f32.mrb[0].mxu0
    %v1357 = vadd.f32 %v309, %v1356
    %v1358 = vpop.f32.mrb[0].mxu0
    %1359 = vmatprep.mubr.bf16.mxu0 0
    %1360 = vmatmul.mubr.bf16.gmra.mrb[0].mxu0 %v843
    %v1361 = vpop.f32.mrb[0].mxu0
    %v1362 = vadd.f32 %v309, %v1361
    %v1363 = vpop.f32.mrb[0].mxu0
    %v1364 = vpop.f32.mrb[0].mxu0
    %v1365 = vadd.f32 %v309, %v1364
    %v1366 = vpop.f32.mrb[0].mxu0
    %1367 = vmatprep.mubr.bf16.mxu0 0
    %1368 = vmatmul.mubr.bf16.gmra.mrb[0].mxu0 %v846
    %v1369 = vpop.f32.mrb[0].mxu0
    %v1370 = vadd.f32 %v309, %v1369
    %v1371 = vpop.f32.mrb[0].mxu0
    %v1372 = vpop.f32.mrb[0].mxu0
    %v1373 = vadd.f32 %v309, %v1372
    %v1374 = vpop.f32.mrb[0].mxu0
    %1375 = vmatprep.mubr.bf16.mxu0 0
    %1376 = vmatmul.mubr.bf16.gmra.mrb[0].mxu0 %v849
    %v1377 = vpop.f32.mrb[0].mxu0
    %v1378 = vadd.f32 %v309, %v1377
    %v1379 = vpop.f32.mrb[0].mxu0
    %v1380 = vpop.f32.mrb[0].mxu0
    %v1381 = vadd.f32 %v309, %v1380
    %v1382 = vpop.f32.mrb[0].mxu0
    %1383 = vmatprep.mubr.bf16.mxu0 0
    %1384 = vmatmul.mubr.bf16.gmra.mrb[0].mxu0 %v852
    %v1385 = vpop.f32.mrb[0].mxu0
    %v1386 = vadd.f32 %v309, %v1385
    %v1387 = vpop.f32.mrb[0].mxu0
    %v1388 = vpop.f32.mrb[0].mxu0
    %v1389 = vadd.f32 %v309, %v1388
    %v1390 = vpop.f32.mrb[0].mxu0
    %1391 = vmatprep.mubr.bf16.mxu0 0
    %1392 = vmatmul.mubr.bf16.gmra.mrb[0].mxu0 %v855
    %v1393 = vpop.f32.mrb[0].mxu0
    %v1394 = vadd.f32 %v309, %v1393
    %v1395 = vpop.f32.mrb[0].mxu0
    %v1396 = vpop.f32.mrb[0].mxu0
    %v1397 = vadd.f32 %v309, %v1396
    %v1398 = vpop.f32.mrb[0].mxu0
    %1399 = vmatprep.mubr.bf16.mxu0 0
    %1400 = vmatmul.mubr.bf16.gmra.mrb[0].mxu0 %v858
    %v1401 = vpop.f32.mrb[0].mxu0
    %v1402 = vadd.f32 %v309, %v1401
    %v1403 = vpop.f32.mrb[0].mxu0
    %v1404 = vpop.f32.mrb[0].mxu0
    %v1405 = vadd.f32 %v309, %v1404
    %v1406 = vpop.f32.mrb[0].mxu0
    %1407 = vmatprep.mubr.bf16.mxu0 0
    %1408 = vmatmul.mubr.bf16.gmra.mrb[0].mxu0 %v861
    %v1409 = vpop.f32.mrb[0].mxu0
    %v1410 = vadd.f32 %v309, %v1409
    %v1411 = vpop.f32.mrb[0].mxu0
    %v1412 = vpop.f32.mrb[0].mxu0
    %v1413 = vadd.f32 %v309, %v1412
    %v1414 = vpop.f32.mrb[0].mxu0
    %1415 = vmatprep.mubr.bf16.mxu0 0
    %1416 = vmatmul.mubr.bf16.gmra.mrb[0].mxu0 %v864
    %v1417 = vpop.f32.mrb[0].mxu0
    %v1418 = vadd.f32 %v309, %v1417
    %v1419 = vpop.f32.mrb[0].mxu0
    %v1420 = vpop.f32.mrb[0].mxu0
    %v1421 = vadd.f32 %v309, %v1420
    %v1422 = vpop.f32.mrb[0].mxu0
    %1423 = vmatprep.mubr.bf16.mxu0 0
    %1424 = vmatmul.mubr.bf16.gmra.mrb[0].mxu0 %v867
    %v1425 = vpop.f32.mrb[0].mxu0
    %v1426 = vadd.f32 %v309, %v1425
    %v1427 = vpop.f32.mrb[0].mxu0
    %v1428 = vpop.f32.mrb[0].mxu0
    %v1429 = vadd.f32 %v309, %v1428
    %v1430 = vpop.f32.mrb[0].mxu0
    %1431 = vmatprep.mubr.bf16.mxu0 0
    %1432 = vmatmul.mubr.bf16.gmra.mrb[0].mxu0 %v870
    %v1433 = vpop.f32.mrb[0].mxu0
    %v1434 = vadd.f32 %v309, %v1433
    %v1435 = vpop.f32.mrb[0].mxu0
    %v1436 = vpop.f32.mrb[0].mxu0
    %v1437 = vadd.f32 %v309, %v1436
    %v1438 = vpop.f32.mrb[0].mxu0
    %1439 = vmatprep.mubr.bf16.mxu0 0
    %1440 = vmatmul.mubr.bf16.gmra.mrb[0].mxu0 %v873
    %v1441 = vpop.f32.mrb[0].mxu0
    %v1442 = vadd.f32 %v309, %v1441
    %v1443 = vpop.f32.mrb[0].mxu0
    %v1444 = vpop.f32.mrb[0].mxu0
    %v1445 = vadd.f32 %v309, %v1444
    %v1446 = vpop.f32.mrb[0].mxu0
    %1447 = vmatprep.mubr.bf16.mxu0 0
    %1448 = vmatmul.mubr.bf16.gmra.mrb[0].mxu0 %v876
    %v1449 = vpop.f32.mrb[0].mxu0
    %v1450 = vadd.f32 %v309, %v1449
    %v1451 = vpop.f32.mrb[0].mxu0
    %v1452 = vpop.f32.mrb[0].mxu0
    %v1453 = vadd.f32 %v309, %v1452
    %v1454 = vpop.f32.mrb[0].mxu0
    %1455 = vmatprep.mubr.bf16.mxu0 0
    %1456 = vmatmul.mubr.bf16.gmra.mrb[0].mxu0 %v879
    %v1457 = vpop.f32.mrb[0].mxu0
    %v1458 = vadd.f32 %v309, %v1457
    %v1459 = vpop.f32.mrb[0].mxu0
    %v1460 = vpop.f32.mrb[0].mxu0
    %v1461 = vadd.f32 %v309, %v1460
    %v1462 = vpop.f32.mrb[0].mxu0
    %1463 = vmatprep.mubr.bf16.mxu0 0
    %1464 = vmatmul.mubr.bf16.gmra.mrb[0].mxu0 %v882
    %v1465 = vpop.f32.mrb[0].mxu0
    %v1466 = vadd.f32 %v309, %v1465
    %v1467 = vpop.f32.mrb[0].mxu0
    %v1468 = vpop.f32.mrb[0].mxu0
    %v1469 = vadd.f32 %v309, %v1468
    %v1470 = vpop.f32.mrb[0].mxu0
    %1471 = vmatprep.mubr.bf16.mxu0 0
    %1472 = vmatmul.mubr.bf16.gmra.mrb[0].mxu0 %v885
    %v1473 = vpop.f32.mrb[0].mxu0
    %v1474 = vadd.f32 %v309, %v1473
    %v1475 = vpop.f32.mrb[0].mxu0
    %v1476 = vpop.f32.mrb[0].mxu0
    %v1477 = vadd.f32 %v309, %v1476
    %v1478 = vpop.f32.mrb[0].mxu0
    %1479 = vmatprep.mubr.bf16.mxu0 0
    %1480 = vmatmul.mubr.bf16.gmra.mrb[0].mxu0 %v888
    %v1481 = vpop.f32.mrb[0].mxu0
    %v1482 = vadd.f32 %v309, %v1481
    %v1483 = vpop.f32.mrb[0].mxu0
    %v1484 = vpop.f32.mrb[0].mxu0
    %v1485 = vadd.f32 %v309, %v1484
    %v1486 = vpop.f32.mrb[0].mxu0
    %1487 = vmatprep.mubr.bf16.mxu0 0
    %1488 = vmatmul.mubr.bf16.gmra.mrb[0].mxu0 %v891
    %v1489 = vpop.f32.mrb[0].mxu0
    %v1490 = vadd.f32 %v309, %v1489
    %v1491 = vpop.f32.mrb[0].mxu0
    %v1492 = vpop.f32.mrb[0].mxu0
    %v1493 = vadd.f32 %v309, %v1492
    %v1494 = vpop.f32.mrb[0].mxu0
    %1495 = vmatprep.mubr.bf16.mxu0 0
    %1496 = vmatmul.mubr.bf16.gmra.mrb[0].mxu0 %v894
    %v1497 = vpop.f32.mrb[0].mxu0
    %v1498 = vadd.f32 %v309, %v1497
    %v1499 = vpop.f32.mrb[0].mxu0
    %v1500 = vpop.f32.mrb[0].mxu0
    %v1501 = vpop.f32.mrb[0].mxu0
    %1502 = vmatprep.mubr.bf16.mxu0 0
    %1503 = vmatmul.mubr.bf16.gmra.mrb[0].mxu0 %v897
    %v1504 = vpop.f32.mrb[0].mxu0
    %v1505 = vpop.f32.mrb[0].mxu0
    %v1506 = vpop.f32.mrb[0].mxu0
    %v1507 = vpop.f32.mrb[0].mxu0
    %1508 = vdwg.mxu0
    %vm1509 = vcmp.ge.f32.partialorder %v941, 0.0
    %vm1510 = vcmp.ge.f32.partialorder %v944, 0.0
    %vm1511 = vcmp.ge.f32.partialorder %v949, 0.0
    %vm1512 = vcmp.ge.f32.partialorder %v952, 0.0
    %vm1513 = vcmp.ge.f32.partialorder %v957, 0.0
    %vm1514 = vcmp.ge.f32.partialorder %v960, 0.0
    %vm1515 = vcmp.ge.f32.partialorder %v965, 0.0
    %vm1516 = vcmp.ge.f32.partialorder %v968, 0.0
    %vm1517 = vcmp.ge.f32.partialorder %v973, 0.0
    %vm1518 = vcmp.ge.f32.partialorder %v976, 0.0
    %vm1519 = vcmp.ge.f32.partialorder %v981, 0.0
    %vm1520 = vcmp.ge.f32.partialorder %v984, 0.0
    %vm1521 = vcmp.ge.f32.partialorder %v989, 0.0
    %vm1522 = vcmp.ge.f32.partialorder %v992, 0.0
    %vm1523 = vcmp.ge.f32.partialorder %v997, 0.0
    %vm1524 = vcmp.ge.f32.partialorder %v1000, 0.0
    %vm1525 = vcmp.ge.f32.partialorder %v1005, 0.0
    %vm1526 = vcmp.ge.f32.partialorder %v1008, 0.0
    %vm1527 = vcmp.ge.f32.partialorder %v1013, 0.0
    %vm1528 = vcmp.ge.f32.partialorder %v1016, 0.0
    %vm1529 = vcmp.ge.f32.partialorder %v1021, 0.0
    %vm1530 = vcmp.ge.f32.partialorder %v1024, 0.0
    %vm1531 = vcmp.ge.f32.partialorder %v1029, 0.0
    %vm1532 = vcmp.ge.f32.partialorder %v1032, 0.0
    %vm1533 = vcmp.ge.f32.partialorder %v1037, 0.0
    %vm1534 = vcmp.ge.f32.partialorder %v1040, 0.0
    %vm1535 = vcmp.ge.f32.partialorder %v1045, 0.0
    %vm1536 = vcmp.ge.f32.partialorder %v1048, 0.0
    %vm1537 = vcmp.ge.f32.partialorder %v1053, 0.0
    %vm1538 = vcmp.ge.f32.partialorder %v1056, 0.0
    %vm1539 = vcmp.ge.f32.partialorder %v1061, 0.0
    %vm1540 = vcmp.ge.f32.partialorder %v1064, 0.0
    %vm1541 = vcmp.ge.f32.partialorder %v1069, 0.0
    %vm1542 = vcmp.ge.f32.partialorder %v1072, 0.0
    %vm1543 = vcmp.ge.f32.partialorder %v1077, 0.0
    %vm1544 = vcmp.ge.f32.partialorder %v1080, 0.0
    %vm1545 = vcmp.ge.f32.partialorder %v1085, 0.0
    %vm1546 = vcmp.ge.f32.partialorder %v1088, 0.0
    %vm1547 = vcmp.ge.f32.partialorder %v1093, 0.0
    %vm1548 = vcmp.ge.f32.partialorder %v1096, 0.0
    %vm1549 = vcmp.ge.f32.partialorder %v1101, 0.0
    %vm1550 = vcmp.ge.f32.partialorder %v1104, 0.0
    %vm1551 = vcmp.ge.f32.partialorder %v1109, 0.0
    %vm1552 = vcmp.ge.f32.partialorder %v1112, 0.0
    %vm1553 = vcmp.ge.f32.partialorder %v1117, 0.0
    %vm1554 = vcmp.ge.f32.partialorder %v1120, 0.0
    %vm1555 = vcmp.ge.f32.partialorder %v1125, 0.0
    %vm1556 = vcmp.ge.f32.partialorder %v1128, 0.0
    %vm1557 = vcmp.ge.f32.partialorder %v1133, 0.0
    %vm1558 = vcmp.ge.f32.partialorder %v1136, 0.0
    %vm1559 = vcmp.ge.f32.partialorder %v1141, 0.0
    %vm1560 = vcmp.ge.f32.partialorder %v1144, 0.0
    %vm1561 = vcmp.ge.f32.partialorder %v1149, 0.0
    %vm1562 = vcmp.ge.f32.partialorder %v1152, 0.0
    %vm1563 = vcmp.ge.f32.partialorder %v1157, 0.0
    %vm1564 = vcmp.ge.f32.partialorder %v1160, 0.0
    %vm1565 = vcmp.ge.f32.partialorder %v1165, 0.0
    %vm1566 = vcmp.ge.f32.partialorder %v1168, 0.0
    %vm1567 = vcmp.ge.f32.partialorder %v1173, 0.0
    %vm1568 = vcmp.ge.f32.partialorder %v1176, 0.0
    %vm1569 = vcmp.ge.f32.partialorder %v1181, 0.0
    %vm1570 = vcmp.ge.f32.partialorder %v1184, 0.0
    %vm1571 = vcmp.ge.f32.partialorder %v1189, 0.0
    %vm1572 = vcmp.ge.f32.partialorder %v1192, 0.0
    %vm1573 = vcmp.ge.f32.partialorder %v1197, 0.0
    %vm1574 = vcmp.ge.f32.partialorder %v1200, 0.0
    %vm1575 = vcmp.ge.f32.partialorder %v1205, 0.0
    %vm1576 = vcmp.ge.f32.partialorder %v1208, 0.0
    %vm1577 = vcmp.ge.f32.partialorder %v1213, 0.0
    %vm1578 = vcmp.ge.f32.partialorder %v1226, 0.0
    %vm1579 = vcmp.ge.f32.partialorder %v1229, 0.0
    %vm1580 = vcmp.ge.f32.partialorder %v1234, 0.0
    %vm1581 = vcmp.ge.f32.partialorder %v1237, 0.0
    %vm1582 = vcmp.ge.f32.partialorder %v1242, 0.0
    %vm1583 = vcmp.ge.f32.partialorder %v1245, 0.0
    %vm1584 = vcmp.ge.f32.partialorder %v1250, 0.0
    %vm1585 = vcmp.ge.f32.partialorder %v1253, 0.0
    %vm1586 = vcmp.ge.f32.partialorder %v1258, 0.0
    %vm1587 = vcmp.ge.f32.partialorder %v1261, 0.0
    %vm1588 = vcmp.ge.f32.partialorder %v1266, 0.0
    %vm1589 = vcmp.ge.f32.partialorder %v1269, 0.0
    %vm1590 = vcmp.ge.f32.partialorder %v1274, 0.0
    %vm1591 = vcmp.ge.f32.partialorder %v1277, 0.0
    %vm1592 = vcmp.ge.f32.partialorder %v1282, 0.0
    %vm1593 = vcmp.ge.f32.partialorder %v1285, 0.0
    %vm1594 = vcmp.ge.f32.partialorder %v1290, 0.0
    %vm1595 = vcmp.ge.f32.partialorder %v1293, 0.0
    %vm1596 = vcmp.ge.f32.partialorder %v1298, 0.0
    %vm1597 = vcmp.ge.f32.partialorder %v1301, 0.0
    %vm1598 = vcmp.ge.f32.partialorder %v1306, 0.0
    %vm1599 = vcmp.ge.f32.partialorder %v1309, 0.0
    %vm1600 = vcmp.ge.f32.partialorder %v1314, 0.0
    %vm1601 = vcmp.ge.f32.partialorder %v1317, 0.0
    %vm1602 = vcmp.ge.f32.partialorder %v1322, 0.0
    %vm1603 = vcmp.ge.f32.partialorder %v1325, 0.0
    %vm1604 = vcmp.ge.f32.partialorder %v1330, 0.0
    %vm1605 = vcmp.ge.f32.partialorder %v1333, 0.0
    %vm1606 = vcmp.ge.f32.partialorder %v1338, 0.0
    %vm1607 = vcmp.ge.f32.partialorder %v1341, 0.0
    %vm1608 = vcmp.ge.f32.partialorder %v1346, 0.0
    %vm1609 = vcmp.ge.f32.partialorder %v1349, 0.0
    %vm1610 = vcmp.ge.f32.partialorder %v1354, 0.0
    %vm1611 = vcmp.ge.f32.partialorder %v1357, 0.0
    %vm1612 = vcmp.ge.f32.partialorder %v1362, 0.0
    %vm1613 = vcmp.ge.f32.partialorder %v1365, 0.0
    %vm1614 = vcmp.ge.f32.partialorder %v1370, 0.0
    %vm1615 = vcmp.ge.f32.partialorder %v1373, 0.0
    %vm1616 = vcmp.ge.f32.partialorder %v1378, 0.0
    %vm1617 = vcmp.ge.f32.partialorder %v1381, 0.0
    %vm1618 = vcmp.ge.f32.partialorder %v1386, 0.0
    %vm1619 = vcmp.ge.f32.partialorder %v1389, 0.0
    %vm1620 = vcmp.ge.f32.partialorder %v1394, 0.0
    %vm1621 = vcmp.ge.f32.partialorder %v1397, 0.0
    %vm1622 = vcmp.ge.f32.partialorder %v1402, 0.0
    %vm1623 = vcmp.ge.f32.partialorder %v1405, 0.0
    %vm1624 = vcmp.ge.f32.partialorder %v1410, 0.0
    %vm1625 = vcmp.ge.f32.partialorder %v1413, 0.0
    %vm1626 = vcmp.ge.f32.partialorder %v1418, 0.0
    %vm1627 = vcmp.ge.f32.partialorder %v1421, 0.0
    %vm1628 = vcmp.ge.f32.partialorder %v1426, 0.0
    %vm1629 = vcmp.ge.f32.partialorder %v1429, 0.0
    %vm1630 = vcmp.ge.f32.partialorder %v1434, 0.0
    %vm1631 = vcmp.ge.f32.partialorder %v1437, 0.0
    %vm1632 = vcmp.ge.f32.partialorder %v1442, 0.0
    %vm1633 = vcmp.ge.f32.partialorder %v1445, 0.0
    %vm1634 = vcmp.ge.f32.partialorder %v1450, 0.0
    %vm1635 = vcmp.ge.f32.partialorder %v1453, 0.0
    %vm1636 = vcmp.ge.f32.partialorder %v1458, 0.0
    %vm1637 = vcmp.ge.f32.partialorder %v1461, 0.0
    %vm1638 = vcmp.ge.f32.partialorder %v1466, 0.0
    %vm1639 = vcmp.ge.f32.partialorder %v1469, 0.0
    %vm1640 = vcmp.ge.f32.partialorder %v1474, 0.0
    %vm1641 = vcmp.ge.f32.partialorder %v1477, 0.0
    %vm1642 = vcmp.ge.f32.partialorder %v1482, 0.0
    %vm1643 = vcmp.ge.f32.partialorder %v1485, 0.0
    %vm1644 = vcmp.ge.f32.partialorder %v1490, 0.0
    %vm1645 = vcmp.ge.f32.partialorder %v1493, 0.0
    %vm1646 = vcmp.ge.f32.partialorder %v1498, 0.0
    %v1647 = vstv %s56
    %v1648 = vmul.f32 %v1647, %v941
    %v1649 = vmul.f32 %v1647, %v944
    %v1650 = vmul.f32 %v1647, %v949
    %v1651 = vmul.f32 %v1647, %v952
    %v1652 = vmul.f32 %v1647, %v957
    %v1653 = vmul.f32 %v1647, %v960
    %v1654 = vmul.f32 %v1647, %v965
    %v1655 = vmul.f32 %v1647, %v968
    %v1656 = vmul.f32 %v1647, %v973
    %v1657 = vmul.f32 %v1647, %v976
    %v1658 = vmul.f32 %v1647, %v981
    %v1659 = vmul.f32 %v1647, %v984
    %v1660 = vmul.f32 %v1647, %v989
    %v1661 = vmul.f32 %v1647, %v992
    %v1662 = vmul.f32 %v1647, %v997
    %v1663 = vmul.f32 %v1647, %v1000
    %v1664 = vmul.f32 %v1647, %v1005
    %v1665 = vmul.f32 %v1647, %v1008
    %v1666 = vmul.f32 %v1647, %v1013
    %v1667 = vmul.f32 %v1647, %v1016
    %v1668 = vmul.f32 %v1647, %v1021
    %v1669 = vmul.f32 %v1647, %v1024
    %v1670 = vmul.f32 %v1647, %v1029
    %v1671 = vmul.f32 %v1647, %v1032
    %v1672 = vmul.f32 %v1647, %v1037
    %v1673 = vmul.f32 %v1647, %v1040
    %v1674 = vmul.f32 %v1647, %v1045
    %v1675 = vmul.f32 %v1647, %v1048
    %v1676 = vmul.f32 %v1647, %v1053
    %v1677 = vmul.f32 %v1647, %v1056
    %v1678 = vmul.f32 %v1647, %v1061
    %v1679 = vmul.f32 %v1647, %v1064
    %v1680 = vmul.f32 %v1647, %v1069
    %v1681 = vmul.f32 %v1647, %v1072
    %v1682 = vmul.f32 %v1647, %v1077
    %v1683 = vmul.f32 %v1647, %v1080
    %v1684 = vmul.f32 %v1647, %v1085
    %v1685 = vmul.f32 %v1647, %v1088
    %v1686 = vmul.f32 %v1647, %v1093
    %v1687 = vmul.f32 %v1647, %v1096
    %v1688 = vmul.f32 %v1647, %v1101
    %v1689 = vmul.f32 %v1647, %v1104
    %v1690 = vmul.f32 %v1647, %v1109
    %v1691 = vmul.f32 %v1647, %v1112
    %v1692 = vmul.f32 %v1647, %v1117
    %v1693 = vmul.f32 %v1647, %v1120
    %v1694 = vmul.f32 %v1647, %v1125
    %v1695 = vmul.f32 %v1647, %v1128
    %v1696 = vmul.f32 %v1647, %v1133
    %v1697 = vmul.f32 %v1647, %v1136
    %v1698 = vmul.f32 %v1647, %v1141
    %v1699 = vmul.f32 %v1647, %v1144
    %v1700 = vmul.f32 %v1647, %v1149
    %v1701 = vmul.f32 %v1647, %v1152
    %v1702 = vmul.f32 %v1647, %v1157
    %v1703 = vmul.f32 %v1647, %v1160
    %v1704 = vmul.f32 %v1647, %v1165
    %v1705 = vmul.f32 %v1647, %v1168
    %v1706 = vmul.f32 %v1647, %v1173
    %v1707 = vmul.f32 %v1647, %v1176
    %v1708 = vmul.f32 %v1647, %v1181
    %v1709 = vmul.f32 %v1647, %v1184
    %v1710 = vmul.f32 %v1647, %v1189
    %v1711 = vmul.f32 %v1647, %v1192
    %v1712 = vmul.f32 %v1647, %v1197
    %v1713 = vmul.f32 %v1647, %v1200
    %v1714 = vmul.f32 %v1647, %v1205
    %v1715 = vmul.f32 %v1647, %v1208
    %v1716 = vmul.f32 %v1647, %v1213
    %v1717 = vmul.f32 %v1647, %v1226
    %v1718 = vmul.f32 %v1647, %v1229
    %v1719 = vmul.f32 %v1647, %v1234
    %v1720 = vmul.f32 %v1647, %v1237
    %v1721 = vmul.f32 %v1647, %v1242
    %v1722 = vmul.f32 %v1647, %v1245
    %v1723 = vmul.f32 %v1647, %v1250
    %v1724 = vmul.f32 %v1647, %v1253
    %v1725 = vmul.f32 %v1647, %v1258
    %v1726 = vmul.f32 %v1647, %v1261
    %v1727 = vmul.f32 %v1647, %v1266
    %v1728 = vmul.f32 %v1647, %v1269
    %v1729 = vmul.f32 %v1647, %v1274
    %v1730 = vmul.f32 %v1647, %v1277
    %v1731 = vmul.f32 %v1647, %v1282
    %v1732 = vmul.f32 %v1647, %v1285
    %v1733 = vmul.f32 %v1647, %v1290
    %v1734 = vmul.f32 %v1647, %v1293
    %v1735 = vmul.f32 %v1647, %v1298
    %v1736 = vmul.f32 %v1647, %v1301
    %v1737 = vmul.f32 %v1647, %v1306
    %v1738 = vmul.f32 %v1647, %v1309
    %v1739 = vmul.f32 %v1647, %v1314
    %v1740 = vmul.f32 %v1647, %v1317
    %v1741 = vmul.f32 %v1647, %v1322
    %v1742 = vmul.f32 %v1647, %v1325
    %v1743 = vmul.f32 %v1647, %v1330
    %v1744 = vmul.f32 %v1647, %v1333
    %v1745 = vmul.f32 %v1647, %v1338
    %v1746 = vmul.f32 %v1647, %v1341
    %v1747 = vmul.f32 %v1647, %v1346
    %v1748 = vmul.f32 %v1647, %v1349
    %v1749 = vmul.f32 %v1647, %v1354
    %v1750 = vmul.f32 %v1647, %v1357
    %v1751 = vmul.f32 %v1647, %v1362
    %v1752 = vmul.f32 %v1647, %v1365
    %v1753 = vmul.f32 %v1647, %v1370
    %v1754 = vmul.f32 %v1647, %v1373
    %v1755 = vmul.f32 %v1647, %v1378
    %v1756 = vmul.f32 %v1647, %v1381
    %v1757 = vmul.f32 %v1647, %v1386
    %v1758 = vmul.f32 %v1647, %v1389
    %v1759 = vmul.f32 %v1647, %v1394
    %v1760 = vmul.f32 %v1647, %v1397
    %v1761 = vmul.f32 %v1647, %v1402
    %v1762 = vmul.f32 %v1647, %v1405
    %v1763 = vmul.f32 %v1647, %v1410
    %v1764 = vmul.f32 %v1647, %v1413
    %v1765 = vmul.f32 %v1647, %v1418
    %v1766 = vmul.f32 %v1647, %v1421
    %v1767 = vmul.f32 %v1647, %v1426
    %v1768 = vmul.f32 %v1647, %v1429
    %v1769 = vmul.f32 %v1647, %v1434
    %v1770 = vmul.f32 %v1647, %v1437
    %v1771 = vmul.f32 %v1647, %v1442
    %v1772 = vmul.f32 %v1647, %v1445
    %v1773 = vmul.f32 %v1647, %v1450
    %v1774 = vmul.f32 %v1647, %v1453
    %v1775 = vmul.f32 %v1647, %v1458
    %v1776 = vmul.f32 %v1647, %v1461
    %v1777 = vmul.f32 %v1647, %v1466
    %v1778 = vmul.f32 %v1647, %v1469
    %v1779 = vmul.f32 %v1647, %v1474
    %v1780 = vmul.f32 %v1647, %v1477
    %v1781 = vmul.f32 %v1647, %v1482
    %v1782 = vmul.f32 %v1647, %v1485
    %v1783 = vmul.f32 %v1647, %v1490
    %v1784 = vmul.f32 %v1647, %v1493
    %v1785 = vmul.f32 %v1647, %v1498
    %v1786 = vsel %vm1509, %v941, %v1648
    %v1787 = vsel %vm1510, %v944, %v1649
    %v1788 = vsel %vm1511, %v949, %v1650
    %v1789 = vsel %vm1512, %v952, %v1651
    %v1790 = vsel %vm1513, %v957, %v1652
    %v1791 = vsel %vm1514, %v960, %v1653
    %v1792 = vsel %vm1515, %v965, %v1654
    %v1793 = vsel %vm1516, %v968, %v1655
    %v1794 = vsel %vm1517, %v973, %v1656
    %v1795 = vsel %vm1518, %v976, %v1657
    %v1796 = vsel %vm1519, %v981, %v1658
    %v1797 = vsel %vm1520, %v984, %v1659
    %v1798 = vsel %vm1521, %v989, %v1660
    %v1799 = vsel %vm1522, %v992, %v1661
    %v1800 = vsel %vm1523, %v997, %v1662
    %v1801 = vsel %vm1524, %v1000, %v1663
    %v1802 = vsel %vm1525, %v1005, %v1664
    %v1803 = vsel %vm1526, %v1008, %v1665
    %v1804 = vsel %vm1527, %v1013, %v1666
    %v1805 = vsel %vm1528, %v1016, %v1667
    %v1806 = vsel %vm1529, %v1021, %v1668
    %v1807 = vsel %vm1530, %v1024, %v1669
    %v1808 = vsel %vm1531, %v1029, %v1670
    %v1809 = vsel %vm1532, %v1032, %v1671
    %v1810 = vsel %vm1533, %v1037, %v1672
    %v1811 = vsel %vm1534, %v1040, %v1673
    %v1812 = vsel %vm1535, %v1045, %v1674
    %v1813 = vsel %vm1536, %v1048, %v1675
    %v1814 = vsel %vm1537, %v1053, %v1676
    %v1815 = vsel %vm1538, %v1056, %v1677
    %v1816 = vsel %vm1539, %v1061, %v1678
    %v1817 = vsel %vm1540, %v1064, %v1679
    %v1818 = vsel %vm1541, %v1069, %v1680
    %v1819 = vsel %vm1542, %v1072, %v1681
    %v1820 = vsel %vm1543, %v1077, %v1682
    %v1821 = vsel %vm1544, %v1080, %v1683
    %v1822 = vsel %vm1545, %v1085, %v1684
    %v1823 = vsel %vm1546, %v1088, %v1685
    %v1824 = vsel %vm1547, %v1093, %v1686
    %v1825 = vsel %vm1548, %v1096, %v1687
    %v1826 = vsel %vm1549, %v1101, %v1688
    %v1827 = vsel %vm1550, %v1104, %v1689
    %v1828 = vsel %vm1551, %v1109, %v1690
    %v1829 = vsel %vm1552, %v1112, %v1691
    %v1830 = vsel %vm1553, %v1117, %v1692
    %v1831 = vsel %vm1554, %v1120, %v1693
    %v1832 = vsel %vm1555, %v1125, %v1694
    %v1833 = vsel %vm1556, %v1128, %v1695
    %v1834 = vsel %vm1557, %v1133, %v1696
    %v1835 = vsel %vm1558, %v1136, %v1697
    %v1836 = vsel %vm1559, %v1141, %v1698
    %v1837 = vsel %vm1560, %v1144, %v1699
    %v1838 = vsel %vm1561, %v1149, %v1700
    %v1839 = vsel %vm1562, %v1152, %v1701
    %v1840 = vsel %vm1563, %v1157, %v1702
    %v1841 = vsel %vm1564, %v1160, %v1703
    %v1842 = vsel %vm1565, %v1165, %v1704
    %v1843 = vsel %vm1566, %v1168, %v1705
    %v1844 = vsel %vm1567, %v1173, %v1706
    %v1845 = vsel %vm1568, %v1176, %v1707
    %v1846 = vsel %vm1569, %v1181, %v1708
    %v1847 = vsel %vm1570, %v1184, %v1709
    %v1848 = vsel %vm1571, %v1189, %v1710
    %v1849 = vsel %vm1572, %v1192, %v1711
    %v1850 = vsel %vm1573, %v1197, %v1712
    %v1851 = vsel %vm1574, %v1200, %v1713
    %v1852 = vsel %vm1575, %v1205, %v1714
    %v1853 = vsel %vm1576, %v1208, %v1715
    %v1854 = vsel %vm1577, %v1213, %v1716
    %v1855 = vsel %vm1578, %v1226, %v1717
    %v1856 = vsel %vm1579, %v1229, %v1718
    %v1857 = vsel %vm1580, %v1234, %v1719
    %v1858 = vsel %vm1581, %v1237, %v1720
    %v1859 = vsel %vm1582, %v1242, %v1721
    %v1860 = vsel %vm1583, %v1245, %v1722
    %v1861 = vsel %vm1584, %v1250, %v1723
    %v1862 = vsel %vm1585, %v1253, %v1724
    %v1863 = vsel %vm1586, %v1258, %v1725
    %v1864 = vsel %vm1587, %v1261, %v1726
    %v1865 = vsel %vm1588, %v1266, %v1727
    %v1866 = vsel %vm1589, %v1269, %v1728
    %v1867 = vsel %vm1590, %v1274, %v1729
    %v1868 = vsel %vm1591, %v1277, %v1730
    %v1869 = vsel %vm1592, %v1282, %v1731
    %v1870 = vsel %vm1593, %v1285, %v1732
    %v1871 = vsel %vm1594, %v1290, %v1733
    %v1872 = vsel %vm1595, %v1293, %v1734
    %v1873 = vsel %vm1596, %v1298, %v1735
    %v1874 = vsel %vm1597, %v1301, %v1736
    %v1875 = vsel %vm1598, %v1306, %v1737
    %v1876 = vsel %vm1599, %v1309, %v1738
    %v1877 = vsel %vm1600, %v1314, %v1739
    %v1878 = vsel %vm1601, %v1317, %v1740
    %v1879 = vsel %vm1602, %v1322, %v1741
    %v1880 = vsel %vm1603, %v1325, %v1742
    %v1881 = vsel %vm1604, %v1330, %v1743
    %v1882 = vsel %vm1605, %v1333, %v1744
    %v1883 = vsel %vm1606, %v1338, %v1745
    %v1884 = vsel %vm1607, %v1341, %v1746
    %v1885 = vsel %vm1608, %v1346, %v1747
    %v1886 = vsel %vm1609, %v1349, %v1748
    %v1887 = vsel %vm1610, %v1354, %v1749
    %v1888 = vsel %vm1611, %v1357, %v1750
    %v1889 = vsel %vm1612, %v1362, %v1751
    %v1890 = vsel %vm1613, %v1365, %v1752
    %v1891 = vsel %vm1614, %v1370, %v1753
    %v1892 = vsel %vm1615, %v1373, %v1754
    %v1893 = vsel %vm1616, %v1378, %v1755
    %v1894 = vsel %vm1617, %v1381, %v1756
    %v1895 = vsel %vm1618, %v1386, %v1757
    %v1896 = vsel %vm1619, %v1389, %v1758
    %v1897 = vsel %vm1620, %v1394, %v1759
    %v1898 = vsel %vm1621, %v1397, %v1760
    %v1899 = vsel %vm1622, %v1402, %v1761
    %v1900 = vsel %vm1623, %v1405, %v1762
    %v1901 = vsel %vm1624, %v1410, %v1763
    %v1902 = vsel %vm1625, %v1413, %v1764
    %v1903 = vsel %vm1626, %v1418, %v1765
    %v1904 = vsel %vm1627, %v1421, %v1766
    %v1905 = vsel %vm1628, %v1426, %v1767
    %v1906 = vsel %vm1629, %v1429, %v1768
    %v1907 = vsel %vm1630, %v1434, %v1769
    %v1908 = vsel %vm1631, %v1437, %v1770
    %v1909 = vsel %vm1632, %v1442, %v1771
    %v1910 = vsel %vm1633, %v1445, %v1772
    %v1911 = vsel %vm1634, %v1450, %v1773
    %v1912 = vsel %vm1635, %v1453, %v1774
    %v1913 = vsel %vm1636, %v1458, %v1775
    %v1914 = vsel %vm1637, %v1461, %v1776
    %v1915 = vsel %vm1638, %v1466, %v1777
    %v1916 = vsel %vm1639, %v1469, %v1778
    %v1917 = vsel %vm1640, %v1474, %v1779
    %v1918 = vsel %vm1641, %v1477, %v1780
    %v1919 = vsel %vm1642, %v1482, %v1781
    %v1920 = vsel %vm1643, %v1485, %v1782
    %v1921 = vsel %vm1644, %v1490, %v1783
    %v1922 = vsel %vm1645, %v1493, %v1784
    %v1923 = vsel %vm1646, %v1498, %v1785
    %v1924 = vpack.c.bf16 %v1787, %v1786
    %v1925 = vpack.c.bf16 %v1788, %v1788
    %v1926 = vpack.c.bf16 %v1790, %v1789
    %v1927 = vpack.c.bf16 %v1791, %v1791
    %v1928 = vpack.c.bf16 %v1793, %v1792
    %v1929 = vpack.c.bf16 %v1794, %v1794
    %v1930 = vpack.c.bf16 %v1796, %v1795
    %v1931 = vpack.c.bf16 %v1797, %v1797
    %v1932 = vpack.c.bf16 %v1799, %v1798
    %v1933 = vpack.c.bf16 %v1800, %v1800
    %v1934 = vpack.c.bf16 %v1802, %v1801
    %v1935 = vpack.c.bf16 %v1803, %v1803
    %v1936 = vpack.c.bf16 %v1805, %v1804
    %v1937 = vpack.c.bf16 %v1806, %v1806
    %v1938 = vpack.c.bf16 %v1808, %v1807
    %v1939 = vpack.c.bf16 %v1809, %v1809
    %v1940 = vpack.c.bf16 %v1811, %v1810
    %v1941 = vpack.c.bf16 %v1812, %v1812
    %v1942 = vpack.c.bf16 %v1814, %v1813
    %v1943 = vpack.c.bf16 %v1815, %v1815
    %v1944 = vpack.c.bf16 %v1817, %v1816
    %v1945 = vpack.c.bf16 %v1818, %v1818
    %v1946 = vpack.c.bf16 %v1820, %v1819
    %v1947 = vpack.c.bf16 %v1821, %v1821
    %v1948 = vpack.c.bf16 %v1823, %v1822
    %v1949 = vpack.c.bf16 %v1824, %v1824
    %v1950 = vpack.c.bf16 %v1826, %v1825
    %v1951 = vpack.c.bf16 %v1827, %v1827
    %v1952 = vpack.c.bf16 %v1829, %v1828
    %v1953 = vpack.c.bf16 %v1830, %v1830
    %v1954 = vpack.c.bf16 %v1832, %v1831
    %v1955 = vpack.c.bf16 %v1833, %v1833
    %v1956 = vpack.c.bf16 %v1835, %v1834
    %v1957 = vpack.c.bf16 %v1836, %v1836
    %v1958 = vpack.c.bf16 %v1838, %v1837
    %v1959 = vpack.c.bf16 %v1839, %v1839
    %v1960 = vpack.c.bf16 %v1841, %v1840
    %v1961 = vpack.c.bf16 %v1842, %v1842
    %v1962 = vpack.c.bf16 %v1844, %v1843
    %v1963 = vpack.c.bf16 %v1845, %v1845
    %v1964 = vpack.c.bf16 %v1847, %v1846
    %v1965 = vpack.c.bf16 %v1848, %v1848
    %v1966 = vpack.c.bf16 %v1850, %v1849
    %v1967 = vpack.c.bf16 %v1851, %v1851
    %v1968 = vpack.c.bf16 %v1853, %v1852
    %v1969 = vpack.c.bf16 %v1854, %v1854
    %v1970 = vpack.c.bf16 %v1856, %v1855
    %v1971 = vpack.c.bf16 %v1857, %v1857
    %v1972 = vpack.c.bf16 %v1859, %v1858
    %v1973 = vpack.c.bf16 %v1860, %v1860
    %v1974 = vpack.c.bf16 %v1862, %v1861
    %v1975 = vpack.c.bf16 %v1863, %v1863
    %v1976 = vpack.c.bf16 %v1865, %v1864
    %v1977 = vpack.c.bf16 %v1866, %v1866
    %v1978 = vpack.c.bf16 %v1868, %v1867
    %v1979 = vpack.c.bf16 %v1869, %v1869
    %v1980 = vpack.c.bf16 %v1871, %v1870
    %v1981 = vpack.c.bf16 %v1872, %v1872
    %v1982 = vpack.c.bf16 %v1874, %v1873
    %v1983 = vpack.c.bf16 %v1875, %v1875
    %v1984 = vpack.c.bf16 %v1877, %v1876
    %v1985 = vpack.c.bf16 %v1878, %v1878
    %v1986 = vpack.c.bf16 %v1880, %v1879
    %v1987 = vpack.c.bf16 %v1881, %v1881
    %v1988 = vpack.c.bf16 %v1883, %v1882
    %v1989 = vpack.c.bf16 %v1884, %v1884
    %v1990 = vpack.c.bf16 %v1886, %v1885
    %v1991 = vpack.c.bf16 %v1887, %v1887
    %v1992 = vpack.c.bf16 %v1889, %v1888
    %v1993 = vpack.c.bf16 %v1890, %v1890
    %v1994 = vpack.c.bf16 %v1892, %v1891
    %v1995 = vpack.c.bf16 %v1893, %v1893
    %v1996 = vpack.c.bf16 %v1895, %v1894
    %v1997 = vpack.c.bf16 %v1896, %v1896
    %v1998 = vpack.c.bf16 %v1898, %v1897
    %v1999 = vpack.c.bf16 %v1899, %v1899
    %v2000 = vpack.c.bf16 %v1901, %v1900
    %v2001 = vpack.c.bf16 %v1902, %v1902
    %v2002 = vpack.c.bf16 %v1904, %v1903
    %v2003 = vpack.c.bf16 %v1905, %v1905
    %v2004 = vpack.c.bf16 %v1907, %v1906
    %v2005 = vpack.c.bf16 %v1908, %v1908
    %v2006 = vpack.c.bf16 %v1910, %v1909
    %v2007 = vpack.c.bf16 %v1911, %v1911
    %v2008 = vpack.c.bf16 %v1913, %v1912
    %v2009 = vpack.c.bf16 %v1914, %v1914
    %v2010 = vpack.c.bf16 %v1916, %v1915
    %v2011 = vpack.c.bf16 %v1917, %v1917
    %v2012 = vpack.c.bf16 %v1919, %v1918
    %v2013 = vpack.c.bf16 %v1920, %v1920
    %v2014 = vpack.c.bf16 %v1922, %v1921
    %v2015 = vpack.c.bf16 %v1923, %v1923
    %v2016 = vmax.bf16 %v1924, %v1926
    %v2017 = vmax.bf16 %v1925, %v1927
    %v2018 = vmax.bf16 %v1928, %v1930
    %v2019 = vmax.bf16 %v1929, %v1931
    %v2020 = vmax.bf16 %v1932, %v1934
    %v2021 = vmax.bf16 %v1933, %v1935
    %v2022 = vmax.bf16 %v1936, %v1938
    %v2023 = vmax.bf16 %v1937, %v1939
    %v2024 = vmax.bf16 %v1940, %v1942
    %v2025 = vmax.bf16 %v1941, %v1943
    %v2026 = vmax.bf16 %v1944, %v1946
    %v2027 = vmax.bf16 %v1945, %v1947
    %v2028 = vmax.bf16 %v1948, %v1950
    %v2029 = vmax.bf16 %v1949, %v1951
    %v2030 = vmax.bf16 %v1952, %v1954
    %v2031 = vmax.bf16 %v1953, %v1955
    %v2032 = vmax.bf16 %v1956, %v1958
    %v2033 = vmax.bf16 %v1957, %v1959
    %v2034 = vmax.bf16 %v1960, %v1962
    %v2035 = vmax.bf16 %v1961, %v1963
    %v2036 = vmax.bf16 %v1964, %v1966
    %v2037 = vmax.bf16 %v1965, %v1967
    %v2038 = vmax.bf16 %v1970, %v1972
    %v2039 = vmax.bf16 %v1971, %v1973
    %v2040 = vmax.bf16 %v1974, %v1976
    %v2041 = vmax.bf16 %v1975, %v1977
    %v2042 = vmax.bf16 %v1978, %v1980
    %v2043 = vmax.bf16 %v1979, %v1981
    %v2044 = vmax.bf16 %v1982, %v1984
    %v2045 = vmax.bf16 %v1983, %v1985
    %v2046 = vmax.bf16 %v1986, %v1988
    %v2047 = vmax.bf16 %v1987, %v1989
    %v2048 = vmax.bf16 %v1990, %v1992
    %v2049 = vmax.bf16 %v1991, %v1993
    %v2050 = vmax.bf16 %v1994, %v1996
    %v2051 = vmax.bf16 %v1995, %v1997
    %v2052 = vmax.bf16 %v1998, %v2000
    %v2053 = vmax.bf16 %v1999, %v2001
    %v2054 = vmax.bf16 %v2002, %v2004
    %v2055 = vmax.bf16 %v2003, %v2005
    %v2056 = vmax.bf16 %v2006, %v2008
    %v2057 = vmax.bf16 %v2007, %v2009
    %v2058 = vmax.bf16 %v2010, %v2012
    %v2059 = vmax.bf16 %v2011, %v2013
    %v2060 = vmax.bf16 %v2016, %v1928
    %v2061 = vmax.bf16 %v2017, %v1929
    %v2062 = vmax.bf16 %v2018, %v1932
    %v2063 = vmax.bf16 %v2019, %v1933
    %v2064 = vmax.bf16 %v2020, %v1936
    %v2065 = vmax.bf16 %v2021, %v1937
    %v2066 = vmax.bf16 %v2022, %v1940
    %v2067 = vmax.bf16 %v2023, %v1941
    %v2068 = vmax.bf16 %v2024, %v1944
    %v2069 = vmax.bf16 %v2025, %v1945
    %v2070 = vmax.bf16 %v2026, %v1948
    %v2071 = vmax.bf16 %v2027, %v1949
    %v2072 = vmax.bf16 %v2028, %v1952
    %v2073 = vmax.bf16 %v2029, %v1953
    %v2074 = vmax.bf16 %v2030, %v1956
    %v2075 = vmax.bf16 %v2031, %v1957
    %v2076 = vmax.bf16 %v2032, %v1960
    %v2077 = vmax.bf16 %v2033, %v1961
    %v2078 = vmax.bf16 %v2034, %v1964
    %v2079 = vmax.bf16 %v2035, %v1965
    %v2080 = vmax.bf16 %v2036, %v1968
    %v2081 = vmax.bf16 %v2037, %v1969
    %v2082 = vmax.bf16 %v2038, %v1974
    %v2083 = vmax.bf16 %v2039, %v1975
    %v2084 = vmax.bf16 %v2040, %v1978
    %v2085 = vmax.bf16 %v2041, %v1979
    %v2086 = vmax.bf16 %v2042, %v1982
    %v2087 = vmax.bf16 %v2043, %v1983
    %v2088 = vmax.bf16 %v2044, %v1986
    %v2089 = vmax.bf16 %v2045, %v1987
    %v2090 = vmax.bf16 %v2046, %v1990
    %v2091 = vmax.bf16 %v2047, %v1991
    %v2092 = vmax.bf16 %v2048, %v1994
    %v2093 = vmax.bf16 %v2049, %v1995
    %v2094 = vmax.bf16 %v2050, %v1998
    %v2095 = vmax.bf16 %v2051, %v1999
    %v2096 = vmax.bf16 %v2052, %v2002
    %v2097 = vmax.bf16 %v2053, %v2003
    %v2098 = vmax.bf16 %v2054, %v2006
    %v2099 = vmax.bf16 %v2055, %v2007
    %v2100 = vmax.bf16 %v2056, %v2010
    %v2101 = vmax.bf16 %v2057, %v2011
    %v2102 = vmax.bf16 %v2058, %v2014
    %v2103 = vmax.bf16 %v2059, %v2015
    %vm2104 = vsmask.f32 7424
    %v2106 = vshrl.u32 %v2060, 16
    %v2108 = vshll.u32 %v2060, 16
    %v2110 = vrot.slane %v2108, 1
    %v2111 = vor.u32 %v2106, %v2110
    %v2113 = vshll.u32 %v2061, 16
    %v2115 = vrot.slane %v2113, 1
    %v2116 = vsel %vm2104, %v2111, %v2115
    %v2117 = vshrl.u32 %v2061, 16
    %v2119 = vor.u32 %v2117, %v2115
    %v2121 = vshrl.u32 %v2062, 16
    %v2123 = vshll.u32 %v2062, 16
    %v2125 = vrot.slane %v2123, 1
    %v2126 = vor.u32 %v2121, %v2125
    %v2128 = vshll.u32 %v2063, 16
    %v2130 = vrot.slane %v2128, 1
    %v2131 = vsel %vm2104, %v2126, %v2130
    %v2132 = vshrl.u32 %v2063, 16
    %v2134 = vor.u32 %v2132, %v2130
    %v2136 = vshrl.u32 %v2064, 16
    %v2138 = vshll.u32 %v2064, 16
    %v2140 = vrot.slane %v2138, 1
    %v2141 = vor.u32 %v2136, %v2140
    %v2143 = vshll.u32 %v2065, 16
    %v2145 = vrot.slane %v2143, 1
    %v2146 = vsel %vm2104, %v2141, %v2145
    %v2147 = vshrl.u32 %v2065, 16
    %v2149 = vor.u32 %v2147, %v2145
    %v2151 = vshrl.u32 %v2066, 16
    %v2153 = vshll.u32 %v2066, 16
    %v2155 = vrot.slane %v2153, 1
    %v2156 = vor.u32 %v2151, %v2155
    %v2158 = vshll.u32 %v2067, 16
    %v2160 = vrot.slane %v2158, 1
    %v2161 = vsel %vm2104, %v2156, %v2160
    %v2162 = vshrl.u32 %v2067, 16
    %v2164 = vor.u32 %v2162, %v2160
    %v2166 = vshrl.u32 %v2068, 16
    %v2168 = vshll.u32 %v2068, 16
    %v2170 = vrot.slane %v2168, 1
    %v2171 = vor.u32 %v2166, %v2170
    %v2173 = vshll.u32 %v2069, 16
    %v2175 = vrot.slane %v2173, 1
    %v2176 = vsel %vm2104, %v2171, %v2175
    %v2177 = vshrl.u32 %v2069, 16
    %v2179 = vor.u32 %v2177, %v2175
    %v2181 = vshrl.u32 %v2070, 16
    %v2183 = vshll.u32 %v2070, 16
    %v2185 = vrot.slane %v2183, 1
    %v2186 = vor.u32 %v2181, %v2185
    %v2188 = vshll.u32 %v2071, 16
    %v2190 = vrot.slane %v2188, 1
    %v2191 = vsel %vm2104, %v2186, %v2190
    %v2192 = vshrl.u32 %v2071, 16
    %v2194 = vor.u32 %v2192, %v2190
    %v2196 = vshrl.u32 %v2072, 16
    %v2198 = vshll.u32 %v2072, 16
    %v2200 = vrot.slane %v2198, 1
    %v2201 = vor.u32 %v2196, %v2200
    %v2203 = vshll.u32 %v2073, 16
    %v2205 = vrot.slane %v2203, 1
    %v2206 = vsel %vm2104, %v2201, %v2205
    %v2207 = vshrl.u32 %v2073, 16
    %v2209 = vor.u32 %v2207, %v2205
    %v2211 = vshrl.u32 %v2074, 16
    %v2213 = vshll.u32 %v2074, 16
    %v2215 = vrot.slane %v2213, 1
    %v2216 = vor.u32 %v2211, %v2215
    %v2218 = vshll.u32 %v2075, 16
    %v2220 = vrot.slane %v2218, 1
    %v2221 = vsel %vm2104, %v2216, %v2220
    %v2222 = vshrl.u32 %v2075, 16
    %v2224 = vor.u32 %v2222, %v2220
    %v2226 = vshrl.u32 %v2076, 16
    %v2228 = vshll.u32 %v2076, 16
    %v2230 = vrot.slane %v2228, 1
    %v2231 = vor.u32 %v2226, %v2230
    %v2233 = vshll.u32 %v2077, 16
    %v2235 = vrot.slane %v2233, 1
    %v2236 = vsel %vm2104, %v2231, %v2235
    %v2237 = vshrl.u32 %v2077, 16
    %v2239 = vor.u32 %v2237, %v2235
    %v2241 = vshrl.u32 %v2078, 16
    %v2243 = vshll.u32 %v2078, 16
    %v2245 = vrot.slane %v2243, 1
    %v2246 = vor.u32 %v2241, %v2245
    %v2248 = vshll.u32 %v2079, 16
    %v2250 = vrot.slane %v2248, 1
    %v2251 = vsel %vm2104, %v2246, %v2250
    %v2252 = vshrl.u32 %v2079, 16
    %v2254 = vor.u32 %v2252, %v2250
    %v2256 = vshrl.u32 %v2080, 16
    %v2258 = vshll.u32 %v2080, 16
    %v2260 = vrot.slane %v2258, 1
    %v2261 = vor.u32 %v2256, %v2260
    %v2263 = vshll.u32 %v2081, 16
    %v2265 = vrot.slane %v2263, 1
    %v2266 = vsel %vm2104, %v2261, %v2265
    %v2267 = vshrl.u32 %v2081, 16
    %v2269 = vor.u32 %v2267, %v2265
    %v2271 = vshrl.u32 %v2082, 16
    %v2273 = vshll.u32 %v2082, 16
    %v2275 = vrot.slane %v2273, 1
    %v2276 = vor.u32 %v2271, %v2275
    %v2278 = vshll.u32 %v2083, 16
    %v2280 = vrot.slane %v2278, 1
    %v2281 = vsel %vm2104, %v2276, %v2280
    %v2282 = vshrl.u32 %v2083, 16
    %v2284 = vor.u32 %v2282, %v2280
    %v2286 = vshrl.u32 %v2084, 16
    %v2288 = vshll.u32 %v2084, 16
    %v2290 = vrot.slane %v2288, 1
    %v2291 = vor.u32 %v2286, %v2290
    %v2293 = vshll.u32 %v2085, 16
    %v2295 = vrot.slane %v2293, 1
    %v2296 = vsel %vm2104, %v2291, %v2295
    %v2297 = vshrl.u32 %v2085, 16
    %v2299 = vor.u32 %v2297, %v2295
    %v2301 = vshrl.u32 %v2086, 16
    %v2303 = vshll.u32 %v2086, 16
    %v2305 = vrot.slane %v2303, 1
    %v2306 = vor.u32 %v2301, %v2305
    %v2308 = vshll.u32 %v2087, 16
    %v2310 = vrot.slane %v2308, 1
    %v2311 = vsel %vm2104, %v2306, %v2310
    %v2312 = vshrl.u32 %v2087, 16
    %v2314 = vor.u32 %v2312, %v2310
    %v2316 = vshrl.u32 %v2088, 16
    %v2318 = vshll.u32 %v2088, 16
    %v2320 = vrot.slane %v2318, 1
    %v2321 = vor.u32 %v2316, %v2320
    %v2323 = vshll.u32 %v2089, 16
    %v2325 = vrot.slane %v2323, 1
    %v2326 = vsel %vm2104, %v2321, %v2325
    %v2327 = vshrl.u32 %v2089, 16
    %v2329 = vor.u32 %v2327, %v2325
    %v2331 = vshrl.u32 %v2090, 16
    %v2333 = vshll.u32 %v2090, 16
    %v2335 = vrot.slane %v2333, 1
    %v2336 = vor.u32 %v2331, %v2335
    %v2338 = vshll.u32 %v2091, 16
    %v2340 = vrot.slane %v2338, 1
    %v2341 = vsel %vm2104, %v2336, %v2340
    %v2342 = vshrl.u32 %v2091, 16
    %v2344 = vor.u32 %v2342, %v2340
    %v2346 = vshrl.u32 %v2092, 16
    %v2348 = vshll.u32 %v2092, 16
    %v2350 = vrot.slane %v2348, 1
    %v2351 = vor.u32 %v2346, %v2350
    %v2353 = vshll.u32 %v2093, 16
    %v2355 = vrot.slane %v2353, 1
    %v2356 = vsel %vm2104, %v2351, %v2355
    %v2357 = vshrl.u32 %v2093, 16
    %v2359 = vor.u32 %v2357, %v2355
    %v2361 = vshrl.u32 %v2094, 16
    %v2363 = vshll.u32 %v2094, 16
    %v2365 = vrot.slane %v2363, 1
    %v2366 = vor.u32 %v2361, %v2365
    %v2368 = vshll.u32 %v2095, 16
    %v2370 = vrot.slane %v2368, 1
    %v2371 = vsel %vm2104, %v2366, %v2370
    %v2372 = vshrl.u32 %v2095, 16
    %v2374 = vor.u32 %v2372, %v2370
    %v2376 = vshrl.u32 %v2096, 16
    %v2378 = vshll.u32 %v2096, 16
    %v2380 = vrot.slane %v2378, 1
    %v2381 = vor.u32 %v2376, %v2380
    %v2383 = vshll.u32 %v2097, 16
    %v2385 = vrot.slane %v2383, 1
    %v2386 = vsel %vm2104, %v2381, %v2385
    %v2387 = vshrl.u32 %v2097, 16
    %v2389 = vor.u32 %v2387, %v2385
    %v2391 = vshrl.u32 %v2098, 16
    %v2393 = vshll.u32 %v2098, 16
    %v2395 = vrot.slane %v2393, 1
    %v2396 = vor.u32 %v2391, %v2395
    %v2398 = vshll.u32 %v2099, 16
    %v2400 = vrot.slane %v2398, 1
    %v2401 = vsel %vm2104, %v2396, %v2400
    %v2402 = vshrl.u32 %v2099, 16
    %v2404 = vor.u32 %v2402, %v2400
    %v2406 = vshrl.u32 %v2100, 16
    %v2408 = vshll.u32 %v2100, 16
    %v2410 = vrot.slane %v2408, 1
    %v2411 = vor.u32 %v2406, %v2410
    %v2413 = vshll.u32 %v2101, 16
    %v2415 = vrot.slane %v2413, 1
    %v2416 = vsel %vm2104, %v2411, %v2415
    %v2417 = vshrl.u32 %v2101, 16
    %v2419 = vor.u32 %v2417, %v2415
    %v2421 = vshrl.u32 %v2102, 16
    %v2423 = vshll.u32 %v2102, 16
    %v2425 = vrot.slane %v2423, 1
    %v2426 = vor.u32 %v2421, %v2425
    %v2428 = vshll.u32 %v2103, 16
    %v2430 = vrot.slane %v2428, 1
    %v2431 = vsel %vm2104, %v2426, %v2430
    %v2432 = vshrl.u32 %v2103, 16
    %v2434 = vor.u32 %v2432, %v2430
    %v2479 = vmax.bf16 %v2060, %v2116
    %v2480 = vmax.bf16 %v2061, %v2119
    %v2481 = vmax.bf16 %v2062, %v2131
    %v2482 = vmax.bf16 %v2063, %v2134
    %v2483 = vmax.bf16 %v2064, %v2146
    %v2484 = vmax.bf16 %v2065, %v2149
    %v2485 = vmax.bf16 %v2066, %v2161
    %v2486 = vmax.bf16 %v2067, %v2164
    %v2487 = vmax.bf16 %v2068, %v2176
    %v2488 = vmax.bf16 %v2069, %v2179
    %v2489 = vmax.bf16 %v2070, %v2191
    %v2490 = vmax.bf16 %v2071, %v2194
    %v2491 = vmax.bf16 %v2072, %v2206
    %v2492 = vmax.bf16 %v2073, %v2209
    %v2493 = vmax.bf16 %v2074, %v2221
    %v2494 = vmax.bf16 %v2075, %v2224
    %v2495 = vmax.bf16 %v2076, %v2236
    %v2496 = vmax.bf16 %v2077, %v2239
    %v2497 = vmax.bf16 %v2078, %v2251
    %v2498 = vmax.bf16 %v2079, %v2254
    %v2499 = vmax.bf16 %v2080, %v2266
    %v2500 = vmax.bf16 %v2081, %v2269
    %v2501 = vmax.bf16 %v2082, %v2281
    %v2502 = vmax.bf16 %v2083, %v2284
    %v2503 = vmax.bf16 %v2084, %v2296
    %v2504 = vmax.bf16 %v2085, %v2299
    %v2505 = vmax.bf16 %v2086, %v2311
    %v2506 = vmax.bf16 %v2087, %v2314
    %v2507 = vmax.bf16 %v2088, %v2326
    %v2508 = vmax.bf16 %v2089, %v2329
    %v2509 = vmax.bf16 %v2090, %v2341
    %v2510 = vmax.bf16 %v2091, %v2344
    %v2511 = vmax.bf16 %v2092, %v2356
    %v2512 = vmax.bf16 %v2093, %v2359
    %v2513 = vmax.bf16 %v2094, %v2371
    %v2514 = vmax.bf16 %v2095, %v2374
    %v2515 = vmax.bf16 %v2096, %v2386
    %v2516 = vmax.bf16 %v2097, %v2389
    %v2517 = vmax.bf16 %v2098, %v2401
    %v2518 = vmax.bf16 %v2099, %v2404
    %v2519 = vmax.bf16 %v2100, %v2416
    %v2520 = vmax.bf16 %v2101, %v2419
    %v2521 = vmax.bf16 %v2102, %v2431
    %v2522 = vmax.bf16 %v2103, %v2434
    %vm2567 = vcmask 1046528
    %v2568 = vrot.slane %v2060, 1
    %v2569 = vrot.slane %v2061, 1
    %v2570 = vsel %vm2567, %v2568, %v2569
    %v2571 = vrot.slane %v2062, 1
    %v2572 = vrot.slane %v2063, 1
    %v2573 = vsel %vm2567, %v2571, %v2572
    %v2574 = vrot.slane %v2064, 1
    %v2575 = vrot.slane %v2065, 1
    %v2576 = vsel %vm2567, %v2574, %v2575
    %v2577 = vrot.slane %v2066, 1
    %v2578 = vrot.slane %v2067, 1
    %v2579 = vsel %vm2567, %v2577, %v2578
    %v2580 = vrot.slane %v2068, 1
    %v2581 = vrot.slane %v2069, 1
    %v2582 = vsel %vm2567, %v2580, %v2581
    %v2583 = vrot.slane %v2070, 1
    %v2584 = vrot.slane %v2071, 1
    %v2585 = vsel %vm2567, %v2583, %v2584
    %v2586 = vrot.slane %v2072, 1
    %v2587 = vrot.slane %v2073, 1
    %v2588 = vsel %vm2567, %v2586, %v2587
    %v2589 = vrot.slane %v2074, 1
    %v2590 = vrot.slane %v2075, 1
    %v2591 = vsel %vm2567, %v2589, %v2590
    %v2592 = vrot.slane %v2076, 1
    %v2593 = vrot.slane %v2077, 1
    %v2594 = vsel %vm2567, %v2592, %v2593
    %v2595 = vrot.slane %v2078, 1
    %v2596 = vrot.slane %v2079, 1
    %v2597 = vsel %vm2567, %v2595, %v2596
    %v2598 = vrot.slane %v2080, 1
    %v2599 = vrot.slane %v2081, 1
    %v2600 = vsel %vm2567, %v2598, %v2599
    %v2601 = vrot.slane %v2082, 1
    %v2602 = vrot.slane %v2083, 1
    %v2603 = vsel %vm2567, %v2601, %v2602
    %v2604 = vrot.slane %v2084, 1
    %v2605 = vrot.slane %v2085, 1
    %v2606 = vsel %vm2567, %v2604, %v2605
    %v2607 = vrot.slane %v2086, 1
    %v2608 = vrot.slane %v2087, 1
    %v2609 = vsel %vm2567, %v2607, %v2608
    %v2610 = vrot.slane %v2088, 1
    %v2611 = vrot.slane %v2089, 1
    %v2612 = vsel %vm2567, %v2610, %v2611
    %v2613 = vrot.slane %v2090, 1
    %v2614 = vrot.slane %v2091, 1
    %v2615 = vsel %vm2567, %v2613, %v2614
    %v2616 = vrot.slane %v2092, 1
    %v2617 = vrot.slane %v2093, 1
    %v2618 = vsel %vm2567, %v2616, %v2617
    %v2619 = vrot.slane %v2094, 1
    %v2620 = vrot.slane %v2095, 1
    %v2621 = vsel %vm2567, %v2619, %v2620
    %v2622 = vrot.slane %v2096, 1
    %v2623 = vrot.slane %v2097, 1
    %v2624 = vsel %vm2567, %v2622, %v2623
    %v2625 = vrot.slane %v2098, 1
    %v2626 = vrot.slane %v2099, 1
    %v2627 = vsel %vm2567, %v2625, %v2626
    %v2628 = vrot.slane %v2100, 1
    %v2629 = vrot.slane %v2101, 1
    %v2630 = vsel %vm2567, %v2628, %v2629
    %v2631 = vrot.slane %v2102, 1
    %v2632 = vrot.slane %v2103, 1
    %v2633 = vsel %vm2567, %v2631, %v2632
    %v2678 = vmax.bf16 %v2479, %v2570
    %v2679 = vmax.bf16 %v2480, %v2569
    %v2680 = vmax.bf16 %v2481, %v2573
    %v2681 = vmax.bf16 %v2482, %v2572
    %v2682 = vmax.bf16 %v2483, %v2576
    %v2683 = vmax.bf16 %v2484, %v2575
    %v2684 = vmax.bf16 %v2485, %v2579
    %v2685 = vmax.bf16 %v2486, %v2578
    %v2686 = vmax.bf16 %v2487, %v2582
    %v2687 = vmax.bf16 %v2488, %v2581
    %v2688 = vmax.bf16 %v2489, %v2585
    %v2689 = vmax.bf16 %v2490, %v2584
    %v2690 = vmax.bf16 %v2491, %v2588
    %v2691 = vmax.bf16 %v2492, %v2587
    %v2692 = vmax.bf16 %v2493, %v2591
    %v2693 = vmax.bf16 %v2494, %v2590
    %v2694 = vmax.bf16 %v2495, %v2594
    %v2695 = vmax.bf16 %v2496, %v2593
    %v2696 = vmax.bf16 %v2497, %v2597
    %v2697 = vmax.bf16 %v2498, %v2596
    %v2698 = vmax.bf16 %v2499, %v2600
    %v2699 = vmax.bf16 %v2500, %v2599
    %v2700 = vmax.bf16 %v2501, %v2603
    %v2701 = vmax.bf16 %v2502, %v2602
    %v2702 = vmax.bf16 %v2503, %v2606
    %v2703 = vmax.bf16 %v2504, %v2605
    %v2704 = vmax.bf16 %v2505, %v2609
    %v2705 = vmax.bf16 %v2506, %v2608
    %v2706 = vmax.bf16 %v2507, %v2612
    %v2707 = vmax.bf16 %v2508, %v2611
    %v2708 = vmax.bf16 %v2509, %v2615
    %v2709 = vmax.bf16 %v2510, %v2614
    %v2710 = vmax.bf16 %v2511, %v2618
    %v2711 = vmax.bf16 %v2512, %v2617
    %v2712 = vmax.bf16 %v2513, %v2621
    %v2713 = vmax.bf16 %v2514, %v2620
    %v2714 = vmax.bf16 %v2515, %v2624
    %v2715 = vmax.bf16 %v2516, %v2623
    %v2716 = vmax.bf16 %v2517, %v2627
    %v2717 = vmax.bf16 %v2518, %v2626
    %v2718 = vmax.bf16 %v2519, %v2630
    %v2719 = vmax.bf16 %v2520, %v2629
    %v2720 = vmax.bf16 %v2521, %v2633
    %v2721 = vmax.bf16 %v2522, %v2632
    %v2723 = vshll.u32 %v2678, 16
    %v2725 = vrot.slane %v2723, 1
    %v2727 = vshll.u32 %v2680, 16
    %v2729 = vrot.slane %v2727, 1
    %v2731 = vshll.u32 %v2682, 16
    %v2733 = vrot.slane %v2731, 1
    %v2735 = vshll.u32 %v2684, 16
    %v2737 = vrot.slane %v2735, 1
    %v2739 = vshll.u32 %v2686, 16
    %v2741 = vrot.slane %v2739, 1
    %v2743 = vshll.u32 %v2688, 16
    %v2745 = vrot.slane %v2743, 1
    %v2747 = vshll.u32 %v2690, 16
    %v2749 = vrot.slane %v2747, 1
    %v2751 = vshll.u32 %v2692, 16
    %v2753 = vrot.slane %v2751, 1
    %v2755 = vshll.u32 %v2694, 16
    %v2757 = vrot.slane %v2755, 1
    %v2759 = vshll.u32 %v2696, 16
    %v2761 = vrot.slane %v2759, 1
    %v2763 = vshll.u32 %v2698, 16
    %v2765 = vrot.slane %v2763, 1
    %v2767 = vshll.u32 %v2700, 16
    %v2769 = vrot.slane %v2767, 1
    %v2771 = vshll.u32 %v2702, 16
    %v2773 = vrot.slane %v2771, 1
    %v2775 = vshll.u32 %v2704, 16
    %v2777 = vrot.slane %v2775, 1
    %v2779 = vshll.u32 %v2706, 16
    %v2781 = vrot.slane %v2779, 1
    %v2783 = vshll.u32 %v2708, 16
    %v2785 = vrot.slane %v2783, 1
    %v2787 = vshll.u32 %v2710, 16
    %v2789 = vrot.slane %v2787, 1
    %v2791 = vshll.u32 %v2712, 16
    %v2793 = vrot.slane %v2791, 1
    %v2795 = vshll.u32 %v2714, 16
    %v2797 = vrot.slane %v2795, 1
    %v2799 = vshll.u32 %v2716, 16
    %v2801 = vrot.slane %v2799, 1
    %v2803 = vshll.u32 %v2718, 16
    %v2805 = vrot.slane %v2803, 1
    %v2807 = vshll.u32 %v2720, 16
    %v2809 = vrot.slane %v2807, 1
    %v2854 = vrot.slane %v2678, 1
    %v2855 = vrot.slane %v2680, 1
    %v2856 = vrot.slane %v2682, 1
    %v2857 = vrot.slane %v2684, 1
    %v2858 = vrot.slane %v2686, 1
    %v2859 = vrot.slane %v2688, 1
    %v2860 = vrot.slane %v2690, 1
    %v2861 = vrot.slane %v2692, 1
    %v2862 = vrot.slane %v2694, 1
    %v2863 = vrot.slane %v2696, 1
    %v2864 = vrot.slane %v2698, 1
    %v2865 = vrot.slane %v2700, 1
    %v2866 = vrot.slane %v2702, 1
    %v2867 = vrot.slane %v2704, 1
    %v2868 = vrot.slane %v2706, 1
    %v2869 = vrot.slane %v2708, 1
    %v2870 = vrot.slane %v2710, 1
    %v2871 = vrot.slane %v2712, 1
    %v2872 = vrot.slane %v2714, 1
    %v2873 = vrot.slane %v2716, 1
    %v2874 = vrot.slane %v2718, 1
    %v2875 = vrot.slane %v2720, 1
    %v2876 = vrot.slane %v2723, 2
    %v2877 = vrot.slane %v2727, 2
    %v2878 = vrot.slane %v2731, 2
    %v2879 = vrot.slane %v2735, 2
    %v2880 = vrot.slane %v2739, 2
    %v2881 = vrot.slane %v2743, 2
    %v2882 = vrot.slane %v2747, 2
    %v2883 = vrot.slane %v2751, 2
    %v2884 = vrot.slane %v2755, 2
    %v2885 = vrot.slane %v2759, 2
    %v2886 = vrot.slane %v2763, 2
    %v2887 = vrot.slane %v2767, 2
    %v2888 = vrot.slane %v2771, 2
    %v2889 = vrot.slane %v2775, 2
    %v2890 = vrot.slane %v2779, 2
    %v2891 = vrot.slane %v2783, 2
    %v2892 = vrot.slane %v2787, 2
    %v2893 = vrot.slane %v2791, 2
    %v2894 = vrot.slane %v2795, 2
    %v2895 = vrot.slane %v2799, 2
    %v2896 = vrot.slane %v2803, 2
    %v2897 = vrot.slane %v2807, 2
    %v2920 = vrot.slane %v2678, 2
    %v2921 = vrot.slane %v2680, 2
    %v2922 = vrot.slane %v2682, 2
    %v2923 = vrot.slane %v2684, 2
    %v2924 = vrot.slane %v2686, 2
    %v2925 = vrot.slane %v2688, 2
    %v2926 = vrot.slane %v2690, 2
    %v2927 = vrot.slane %v2692, 2
    %v2928 = vrot.slane %v2694, 2
    %v2929 = vrot.slane %v2696, 2
    %v2930 = vrot.slane %v2698, 2
    %v2931 = vrot.slane %v2700, 2
    %v2932 = vrot.slane %v2702, 2
    %v2933 = vrot.slane %v2704, 2
    %v2934 = vrot.slane %v2706, 2
    %v2935 = vrot.slane %v2708, 2
    %v2936 = vrot.slane %v2710, 2
    %v2937 = vrot.slane %v2712, 2
    %v2938 = vrot.slane %v2714, 2
    %v2939 = vrot.slane %v2716, 2
    %v2940 = vrot.slane %v2718, 2
    %v2941 = vrot.slane %v2720, 2
    %v2942 = vrot.slane %v2723, 3
    %v2943 = vrot.slane %v2727, 3
    %v2944 = vrot.slane %v2731, 3
    %v2945 = vrot.slane %v2735, 3
    %v2946 = vrot.slane %v2739, 3
    %v2947 = vrot.slane %v2743, 3
    %v2948 = vrot.slane %v2747, 3
    %v2949 = vrot.slane %v2751, 3
    %v2950 = vrot.slane %v2755, 3
    %v2951 = vrot.slane %v2759, 3
    %v2952 = vrot.slane %v2763, 3
    %v2953 = vrot.slane %v2767, 3
    %v2954 = vrot.slane %v2771, 3
    %v2955 = vrot.slane %v2775, 3
    %v2956 = vrot.slane %v2779, 3
    %v2957 = vrot.slane %v2783, 3
    %v2958 = vrot.slane %v2787, 3
    %v2959 = vrot.slane %v2791, 3
    %v2960 = vrot.slane %v2795, 3
    %v2961 = vrot.slane %v2799, 3
    %v2962 = vrot.slane %v2803, 3
    %v2963 = vrot.slane %v2807, 3
    %v2986 = vrot.slane %v2678, 3
    %v2987 = vrot.slane %v2680, 3
    %v2988 = vrot.slane %v2682, 3
    %v2989 = vrot.slane %v2684, 3
    %v2990 = vrot.slane %v2686, 3
    %v2991 = vrot.slane %v2688, 3
    %v2992 = vrot.slane %v2690, 3
    %v2993 = vrot.slane %v2692, 3
    %v2994 = vrot.slane %v2694, 3
    %v2995 = vrot.slane %v2696, 3
    %v2996 = vrot.slane %v2698, 3
    %v2997 = vrot.slane %v2700, 3
    %v2998 = vrot.slane %v2702, 3
    %v2999 = vrot.slane %v2704, 3
    %v3000 = vrot.slane %v2706, 3
    %v3001 = vrot.slane %v2708, 3
    %v3002 = vrot.slane %v2710, 3
    %v3003 = vrot.slane %v2712, 3
    %v3004 = vrot.slane %v2714, 3
    %v3005 = vrot.slane %v2716, 3
    %v3006 = vrot.slane %v2718, 3
    %v3007 = vrot.slane %v2720, 3
    %v3008 = vrot.slane %v2723, 4
    %v3009 = vrot.slane %v2727, 4
    %v3010 = vrot.slane %v2731, 4
    %v3011 = vrot.slane %v2735, 4
    %v3012 = vrot.slane %v2739, 4
    %v3013 = vrot.slane %v2743, 4
    %v3014 = vrot.slane %v2747, 4
    %v3015 = vrot.slane %v2751, 4
    %v3016 = vrot.slane %v2755, 4
    %v3017 = vrot.slane %v2759, 4
    %v3018 = vrot.slane %v2763, 4
    %v3019 = vrot.slane %v2767, 4
    %v3020 = vrot.slane %v2771, 4
    %v3021 = vrot.slane %v2775, 4
    %v3022 = vrot.slane %v2779, 4
    %v3023 = vrot.slane %v2783, 4
    %v3024 = vrot.slane %v2787, 4
    %v3025 = vrot.slane %v2791, 4
    %v3026 = vrot.slane %v2795, 4
    %v3027 = vrot.slane %v2799, 4
    %v3028 = vrot.slane %v2803, 4
    %v3029 = vrot.slane %v2807, 4
    %v3074 = vrot.slane %v2679, 4
    %v3075 = vrot.slane %v2681, 4
    %v3076 = vrot.slane %v2683, 4
    %v3077 = vrot.slane %v2685, 4
    %v3078 = vrot.slane %v2687, 4
    %v3079 = vrot.slane %v2689, 4
    %v3080 = vrot.slane %v2691, 4
    %v3081 = vrot.slane %v2693, 4
    %v3082 = vrot.slane %v2695, 4
    %v3083 = vrot.slane %v2697, 4
    %v3084 = vrot.slane %v2699, 4
    %v3085 = vrot.slane %v2701, 4
    %v3086 = vrot.slane %v2703, 4
    %v3087 = vrot.slane %v2705, 4
    %v3088 = vrot.slane %v2707, 4
    %v3089 = vrot.slane %v2709, 4
    %v3090 = vrot.slane %v2711, 4
    %v3091 = vrot.slane %v2713, 4
    %v3092 = vrot.slane %v2715, 4
    %v3093 = vrot.slane %v2717, 4
    %v3094 = vrot.slane %v2719, 4
    %v3095 = vrot.slane %v2721, 4
    %v3097 = vshll.u32 %v2679, 16
    %v3099 = vrot.slane %v3097, 5
    %v3101 = vshll.u32 %v2681, 16
    %v3103 = vrot.slane %v3101, 5
    %v3105 = vshll.u32 %v2683, 16
    %v3107 = vrot.slane %v3105, 5
    %v3109 = vshll.u32 %v2685, 16
    %v3111 = vrot.slane %v3109, 5
    %v3113 = vshll.u32 %v2687, 16
    %v3115 = vrot.slane %v3113, 5
    %v3117 = vshll.u32 %v2689, 16
    %v3119 = vrot.slane %v3117, 5
    %v3121 = vshll.u32 %v2691, 16
    %v3123 = vrot.slane %v3121, 5
    %v3125 = vshll.u32 %v2693, 16
    %v3127 = vrot.slane %v3125, 5
    %v3129 = vshll.u32 %v2695, 16
    %v3131 = vrot.slane %v3129, 5
    %v3133 = vshll.u32 %v2697, 16
    %v3135 = vrot.slane %v3133, 5
    %v3137 = vshll.u32 %v2699, 16
    %v3139 = vrot.slane %v3137, 5
    %v3141 = vshll.u32 %v2701, 16
    %v3143 = vrot.slane %v3141, 5
    %v3145 = vshll.u32 %v2703, 16
    %v3147 = vrot.slane %v3145, 5
    %v3149 = vshll.u32 %v2705, 16
    %v3151 = vrot.slane %v3149, 5
    %v3153 = vshll.u32 %v2707, 16
    %v3155 = vrot.slane %v3153, 5
    %v3157 = vshll.u32 %v2709, 16
    %v3159 = vrot.slane %v3157, 5
    %v3161 = vshll.u32 %v2711, 16
    %v3163 = vrot.slane %v3161, 5
    %v3165 = vshll.u32 %v2713, 16
    %v3167 = vrot.slane %v3165, 5
    %v3169 = vshll.u32 %v2715, 16
    %v3171 = vrot.slane %v3169, 5
    %v3173 = vshll.u32 %v2717, 16
    %v3175 = vrot.slane %v3173, 5
    %v3177 = vshll.u32 %v2719, 16
    %v3179 = vrot.slane %v3177, 5
    %v3181 = vshll.u32 %v2721, 16
    %v3183 = vrot.slane %v3181, 5
    %v3206 = vrot.slane %v2679, 5
    %v3207 = vrot.slane %v2681, 5
    %v3208 = vrot.slane %v2683, 5
    %v3209 = vrot.slane %v2685, 5
    %v3210 = vrot.slane %v2687, 5
    %v3211 = vrot.slane %v2689, 5
    %v3212 = vrot.slane %v2691, 5
    %v3213 = vrot.slane %v2693, 5
    %v3214 = vrot.slane %v2695, 5
    %v3215 = vrot.slane %v2697, 5
    %v3216 = vrot.slane %v2699, 5
    %v3217 = vrot.slane %v2701, 5
    %v3218 = vrot.slane %v2703, 5
    %v3219 = vrot.slane %v2705, 5
    %v3220 = vrot.slane %v2707, 5
    %v3221 = vrot.slane %v2709, 5
    %v3222 = vrot.slane %v2711, 5
    %v3223 = vrot.slane %v2713, 5
    %v3224 = vrot.slane %v2715, 5
    %v3225 = vrot.slane %v2717, 5
    %v3226 = vrot.slane %v2719, 5
    %v3227 = vrot.slane %v2721, 5
    %vm3228 = vcmask 1040384
    %vm3229 = vsmask.f32 256
    %vm3230 = vmand %vm3228, %vm3229
    %v3231 = vsel %vm3230, %v2678, %v2725
    %v3232 = vsel %vm3230, %v2680, %v2729
    %v3233 = vsel %vm3230, %v2682, %v2733
    %v3234 = vsel %vm3230, %v2684, %v2737
    %v3235 = vsel %vm3230, %v2686, %v2741
    %v3236 = vsel %vm3230, %v2688, %v2745
    %v3237 = vsel %vm3230, %v2690, %v2749
    %v3238 = vsel %vm3230, %v2692, %v2753
    %v3239 = vsel %vm3230, %v2694, %v2757
    %v3240 = vsel %vm3230, %v2696, %v2761
    %v3241 = vsel %vm3230, %v2698, %v2765
    %v3242 = vsel %vm3230, %v2700, %v2769
    %v3243 = vsel %vm3230, %v2702, %v2773
    %v3244 = vsel %vm3230, %v2704, %v2777
    %v3245 = vsel %vm3230, %v2706, %v2781
    %v3246 = vsel %vm3230, %v2708, %v2785
    %v3247 = vsel %vm3230, %v2710, %v2789
    %v3248 = vsel %vm3230, %v2712, %v2793
    %v3249 = vsel %vm3230, %v2714, %v2797
    %v3250 = vsel %vm3230, %v2716, %v2801
    %v3251 = vsel %vm3230, %v2718, %v2805
    %v3252 = vsel %vm3230, %v2720, %v2809
    %vm3253 = vcmask 1040384
    %v3256 = vsel %vm3253, %v3231, %v2854
    %v3260 = vsel %vm3253, %v3232, %v2855
    %v3264 = vsel %vm3253, %v3233, %v2856
    %v3268 = vsel %vm3253, %v3234, %v2857
    %v3272 = vsel %vm3253, %v3235, %v2858
    %v3276 = vsel %vm3253, %v3236, %v2859
    %v3280 = vsel %vm3253, %v3237, %v2860
    %v3284 = vsel %vm3253, %v3238, %v2861
    %v3288 = vsel %vm3253, %v3239, %v2862
    %v3292 = vsel %vm3253, %v3240, %v2863
    %v3296 = vsel %vm3253, %v3241, %v2864
    %v3300 = vsel %vm3253, %v3242, %v2865
    %v3304 = vsel %vm3253, %v3243, %v2866
    %v3308 = vsel %vm3253, %v3244, %v2867
    %v3312 = vsel %vm3253, %v3245, %v2868
    %v3316 = vsel %vm3253, %v3246, %v2869
    %v3320 = vsel %vm3253, %v3247, %v2870
    %v3324 = vsel %vm3253, %v3248, %v2871
    %v3328 = vsel %vm3253, %v3249, %v2872
    %v3332 = vsel %vm3253, %v3250, %v2873
    %v3336 = vsel %vm3253, %v3251, %v2874
    %v3340 = vsel %vm3253, %v3252, %v2875
    %vm3342 = vcmask 1041408
    %vm3343 = vsmask.f32 1280
    %vm3344 = vmand %vm3342, %vm3343
    %v3345 = vsel %vm3344, %v3256, %v2876
    %v3346 = vsel %vm3344, %v3260, %v2877
    %v3347 = vsel %vm3344, %v3264, %v2878
    %v3348 = vsel %vm3344, %v3268, %v2879
    %v3349 = vsel %vm3344, %v3272, %v2880
    %v3350 = vsel %vm3344, %v3276, %v2881
    %v3351 = vsel %vm3344, %v3280, %v2882
    %v3352 = vsel %vm3344, %v3284, %v2883
    %v3353 = vsel %vm3344, %v3288, %v2884
    %v3354 = vsel %vm3344, %v3292, %v2885
    %v3355 = vsel %vm3344, %v3296, %v2886
    %v3356 = vsel %vm3344, %v3300, %v2887
    %v3357 = vsel %vm3344, %v3304, %v2888
    %v3358 = vsel %vm3344, %v3308, %v2889
    %v3359 = vsel %vm3344, %v3312, %v2890
    %v3360 = vsel %vm3344, %v3316, %v2891
    %v3361 = vsel %vm3344, %v3320, %v2892
    %v3362 = vsel %vm3344, %v3324, %v2893
    %v3363 = vsel %vm3344, %v3328, %v2894
    %v3364 = vsel %vm3344, %v3332, %v2895
    %v3365 = vsel %vm3344, %v3336, %v2896
    %v3366 = vsel %vm3344, %v3340, %v2897
    %vm3367 = vcmask 1041408
    %v3370 = vsel %vm3367, %v3345, %v2920
    %v3374 = vsel %vm3367, %v3346, %v2921
    %v3378 = vsel %vm3367, %v3347, %v2922
    %v3382 = vsel %vm3367, %v3348, %v2923
    %v3386 = vsel %vm3367, %v3349, %v2924
    %v3390 = vsel %vm3367, %v3350, %v2925
    %v3394 = vsel %vm3367, %v3351, %v2926
    %v3398 = vsel %vm3367, %v3352, %v2927
    %v3402 = vsel %vm3367, %v3353, %v2928
    %v3406 = vsel %vm3367, %v3354, %v2929
    %v3410 = vsel %vm3367, %v3355, %v2930
    %v3414 = vsel %vm3367, %v3356, %v2931
    %v3418 = vsel %vm3367, %v3357, %v2932
    %v3422 = vsel %vm3367, %v3358, %v2933
    %v3426 = vsel %vm3367, %v3359, %v2934
    %v3430 = vsel %vm3367, %v3360, %v2935
    %v3434 = vsel %vm3367, %v3361, %v2936
    %v3438 = vsel %vm3367, %v3362, %v2937
    %v3442 = vsel %vm3367, %v3363, %v2938
    %v3446 = vsel %vm3367, %v3364, %v2939
    %v3450 = vsel %vm3367, %v3365, %v2940
    %v3454 = vsel %vm3367, %v3366, %v2941
    %vm3456 = vcmask 1042432
    %vm3457 = vsmask.f32 2304
    %vm3458 = vmand %vm3456, %vm3457
    %v3459 = vsel %vm3458, %v3370, %v2942
    %v3460 = vsel %vm3458, %v3374, %v2943
    %v3461 = vsel %vm3458, %v3378, %v2944
    %v3462 = vsel %vm3458, %v3382, %v2945
    %v3463 = vsel %vm3458, %v3386, %v2946
    %v3464 = vsel %vm3458, %v3390, %v2947
    %v3465 = vsel %vm3458, %v3394, %v2948
    %v3466 = vsel %vm3458, %v3398, %v2949
    %v3467 = vsel %vm3458, %v3402, %v2950
    %v3468 = vsel %vm3458, %v3406, %v2951
    %v3469 = vsel %vm3458, %v3410, %v2952
    %v3470 = vsel %vm3458, %v3414, %v2953
    %v3471 = vsel %vm3458, %v3418, %v2954
    %v3472 = vsel %vm3458, %v3422, %v2955
    %v3473 = vsel %vm3458, %v3426, %v2956
    %v3474 = vsel %vm3458, %v3430, %v2957
    %v3475 = vsel %vm3458, %v3434, %v2958
    %v3476 = vsel %vm3458, %v3438, %v2959
    %v3477 = vsel %vm3458, %v3442, %v2960
    %v3478 = vsel %vm3458, %v3446, %v2961
    %v3479 = vsel %vm3458, %v3450, %v2962
    %v3480 = vsel %vm3458, %v3454, %v2963
    %vm3481 = vcmask 1042432
    %v3484 = vsel %vm3481, %v3459, %v2986
    %v3488 = vsel %vm3481, %v3460, %v2987
    %v3492 = vsel %vm3481, %v3461, %v2988
    %v3496 = vsel %vm3481, %v3462, %v2989
    %v3500 = vsel %vm3481, %v3463, %v2990
    %v3504 = vsel %vm3481, %v3464, %v2991
    %v3508 = vsel %vm3481, %v3465, %v2992
    %v3512 = vsel %vm3481, %v3466, %v2993
    %v3516 = vsel %vm3481, %v3467, %v2994
    %v3520 = vsel %vm3481, %v3468, %v2995
    %v3524 = vsel %vm3481, %v3469, %v2996
    %v3528 = vsel %vm3481, %v3470, %v2997
    %v3532 = vsel %vm3481, %v3471, %v2998
    %v3536 = vsel %vm3481, %v3472, %v2999
    %v3540 = vsel %vm3481, %v3473, %v3000
    %v3544 = vsel %vm3481, %v3474, %v3001
    %v3548 = vsel %vm3481, %v3475, %v3002
    %v3552 = vsel %vm3481, %v3476, %v3003
    %v3556 = vsel %vm3481, %v3477, %v3004
    %v3560 = vsel %vm3481, %v3478, %v3005
    %v3564 = vsel %vm3481, %v3479, %v3006
    %v3568 = vsel %vm3481, %v3480, %v3007
    %vm3570 = vcmask 1043456
    %vm3571 = vsmask.f32 3328
    %vm3572 = vmand %vm3570, %vm3571
    %v3573 = vsel %vm3572, %v3484, %v3008
    %v3574 = vsel %vm3572, %v3488, %v3009
    %v3575 = vsel %vm3572, %v3492, %v3010
    %v3576 = vsel %vm3572, %v3496, %v3011
    %v3577 = vsel %vm3572, %v3500, %v3012
    %v3578 = vsel %vm3572, %v3504, %v3013
    %v3579 = vsel %vm3572, %v3508, %v3014
    %v3580 = vsel %vm3572, %v3512, %v3015
    %v3581 = vsel %vm3572, %v3516, %v3016
    %v3582 = vsel %vm3572, %v3520, %v3017
    %v3583 = vsel %vm3572, %v3524, %v3018
    %v3584 = vsel %vm3572, %v3528, %v3019
    %v3585 = vsel %vm3572, %v3532, %v3020
    %v3586 = vsel %vm3572, %v3536, %v3021
    %v3587 = vsel %vm3572, %v3540, %v3022
    %v3588 = vsel %vm3572, %v3544, %v3023
    %v3589 = vsel %vm3572, %v3548, %v3024
    %v3590 = vsel %vm3572, %v3552, %v3025
    %v3591 = vsel %vm3572, %v3556, %v3026
    %v3592 = vsel %vm3572, %v3560, %v3027
    %v3593 = vsel %vm3572, %v3564, %v3028
    %v3594 = vsel %vm3572, %v3568, %v3029
    %vm3595 = vcmask 1043456
    %v3598 = vsel %vm3595, %v3573, %v3074
    %v3602 = vsel %vm3595, %v3574, %v3075
    %v3606 = vsel %vm3595, %v3575, %v3076
    %v3610 = vsel %vm3595, %v3576, %v3077
    %v3614 = vsel %vm3595, %v3577, %v3078
    %v3618 = vsel %vm3595, %v3578, %v3079
    %v3622 = vsel %vm3595, %v3579, %v3080
    %v3626 = vsel %vm3595, %v3580, %v3081
    %v3630 = vsel %vm3595, %v3581, %v3082
    %v3634 = vsel %vm3595, %v3582, %v3083
    %v3638 = vsel %vm3595, %v3583, %v3084
    %v3642 = vsel %vm3595, %v3584, %v3085
    %v3646 = vsel %vm3595, %v3585, %v3086
    %v3650 = vsel %vm3595, %v3586, %v3087
    %v3654 = vsel %vm3595, %v3587, %v3088
    %v3658 = vsel %vm3595, %v3588, %v3089
    %v3662 = vsel %vm3595, %v3589, %v3090
    %v3666 = vsel %vm3595, %v3590, %v3091
    %v3670 = vsel %vm3595, %v3591, %v3092
    %v3674 = vsel %vm3595, %v3592, %v3093
    %v3678 = vsel %vm3595, %v3593, %v3094
    %v3682 = vsel %vm3595, %v3594, %v3095
    %vm3684 = vcmask 1044480
    %vm3685 = vsmask.f32 4352
    %vm3686 = vmand %vm3684, %vm3685
    %v3687 = vsel %vm3686, %v3598, %v3099
    %v3688 = vsel %vm3686, %v3602, %v3103
    %v3689 = vsel %vm3686, %v3606, %v3107
    %v3690 = vsel %vm3686, %v3610, %v3111
    %v3691 = vsel %vm3686, %v3614, %v3115
    %v3692 = vsel %vm3686, %v3618, %v3119
    %v3693 = vsel %vm3686, %v3622, %v3123
    %v3694 = vsel %vm3686, %v3626, %v3127
    %v3695 = vsel %vm3686, %v3630, %v3131
    %v3696 = vsel %vm3686, %v3634, %v3135
    %v3697 = vsel %vm3686, %v3638, %v3139
    %v3698 = vsel %vm3686, %v3642, %v3143
    %v3699 = vsel %vm3686, %v3646, %v3147
    %v3700 = vsel %vm3686, %v3650, %v3151
    %v3701 = vsel %vm3686, %v3654, %v3155
    %v3702 = vsel %vm3686, %v3658, %v3159
    %v3703 = vsel %vm3686, %v3662, %v3163
    %v3704 = vsel %vm3686, %v3666, %v3167
    %v3705 = vsel %vm3686, %v3670, %v3171
    %v3706 = vsel %vm3686, %v3674, %v3175
    %v3707 = vsel %vm3686, %v3678, %v3179
    %v3708 = vsel %vm3686, %v3682, %v3183
    %v3711 = vsel %vm899, %v3687, %v3206
    %v3715 = vsel %vm899, %v3688, %v3207
    %v3719 = vsel %vm899, %v3689, %v3208
    %v3723 = vsel %vm899, %v3690, %v3209
    %v3727 = vsel %vm899, %v3691, %v3210
    %v3731 = vsel %vm899, %v3692, %v3211
    %v3735 = vsel %vm899, %v3693, %v3212
    %v3739 = vsel %vm899, %v3694, %v3213
    %v3743 = vsel %vm899, %v3695, %v3214
    %v3747 = vsel %vm899, %v3696, %v3215
    %v3751 = vsel %vm899, %v3697, %v3216
    %v3755 = vsel %vm899, %v3698, %v3217
    %v3759 = vsel %vm899, %v3699, %v3218
    %v3763 = vsel %vm899, %v3700, %v3219
    %v3767 = vsel %vm899, %v3701, %v3220
    %v3771 = vsel %vm899, %v3702, %v3221
    %v3775 = vsel %vm899, %v3703, %v3222
    %v3779 = vsel %vm899, %v3704, %v3223
    %v3783 = vsel %vm899, %v3705, %v3224
    %v3787 = vsel %vm899, %v3706, %v3225
    %v3791 = vsel %vm899, %v3707, %v3226
    %v3795 = vsel %vm899, %v3708, %v3227
    %vm3797 = vcmask 1045504
    %vm3798 = vsmask.f32 5376
    %vm3799 = vmand %vm3797, %vm3798
    %v3800 = vsel %vm3799, %v3711, %v2942
    %v3801 = vsel %vm3799, %v3715, %v2943
    %v3802 = vsel %vm3799, %v3719, %v2944
    %v3803 = vsel %vm3799, %v3723, %v2945
    %v3804 = vsel %vm3799, %v3727, %v2946
    %v3805 = vsel %vm3799, %v3731, %v2947
    %v3806 = vsel %vm3799, %v3735, %v2948
    %v3807 = vsel %vm3799, %v3739, %v2949
    %v3808 = vsel %vm3799, %v3743, %v2950
    %v3809 = vsel %vm3799, %v3747, %v2951
    %v3810 = vsel %vm3799, %v3751, %v2952
    %v3811 = vsel %vm3799, %v3755, %v2953
    %v3812 = vsel %vm3799, %v3759, %v2954
    %v3813 = vsel %vm3799, %v3763, %v2955
    %v3814 = vsel %vm3799, %v3767, %v2956
    %v3815 = vsel %vm3799, %v3771, %v2957
    %v3816 = vsel %vm3799, %v3775, %v2958
    %v3817 = vsel %vm3799, %v3779, %v2959
    %v3818 = vsel %vm3799, %v3783, %v2960
    %v3819 = vsel %vm3799, %v3787, %v2961
    %v3820 = vsel %vm3799, %v3791, %v2962
    %v3821 = vsel %vm3799, %v3795, %v2963
    %v3844 = vunpack.c.l.b16 %v3800
    %v3845 = vunpack.c.h.b16 %v3800
    %v3846 = vunpack.c.l.b16 %v3801
    %v3847 = vunpack.c.h.b16 %v3801
    %v3848 = vunpack.c.l.b16 %v3802
    %v3849 = vunpack.c.h.b16 %v3802
    %v3850 = vunpack.c.l.b16 %v3803
    %v3851 = vunpack.c.h.b16 %v3803
    %v3852 = vunpack.c.l.b16 %v3804
    %v3853 = vunpack.c.h.b16 %v3804
    %v3854 = vunpack.c.l.b16 %v3805
    %v3855 = vunpack.c.h.b16 %v3805
    %v3856 = vunpack.c.l.b16 %v3806
    %v3857 = vunpack.c.h.b16 %v3806
    %v3858 = vunpack.c.l.b16 %v3807
    %v3859 = vunpack.c.h.b16 %v3807
    %v3860 = vunpack.c.l.b16 %v3808
    %v3861 = vunpack.c.h.b16 %v3808
    %v3862 = vunpack.c.l.b16 %v3809
    %v3863 = vunpack.c.h.b16 %v3809
    %v3864 = vunpack.c.l.b16 %v3810
    %v3865 = vunpack.c.h.b16 %v3810
    %v3866 = vunpack.c.l.b16 %v3811
    %v3867 = vunpack.c.h.b16 %v3811
    %v3868 = vunpack.c.l.b16 %v3812
    %v3869 = vunpack.c.h.b16 %v3812
    %v3870 = vunpack.c.l.b16 %v3813
    %v3871 = vunpack.c.h.b16 %v3813
    %v3872 = vunpack.c.l.b16 %v3814
    %v3873 = vunpack.c.h.b16 %v3814
    %v3874 = vunpack.c.l.b16 %v3815
    %v3875 = vunpack.c.h.b16 %v3815
    %v3876 = vunpack.c.l.b16 %v3816
    %v3877 = vunpack.c.h.b16 %v3816
    %v3878 = vunpack.c.l.b16 %v3817
    %v3879 = vunpack.c.h.b16 %v3817
    %v3880 = vunpack.c.l.b16 %v3818
    %v3881 = vunpack.c.h.b16 %v3818
    %v3882 = vunpack.c.l.b16 %v3819
    %v3883 = vunpack.c.h.b16 %v3819
    %v3884 = vunpack.c.l.b16 %v3820
    %v3885 = vunpack.c.h.b16 %v3820
    %v3886 = vunpack.c.l.b16 %v3821
    %v3887 = vunpack.c.h.b16 %v3821
    %v3888 = vpack.c.b16 %v3844, %v3844
    %v3889 = vpack.c.b16 %v3845, %v3845
    %v3890 = vpack.c.b16 %v3846, %v3846
    %v3891 = vpack.c.b16 %v3847, %v3847
    %v3892 = vpack.c.b16 %v3848, %v3848
    %v3893 = vpack.c.b16 %v3849, %v3849
    %v3894 = vpack.c.b16 %v3850, %v3850
    %v3895 = vpack.c.b16 %v3851, %v3851
    %v3896 = vpack.c.b16 %v3852, %v3852
    %v3897 = vpack.c.b16 %v3853, %v3853
    %v3898 = vpack.c.b16 %v3854, %v3854
    %v3899 = vpack.c.b16 %v3855, %v3855
    %v3900 = vpack.c.b16 %v3856, %v3856
    %v3901 = vpack.c.b16 %v3857, %v3857
    %v3902 = vpack.c.b16 %v3858, %v3858
    %v3903 = vpack.c.b16 %v3859, %v3859
    %v3904 = vpack.c.b16 %v3860, %v3860
    %v3905 = vpack.c.b16 %v3861, %v3861
    %v3906 = vpack.c.b16 %v3862, %v3862
    %v3907 = vpack.c.b16 %v3863, %v3863
    %v3908 = vpack.c.b16 %v3864, %v3864
    %v3909 = vpack.c.b16 %v3865, %v3865
    %v3910 = vpack.c.b16 %v3866, %v3866
    %v3911 = vpack.c.b16 %v3867, %v3867
    %v3912 = vpack.c.b16 %v3868, %v3868
    %v3913 = vpack.c.b16 %v3869, %v3869
    %v3914 = vpack.c.b16 %v3870, %v3870
    %v3915 = vpack.c.b16 %v3871, %v3871
    %v3916 = vpack.c.b16 %v3872, %v3872
    %v3917 = vpack.c.b16 %v3873, %v3873
    %v3918 = vpack.c.b16 %v3874, %v3874
    %v3919 = vpack.c.b16 %v3875, %v3875
    %v3920 = vpack.c.b16 %v3876, %v3876
    %v3921 = vpack.c.b16 %v3877, %v3877
    %v3922 = vpack.c.b16 %v3878, %v3878
    %v3923 = vpack.c.b16 %v3879, %v3879
    %v3924 = vpack.c.b16 %v3880, %v3880
    %v3925 = vpack.c.b16 %v3881, %v3881
    %v3926 = vpack.c.b16 %v3882, %v3882
    %v3927 = vpack.c.b16 %v3883, %v3883
    %v3928 = vpack.c.b16 %v3884, %v3884
    %v3929 = vpack.c.b16 %v3885, %v3885
    %v3930 = vpack.c.b16 %v3886, %v3886
    %v3931 = vpack.c.b16 %v3887, %v3887
    %vm3976 = vcmask 224256
    %3977 = vst.msk [vmem:[#allocation2] sm:$0xf] %vm3976, %v3888
    %vm3978 = vcmask 222208
    %3979 = vst.msk [vmem:[#allocation2 + $0x4] sm:$0x3] %vm3978, %v3889
    %3980 = vst.msk [vmem:[#allocation2 + $0xc] sm:$0xf] %vm3976, %v3890
    %3981 = vst.msk [vmem:[#allocation2 + $0x10] sm:$0x3] %vm3978, %v3891
    %3982 = vst.msk [vmem:[#allocation2 + $0x18] sm:$0xf] %vm3976, %v3892
    %3983 = vst.msk [vmem:[#allocation2 + $0x1c] sm:$0x3] %vm3978, %v3893
    %3984 = vst.msk [vmem:[#allocation2 + $0x24] sm:$0xf] %vm3976, %v3894
    %3985 = vst.msk [vmem:[#allocation2 + $0x28] sm:$0x3] %vm3978, %v3895
    %3986 = vst.msk [vmem:[#allocation2 + $0x30] sm:$0xf] %vm3976, %v3896
    %3987 = vst.msk [vmem:[#allocation2 + $0x34] sm:$0x3] %vm3978, %v3897
    %3988 = vst.msk [vmem:[#allocation2 + $0x3c] sm:$0xf] %vm3976, %v3898
    %3989 = vst.msk [vmem:[#allocation2 + $0x40] sm:$0x3] %vm3978, %v3899
    %3990 = vst.msk [vmem:[#allocation2 + $0x48] sm:$0xf] %vm3976, %v3900
    %3991 = vst.msk [vmem:[#allocation2 + $0x4c] sm:$0x3] %vm3978, %v3901
    %3992 = vst.msk [vmem:[#allocation2 + $0x54] sm:$0xf] %vm3976, %v3902
    %3993 = vst.msk [vmem:[#allocation2 + $0x58] sm:$0x3] %vm3978, %v3903
    %3994 = vst.msk [vmem:[#allocation2 + $0x60] sm:$0xf] %vm3976, %v3904
    %3995 = vst.msk [vmem:[#allocation2 + $0x64] sm:$0x3] %vm3978, %v3905
    %3996 = vst.msk [vmem:[#allocation2 + $0x6c] sm:$0xf] %vm3976, %v3906
    %3997 = vst.msk [vmem:[#allocation2 + $0x70] sm:$0x3] %vm3978, %v3907
    %3998 = vst.msk [vmem:[#allocation2 + $0x78] sm:$0xf] %vm3976, %v3908
    %3999 = vst.msk [vmem:[#allocation2 + $0x7c] sm:$0x3] %vm3978, %v3909
    %4000 = vst.msk [vmem:[#allocation2 + $0x84] sm:$0xf] %vm3976, %v3910
    %4001 = vst.msk [vmem:[#allocation2 + $0x88] sm:$0x3] %vm3978, %v3911
    %4002 = vst.msk [vmem:[#allocation2 + $0x90] sm:$0xf] %vm3976, %v3912
    %4003 = vst.msk [vmem:[#allocation2 + $0x94] sm:$0x3] %vm3978, %v3913
    %4004 = vst.msk [vmem:[#allocation2 + $0x9c] sm:$0xf] %vm3976, %v3914
    %4005 = vst.msk [vmem:[#allocation2 + $0xa0] sm:$0x3] %vm3978, %v3915
    %4006 = vst.msk [vmem:[#allocation2 + $0xa8] sm:$0xf] %vm3976, %v3916
    %4007 = vst.msk [vmem:[#allocation2 + $0xac] sm:$0x3] %vm3978, %v3917
    %4008 = vst.msk [vmem:[#allocation2 + $0xb4] sm:$0xf] %vm3976, %v3918
    %4009 = vst.msk [vmem:[#allocation2 + $0xb8] sm:$0x3] %vm3978, %v3919
    %4010 = vst.msk [vmem:[#allocation2 + $0xc0] sm:$0xf] %vm3976, %v3920
    %4011 = vst.msk [vmem:[#allocation2 + $0xc4] sm:$0x3] %vm3978, %v3921
    %4012 = vst.msk [vmem:[#allocation2 + $0xcc] sm:$0xf] %vm3976, %v3922
    %4013 = vst.msk [vmem:[#allocation2 + $0xd0] sm:$0x3] %vm3978, %v3923
    %4014 = vst.msk [vmem:[#allocation2 + $0xd8] sm:$0xf] %vm3976, %v3924
    %4015 = vst.msk [vmem:[#allocation2 + $0xdc] sm:$0x3] %vm3978, %v3925
    %4016 = vst.msk [vmem:[#allocation2 + $0xe4] sm:$0xf] %vm3976, %v3926
    %4017 = vst.msk [vmem:[#allocation2 + $0xe8] sm:$0x3] %vm3978, %v3927
    %4018 = vst.msk [vmem:[#allocation2 + $0xf0] sm:$0xf] %vm3976, %v3928
    %4019 = vst.msk [vmem:[#allocation2 + $0xf4] sm:$0x3] %vm3978, %v3929
    %4020 = vst.msk [vmem:[#allocation2 + $0xfc] sm:$0xf] %vm3976, %v3930
    %4021 = vst.msk [vmem:[#allocation2 + $0x100] sm:$0x3] %vm3978, %v3931
    %v4022 = vld [vmem:[#allocation2] sm:$0xf]
    %v4023 = vld [vmem:[#allocation2 + $0x4] sm:$0xf]
    %v4024 = vld [vmem:[#allocation2 + $0xc] sm:$0xf]
    %v4025 = vld [vmem:[#allocation2 + $0x10] sm:$0xf]
    %v4026 = vld [vmem:[#allocation2 + $0x18] sm:$0xf]
    %v4027 = vld [vmem:[#allocation2 + $0x1c] sm:$0xf]
    %v4028 = vld [vmem:[#allocation2 + $0x24] sm:$0xf]
    %v4029 = vld [vmem:[#allocation2 + $0x28] sm:$0xf]
    %v4030 = vld [vmem:[#allocation2 + $0x30] sm:$0xf]
    %v4031 = vld [vmem:[#allocation2 + $0x34] sm:$0xf]
    %v4032 = vld [vmem:[#allocation2 + $0x3c] sm:$0xf]
    %v4033 = vld [vmem:[#allocation2 + $0x40] sm:$0xf]
    %v4034 = vld [vmem:[#allocation2 + $0x48] sm:$0xf]
    %v4035 = vld [vmem:[#allocation2 + $0x4c] sm:$0xf]
    %v4036 = vld [vmem:[#allocation2 + $0x54] sm:$0xf]
    %v4037 = vld [vmem:[#allocation2 + $0x58] sm:$0xf]
    %v4038 = vld [vmem:[#allocation2 + $0x60] sm:$0xf]
    %v4039 = vld [vmem:[#allocation2 + $0x64] sm:$0xf]
    %v4040 = vld [vmem:[#allocation2 + $0x84] sm:$0xf]
    %v4041 = vld [vmem:[#allocation2 + $0x88] sm:$0xf]
    %v4042 = vld [vmem:[#allocation2 + $0x90] sm:$0xf]
    %v4043 = vld [vmem:[#allocation2 + $0x94] sm:$0xf]
    %v4044 = vld [vmem:[#allocation2 + $0x9c] sm:$0xf]
    %v4045 = vld [vmem:[#allocation2 + $0xa0] sm:$0xf]
    %v4046 = vld [vmem:[#allocation2 + $0xa8] sm:$0xf]
    %v4047 = vld [vmem:[#allocation2 + $0xac] sm:$0xf]
    %v4048 = vld [vmem:[#allocation2 + $0xb4] sm:$0xf]
    %v4049 = vld [vmem:[#allocation2 + $0xb8] sm:$0xf]
    %v4050 = vld [vmem:[#allocation2 + $0xc0] sm:$0xf]
    %v4051 = vld [vmem:[#allocation2 + $0xc4] sm:$0xf]
    %v4052 = vld [vmem:[#allocation2 + $0xcc] sm:$0xf]
    %v4053 = vld [vmem:[#allocation2 + $0xd0] sm:$0xf]
    %v4054 = vld [vmem:[#allocation2 + $0xd8] sm:$0xf]
    %v4055 = vld [vmem:[#allocation2 + $0xdc] sm:$0xf]
    %v4056 = vld [vmem:[#allocation2 + $0xe4] sm:$0xf]
    %v4057 = vld [vmem:[#allocation2 + $0xe8] sm:$0xf]
    %v4058 = vld [vmem:[#allocation2 + $0x8] sm:$0x1]
    %v4059 = vld [vmem:[#allocation2 + $0x14] sm:$0x1]
    %v4060 = vld [vmem:[#allocation2 + $0x20] sm:$0x1]
    %v4061 = vld [vmem:[#allocation2 + $0x2c] sm:$0x1]
    %v4062 = vld [vmem:[#allocation2 + $0x38] sm:$0x1]
    %v4063 = vld [vmem:[#allocation2 + $0x44] sm:$0x1]
    %v4064 = vld [vmem:[#allocation2 + $0x50] sm:$0x1]
    %v4065 = vld [vmem:[#allocation2 + $0x5c] sm:$0x1]
    %v4066 = vld [vmem:[#allocation2 + $0x68] sm:$0x1]
    %v4067 = vld [vmem:[#allocation2 + $0x8c] sm:$0x1]
    %v4068 = vld [vmem:[#allocation2 + $0x98] sm:$0x1]
    %v4069 = vld [vmem:[#allocation2 + $0xa4] sm:$0x1]
    %v4070 = vld [vmem:[#allocation2 + $0xb0] sm:$0x1]
    %v4071 = vld [vmem:[#allocation2 + $0xbc] sm:$0x1]
    %v4072 = vld [vmem:[#allocation2 + $0xc8] sm:$0x1]
    %v4073 = vld [vmem:[#allocation2 + $0xd4] sm:$0x1]
    %v4074 = vld [vmem:[#allocation2 + $0xe0] sm:$0x1]
    %v4075 = vld [vmem:[#allocation2 + $0xec] sm:$0x1]
    %v4076 = vld [vmem:[#allocation2] sm:$0xe]
    %v4077 = vld [vmem:[#allocation2 + $0xc] sm:$0xe]
    %v4078 = vld [vmem:[#allocation2 + $0x18] sm:$0xe]
    %v4079 = vld [vmem:[#allocation2 + $0x24] sm:$0xe]
    %v4080 = vld [vmem:[#allocation2 + $0x30] sm:$0xe]
    %v4081 = vld [vmem:[#allocation2 + $0x3c] sm:$0xe]
    %v4082 = vld [vmem:[#allocation2 + $0x48] sm:$0xe]
    %v4083 = vld [vmem:[#allocation2 + $0x54] sm:$0xe]
    %v4084 = vld [vmem:[#allocation2 + $0x60] sm:$0xe]
    %v4085 = vld [vmem:[#allocation2 + $0x84] sm:$0xe]
    %v4086 = vld [vmem:[#allocation2 + $0x90] sm:$0xe]
    %v4087 = vld [vmem:[#allocation2 + $0x9c] sm:$0xe]
    %v4088 = vld [vmem:[#allocation2 + $0xa8] sm:$0xe]
    %v4089 = vld [vmem:[#allocation2 + $0xb4] sm:$0xe]
    %v4090 = vld [vmem:[#allocation2 + $0xc0] sm:$0xe]
    %v4091 = vld [vmem:[#allocation2 + $0xcc] sm:$0xe]
    %v4092 = vld [vmem:[#allocation2 + $0xd8] sm:$0xe]
    %v4093 = vld [vmem:[#allocation2 + $0xe4] sm:$0xe]
    %s4094 = scalar_lea.vmem [#allocation2], 12
    %v4095 = vld [vmem:[%s4094] sm:$0xf]
    %v4096 = vld [vmem:[%s4094 + $0x4] sm:$0xf]
    %v4097 = vld [vmem:[%s4094 + $0xc] sm:$0xf]
    %v4098 = vld [vmem:[%s4094 + $0x10] sm:$0xf]
    %v4099 = vld [vmem:[%s4094 + $0x18] sm:$0xf]
    %v4100 = vld [vmem:[%s4094 + $0x1c] sm:$0xf]
    %v4101 = vld [vmem:[%s4094 + $0x24] sm:$0xf]
    %v4102 = vld [vmem:[%s4094 + $0x28] sm:$0xf]
    %v4103 = vld [vmem:[%s4094 + $0x30] sm:$0xf]
    %v4104 = vld [vmem:[%s4094 + $0x34] sm:$0xf]
    %v4105 = vld [vmem:[%s4094 + $0x3c] sm:$0xf]
    %v4106 = vld [vmem:[%s4094 + $0x40] sm:$0xf]
    %v4107 = vld [vmem:[%s4094 + $0x48] sm:$0xf]
    %v4108 = vld [vmem:[%s4094 + $0x4c] sm:$0xf]
    %v4109 = vld [vmem:[%s4094 + $0x54] sm:$0xf]
    %v4110 = vld [vmem:[%s4094 + $0x58] sm:$0xf]
    %v4111 = vld [vmem:[%s4094 + $0x60] sm:$0xf]
    %v4112 = vld [vmem:[%s4094 + $0x64] sm:$0xf]
    %v4113 = vld [vmem:[%s4094 + $0x84] sm:$0xf]
    %v4114 = vld [vmem:[%s4094 + $0x88] sm:$0xf]
    %v4115 = vld [vmem:[%s4094 + $0x90] sm:$0xf]
    %v4116 = vld [vmem:[%s4094 + $0x94] sm:$0xf]
    %v4117 = vld [vmem:[%s4094 + $0x9c] sm:$0xf]
    %v4118 = vld [vmem:[%s4094 + $0xa0] sm:$0xf]
    %v4119 = vld [vmem:[%s4094 + $0xa8] sm:$0xf]
    %v4120 = vld [vmem:[%s4094 + $0xac] sm:$0xf]
    %v4121 = vld [vmem:[%s4094 + $0xb4] sm:$0xf]
    %v4122 = vld [vmem:[%s4094 + $0xb8] sm:$0xf]
    %v4123 = vld [vmem:[%s4094 + $0xc0] sm:$0xf]
    %v4124 = vld [vmem:[%s4094 + $0xc4] sm:$0xf]
    %v4125 = vld [vmem:[%s4094 + $0xcc] sm:$0xf]
    %v4126 = vld [vmem:[%s4094 + $0xd0] sm:$0xf]
    %v4127 = vld [vmem:[%s4094 + $0xd8] sm:$0xf]
    %v4128 = vld [vmem:[%s4094 + $0xdc] sm:$0xf]
    %v4129 = vld [vmem:[%s4094 + $0xe4] sm:$0xf]
    %v4130 = vld [vmem:[%s4094 + $0xe8] sm:$0xf]
    %v4131 = vld [vmem:[%s4094 + $0x8] sm:$0x1]
    %v4132 = vld [vmem:[%s4094 + $0x14] sm:$0x1]
    %v4133 = vld [vmem:[%s4094 + $0x20] sm:$0x1]
    %v4134 = vld [vmem:[%s4094 + $0x2c] sm:$0x1]
    %v4135 = vld [vmem:[%s4094 + $0x38] sm:$0x1]
    %v4136 = vld [vmem:[%s4094 + $0x44] sm:$0x1]
    %v4137 = vld [vmem:[%s4094 + $0x50] sm:$0x1]
    %v4138 = vld [vmem:[%s4094 + $0x5c] sm:$0x1]
    %v4139 = vld [vmem:[%s4094 + $0x68] sm:$0x1]
    %v4140 = vld [vmem:[%s4094 + $0x8c] sm:$0x1]
    %v4141 = vld [vmem:[%s4094 + $0x98] sm:$0x1]
    %v4142 = vld [vmem:[%s4094 + $0xa4] sm:$0x1]
    %v4143 = vld [vmem:[%s4094 + $0xb0] sm:$0x1]
    %v4144 = vld [vmem:[%s4094 + $0xbc] sm:$0x1]
    %v4145 = vld [vmem:[%s4094 + $0xc8] sm:$0x1]
    %v4146 = vld [vmem:[%s4094 + $0xd4] sm:$0x1]
    %v4147 = vld [vmem:[%s4094 + $0xe0] sm:$0x1]
    %v4148 = vld [vmem:[%s4094 + $0xec] sm:$0x1]
    %v4149 = vld [vmem:[%s4094] sm:$0xe]
    %v4150 = vld [vmem:[%s4094 + $0xc] sm:$0xe]
    %v4151 = vld [vmem:[%s4094 + $0x18] sm:$0xe]
    %v4152 = vld [vmem:[%s4094 + $0x24] sm:$0xe]
    %v4153 = vld [vmem:[%s4094 + $0x30] sm:$0xe]
    %v4154 = vld [vmem:[%s4094 + $0x3c] sm:$0xe]
    %v4155 = vld [vmem:[%s4094 + $0x48] sm:$0xe]
    %v4156 = vld [vmem:[%s4094 + $0x54] sm:$0xe]
    %v4157 = vld [vmem:[%s4094 + $0x60] sm:$0xe]
    %v4158 = vld [vmem:[%s4094 + $0x84] sm:$0xe]
    %v4159 = vld [vmem:[%s4094 + $0x90] sm:$0xe]
    %v4160 = vld [vmem:[%s4094 + $0x9c] sm:$0xe]
    %v4161 = vld [vmem:[%s4094 + $0xa8] sm:$0xe]
    %v4162 = vld [vmem:[%s4094 + $0xb4] sm:$0xe]
    %v4163 = vld [vmem:[%s4094 + $0xc0] sm:$0xe]
    %v4164 = vld [vmem:[%s4094 + $0xcc] sm:$0xe]
    %v4165 = vld [vmem:[%s4094 + $0xd8] sm:$0xe]
    %v4166 = vld [vmem:[%s4094 + $0xe4] sm:$0xe]
    %s4167 = scalar_lea.vmem [#allocation2], 24
    %v4168 = vld [vmem:[%s4167] sm:$0xf]
    %v4169 = vld [vmem:[%s4167 + $0x4] sm:$0xf]
    %v4170 = vld [vmem:[%s4167 + $0xc] sm:$0xf]
    %v4171 = vld [vmem:[%s4167 + $0x10] sm:$0xf]
    %v4172 = vld [vmem:[%s4167 + $0x18] sm:$0xf]
    %v4173 = vld [vmem:[%s4167 + $0x1c] sm:$0xf]
    %v4174 = vld [vmem:[%s4167 + $0x24] sm:$0xf]
    %v4175 = vld [vmem:[%s4167 + $0x28] sm:$0xf]
    %v4176 = vld [vmem:[%s4167 + $0x30] sm:$0xf]
    %v4177 = vld [vmem:[%s4167 + $0x34] sm:$0xf]
    %v4178 = vld [vmem:[%s4167 + $0x3c] sm:$0xf]
    %v4179 = vld [vmem:[%s4167 + $0x40] sm:$0xf]
    %v4180 = vld [vmem:[%s4167 + $0x48] sm:$0xf]
    %v4181 = vld [vmem:[%s4167 + $0x4c] sm:$0xf]
    %v4182 = vld [vmem:[%s4167 + $0x54] sm:$0xf]
    %v4183 = vld [vmem:[%s4167 + $0x58] sm:$0xf]
    %v4184 = vld [vmem:[%s4167 + $0x60] sm:$0xf]
    %v4185 = vld [vmem:[%s4167 + $0x64] sm:$0xf]
    %v4186 = vld [vmem:[%s4167 + $0x84] sm:$0xf]
    %v4187 = vld [vmem:[%s4167 + $0x88] sm:$0xf]
    %v4188 = vld [vmem:[%s4167 + $0x90] sm:$0xf]
    %v4189 = vld [vmem:[%s4167 + $0x94] sm:$0xf]
    %v4190 = vld [vmem:[%s4167 + $0x9c] sm:$0xf]
    %v4191 = vld [vmem:[%s4167 + $0xa0] sm:$0xf]
    %v4192 = vld [vmem:[%s4167 + $0xa8] sm:$0xf]
    %v4193 = vld [vmem:[%s4167 + $0xac] sm:$0xf]
    %v4194 = vld [vmem:[%s4167 + $0xb4] sm:$0xf]
    %v4195 = vld [vmem:[%s4167 + $0xb8] sm:$0xf]
    %v4196 = vld [vmem:[%s4167 + $0xc0] sm:$0xf]
    %v4197 = vld [vmem:[%s4167 + $0xc4] sm:$0xf]
    %v4198 = vld [vmem:[%s4167 + $0xcc] sm:$0xf]
    %v4199 = vld [vmem:[%s4167 + $0xd0] sm:$0xf]
    %v4200 = vld [vmem:[%s4167 + $0xd8] sm:$0xf]
    %v4201 = vld [vmem:[%s4167 + $0xdc] sm:$0xf]
    %v4202 = vld [vmem:[%s4167 + $0xe4] sm:$0xf]
    %v4203 = vld [vmem:[%s4167 + $0xe8] sm:$0xf]
    %v4204 = vld [vmem:[%s4167 + $0x8] sm:$0x1]
    %v4205 = vld [vmem:[%s4167 + $0x14] sm:$0x1]
    %v4206 = vld [vmem:[%s4167 + $0x20] sm:$0x1]
    %v4207 = vld [vmem:[%s4167 + $0x2c] sm:$0x1]
    %v4208 = vld [vmem:[%s4167 + $0x38] sm:$0x1]
    %v4209 = vld [vmem:[%s4167 + $0x44] sm:$0x1]
    %v4210 = vld [vmem:[%s4167 + $0x50] sm:$0x1]
    %v4211 = vld [vmem:[%s4167 + $0x5c] sm:$0x1]
    %v4212 = vld [vmem:[%s4167 + $0x68] sm:$0x1]
    %v4213 = vld [vmem:[%s4167 + $0x8c] sm:$0x1]
    %v4214 = vld [vmem:[%s4167 + $0x98] sm:$0x1]
    %v4215 = vld [vmem:[%s4167 + $0xa4] sm:$0x1]
    %v4216 = vld [vmem:[%s4167 + $0xb0] sm:$0x1]
    %v4217 = vld [vmem:[%s4167 + $0xbc] sm:$0x1]
    %v4218 = vld [vmem:[%s4167 + $0xc8] sm:$0x1]
    %v4219 = vld [vmem:[%s4167 + $0xd4] sm:$0x1]
    %v4220 = vld [vmem:[%s4167 + $0xe0] sm:$0x1]
    %v4221 = vld [vmem:[%s4167 + $0xec] sm:$0x1]
    %v4222 = vld [vmem:[%s4167] sm:$0xe]
    %v4223 = vld [vmem:[%s4167 + $0xc] sm:$0xe]
    %v4224 = vld [vmem:[%s4167 + $0x18] sm:$0xe]
    %v4225 = vld [vmem:[%s4167 + $0x24] sm:$0xe]
    %v4226 = vld [vmem:[%s4167 + $0x30] sm:$0xe]
    %v4227 = vld [vmem:[%s4167 + $0x3c] sm:$0xe]
    %v4228 = vld [vmem:[%s4167 + $0x48] sm:$0xe]
    %v4229 = vld [vmem:[%s4167 + $0x54] sm:$0xe]
    %v4230 = vld [vmem:[%s4167 + $0x60] sm:$0xe]
    %v4231 = vld [vmem:[%s4167 + $0x84] sm:$0xe]
    %v4232 = vld [vmem:[%s4167 + $0x90] sm:$0xe]
    %v4233 = vld [vmem:[%s4167 + $0x9c] sm:$0xe]
    %v4234 = vld [vmem:[%s4167 + $0xa8] sm:$0xe]
    %v4235 = vld [vmem:[%s4167 + $0xb4] sm:$0xe]
    %v4236 = vld [vmem:[%s4167 + $0xc0] sm:$0xe]
    %v4237 = vld [vmem:[%s4167 + $0xcc] sm:$0xe]
    %v4238 = vld [vmem:[%s4167 + $0xd8] sm:$0xe]
    %v4239 = vld [vmem:[%s4167 + $0xe4] sm:$0xe]
    %v4276 = vunpack.c.l.b16 %v4022
    %v4277 = vunpack.c.l.b16 %v4023
    %v4278 = vunpack.c.l.b16 %v4024
    %v4279 = vunpack.c.l.b16 %v4025
    %v4280 = vunpack.c.l.b16 %v4026
    %v4281 = vunpack.c.l.b16 %v4027
    %v4282 = vunpack.c.l.b16 %v4028
    %v4283 = vunpack.c.l.b16 %v4029
    %v4284 = vunpack.c.l.b16 %v4030
    %v4285 = vunpack.c.l.b16 %v4031
    %v4286 = vunpack.c.l.b16 %v4032
    %v4287 = vunpack.c.l.b16 %v4033
    %v4288 = vunpack.c.l.b16 %v4034
    %v4289 = vunpack.c.l.b16 %v4035
    %v4290 = vunpack.c.l.b16 %v4036
    %v4291 = vunpack.c.l.b16 %v4037
    %v4292 = vunpack.c.l.b16 %v4038
    %v4293 = vunpack.c.l.b16 %v4039
    %v4294 = vunpack.c.l.b16 %v4040
    %v4295 = vunpack.c.l.b16 %v4041
    %v4296 = vunpack.c.l.b16 %v4042
    %v4297 = vunpack.c.l.b16 %v4043
    %v4298 = vunpack.c.l.b16 %v4044
    %v4299 = vunpack.c.l.b16 %v4045
    %v4300 = vunpack.c.l.b16 %v4046
    %v4301 = vunpack.c.l.b16 %v4047
    %v4302 = vunpack.c.l.b16 %v4048
    %v4303 = vunpack.c.l.b16 %v4049
    %v4304 = vunpack.c.l.b16 %v4050
    %v4305 = vunpack.c.l.b16 %v4051
    %v4306 = vunpack.c.l.b16 %v4052
    %v4307 = vunpack.c.l.b16 %v4053
    %v4308 = vunpack.c.l.b16 %v4054
    %v4309 = vunpack.c.l.b16 %v4055
    %v4310 = vunpack.c.l.b16 %v4056
    %v4311 = vunpack.c.l.b16 %v4057
    %v4312 = vpack.c.b16 %v4277, %v4276
    %v4313 = vpack.c.b16 %v4279, %v4278
    %v4314 = vpack.c.b16 %v4281, %v4280
    %v4315 = vpack.c.b16 %v4283, %v4282
    %v4316 = vpack.c.b16 %v4285, %v4284
    %v4317 = vpack.c.b16 %v4287, %v4286
    %v4318 = vpack.c.b16 %v4289, %v4288
    %v4319 = vpack.c.b16 %v4291, %v4290
    %v4320 = vpack.c.b16 %v4293, %v4292
    %v4321 = vpack.c.b16 %v4295, %v4294
    %v4322 = vpack.c.b16 %v4297, %v4296
    %v4323 = vpack.c.b16 %v4299, %v4298
    %v4324 = vpack.c.b16 %v4301, %v4300
    %v4325 = vpack.c.b16 %v4303, %v4302
    %v4326 = vpack.c.b16 %v4305, %v4304
    %v4327 = vpack.c.b16 %v4307, %v4306
    %v4328 = vpack.c.b16 %v4309, %v4308
    %v4329 = vpack.c.b16 %v4311, %v4310
    %v4348 = vunpack.c.l.b16 %v4058
    %v4349 = vunpack.c.l.b16 %v4059
    %v4350 = vunpack.c.l.b16 %v4060
    %v4351 = vunpack.c.l.b16 %v4061
    %v4352 = vunpack.c.l.b16 %v4062
    %v4353 = vunpack.c.l.b16 %v4063
    %v4354 = vunpack.c.l.b16 %v4064
    %v4355 = vunpack.c.l.b16 %v4065
    %v4356 = vunpack.c.l.b16 %v4066
    %v4357 = vunpack.c.l.b16 %v4067
    %v4358 = vunpack.c.l.b16 %v4068
    %v4359 = vunpack.c.l.b16 %v4069
    %v4360 = vunpack.c.l.b16 %v4070
    %v4361 = vunpack.c.l.b16 %v4071
    %v4362 = vunpack.c.l.b16 %v4072
    %v4363 = vunpack.c.l.b16 %v4073
    %v4364 = vunpack.c.l.b16 %v4074
    %v4365 = vunpack.c.l.b16 %v4075
    %v4366 = vpack.c.b16 %v4348, %v4348
    %v4367 = vpack.c.b16 %v4349, %v4349
    %v4368 = vpack.c.b16 %v4350, %v4350
    %v4369 = vpack.c.b16 %v4351, %v4351
    %v4370 = vpack.c.b16 %v4352, %v4352
    %v4371 = vpack.c.b16 %v4353, %v4353
    %v4372 = vpack.c.b16 %v4354, %v4354
    %v4373 = vpack.c.b16 %v4355, %v4355
    %v4374 = vpack.c.b16 %v4356, %v4356
    %v4375 = vpack.c.b16 %v4357, %v4357
    %v4376 = vpack.c.b16 %v4358, %v4358
    %v4377 = vpack.c.b16 %v4359, %v4359
    %v4378 = vpack.c.b16 %v4360, %v4360
    %v4379 = vpack.c.b16 %v4361, %v4361
    %v4380 = vpack.c.b16 %v4362, %v4362
    %v4381 = vpack.c.b16 %v4363, %v4363
    %v4382 = vpack.c.b16 %v4364, %v4364
    %v4383 = vpack.c.b16 %v4365, %v4365
    %v4385 = vshrl.u32 %v4312, 16
    %v4387 = vshll.u32 %v4312, 16
    %v4389 = vrot.slane %v4387, 1
    %v4390 = vor.u32 %v4385, %v4389
    %v4392 = vshll.u32 %v4366, 16
    %v4394 = vrot.slane %v4392, 1
    %v4395 = vsel %vm2104, %v4390, %v4394
    %v4397 = vshrl.u32 %v4313, 16
    %v4399 = vshll.u32 %v4313, 16
    %v4401 = vrot.slane %v4399, 1
    %v4402 = vor.u32 %v4397, %v4401
    %v4404 = vshll.u32 %v4367, 16
    %v4406 = vrot.slane %v4404, 1
    %v4407 = vsel %vm2104, %v4402, %v4406
    %v4409 = vshrl.u32 %v4314, 16
    %v4411 = vshll.u32 %v4314, 16
    %v4413 = vrot.slane %v4411, 1
    %v4414 = vor.u32 %v4409, %v4413
    %v4416 = vshll.u32 %v4368, 16
    %v4418 = vrot.slane %v4416, 1
    %v4419 = vsel %vm2104, %v4414, %v4418
    %v4421 = vshrl.u32 %v4315, 16
    %v4423 = vshll.u32 %v4315, 16
    %v4425 = vrot.slane %v4423, 1
    %v4426 = vor.u32 %v4421, %v4425
    %v4428 = vshll.u32 %v4369, 16
    %v4430 = vrot.slane %v4428, 1
    %v4431 = vsel %vm2104, %v4426, %v4430
    %v4433 = vshrl.u32 %v4316, 16
    %v4435 = vshll.u32 %v4316, 16
    %v4437 = vrot.slane %v4435, 1
    %v4438 = vor.u32 %v4433, %v4437
    %v4440 = vshll.u32 %v4370, 16
    %v4442 = vrot.slane %v4440, 1
    %v4443 = vsel %vm2104, %v4438, %v4442
    %v4445 = vshrl.u32 %v4317, 16
    %v4447 = vshll.u32 %v4317, 16
    %v4449 = vrot.slane %v4447, 1
    %v4450 = vor.u32 %v4445, %v4449
    %v4452 = vshll.u32 %v4371, 16
    %v4454 = vrot.slane %v4452, 1
    %v4455 = vsel %vm2104, %v4450, %v4454
    %v4457 = vshrl.u32 %v4318, 16
    %v4459 = vshll.u32 %v4318, 16
    %v4461 = vrot.slane %v4459, 1
    %v4462 = vor.u32 %v4457, %v4461
    %v4464 = vshll.u32 %v4372, 16
    %v4466 = vrot.slane %v4464, 1
    %v4467 = vsel %vm2104, %v4462, %v4466
    %v4469 = vshrl.u32 %v4319, 16
    %v4471 = vshll.u32 %v4319, 16
    %v4473 = vrot.slane %v4471, 1
    %v4474 = vor.u32 %v4469, %v4473
    %v4476 = vshll.u32 %v4373, 16
    %v4478 = vrot.slane %v4476, 1
    %v4479 = vsel %vm2104, %v4474, %v4478
    %v4481 = vshrl.u32 %v4320, 16
    %v4483 = vshll.u32 %v4320, 16
    %v4485 = vrot.slane %v4483, 1
    %v4486 = vor.u32 %v4481, %v4485
    %v4488 = vshll.u32 %v4374, 16
    %v4490 = vrot.slane %v4488, 1
    %v4491 = vsel %vm2104, %v4486, %v4490
    %v4493 = vshrl.u32 %v4321, 16
    %v4495 = vshll.u32 %v4321, 16
    %v4497 = vrot.slane %v4495, 1
    %v4498 = vor.u32 %v4493, %v4497
    %v4500 = vshll.u32 %v4375, 16
    %v4502 = vrot.slane %v4500, 1
    %v4503 = vsel %vm2104, %v4498, %v4502
    %v4505 = vshrl.u32 %v4322, 16
    %v4507 = vshll.u32 %v4322, 16
    %v4509 = vrot.slane %v4507, 1
    %v4510 = vor.u32 %v4505, %v4509
    %v4512 = vshll.u32 %v4376, 16
    %v4514 = vrot.slane %v4512, 1
    %v4515 = vsel %vm2104, %v4510, %v4514
    %v4517 = vshrl.u32 %v4323, 16
    %v4519 = vshll.u32 %v4323, 16
    %v4521 = vrot.slane %v4519, 1
    %v4522 = vor.u32 %v4517, %v4521
    %v4524 = vshll.u32 %v4377, 16
    %v4526 = vrot.slane %v4524, 1
    %v4527 = vsel %vm2104, %v4522, %v4526
    %v4529 = vshrl.u32 %v4324, 16
    %v4531 = vshll.u32 %v4324, 16
    %v4533 = vrot.slane %v4531, 1
    %v4534 = vor.u32 %v4529, %v4533
    %v4536 = vshll.u32 %v4378, 16
    %v4538 = vrot.slane %v4536, 1
    %v4539 = vsel %vm2104, %v4534, %v4538
    %v4541 = vshrl.u32 %v4325, 16
    %v4543 = vshll.u32 %v4325, 16
    %v4545 = vrot.slane %v4543, 1
    %v4546 = vor.u32 %v4541, %v4545
    %v4548 = vshll.u32 %v4379, 16
    %v4550 = vrot.slane %v4548, 1
    %v4551 = vsel %vm2104, %v4546, %v4550
    %v4553 = vshrl.u32 %v4326, 16
    %v4555 = vshll.u32 %v4326, 16
    %v4557 = vrot.slane %v4555, 1
    %v4558 = vor.u32 %v4553, %v4557
    %v4560 = vshll.u32 %v4380, 16
    %v4562 = vrot.slane %v4560, 1
    %v4563 = vsel %vm2104, %v4558, %v4562
    %v4565 = vshrl.u32 %v4327, 16
    %v4567 = vshll.u32 %v4327, 16
    %v4569 = vrot.slane %v4567, 1
    %v4570 = vor.u32 %v4565, %v4569
    %v4572 = vshll.u32 %v4381, 16
    %v4574 = vrot.slane %v4572, 1
    %v4575 = vsel %vm2104, %v4570, %v4574
    %v4577 = vshrl.u32 %v4328, 16
    %v4579 = vshll.u32 %v4328, 16
    %v4581 = vrot.slane %v4579, 1
    %v4582 = vor.u32 %v4577, %v4581
    %v4584 = vshll.u32 %v4382, 16
    %v4586 = vrot.slane %v4584, 1
    %v4587 = vsel %vm2104, %v4582, %v4586
    %v4589 = vshrl.u32 %v4329, 16
    %v4591 = vshll.u32 %v4329, 16
    %v4593 = vrot.slane %v4591, 1
    %v4594 = vor.u32 %v4589, %v4593
    %v4596 = vshll.u32 %v4383, 16
    %v4598 = vrot.slane %v4596, 1
    %v4599 = vsel %vm2104, %v4594, %v4598
    %4600 = vrot.lane.b32.xlu0 %v4395, 28
    %v4601 = vpop.permute.xlu0 %4600
    %4602 = vrot.lane.b32.xlu0 %v4407, 28
    %v4603 = vpop.permute.xlu0 %4602
    %4604 = vrot.lane.b32.xlu0 %v4419, 28
    %v4605 = vpop.permute.xlu0 %4604
    %4606 = vrot.lane.b32.xlu0 %v4431, 28
    %v4607 = vpop.permute.xlu0 %4606
    %4608 = vrot.lane.b32.xlu0 %v4443, 28
    %v4609 = vpop.permute.xlu0 %4608
    %4610 = vrot.lane.b32.xlu0 %v4455, 28
    %v4611 = vpop.permute.xlu0 %4610
    %4612 = vrot.lane.b32.xlu0 %v4467, 28
    %v4613 = vpop.permute.xlu0 %4612
    %4614 = vrot.lane.b32.xlu0 %v4479, 28
    %v4615 = vpop.permute.xlu0 %4614
    %4616 = vrot.lane.b32.xlu0 %v4491, 28
    %v4617 = vpop.permute.xlu0 %4616
    %4618 = vrot.lane.b32.xlu0 %v4503, 28
    %v4619 = vpop.permute.xlu0 %4618
    %4620 = vrot.lane.b32.xlu0 %v4515, 28
    %v4621 = vpop.permute.xlu0 %4620
    %4622 = vrot.lane.b32.xlu0 %v4527, 28
    %v4623 = vpop.permute.xlu0 %4622
    %4624 = vrot.lane.b32.xlu0 %v4539, 28
    %v4625 = vpop.permute.xlu0 %4624
    %4626 = vrot.lane.b32.xlu0 %v4551, 28
    %v4627 = vpop.permute.xlu0 %4626
    %4628 = vrot.lane.b32.xlu0 %v4563, 28
    %v4629 = vpop.permute.xlu0 %4628
    %4630 = vrot.lane.b32.xlu0 %v4575, 28
    %v4631 = vpop.permute.xlu0 %4630
    %4632 = vrot.lane.b32.xlu0 %v4587, 28
    %v4633 = vpop.permute.xlu0 %4632
    %4634 = vrot.lane.b32.xlu0 %v4599, 28
    %v4635 = vpop.permute.xlu0 %4634
    %v4654 = vunpack.c.l.b16 %v4076
    %v4655 = vunpack.c.l.b16 %v4077
    %v4656 = vunpack.c.l.b16 %v4078
    %v4657 = vunpack.c.l.b16 %v4079
    %v4658 = vunpack.c.l.b16 %v4080
    %v4659 = vunpack.c.l.b16 %v4081
    %v4660 = vunpack.c.l.b16 %v4082
    %v4661 = vunpack.c.l.b16 %v4083
    %v4662 = vunpack.c.l.b16 %v4084
    %v4663 = vunpack.c.l.b16 %v4085
    %v4664 = vunpack.c.l.b16 %v4086
    %v4665 = vunpack.c.l.b16 %v4087
    %v4666 = vunpack.c.l.b16 %v4088
    %v4667 = vunpack.c.l.b16 %v4089
    %v4668 = vunpack.c.l.b16 %v4090
    %v4669 = vunpack.c.l.b16 %v4091
    %v4670 = vunpack.c.l.b16 %v4092
    %v4671 = vunpack.c.l.b16 %v4093
    %v4672 = vpack.c.b16 %v4277, %v4654
    %v4673 = vpack.c.b16 %v4279, %v4655
    %v4674 = vpack.c.b16 %v4281, %v4656
    %v4675 = vpack.c.b16 %v4283, %v4657
    %v4676 = vpack.c.b16 %v4285, %v4658
    %v4677 = vpack.c.b16 %v4287, %v4659
    %v4678 = vpack.c.b16 %v4289, %v4660
    %v4679 = vpack.c.b16 %v4291, %v4661
    %v4680 = vpack.c.b16 %v4293, %v4662
    %v4681 = vpack.c.b16 %v4295, %v4663
    %v4682 = vpack.c.b16 %v4297, %v4664
    %v4683 = vpack.c.b16 %v4299, %v4665
    %v4684 = vpack.c.b16 %v4301, %v4666
    %v4685 = vpack.c.b16 %v4303, %v4667
    %v4686 = vpack.c.b16 %v4305, %v4668
    %v4687 = vpack.c.b16 %v4307, %v4669
    %v4688 = vpack.c.b16 %v4309, %v4670
    %v4689 = vpack.c.b16 %v4311, %v4671
    %v4690 = vrot.slane %v4672, 1
    %v4691 = vrot.slane %v4366, 1
    %v4692 = vsel %vm2567, %v4690, %v4691
    %v4693 = vrot.slane %v4673, 1
    %v4694 = vrot.slane %v4367, 1
    %v4695 = vsel %vm2567, %v4693, %v4694
    %v4696 = vrot.slane %v4674, 1
    %v4697 = vrot.slane %v4368, 1
    %v4698 = vsel %vm2567, %v4696, %v4697
    %v4699 = vrot.slane %v4675, 1
    %v4700 = vrot.slane %v4369, 1
    %v4701 = vsel %vm2567, %v4699, %v4700
    %v4702 = vrot.slane %v4676, 1
    %v4703 = vrot.slane %v4370, 1
    %v4704 = vsel %vm2567, %v4702, %v4703
    %v4705 = vrot.slane %v4677, 1
    %v4706 = vrot.slane %v4371, 1
    %v4707 = vsel %vm2567, %v4705, %v4706
    %v4708 = vrot.slane %v4678, 1
    %v4709 = vrot.slane %v4372, 1
    %v4710 = vsel %vm2567, %v4708, %v4709
    %v4711 = vrot.slane %v4679, 1
    %v4712 = vrot.slane %v4373, 1
    %v4713 = vsel %vm2567, %v4711, %v4712
    %v4714 = vrot.slane %v4680, 1
    %v4715 = vrot.slane %v4374, 1
    %v4716 = vsel %vm2567, %v4714, %v4715
    %v4717 = vrot.slane %v4681, 1
    %v4718 = vrot.slane %v4375, 1
    %v4719 = vsel %vm2567, %v4717, %v4718
    %v4720 = vrot.slane %v4682, 1
    %v4721 = vrot.slane %v4376, 1
    %v4722 = vsel %vm2567, %v4720, %v4721
    %v4723 = vrot.slane %v4683, 1
    %v4724 = vrot.slane %v4377, 1
    %v4725 = vsel %vm2567, %v4723, %v4724
    %v4726 = vrot.slane %v4684, 1
    %v4727 = vrot.slane %v4378, 1
    %v4728 = vsel %vm2567, %v4726, %v4727
    %v4729 = vrot.slane %v4685, 1
    %v4730 = vrot.slane %v4379, 1
    %v4731 = vsel %vm2567, %v4729, %v4730
    %v4732 = vrot.slane %v4686, 1
    %v4733 = vrot.slane %v4380, 1
    %v4734 = vsel %vm2567, %v4732, %v4733
    %v4735 = vrot.slane %v4687, 1
    %v4736 = vrot.slane %v4381, 1
    %v4737 = vsel %vm2567, %v4735, %v4736
    %v4738 = vrot.slane %v4688, 1
    %v4739 = vrot.slane %v4382, 1
    %v4740 = vsel %vm2567, %v4738, %v4739
    %v4741 = vrot.slane %v4689, 1
    %v4742 = vrot.slane %v4383, 1
    %v4743 = vsel %vm2567, %v4741, %v4742
    %4744 = vrot.lane.b32.xlu0 %v4692, 56
    %v4745 = vpop.permute.xlu0 %4744
    %4746 = vrot.lane.b32.xlu0 %v4695, 56
    %v4747 = vpop.permute.xlu0 %4746
    %4748 = vrot.lane.b32.xlu0 %v4698, 56
    %v4749 = vpop.permute.xlu0 %4748
    %4750 = vrot.lane.b32.xlu0 %v4701, 56
    %v4751 = vpop.permute.xlu0 %4750
    %4752 = vrot.lane.b32.xlu0 %v4704, 56
    %v4753 = vpop.permute.xlu0 %4752
    %4754 = vrot.lane.b32.xlu0 %v4707, 56
    %v4755 = vpop.permute.xlu0 %4754
    %4756 = vrot.lane.b32.xlu0 %v4710, 56
    %v4757 = vpop.permute.xlu0 %4756
    %4758 = vrot.lane.b32.xlu0 %v4713, 56
    %v4759 = vpop.permute.xlu0 %4758
    %4760 = vrot.lane.b32.xlu0 %v4716, 56
    %v4761 = vpop.permute.xlu0 %4760
    %4762 = vrot.lane.b32.xlu0 %v4719, 56
    %v4763 = vpop.permute.xlu0 %4762
    %4764 = vrot.lane.b32.xlu0 %v4722, 56
    %v4765 = vpop.permute.xlu0 %4764
    %4766 = vrot.lane.b32.xlu0 %v4725, 56
    %v4767 = vpop.permute.xlu0 %4766
    %4768 = vrot.lane.b32.xlu0 %v4728, 56
    %v4769 = vpop.permute.xlu0 %4768
    %4770 = vrot.lane.b32.xlu0 %v4731, 56
    %v4771 = vpop.permute.xlu0 %4770
    %4772 = vrot.lane.b32.xlu0 %v4734, 56
    %v4773 = vpop.permute.xlu0 %4772
    %4774 = vrot.lane.b32.xlu0 %v4737, 56
    %v4775 = vpop.permute.xlu0 %4774
    %4776 = vrot.lane.b32.xlu0 %v4740, 56
    %v4777 = vpop.permute.xlu0 %4776
    %4778 = vrot.lane.b32.xlu0 %v4743, 56
    %v4779 = vpop.permute.xlu0 %4778
    %v4816 = vunpack.c.l.b16 %v4095
    %v4817 = vunpack.c.l.b16 %v4096
    %v4818 = vunpack.c.l.b16 %v4097
    %v4819 = vunpack.c.l.b16 %v4098
    %v4820 = vunpack.c.l.b16 %v4099
    %v4821 = vunpack.c.l.b16 %v4100
    %v4822 = vunpack.c.l.b16 %v4101
    %v4823 = vunpack.c.l.b16 %v4102
    %v4824 = vunpack.c.l.b16 %v4103
    %v4825 = vunpack.c.l.b16 %v4104
    %v4826 = vunpack.c.l.b16 %v4105
    %v4827 = vunpack.c.l.b16 %v4106
    %v4828 = vunpack.c.l.b16 %v4107
    %v4829 = vunpack.c.l.b16 %v4108
    %v4830 = vunpack.c.l.b16 %v4109
    %v4831 = vunpack.c.l.b16 %v4110
    %v4832 = vunpack.c.l.b16 %v4111
    %v4833 = vunpack.c.l.b16 %v4112
    %v4834 = vunpack.c.l.b16 %v4113
    %v4835 = vunpack.c.l.b16 %v4114
    %v4836 = vunpack.c.l.b16 %v4115
    %v4837 = vunpack.c.l.b16 %v4116
    %v4838 = vunpack.c.l.b16 %v4117
    %v4839 = vunpack.c.l.b16 %v4118
    %v4840 = vunpack.c.l.b16 %v4119
    %v4841 = vunpack.c.l.b16 %v4120
    %v4842 = vunpack.c.l.b16 %v4121
    %v4843 = vunpack.c.l.b16 %v4122
    %v4844 = vunpack.c.l.b16 %v4123
    %v4845 = vunpack.c.l.b16 %v4124
    %v4846 = vunpack.c.l.b16 %v4125
    %v4847 = vunpack.c.l.b16 %v4126
    %v4848 = vunpack.c.l.b16 %v4127
    %v4849 = vunpack.c.l.b16 %v4128
    %v4850 = vunpack.c.l.b16 %v4129
    %v4851 = vunpack.c.l.b16 %v4130
    %v4852 = vpack.c.b16 %v4817, %v4816
    %v4853 = vpack.c.b16 %v4819, %v4818
    %v4854 = vpack.c.b16 %v4821, %v4820
    %v4855 = vpack.c.b16 %v4823, %v4822
    %v4856 = vpack.c.b16 %v4825, %v4824
    %v4857 = vpack.c.b16 %v4827, %v4826
    %v4858 = vpack.c.b16 %v4829, %v4828
    %v4859 = vpack.c.b16 %v4831, %v4830
    %v4860 = vpack.c.b16 %v4833, %v4832
    %v4861 = vpack.c.b16 %v4835, %v4834
    %v4862 = vpack.c.b16 %v4837, %v4836
    %v4863 = vpack.c.b16 %v4839, %v4838
    %v4864 = vpack.c.b16 %v4841, %v4840
    %v4865 = vpack.c.b16 %v4843, %v4842
    %v4866 = vpack.c.b16 %v4845, %v4844
    %v4867 = vpack.c.b16 %v4847, %v4846
    %v4868 = vpack.c.b16 %v4849, %v4848
    %v4869 = vpack.c.b16 %v4851, %v4850
    %4870 = vrot.lane.b32.xlu0 %v4852, 84
    %v4871 = vpop.permute.xlu0 %4870
    %4872 = vrot.lane.b32.xlu0 %v4853, 84
    %v4873 = vpop.permute.xlu0 %4872
    %4874 = vrot.lane.b32.xlu0 %v4854, 84
    %v4875 = vpop.permute.xlu0 %4874
    %4876 = vrot.lane.b32.xlu0 %v4855, 84
    %v4877 = vpop.permute.xlu0 %4876
    %4878 = vrot.lane.b32.xlu0 %v4856, 84
    %v4879 = vpop.permute.xlu0 %4878
    %4880 = vrot.lane.b32.xlu0 %v4857, 84
    %v4881 = vpop.permute.xlu0 %4880
    %4882 = vrot.lane.b32.xlu0 %v4858, 84
    %v4883 = vpop.permute.xlu0 %4882
    %4884 = vrot.lane.b32.xlu0 %v4859, 84
    %v4885 = vpop.permute.xlu0 %4884
    %4886 = vrot.lane.b32.xlu0 %v4860, 84
    %v4887 = vpop.permute.xlu0 %4886
    %4888 = vrot.lane.b32.xlu0 %v4861, 84
    %v4889 = vpop.permute.xlu0 %4888
    %4890 = vrot.lane.b32.xlu0 %v4862, 84
    %v4891 = vpop.permute.xlu0 %4890
    %4892 = vrot.lane.b32.xlu0 %v4863, 84
    %v4893 = vpop.permute.xlu0 %4892
    %4894 = vrot.lane.b32.xlu0 %v4864, 84
    %v4895 = vpop.permute.xlu0 %4894
    %4896 = vrot.lane.b32.xlu0 %v4865, 84
    %v4897 = vpop.permute.xlu0 %4896
    %4898 = vrot.lane.b32.xlu0 %v4866, 84
    %v4899 = vpop.permute.xlu0 %4898
    %4900 = vrot.lane.b32.xlu0 %v4867, 84
    %v4901 = vpop.permute.xlu0 %4900
    %4902 = vrot.lane.b32.xlu0 %v4868, 84
    %v4903 = vpop.permute.xlu0 %4902
    %4904 = vrot.lane.b32.xlu0 %v4869, 84
    %v4905 = vpop.permute.xlu0 %4904
    %v4924 = vunpack.c.l.b16 %v4131
    %v4925 = vunpack.c.l.b16 %v4132
    %v4926 = vunpack.c.l.b16 %v4133
    %v4927 = vunpack.c.l.b16 %v4134
    %v4928 = vunpack.c.l.b16 %v4135
    %v4929 = vunpack.c.l.b16 %v4136
    %v4930 = vunpack.c.l.b16 %v4137
    %v4931 = vunpack.c.l.b16 %v4138
    %v4932 = vunpack.c.l.b16 %v4139
    %v4933 = vunpack.c.l.b16 %v4140
    %v4934 = vunpack.c.l.b16 %v4141
    %v4935 = vunpack.c.l.b16 %v4142
    %v4936 = vunpack.c.l.b16 %v4143
    %v4937 = vunpack.c.l.b16 %v4144
    %v4938 = vunpack.c.l.b16 %v4145
    %v4939 = vunpack.c.l.b16 %v4146
    %v4940 = vunpack.c.l.b16 %v4147
    %v4941 = vunpack.c.l.b16 %v4148
    %v4942 = vpack.c.b16 %v4924, %v4924
    %v4943 = vpack.c.b16 %v4925, %v4925
    %v4944 = vpack.c.b16 %v4926, %v4926
    %v4945 = vpack.c.b16 %v4927, %v4927
    %v4946 = vpack.c.b16 %v4928, %v4928
    %v4947 = vpack.c.b16 %v4929, %v4929
    %v4948 = vpack.c.b16 %v4930, %v4930
    %v4949 = vpack.c.b16 %v4931, %v4931
    %v4950 = vpack.c.b16 %v4932, %v4932
    %v4951 = vpack.c.b16 %v4933, %v4933
    %v4952 = vpack.c.b16 %v4934, %v4934
    %v4953 = vpack.c.b16 %v4935, %v4935
    %v4954 = vpack.c.b16 %v4936, %v4936
    %v4955 = vpack.c.b16 %v4937, %v4937
    %v4956 = vpack.c.b16 %v4938, %v4938
    %v4957 = vpack.c.b16 %v4939, %v4939
    %v4958 = vpack.c.b16 %v4940, %v4940
    %v4959 = vpack.c.b16 %v4941, %v4941
    %v4961 = vshrl.u32 %v4852, 16
    %v4963 = vshll.u32 %v4852, 16
    %v4965 = vrot.slane %v4963, 1
    %v4966 = vor.u32 %v4961, %v4965
    %v4968 = vshll.u32 %v4942, 16
    %v4970 = vrot.slane %v4968, 1
    %v4971 = vsel %vm2104, %v4966, %v4970
    %v4973 = vshrl.u32 %v4853, 16
    %v4975 = vshll.u32 %v4853, 16
    %v4977 = vrot.slane %v4975, 1
    %v4978 = vor.u32 %v4973, %v4977
    %v4980 = vshll.u32 %v4943, 16
    %v4982 = vrot.slane %v4980, 1
    %v4983 = vsel %vm2104, %v4978, %v4982
    %v4985 = vshrl.u32 %v4854, 16
    %v4987 = vshll.u32 %v4854, 16
    %v4989 = vrot.slane %v4987, 1
    %v4990 = vor.u32 %v4985, %v4989
    %v4992 = vshll.u32 %v4944, 16
    %v4994 = vrot.slane %v4992, 1
    %v4995 = vsel %vm2104, %v4990, %v4994
    %v4997 = vshrl.u32 %v4855, 16
    %v4999 = vshll.u32 %v4855, 16
    %v5001 = vrot.slane %v4999, 1
    %v5002 = vor.u32 %v4997, %v5001
    %v5004 = vshll.u32 %v4945, 16
    %v5006 = vrot.slane %v5004, 1
    %v5007 = vsel %vm2104, %v5002, %v5006
    %v5009 = vshrl.u32 %v4856, 16
    %v5011 = vshll.u32 %v4856, 16
    %v5013 = vrot.slane %v5011, 1
    %v5014 = vor.u32 %v5009, %v5013
    %v5016 = vshll.u32 %v4946, 16
    %v5018 = vrot.slane %v5016, 1
    %v5019 = vsel %vm2104, %v5014, %v5018
    %v5021 = vshrl.u32 %v4857, 16
    %v5023 = vshll.u32 %v4857, 16
    %v5025 = vrot.slane %v5023, 1
    %v5026 = vor.u32 %v5021, %v5025
    %v5028 = vshll.u32 %v4947, 16
    %v5030 = vrot.slane %v5028, 1
    %v5031 = vsel %vm2104, %v5026, %v5030
    %v5033 = vshrl.u32 %v4858, 16
    %v5035 = vshll.u32 %v4858, 16
    %v5037 = vrot.slane %v5035, 1
    %v5038 = vor.u32 %v5033, %v5037
    %v5040 = vshll.u32 %v4948, 16
    %v5042 = vrot.slane %v5040, 1
    %v5043 = vsel %vm2104, %v5038, %v5042
    %v5045 = vshrl.u32 %v4859, 16
    %v5047 = vshll.u32 %v4859, 16
    %v5049 = vrot.slane %v5047, 1
    %v5050 = vor.u32 %v5045, %v5049
    %v5052 = vshll.u32 %v4949, 16
    %v5054 = vrot.slane %v5052, 1
    %v5055 = vsel %vm2104, %v5050, %v5054
    %v5057 = vshrl.u32 %v4860, 16
    %v5059 = vshll.u32 %v4860, 16
    %v5061 = vrot.slane %v5059, 1
    %v5062 = vor.u32 %v5057, %v5061
    %v5064 = vshll.u32 %v4950, 16
    %v5066 = vrot.slane %v5064, 1
    %v5067 = vsel %vm2104, %v5062, %v5066
    %v5069 = vshrl.u32 %v4861, 16
    %v5071 = vshll.u32 %v4861, 16
    %v5073 = vrot.slane %v5071, 1
    %v5074 = vor.u32 %v5069, %v5073
    %v5076 = vshll.u32 %v4951, 16
    %v5078 = vrot.slane %v5076, 1
    %v5079 = vsel %vm2104, %v5074, %v5078
    %v5081 = vshrl.u32 %v4862, 16
    %v5083 = vshll.u32 %v4862, 16
    %v5085 = vrot.slane %v5083, 1
    %v5086 = vor.u32 %v5081, %v5085
    %v5088 = vshll.u32 %v4952, 16
    %v5090 = vrot.slane %v5088, 1
    %v5091 = vsel %vm2104, %v5086, %v5090
    %v5093 = vshrl.u32 %v4863, 16
    %v5095 = vshll.u32 %v4863, 16
    %v5097 = vrot.slane %v5095, 1
    %v5098 = vor.u32 %v5093, %v5097
    %v5100 = vshll.u32 %v4953, 16
    %v5102 = vrot.slane %v5100, 1
    %v5103 = vsel %vm2104, %v5098, %v5102
    %v5105 = vshrl.u32 %v4864, 16
    %v5107 = vshll.u32 %v4864, 16
    %v5109 = vrot.slane %v5107, 1
    %v5110 = vor.u32 %v5105, %v5109
    %v5112 = vshll.u32 %v4954, 16
    %v5114 = vrot.slane %v5112, 1
    %v5115 = vsel %vm2104, %v5110, %v5114
    %v5117 = vshrl.u32 %v4865, 16
    %v5119 = vshll.u32 %v4865, 16
    %v5121 = vrot.slane %v5119, 1
    %v5122 = vor.u32 %v5117, %v5121
    %v5124 = vshll.u32 %v4955, 16
    %v5126 = vrot.slane %v5124, 1
    %v5127 = vsel %vm2104, %v5122, %v5126
    %v5129 = vshrl.u32 %v4866, 16
    %v5131 = vshll.u32 %v4866, 16
    %v5133 = vrot.slane %v5131, 1
    %v5134 = vor.u32 %v5129, %v5133
    %v5136 = vshll.u32 %v4956, 16
    %v5138 = vrot.slane %v5136, 1
    %v5139 = vsel %vm2104, %v5134, %v5138
    %v5141 = vshrl.u32 %v4867, 16
    %v5143 = vshll.u32 %v4867, 16
    %v5145 = vrot.slane %v5143, 1
    %v5146 = vor.u32 %v5141, %v5145
    %v5148 = vshll.u32 %v4957, 16
    %v5150 = vrot.slane %v5148, 1
    %v5151 = vsel %vm2104, %v5146, %v5150
    %v5153 = vshrl.u32 %v4868, 16
    %v5155 = vshll.u32 %v4868, 16
    %v5157 = vrot.slane %v5155, 1
    %v5158 = vor.u32 %v5153, %v5157
    %v5160 = vshll.u32 %v4958, 16
    %v5162 = vrot.slane %v5160, 1
    %v5163 = vsel %vm2104, %v5158, %v5162
    %v5165 = vshrl.u32 %v4869, 16
    %v5167 = vshll.u32 %v4869, 16
    %v5169 = vrot.slane %v5167, 1
    %v5170 = vor.u32 %v5165, %v5169
    %v5172 = vshll.u32 %v4959, 16
    %v5174 = vrot.slane %v5172, 1
    %v5175 = vsel %vm2104, %v5170, %v5174
    %5176 = vrot.lane.b32.xlu0 %v4971, 112
    %v5177 = vpop.permute.xlu0 %5176
    %5178 = vrot.lane.b32.xlu0 %v4983, 112
    %v5179 = vpop.permute.xlu0 %5178
    %5180 = vrot.lane.b32.xlu0 %v4995, 112
    %v5181 = vpop.permute.xlu0 %5180
    %5182 = vrot.lane.b32.xlu0 %v5007, 112
    %v5183 = vpop.permute.xlu0 %5182
    %5184 = vrot.lane.b32.xlu0 %v5019, 112
    %v5185 = vpop.permute.xlu0 %5184
    %5186 = vrot.lane.b32.xlu0 %v5031, 112
    %v5187 = vpop.permute.xlu0 %5186
    %5188 = vrot.lane.b32.xlu0 %v5043, 112
    %v5189 = vpop.permute.xlu0 %5188
    %5190 = vrot.lane.b32.xlu0 %v5055, 112
    %v5191 = vpop.permute.xlu0 %5190
    %5192 = vrot.lane.b32.xlu0 %v5067, 112
    %v5193 = vpop.permute.xlu0 %5192
    %5194 = vrot.lane.b32.xlu0 %v5079, 112
    %v5195 = vpop.permute.xlu0 %5194
    %5196 = vrot.lane.b32.xlu0 %v5091, 112
    %v5197 = vpop.permute.xlu0 %5196
    %5198 = vrot.lane.b32.xlu0 %v5103, 112
    %v5199 = vpop.permute.xlu0 %5198
    %5200 = vrot.lane.b32.xlu0 %v5115, 112
    %v5201 = vpop.permute.xlu0 %5200
    %5202 = vrot.lane.b32.xlu0 %v5127, 112
    %v5203 = vpop.permute.xlu0 %5202
    %5204 = vrot.lane.b32.xlu0 %v5139, 112
    %v5205 = vpop.permute.xlu0 %5204
    %5206 = vrot.lane.b32.xlu0 %v5151, 112
    %v5207 = vpop.permute.xlu0 %5206
    %5208 = vrot.lane.b32.xlu0 %v5163, 112
    %v5209 = vpop.permute.xlu0 %5208
    %5210 = vrot.lane.b32.xlu0 %v5175, 112
    %v5211 = vpop.permute.xlu0 %5210
    %v5230 = vunpack.c.l.b16 %v4149
    %v5231 = vunpack.c.l.b16 %v4150
    %v5232 = vunpack.c.l.b16 %v4151
    %v5233 = vunpack.c.l.b16 %v4152
    %v5234 = vunpack.c.l.b16 %v4153
    %v5235 = vunpack.c.l.b16 %v4154
    %v5236 = vunpack.c.l.b16 %v4155
    %v5237 = vunpack.c.l.b16 %v4156
    %v5238 = vunpack.c.l.b16 %v4157
    %v5239 = vunpack.c.l.b16 %v4158
    %v5240 = vunpack.c.l.b16 %v4159
    %v5241 = vunpack.c.l.b16 %v4160
    %v5242 = vunpack.c.l.b16 %v4161
    %v5243 = vunpack.c.l.b16 %v4162
    %v5244 = vunpack.c.l.b16 %v4163
    %v5245 = vunpack.c.l.b16 %v4164
    %v5246 = vunpack.c.l.b16 %v4165
    %v5247 = vunpack.c.l.b16 %v4166
    %v5248 = vpack.c.b16 %v4817, %v5230
    %v5249 = vpack.c.b16 %v4819, %v5231
    %v5250 = vpack.c.b16 %v4821, %v5232
    %v5251 = vpack.c.b16 %v4823, %v5233
    %v5252 = vpack.c.b16 %v4825, %v5234
    %v5253 = vpack.c.b16 %v4827, %v5235
    %v5254 = vpack.c.b16 %v4829, %v5236
    %v5255 = vpack.c.b16 %v4831, %v5237
    %v5256 = vpack.c.b16 %v4833, %v5238
    %v5257 = vpack.c.b16 %v4835, %v5239
    %v5258 = vpack.c.b16 %v4837, %v5240
    %v5259 = vpack.c.b16 %v4839, %v5241
    %v5260 = vpack.c.b16 %v4841, %v5242
    %v5261 = vpack.c.b16 %v4843, %v5243
    %v5262 = vpack.c.b16 %v4845, %v5244
    %v5263 = vpack.c.b16 %v4847, %v5245
    %v5264 = vpack.c.b16 %v4849, %v5246
    %v5265 = vpack.c.b16 %v4851, %v5247
    %v5266 = vrot.slane %v5248, 1
    %v5267 = vrot.slane %v4942, 1
    %v5268 = vsel %vm2567, %v5266, %v5267
    %v5269 = vrot.slane %v5249, 1
    %v5270 = vrot.slane %v4943, 1
    %v5271 = vsel %vm2567, %v5269, %v5270
    %v5272 = vrot.slane %v5250, 1
    %v5273 = vrot.slane %v4944, 1
    %v5274 = vsel %vm2567, %v5272, %v5273
    %v5275 = vrot.slane %v5251, 1
    %v5276 = vrot.slane %v4945, 1
    %v5277 = vsel %vm2567, %v5275, %v5276
    %v5278 = vrot.slane %v5252, 1
    %v5279 = vrot.slane %v4946, 1
    %v5280 = vsel %vm2567, %v5278, %v5279
    %v5281 = vrot.slane %v5253, 1
    %v5282 = vrot.slane %v4947, 1
    %v5283 = vsel %vm2567, %v5281, %v5282
    %v5284 = vrot.slane %v5254, 1
    %v5285 = vrot.slane %v4948, 1
    %v5286 = vsel %vm2567, %v5284, %v5285
    %v5287 = vrot.slane %v5255, 1
    %v5288 = vrot.slane %v4949, 1
    %v5289 = vsel %vm2567, %v5287, %v5288
    %v5290 = vrot.slane %v5256, 1
    %v5291 = vrot.slane %v4950, 1
    %v5292 = vsel %vm2567, %v5290, %v5291
    %v5293 = vrot.slane %v5257, 1
    %v5294 = vrot.slane %v4951, 1
    %v5295 = vsel %vm2567, %v5293, %v5294
    %v5296 = vrot.slane %v5258, 1
    %v5297 = vrot.slane %v4952, 1
    %v5298 = vsel %vm2567, %v5296, %v5297
    %v5299 = vrot.slane %v5259, 1
    %v5300 = vrot.slane %v4953, 1
    %v5301 = vsel %vm2567, %v5299, %v5300
    %v5302 = vrot.slane %v5260, 1
    %v5303 = vrot.slane %v4954, 1
    %v5304 = vsel %vm2567, %v5302, %v5303
    %v5305 = vrot.slane %v5261, 1
    %v5306 = vrot.slane %v4955, 1
    %v5307 = vsel %vm2567, %v5305, %v5306
    %v5308 = vrot.slane %v5262, 1
    %v5309 = vrot.slane %v4956, 1
    %v5310 = vsel %vm2567, %v5308, %v5309
    %v5311 = vrot.slane %v5263, 1
    %v5312 = vrot.slane %v4957, 1
    %v5313 = vsel %vm2567, %v5311, %v5312
    %v5314 = vrot.slane %v5264, 1
    %v5315 = vrot.slane %v4958, 1
    %v5316 = vsel %vm2567, %v5314, %v5315
    %v5317 = vrot.slane %v5265, 1
    %v5318 = vrot.slane %v4959, 1
    %v5319 = vsel %vm2567, %v5317, %v5318
    %5320 = vrot.lane.b32.xlu0 %v5268, 12
    %v5321 = vpop.permute.xlu0 %5320
    %5322 = vrot.lane.b32.xlu0 %v5271, 12
    %v5323 = vpop.permute.xlu0 %5322
    %5324 = vrot.lane.b32.xlu0 %v5274, 12
    %v5325 = vpop.permute.xlu0 %5324
    %5326 = vrot.lane.b32.xlu0 %v5277, 12
    %v5327 = vpop.permute.xlu0 %5326
    %5328 = vrot.lane.b32.xlu0 %v5280, 12
    %v5329 = vpop.permute.xlu0 %5328
    %5330 = vrot.lane.b32.xlu0 %v5283, 12
    %v5331 = vpop.permute.xlu0 %5330
    %5332 = vrot.lane.b32.xlu0 %v5286, 12
    %v5333 = vpop.permute.xlu0 %5332
    %5334 = vrot.lane.b32.xlu0 %v5289, 12
    %v5335 = vpop.permute.xlu0 %5334
    %5336 = vrot.lane.b32.xlu0 %v5292, 12
    %v5337 = vpop.permute.xlu0 %5336
    %5338 = vrot.lane.b32.xlu0 %v5295, 12
    %v5339 = vpop.permute.xlu0 %5338
    %5340 = vrot.lane.b32.xlu0 %v5298, 12
    %v5341 = vpop.permute.xlu0 %5340
    %5342 = vrot.lane.b32.xlu0 %v5301, 12
    %v5343 = vpop.permute.xlu0 %5342
    %5344 = vrot.lane.b32.xlu0 %v5304, 12
    %v5345 = vpop.permute.xlu0 %5344
    %5346 = vrot.lane.b32.xlu0 %v5307, 12
    %v5347 = vpop.permute.xlu0 %5346
    %5348 = vrot.lane.b32.xlu0 %v5310, 12
    %v5349 = vpop.permute.xlu0 %5348
    %5350 = vrot.lane.b32.xlu0 %v5313, 12
    %v5351 = vpop.permute.xlu0 %5350
    %5352 = vrot.lane.b32.xlu0 %v5316, 12
    %v5353 = vpop.permute.xlu0 %5352
    %5354 = vrot.lane.b32.xlu0 %v5319, 12
    %v5355 = vpop.permute.xlu0 %5354
    %v5392 = vunpack.c.l.b16 %v4168
    %v5393 = vunpack.c.l.b16 %v4169
    %v5394 = vunpack.c.l.b16 %v4170
    %v5395 = vunpack.c.l.b16 %v4171
    %v5396 = vunpack.c.l.b16 %v4172
    %v5397 = vunpack.c.l.b16 %v4173
    %v5398 = vunpack.c.l.b16 %v4174
    %v5399 = vunpack.c.l.b16 %v4175
    %v5400 = vunpack.c.l.b16 %v4176
    %v5401 = vunpack.c.l.b16 %v4177
    %v5402 = vunpack.c.l.b16 %v4178
    %v5403 = vunpack.c.l.b16 %v4179
    %v5404 = vunpack.c.l.b16 %v4180
    %v5405 = vunpack.c.l.b16 %v4181
    %v5406 = vunpack.c.l.b16 %v4182
    %v5407 = vunpack.c.l.b16 %v4183
    %v5408 = vunpack.c.l.b16 %v4184
    %v5409 = vunpack.c.l.b16 %v4185
    %v5410 = vunpack.c.l.b16 %v4186
    %v5411 = vunpack.c.l.b16 %v4187
    %v5412 = vunpack.c.l.b16 %v4188
    %v5413 = vunpack.c.l.b16 %v4189
    %v5414 = vunpack.c.l.b16 %v4190
    %v5415 = vunpack.c.l.b16 %v4191
    %v5416 = vunpack.c.l.b16 %v4192
    %v5417 = vunpack.c.l.b16 %v4193
    %v5418 = vunpack.c.l.b16 %v4194
    %v5419 = vunpack.c.l.b16 %v4195
    %v5420 = vunpack.c.l.b16 %v4196
    %v5421 = vunpack.c.l.b16 %v4197
    %v5422 = vunpack.c.l.b16 %v4198
    %v5423 = vunpack.c.l.b16 %v4199
    %v5424 = vunpack.c.l.b16 %v4200
    %v5425 = vunpack.c.l.b16 %v4201
    %v5426 = vunpack.c.l.b16 %v4202
    %v5427 = vunpack.c.l.b16 %v4203
    %v5428 = vpack.c.b16 %v5393, %v5392
    %v5429 = vpack.c.b16 %v5395, %v5394
    %v5430 = vpack.c.b16 %v5397, %v5396
    %v5431 = vpack.c.b16 %v5399, %v5398
    %v5432 = vpack.c.b16 %v5401, %v5400
    %v5433 = vpack.c.b16 %v5403, %v5402
    %v5434 = vpack.c.b16 %v5405, %v5404
    %v5435 = vpack.c.b16 %v5407, %v5406
    %v5436 = vpack.c.b16 %v5409, %v5408
    %v5437 = vpack.c.b16 %v5411, %v5410
    %v5438 = vpack.c.b16 %v5413, %v5412
    %v5439 = vpack.c.b16 %v5415, %v5414
    %v5440 = vpack.c.b16 %v5417, %v5416
    %v5441 = vpack.c.b16 %v5419, %v5418
    %v5442 = vpack.c.b16 %v5421, %v5420
    %v5443 = vpack.c.b16 %v5423, %v5422
    %v5444 = vpack.c.b16 %v5425, %v5424
    %v5445 = vpack.c.b16 %v5427, %v5426
    %5446 = vrot.lane.b32.xlu0 %v5428, 40
    %v5447 = vpop.permute.xlu0 %5446
    %5448 = vrot.lane.b32.xlu0 %v5429, 40
    %v5449 = vpop.permute.xlu0 %5448
    %5450 = vrot.lane.b32.xlu0 %v5430, 40
    %v5451 = vpop.permute.xlu0 %5450
    %5452 = vrot.lane.b32.xlu0 %v5431, 40
    %v5453 = vpop.permute.xlu0 %5452
    %5454 = vrot.lane.b32.xlu0 %v5432, 40
    %v5455 = vpop.permute.xlu0 %5454
    %5456 = vrot.lane.b32.xlu0 %v5433, 40
    %v5457 = vpop.permute.xlu0 %5456
    %5458 = vrot.lane.b32.xlu0 %v5434, 40
    %v5459 = vpop.permute.xlu0 %5458
    %5460 = vrot.lane.b32.xlu0 %v5435, 40
    %v5461 = vpop.permute.xlu0 %5460
    %5462 = vrot.lane.b32.xlu0 %v5436, 40
    %v5463 = vpop.permute.xlu0 %5462
    %5464 = vrot.lane.b32.xlu0 %v5437, 40
    %v5465 = vpop.permute.xlu0 %5464
    %5466 = vrot.lane.b32.xlu0 %v5438, 40
    %v5467 = vpop.permute.xlu0 %5466
    %5468 = vrot.lane.b32.xlu0 %v5439, 40
    %v5469 = vpop.permute.xlu0 %5468
    %5470 = vrot.lane.b32.xlu0 %v5440, 40
    %v5471 = vpop.permute.xlu0 %5470
    %5472 = vrot.lane.b32.xlu0 %v5441, 40
    %v5473 = vpop.permute.xlu0 %5472
    %5474 = vrot.lane.b32.xlu0 %v5442, 40
    %v5475 = vpop.permute.xlu0 %5474
    %5476 = vrot.lane.b32.xlu0 %v5443, 40
    %v5477 = vpop.permute.xlu0 %5476
    %5478 = vrot.lane.b32.xlu0 %v5444, 40
    %v5479 = vpop.permute.xlu0 %5478
    %5480 = vrot.lane.b32.xlu0 %v5445, 40
    %v5481 = vpop.permute.xlu0 %5480
    %v5500 = vunpack.c.l.b16 %v4204
    %v5501 = vunpack.c.l.b16 %v4205
    %v5502 = vunpack.c.l.b16 %v4206
    %v5503 = vunpack.c.l.b16 %v4207
    %v5504 = vunpack.c.l.b16 %v4208
    %v5505 = vunpack.c.l.b16 %v4209
    %v5506 = vunpack.c.l.b16 %v4210
    %v5507 = vunpack.c.l.b16 %v4211
    %v5508 = vunpack.c.l.b16 %v4212
    %v5509 = vunpack.c.l.b16 %v4213
    %v5510 = vunpack.c.l.b16 %v4214
    %v5511 = vunpack.c.l.b16 %v4215
    %v5512 = vunpack.c.l.b16 %v4216
    %v5513 = vunpack.c.l.b16 %v4217
    %v5514 = vunpack.c.l.b16 %v4218
    %v5515 = vunpack.c.l.b16 %v4219
    %v5516 = vunpack.c.l.b16 %v4220
    %v5517 = vunpack.c.l.b16 %v4221
    %v5518 = vpack.c.b16 %v5500, %v5500
    %v5519 = vpack.c.b16 %v5501, %v5501
    %v5520 = vpack.c.b16 %v5502, %v5502
    %v5521 = vpack.c.b16 %v5503, %v5503
    %v5522 = vpack.c.b16 %v5504, %v5504
    %v5523 = vpack.c.b16 %v5505, %v5505
    %v5524 = vpack.c.b16 %v5506, %v5506
    %v5525 = vpack.c.b16 %v5507, %v5507
    %v5526 = vpack.c.b16 %v5508, %v5508
    %v5527 = vpack.c.b16 %v5509, %v5509
    %v5528 = vpack.c.b16 %v5510, %v5510
    %v5529 = vpack.c.b16 %v5511, %v5511
    %v5530 = vpack.c.b16 %v5512, %v5512
    %v5531 = vpack.c.b16 %v5513, %v5513
    %v5532 = vpack.c.b16 %v5514, %v5514
    %v5533 = vpack.c.b16 %v5515, %v5515
    %v5534 = vpack.c.b16 %v5516, %v5516
    %v5535 = vpack.c.b16 %v5517, %v5517
    %v5537 = vshrl.u32 %v5428, 16
    %v5539 = vshll.u32 %v5428, 16
    %v5541 = vrot.slane %v5539, 1
    %v5542 = vor.u32 %v5537, %v5541
    %v5544 = vshll.u32 %v5518, 16
    %v5546 = vrot.slane %v5544, 1
    %v5547 = vsel %vm2104, %v5542, %v5546
    %v5549 = vshrl.u32 %v5429, 16
    %v5551 = vshll.u32 %v5429, 16
    %v5553 = vrot.slane %v5551, 1
    %v5554 = vor.u32 %v5549, %v5553
    %v5556 = vshll.u32 %v5519, 16
    %v5558 = vrot.slane %v5556, 1
    %v5559 = vsel %vm2104, %v5554, %v5558
    %v5561 = vshrl.u32 %v5430, 16
    %v5563 = vshll.u32 %v5430, 16
    %v5565 = vrot.slane %v5563, 1
    %v5566 = vor.u32 %v5561, %v5565
    %v5568 = vshll.u32 %v5520, 16
    %v5570 = vrot.slane %v5568, 1
    %v5571 = vsel %vm2104, %v5566, %v5570
    %v5573 = vshrl.u32 %v5431, 16
    %v5575 = vshll.u32 %v5431, 16
    %v5577 = vrot.slane %v5575, 1
    %v5578 = vor.u32 %v5573, %v5577
    %v5580 = vshll.u32 %v5521, 16
    %v5582 = vrot.slane %v5580, 1
    %v5583 = vsel %vm2104, %v5578, %v5582
    %v5585 = vshrl.u32 %v5432, 16
    %v5587 = vshll.u32 %v5432, 16
    %v5589 = vrot.slane %v5587, 1
    %v5590 = vor.u32 %v5585, %v5589
    %v5592 = vshll.u32 %v5522, 16
    %v5594 = vrot.slane %v5592, 1
    %v5595 = vsel %vm2104, %v5590, %v5594
    %v5597 = vshrl.u32 %v5433, 16
    %v5599 = vshll.u32 %v5433, 16
    %v5601 = vrot.slane %v5599, 1
    %v5602 = vor.u32 %v5597, %v5601
    %v5604 = vshll.u32 %v5523, 16
    %v5606 = vrot.slane %v5604, 1
    %v5607 = vsel %vm2104, %v5602, %v5606
    %v5609 = vshrl.u32 %v5434, 16
    %v5611 = vshll.u32 %v5434, 16
    %v5613 = vrot.slane %v5611, 1
    %v5614 = vor.u32 %v5609, %v5613
    %v5616 = vshll.u32 %v5524, 16
    %v5618 = vrot.slane %v5616, 1
    %v5619 = vsel %vm2104, %v5614, %v5618
    %v5621 = vshrl.u32 %v5435, 16
    %v5623 = vshll.u32 %v5435, 16
    %v5625 = vrot.slane %v5623, 1
    %v5626 = vor.u32 %v5621, %v5625
    %v5628 = vshll.u32 %v5525, 16
    %v5630 = vrot.slane %v5628, 1
    %v5631 = vsel %vm2104, %v5626, %v5630
    %v5633 = vshrl.u32 %v5436, 16
    %v5635 = vshll.u32 %v5436, 16
    %v5637 = vrot.slane %v5635, 1
    %v5638 = vor.u32 %v5633, %v5637
    %v5640 = vshll.u32 %v5526, 16
    %v5642 = vrot.slane %v5640, 1
    %v5643 = vsel %vm2104, %v5638, %v5642
    %v5645 = vshrl.u32 %v5437, 16
    %v5647 = vshll.u32 %v5437, 16
    %v5649 = vrot.slane %v5647, 1
    %v5650 = vor.u32 %v5645, %v5649
    %v5652 = vshll.u32 %v5527, 16
    %v5654 = vrot.slane %v5652, 1
    %v5655 = vsel %vm2104, %v5650, %v5654
    %v5657 = vshrl.u32 %v5438, 16
    %v5659 = vshll.u32 %v5438, 16
    %v5661 = vrot.slane %v5659, 1
    %v5662 = vor.u32 %v5657, %v5661
    %v5664 = vshll.u32 %v5528, 16
    %v5666 = vrot.slane %v5664, 1
    %v5667 = vsel %vm2104, %v5662, %v5666
    %v5669 = vshrl.u32 %v5439, 16
    %v5671 = vshll.u32 %v5439, 16
    %v5673 = vrot.slane %v5671, 1
    %v5674 = vor.u32 %v5669, %v5673
    %v5676 = vshll.u32 %v5529, 16
    %v5678 = vrot.slane %v5676, 1
    %v5679 = vsel %vm2104, %v5674, %v5678
    %v5681 = vshrl.u32 %v5440, 16
    %v5683 = vshll.u32 %v5440, 16
    %v5685 = vrot.slane %v5683, 1
    %v5686 = vor.u32 %v5681, %v5685
    %v5688 = vshll.u32 %v5530, 16
    %v5690 = vrot.slane %v5688, 1
    %v5691 = vsel %vm2104, %v5686, %v5690
    %v5693 = vshrl.u32 %v5441, 16
    %v5695 = vshll.u32 %v5441, 16
    %v5697 = vrot.slane %v5695, 1
    %v5698 = vor.u32 %v5693, %v5697
    %v5700 = vshll.u32 %v5531, 16
    %v5702 = vrot.slane %v5700, 1
    %v5703 = vsel %vm2104, %v5698, %v5702
    %v5705 = vshrl.u32 %v5442, 16
    %v5707 = vshll.u32 %v5442, 16
    %v5709 = vrot.slane %v5707, 1
    %v5710 = vor.u32 %v5705, %v5709
    %v5712 = vshll.u32 %v5532, 16
    %v5714 = vrot.slane %v5712, 1
    %v5715 = vsel %vm2104, %v5710, %v5714
    %v5717 = vshrl.u32 %v5443, 16
    %v5719 = vshll.u32 %v5443, 16
    %v5721 = vrot.slane %v5719, 1
    %v5722 = vor.u32 %v5717, %v5721
    %v5724 = vshll.u32 %v5533, 16
    %v5726 = vrot.slane %v5724, 1
    %v5727 = vsel %vm2104, %v5722, %v5726
    %v5729 = vshrl.u32 %v5444, 16
    %v5731 = vshll.u32 %v5444, 16
    %v5733 = vrot.slane %v5731, 1
    %v5734 = vor.u32 %v5729, %v5733
    %v5736 = vshll.u32 %v5534, 16
    %v5738 = vrot.slane %v5736, 1
    %v5739 = vsel %vm2104, %v5734, %v5738
    %v5741 = vshrl.u32 %v5445, 16
    %v5743 = vshll.u32 %v5445, 16
    %v5745 = vrot.slane %v5743, 1
    %v5746 = vor.u32 %v5741, %v5745
    %v5748 = vshll.u32 %v5535, 16
    %v5750 = vrot.slane %v5748, 1
    %v5751 = vsel %vm2104, %v5746, %v5750
    %5752 = vrot.lane.b32.xlu0 %v5547, 68
    %v5753 = vpop.permute.xlu0 %5752
    %5754 = vrot.lane.b32.xlu0 %v5559, 68
    %v5755 = vpop.permute.xlu0 %5754
    %5756 = vrot.lane.b32.xlu0 %v5571, 68
    %v5757 = vpop.permute.xlu0 %5756
    %5758 = vrot.lane.b32.xlu0 %v5583, 68
    %v5759 = vpop.permute.xlu0 %5758
    %5760 = vrot.lane.b32.xlu0 %v5595, 68
    %v5761 = vpop.permute.xlu0 %5760
    %5762 = vrot.lane.b32.xlu0 %v5607, 68
    %v5763 = vpop.permute.xlu0 %5762
    %5764 = vrot.lane.b32.xlu0 %v5619, 68
    %v5765 = vpop.permute.xlu0 %5764
    %5766 = vrot.lane.b32.xlu0 %v5631, 68
    %v5767 = vpop.permute.xlu0 %5766
    %5768 = vrot.lane.b32.xlu0 %v5643, 68
    %v5769 = vpop.permute.xlu0 %5768
    %5770 = vrot.lane.b32.xlu0 %v5655, 68
    %v5771 = vpop.permute.xlu0 %5770
    %5772 = vrot.lane.b32.xlu0 %v5667, 68
    %v5773 = vpop.permute.xlu0 %5772
    %5774 = vrot.lane.b32.xlu0 %v5679, 68
    %v5775 = vpop.permute.xlu0 %5774
    %5776 = vrot.lane.b32.xlu0 %v5691, 68
    %v5777 = vpop.permute.xlu0 %5776
    %5778 = vrot.lane.b32.xlu0 %v5703, 68
    %v5779 = vpop.permute.xlu0 %5778
    %5780 = vrot.lane.b32.xlu0 %v5715, 68
    %v5781 = vpop.permute.xlu0 %5780
    %5782 = vrot.lane.b32.xlu0 %v5727, 68
    %v5783 = vpop.permute.xlu0 %5782
    %5784 = vrot.lane.b32.xlu0 %v5739, 68
    %v5785 = vpop.permute.xlu0 %5784
    %5786 = vrot.lane.b32.xlu0 %v5751, 68
    %v5787 = vpop.permute.xlu0 %5786
    %v5806 = vunpack.c.l.b16 %v4222
    %v5807 = vunpack.c.l.b16 %v4223
    %v5808 = vunpack.c.l.b16 %v4224
    %v5809 = vunpack.c.l.b16 %v4225
    %v5810 = vunpack.c.l.b16 %v4226
    %v5811 = vunpack.c.l.b16 %v4227
    %v5812 = vunpack.c.l.b16 %v4228
    %v5813 = vunpack.c.l.b16 %v4229
    %v5814 = vunpack.c.l.b16 %v4230
    %v5815 = vunpack.c.l.b16 %v4231
    %v5816 = vunpack.c.l.b16 %v4232
    %v5817 = vunpack.c.l.b16 %v4233
    %v5818 = vunpack.c.l.b16 %v4234
    %v5819 = vunpack.c.l.b16 %v4235
    %v5820 = vunpack.c.l.b16 %v4236
    %v5821 = vunpack.c.l.b16 %v4237
    %v5822 = vunpack.c.l.b16 %v4238
    %v5823 = vunpack.c.l.b16 %v4239
    %v5824 = vpack.c.b16 %v5393, %v5806
    %v5825 = vpack.c.b16 %v5395, %v5807
    %v5826 = vpack.c.b16 %v5397, %v5808
    %v5827 = vpack.c.b16 %v5399, %v5809
    %v5828 = vpack.c.b16 %v5401, %v5810
    %v5829 = vpack.c.b16 %v5403, %v5811
    %v5830 = vpack.c.b16 %v5405, %v5812
    %v5831 = vpack.c.b16 %v5407, %v5813
    %v5832 = vpack.c.b16 %v5409, %v5814
    %v5833 = vpack.c.b16 %v5411, %v5815
    %v5834 = vpack.c.b16 %v5413, %v5816
    %v5835 = vpack.c.b16 %v5415, %v5817
    %v5836 = vpack.c.b16 %v5417, %v5818
    %v5837 = vpack.c.b16 %v5419, %v5819
    %v5838 = vpack.c.b16 %v5421, %v5820
    %v5839 = vpack.c.b16 %v5423, %v5821
    %v5840 = vpack.c.b16 %v5425, %v5822
    %v5841 = vpack.c.b16 %v5427, %v5823
    %v5842 = vrot.slane %v5824, 1
    %v5843 = vrot.slane %v5518, 1
    %v5844 = vsel %vm2567, %v5842, %v5843
    %v5845 = vrot.slane %v5825, 1
    %v5846 = vrot.slane %v5519, 1
    %v5847 = vsel %vm2567, %v5845, %v5846
    %v5848 = vrot.slane %v5826, 1
    %v5849 = vrot.slane %v5520, 1
    %v5850 = vsel %vm2567, %v5848, %v5849
    %v5851 = vrot.slane %v5827, 1
    %v5852 = vrot.slane %v5521, 1
    %v5853 = vsel %vm2567, %v5851, %v5852
    %v5854 = vrot.slane %v5828, 1
    %v5855 = vrot.slane %v5522, 1
    %v5856 = vsel %vm2567, %v5854, %v5855
    %v5857 = vrot.slane %v5829, 1
    %v5858 = vrot.slane %v5523, 1
    %v5859 = vsel %vm2567, %v5857, %v5858
    %v5860 = vrot.slane %v5830, 1
    %v5861 = vrot.slane %v5524, 1
    %v5862 = vsel %vm2567, %v5860, %v5861
    %v5863 = vrot.slane %v5831, 1
    %v5864 = vrot.slane %v5525, 1
    %v5865 = vsel %vm2567, %v5863, %v5864
    %v5866 = vrot.slane %v5832, 1
    %v5867 = vrot.slane %v5526, 1
    %v5868 = vsel %vm2567, %v5866, %v5867
    %v5869 = vrot.slane %v5833, 1
    %v5870 = vrot.slane %v5527, 1
    %v5871 = vsel %vm2567, %v5869, %v5870
    %v5872 = vrot.slane %v5834, 1
    %v5873 = vrot.slane %v5528, 1
    %v5874 = vsel %vm2567, %v5872, %v5873
    %v5875 = vrot.slane %v5835, 1
    %v5876 = vrot.slane %v5529, 1
    %v5877 = vsel %vm2567, %v5875, %v5876
    %v5878 = vrot.slane %v5836, 1
    %v5879 = vrot.slane %v5530, 1
    %v5880 = vsel %vm2567, %v5878, %v5879
    %v5881 = vrot.slane %v5837, 1
    %v5882 = vrot.slane %v5531, 1
    %v5883 = vsel %vm2567, %v5881, %v5882
    %v5884 = vrot.slane %v5838, 1
    %v5885 = vrot.slane %v5532, 1
    %v5886 = vsel %vm2567, %v5884, %v5885
    %v5887 = vrot.slane %v5839, 1
    %v5888 = vrot.slane %v5533, 1
    %v5889 = vsel %vm2567, %v5887, %v5888
    %v5890 = vrot.slane %v5840, 1
    %v5891 = vrot.slane %v5534, 1
    %v5892 = vsel %vm2567, %v5890, %v5891
    %v5893 = vrot.slane %v5841, 1
    %v5894 = vrot.slane %v5535, 1
    %v5895 = vsel %vm2567, %v5893, %v5894
    %5896 = vrot.lane.b32.xlu0 %v5844, 96
    %v5897 = vpop.permute.xlu0 %5896
    %5898 = vrot.lane.b32.xlu0 %v5847, 96
    %v5899 = vpop.permute.xlu0 %5898
    %5900 = vrot.lane.b32.xlu0 %v5850, 96
    %v5901 = vpop.permute.xlu0 %5900
    %5902 = vrot.lane.b32.xlu0 %v5853, 96
    %v5903 = vpop.permute.xlu0 %5902
    %5904 = vrot.lane.b32.xlu0 %v5856, 96
    %v5905 = vpop.permute.xlu0 %5904
    %5906 = vrot.lane.b32.xlu0 %v5859, 96
    %v5907 = vpop.permute.xlu0 %5906
    %5908 = vrot.lane.b32.xlu0 %v5862, 96
    %v5909 = vpop.permute.xlu0 %5908
    %5910 = vrot.lane.b32.xlu0 %v5865, 96
    %v5911 = vpop.permute.xlu0 %5910
    %5912 = vrot.lane.b32.xlu0 %v5868, 96
    %v5913 = vpop.permute.xlu0 %5912
    %5914 = vrot.lane.b32.xlu0 %v5871, 96
    %v5915 = vpop.permute.xlu0 %5914
    %5916 = vrot.lane.b32.xlu0 %v5874, 96
    %v5917 = vpop.permute.xlu0 %5916
    %5918 = vrot.lane.b32.xlu0 %v5877, 96
    %v5919 = vpop.permute.xlu0 %5918
    %5920 = vrot.lane.b32.xlu0 %v5880, 96
    %v5921 = vpop.permute.xlu0 %5920
    %5922 = vrot.lane.b32.xlu0 %v5883, 96
    %v5923 = vpop.permute.xlu0 %5922
    %5924 = vrot.lane.b32.xlu0 %v5886, 96
    %v5925 = vpop.permute.xlu0 %5924
    %5926 = vrot.lane.b32.xlu0 %v5889, 96
    %v5927 = vpop.permute.xlu0 %5926
    %5928 = vrot.lane.b32.xlu0 %v5892, 96
    %v5929 = vpop.permute.xlu0 %5928
    %5930 = vrot.lane.b32.xlu0 %v5895, 96
    %v5931 = vpop.permute.xlu0 %5930
    %vm5932 = vcmask 228352
    %v5934 = vsel %vm5932, %v4312, %v4601
    %v5936 = vsel %vm5932, %v4313, %v4603
    %v5938 = vsel %vm5932, %v4314, %v4605
    %v5940 = vsel %vm5932, %v4315, %v4607
    %v5942 = vsel %vm5932, %v4316, %v4609
    %v5944 = vsel %vm5932, %v4317, %v4611
    %v5946 = vsel %vm5932, %v4318, %v4613
    %v5948 = vsel %vm5932, %v4319, %v4615
    %v5950 = vsel %vm5932, %v4320, %v4617
    %v5952 = vsel %vm5932, %v4321, %v4619
    %v5954 = vsel %vm5932, %v4322, %v4621
    %v5956 = vsel %vm5932, %v4323, %v4623
    %v5958 = vsel %vm5932, %v4324, %v4625
    %v5960 = vsel %vm5932, %v4325, %v4627
    %v5962 = vsel %vm5932, %v4326, %v4629
    %v5964 = vsel %vm5932, %v4327, %v4631
    %v5966 = vsel %vm5932, %v4328, %v4633
    %v5968 = vsel %vm5932, %v4329, %v4635
    %vm5969 = vcmask 457728
    %v5971 = vsel %vm5969, %v5934, %v4745
    %v5973 = vsel %vm5969, %v5936, %v4747
    %v5975 = vsel %vm5969, %v5938, %v4749
    %v5977 = vsel %vm5969, %v5940, %v4751
    %v5979 = vsel %vm5969, %v5942, %v4753
    %v5981 = vsel %vm5969, %v5944, %v4755
    %v5983 = vsel %vm5969, %v5946, %v4757
    %v5985 = vsel %vm5969, %v5948, %v4759
    %v5987 = vsel %vm5969, %v5950, %v4761
    %v5989 = vsel %vm5969, %v5952, %v4763
    %v5991 = vsel %vm5969, %v5954, %v4765
    %v5993 = vsel %vm5969, %v5956, %v4767
    %v5995 = vsel %vm5969, %v5958, %v4769
    %v5997 = vsel %vm5969, %v5960, %v4771
    %v5999 = vsel %vm5969, %v5962, %v4773
    %v6001 = vsel %vm5969, %v5964, %v4775
    %v6003 = vsel %vm5969, %v5966, %v4777
    %v6005 = vsel %vm5969, %v5968, %v4779
    %vm6006 = vcmask 687104
    %v6008 = vsel %vm6006, %v5971, %v4871
    %v6010 = vsel %vm6006, %v5973, %v4873
    %v6012 = vsel %vm6006, %v5975, %v4875
    %v6014 = vsel %vm6006, %v5977, %v4877
    %v6016 = vsel %vm6006, %v5979, %v4879
    %v6018 = vsel %vm6006, %v5981, %v4881
    %v6020 = vsel %vm6006, %v5983, %v4883
    %v6022 = vsel %vm6006, %v5985, %v4885
    %v6024 = vsel %vm6006, %v5987, %v4887
    %v6026 = vsel %vm6006, %v5989, %v4889
    %v6028 = vsel %vm6006, %v5991, %v4891
    %v6030 = vsel %vm6006, %v5993, %v4893
    %v6032 = vsel %vm6006, %v5995, %v4895
    %v6034 = vsel %vm6006, %v5997, %v4897
    %v6036 = vsel %vm6006, %v5999, %v4899
    %v6038 = vsel %vm6006, %v6001, %v4901
    %v6040 = vsel %vm6006, %v6003, %v4903
    %v6042 = vsel %vm6006, %v6005, %v4905
    %vm6043 = vcmask 916480
    %v6045 = vsel %vm6043, %v6008, %v5177
    %v6048 = vsel %vm6043, %v6010, %v5179
    %v6051 = vsel %vm6043, %v6012, %v5181
    %v6054 = vsel %vm6043, %v6014, %v5183
    %v6057 = vsel %vm6043, %v6016, %v5185
    %v6060 = vsel %vm6043, %v6018, %v5187
    %v6063 = vsel %vm6043, %v6020, %v5189
    %v6066 = vsel %vm6043, %v6022, %v5191
    %v6069 = vsel %vm6043, %v6024, %v5193
    %v6072 = vsel %vm6043, %v6026, %v5195
    %v6075 = vsel %vm6043, %v6028, %v5197
    %v6078 = vsel %vm6043, %v6030, %v5199
    %v6081 = vsel %vm6043, %v6032, %v5201
    %v6084 = vsel %vm6043, %v6034, %v5203
    %v6087 = vsel %vm6043, %v6036, %v5205
    %v6090 = vsel %vm6043, %v6038, %v5207
    %v6093 = vsel %vm6043, %v6040, %v5209
    %v6096 = vsel %vm6043, %v6042, %v5211
    %vm6098 = vcmask 97280
    %v6100 = vsel %vm6098, %v5177, %v5321
    %v6102 = vsel %vm6098, %v5179, %v5323
    %v6104 = vsel %vm6098, %v5181, %v5325
    %v6106 = vsel %vm6098, %v5183, %v5327
    %v6108 = vsel %vm6098, %v5185, %v5329
    %v6110 = vsel %vm6098, %v5187, %v5331
    %v6112 = vsel %vm6098, %v5189, %v5333
    %v6114 = vsel %vm6098, %v5191, %v5335
    %v6116 = vsel %vm6098, %v5193, %v5337
    %v6118 = vsel %vm6098, %v5195, %v5339
    %v6120 = vsel %vm6098, %v5197, %v5341
    %v6122 = vsel %vm6098, %v5199, %v5343
    %v6124 = vsel %vm6098, %v5201, %v5345
    %v6126 = vsel %vm6098, %v5203, %v5347
    %v6128 = vsel %vm6098, %v5205, %v5349
    %v6130 = vsel %vm6098, %v5207, %v5351
    %v6132 = vsel %vm6098, %v5209, %v5353
    %v6134 = vsel %vm6098, %v5211, %v5355
    %vm6135 = vcmask 326656
    %v6137 = vsel %vm6135, %v6100, %v5447
    %v6139 = vsel %vm6135, %v6102, %v5449
    %v6141 = vsel %vm6135, %v6104, %v5451
    %v6143 = vsel %vm6135, %v6106, %v5453
    %v6145 = vsel %vm6135, %v6108, %v5455
    %v6147 = vsel %vm6135, %v6110, %v5457
    %v6149 = vsel %vm6135, %v6112, %v5459
    %v6151 = vsel %vm6135, %v6114, %v5461
    %v6153 = vsel %vm6135, %v6116, %v5463
    %v6155 = vsel %vm6135, %v6118, %v5465
    %v6157 = vsel %vm6135, %v6120, %v5467
    %v6159 = vsel %vm6135, %v6122, %v5469
    %v6161 = vsel %vm6135, %v6124, %v5471
    %v6163 = vsel %vm6135, %v6126, %v5473
    %v6165 = vsel %vm6135, %v6128, %v5475
    %v6167 = vsel %vm6135, %v6130, %v5477
    %v6169 = vsel %vm6135, %v6132, %v5479
    %v6171 = vsel %vm6135, %v6134, %v5481
    %vm6172 = vcmask 556032
    %v6174 = vsel %vm6172, %v6137, %v5753
    %v6176 = vsel %vm6172, %v6139, %v5755
    %v6178 = vsel %vm6172, %v6141, %v5757
    %v6180 = vsel %vm6172, %v6143, %v5759
    %v6182 = vsel %vm6172, %v6145, %v5761
    %v6184 = vsel %vm6172, %v6147, %v5763
    %v6186 = vsel %vm6172, %v6149, %v5765
    %v6188 = vsel %vm6172, %v6151, %v5767
    %v6190 = vsel %vm6172, %v6153, %v5769
    %v6192 = vsel %vm6172, %v6155, %v5771
    %v6194 = vsel %vm6172, %v6157, %v5773
    %v6196 = vsel %vm6172, %v6159, %v5775
    %v6198 = vsel %vm6172, %v6161, %v5777
    %v6200 = vsel %vm6172, %v6163, %v5779
    %v6202 = vsel %vm6172, %v6165, %v5781
    %v6204 = vsel %vm6172, %v6167, %v5783
    %v6206 = vsel %vm6172, %v6169, %v5785
    %v6208 = vsel %vm6172, %v6171, %v5787
    %vm6209 = vcmask 785408
    %v6211 = vsel %vm6209, %v6174, %v5897
    %v6213 = vsel %vm6209, %v6176, %v5899
    %v6215 = vsel %vm6209, %v6178, %v5901
    %v6217 = vsel %vm6209, %v6180, %v5903
    %v6219 = vsel %vm6209, %v6182, %v5905
    %v6221 = vsel %vm6209, %v6184, %v5907
    %v6223 = vsel %vm6209, %v6186, %v5909
    %v6225 = vsel %vm6209, %v6188, %v5911
    %v6227 = vsel %vm6209, %v6190, %v5913
    %v6229 = vsel %vm6209, %v6192, %v5915
    %v6231 = vsel %vm6209, %v6194, %v5917
    %v6233 = vsel %vm6209, %v6196, %v5919
    %v6235 = vsel %vm6209, %v6198, %v5921
    %v6237 = vsel %vm6209, %v6200, %v5923
    %v6239 = vsel %vm6209, %v6202, %v5925
    %v6241 = vsel %vm6209, %v6204, %v5927
    %v6243 = vsel %vm6209, %v6206, %v5929
    %v6245 = vsel %vm6209, %v6208, %v5931
    %v6246 = vld [vmem:[%s4] sm:$0xf]
    %v6247 = vld [vmem:[%s4 + $0x4] sm:$0xf]
    %v6248 = vld [vmem:[%s4 + $0x8] sm:$0xf]
    %v6249 = vld [vmem:[%s4 + $0xc] sm:$0xf]
    %v6250 = vld [vmem:[%s4 + $0x10] sm:$0xf]
    %v6251 = vld [vmem:[%s4 + $0x14] sm:$0xf]
    %v6252 = vld [vmem:[%s4 + $0x18] sm:$0xf]
    %v6253 = vld [vmem:[%s4 + $0x1c] sm:$0xf]
    %v6254 = vld [vmem:[%s4 + $0x20] sm:$0xf]
    %v6255 = vld [vmem:[%s4 + $0x24] sm:$0xf]
    %v6256 = vld [vmem:[%s4 + $0x28] sm:$0xf]
    %v6257 = vld [vmem:[%s4 + $0x2c] sm:$0xf]
    %v6258 = vld [vmem:[%s4 + $0x30] sm:$0xf]
    %v6259 = vld [vmem:[%s4 + $0x34] sm:$0xf]
    %v6260 = vld [vmem:[%s4 + $0x38] sm:$0xf]
    %v6261 = vld [vmem:[%s4 + $0x3c] sm:$0xf]
    %v6262 = vld [vmem:[%s4 + $0x40] sm:$0xf]
    %v6263 = vld [vmem:[%s4 + $0x44] sm:$0xf]
    %v6264 = vld [vmem:[%s4 + $0x48] sm:$0xf]
    %v6265 = vld [vmem:[%s4 + $0x4c] sm:$0xf]
    %v6266 = vld [vmem:[%s4 + $0x50] sm:$0xf]
    %v6267 = vld [vmem:[%s4 + $0x54] sm:$0xf]
    %v6268 = vld [vmem:[%s4 + $0x58] sm:$0xf]
    %v6269 = vld [vmem:[%s4 + $0x5c] sm:$0xf]
    %v6270 = vld [vmem:[%s4 + $0x60] sm:$0xf]
    %v6271 = vld [vmem:[%s4 + $0x64] sm:$0xf]
    %v6272 = vld [vmem:[%s4 + $0x68] sm:$0xf]
    %v6273 = vld [vmem:[%s4 + $0x6c] sm:$0xf]
    %v6274 = vld [vmem:[%s4 + $0x70] sm:$0xf]
    %v6275 = vld [vmem:[%s4 + $0x74] sm:$0xf]
    %v6276 = vld [vmem:[%s4 + $0x78] sm:$0xf]
    %v6277 = vld [vmem:[%s4 + $0x7c] sm:$0x3]
    %v6278 = vld [vmem:[%s5] sm:$0x1]
    %v6280 = vlaneseq
    %v6281 = vshrl.u32 %v6280, 7
    %v6282 = vsub.s32 0, %v6281
    %v6283 = vrot.slane %v6278, %v6282
    %v6317 = vunpack.c.l.b16 %v6246
    %v6318 = vunpack.c.l.b16 %v6247
    %v6319 = vunpack.c.l.b16 %v6248
    %v6320 = vunpack.c.l.b16 %v6249
    %v6321 = vunpack.c.l.b16 %v6250
    %v6322 = vunpack.c.l.b16 %v6251
    %v6323 = vunpack.c.l.b16 %v6252
    %v6324 = vunpack.c.l.b16 %v6253
    %v6325 = vunpack.c.l.b16 %v6254
    %v6326 = vunpack.c.l.b16 %v6255
    %v6327 = vunpack.c.l.b16 %v6256
    %v6328 = vunpack.c.l.b16 %v6257
    %v6329 = vunpack.c.l.b16 %v6258
    %v6330 = vunpack.c.l.b16 %v6259
    %v6331 = vunpack.c.l.b16 %v6260
    %v6332 = vunpack.c.l.b16 %v6261
    %v6333 = vunpack.c.l.b16 %v6262
    %v6334 = vunpack.c.l.b16 %v6263
    %v6335 = vunpack.c.l.b16 %v6264
    %v6336 = vunpack.c.l.b16 %v6265
    %v6337 = vunpack.c.l.b16 %v6266
    %v6338 = vunpack.c.l.b16 %v6267
    %v6339 = vunpack.c.l.b16 %v6268
    %v6340 = vunpack.c.l.b16 %v6269
    %v6341 = vunpack.c.l.b16 %v6270
    %v6342 = vunpack.c.l.b16 %v6271
    %v6343 = vunpack.c.l.b16 %v6272
    %v6344 = vunpack.c.l.b16 %v6273
    %v6345 = vunpack.c.l.b16 %v6274
    %v6346 = vunpack.c.l.b16 %v6275
    %v6347 = vunpack.c.l.b16 %v6276
    %v6348 = vunpack.c.l.b16 %v6277
    %v6349 = vpack.c.b16 %v6318, %v6317
    %v6350 = vpack.c.b16 %v6320, %v6319
    %v6351 = vpack.c.b16 %v6322, %v6321
    %v6352 = vpack.c.b16 %v6324, %v6323
    %v6353 = vpack.c.b16 %v6326, %v6325
    %v6354 = vpack.c.b16 %v6328, %v6327
    %v6355 = vpack.c.b16 %v6330, %v6329
    %v6356 = vpack.c.b16 %v6332, %v6331
    %v6357 = vpack.c.b16 %v6334, %v6333
    %v6358 = vpack.c.b16 %v6336, %v6335
    %v6359 = vpack.c.b16 %v6338, %v6337
    %v6360 = vpack.c.b16 %v6340, %v6339
    %v6361 = vpack.c.b16 %v6342, %v6341
    %v6362 = vpack.c.b16 %v6344, %v6343
    %v6363 = vpack.c.b16 %v6346, %v6345
    %v6364 = vpack.c.b16 %v6348, %v6347
    %vm6380 = vcmask 1014784
    %v6381 = vsel %vm6380, %v6211, 0
    %v6383 = vsel %vm6380, %v6213, 0
    %v6385 = vsel %vm6380, %v6215, 0
    %v6387 = vsel %vm6380, %v6217, 0
    %v6389 = vsel %vm6380, %v6219, 0
    %v6391 = vsel %vm6380, %v6221, 0
    %v6393 = vsel %vm6380, %v6223, 0
    %v6395 = vsel %vm6380, %v6225, 0
    %v6397 = vsel %vm6380, %v6227, 0
    %v6399 = vsel %vm6380, %v6229, 0
    %v6401 = vsel %vm6380, %v6231, 0
    %v6403 = vsel %vm6380, %v6233, 0
    %v6405 = vsel %vm6380, %v6235, 0
    %v6407 = vsel %vm6380, %v6237, 0
    %v6409 = vsel %vm6380, %v6239, 0
    %v6411 = vsel %vm6380, %v6241, 0
    %v6413 = vsel %vm6380, %v6243, 0
    %v6415 = vsel %vm6380, %v6245, 0
    %v6418 = vsel %vm900, %v6364, 0
    %6420 = vmatprep.subr.bf16.mxu0 0
    %6421 = vmatpush1.bf16.msra.mxu0 %v6349
    %6422 = vmatprep.subr.bf16.mxu0 0
    %6423 = vmatpush1.bf16.msra.mxu0 %v6350
    %6424 = vmatprep.subr.bf16.mxu0 0
    %6425 = vmatpush1.bf16.msra.mxu0 %v6351
    %6426 = vmatprep.subr.bf16.mxu0 0
    %6427 = vmatpush1.bf16.msra.mxu0 %v6352
    %6428 = vmatprep.subr.bf16.mxu0 0
    %6429 = vmatpush1.bf16.msra.mxu0 %v6353
    %6430 = vmatprep.subr.bf16.mxu0 0
    %6431 = vmatpush1.bf16.msra.mxu0 %v6354
    %6432 = vmatprep.subr.bf16.mxu0 0
    %6433 = vmatpush1.bf16.msra.mxu0 %v6355
    %6434 = vmatprep.subr.bf16.mxu0 0
    %6435 = vmatpush1.bf16.msra.mxu0 %v6356
    %6436 = vmatprep.subr.bf16.mxu0 0
    %6437 = vmatpush1.bf16.msra.mxu0 %v6357
    %6438 = vmatprep.subr.bf16.mxu0 0
    %6439 = vmatpush1.bf16.msra.mxu0 %v6358
    %6440 = vmatprep.subr.bf16.mxu0 0
    %6441 = vmatpush1.bf16.msra.mxu0 %v6359
    %6442 = vmatprep.subr.bf16.mxu0 0
    %6443 = vmatpush1.bf16.msra.mxu0 %v6360
    %6444 = vmatprep.subr.bf16.mxu0 0
    %6445 = vmatpush1.bf16.msra.mxu0 %v6361
    %6446 = vmatprep.subr.bf16.mxu0 0
    %6447 = vmatpush1.bf16.msra.mxu0 %v6362
    %6448 = vmatprep.subr.bf16.mxu0 0
    %6449 = vmatpush1.bf16.msra.mxu0 %v6363
    %6450 = vmatprep.subr.bf16.mxu0 0
    %6451 = vmatpush1.bf16.msra.mxu0 %v6418
    %6452 = vmatprep.mubr.bf16.mxu0 %v6381
    %6453 = vmatmul.mubr.bf16.gmra.mrb[0].mxu0 %v6045
    %v6454 = vpop.f32.mrb[0].mxu0
    %v6455 = vadd.f32 %v6283, %v6454
    %v6456 = vpop.f32.mrb[0].mxu0
    %v6457 = vpop.f32.mrb[0].mxu0
    %v6458 = vadd.f32 %v6283, %v6457
    %v6459 = vpop.f32.mrb[0].mxu0
    %6460 = vmatprep.mubr.bf16.mxu0 %v6383
    %6461 = vmatmul.mubr.bf16.gmra.mrb[0].mxu0 %v6048
    %v6462 = vpop.f32.mrb[0].mxu0
    %v6463 = vadd.f32 %v6283, %v6462
    %v6464 = vpop.f32.mrb[0].mxu0
    %v6465 = vpop.f32.mrb[0].mxu0
    %v6466 = vadd.f32 %v6283, %v6465
    %v6467 = vpop.f32.mrb[0].mxu0
    %6468 = vmatprep.mubr.bf16.mxu0 %v6385
    %6469 = vmatmul.mubr.bf16.gmra.mrb[0].mxu0 %v6051
    %v6470 = vpop.f32.mrb[0].mxu0
    %v6471 = vadd.f32 %v6283, %v6470
    %v6472 = vpop.f32.mrb[0].mxu0
    %v6473 = vpop.f32.mrb[0].mxu0
    %v6474 = vadd.f32 %v6283, %v6473
    %v6475 = vpop.f32.mrb[0].mxu0
    %6476 = vmatprep.mubr.bf16.mxu0 %v6387
    %6477 = vmatmul.mubr.bf16.gmra.mrb[0].mxu0 %v6054
    %v6478 = vpop.f32.mrb[0].mxu0
    %v6479 = vadd.f32 %v6283, %v6478
    %v6480 = vpop.f32.mrb[0].mxu0
    %v6481 = vpop.f32.mrb[0].mxu0
    %v6482 = vadd.f32 %v6283, %v6481
    %v6483 = vpop.f32.mrb[0].mxu0
    %6484 = vmatprep.mubr.bf16.mxu0 %v6389
    %6485 = vmatmul.mubr.bf16.gmra.mrb[0].mxu0 %v6057
    %v6486 = vpop.f32.mrb[0].mxu0
    %v6487 = vadd.f32 %v6283, %v6486
    %v6488 = vpop.f32.mrb[0].mxu0
    %v6489 = vpop.f32.mrb[0].mxu0
    %v6490 = vadd.f32 %v6283, %v6489
    %v6491 = vpop.f32.mrb[0].mxu0
    %6492 = vmatprep.mubr.bf16.mxu0 %v6391
    %6493 = vmatmul.mubr.bf16.gmra.mrb[0].mxu0 %v6060
    %v6494 = vpop.f32.mrb[0].mxu0
    %v6495 = vadd.f32 %v6283, %v6494
    %v6496 = vpop.f32.mrb[0].mxu0
    %v6497 = vpop.f32.mrb[0].mxu0
    %v6498 = vadd.f32 %v6283, %v6497
    %v6499 = vpop.f32.mrb[0].mxu0
    %6500 = vmatprep.mubr.bf16.mxu0 %v6393
    %6501 = vmatmul.mubr.bf16.gmra.mrb[0].mxu0 %v6063
    %v6502 = vpop.f32.mrb[0].mxu0
    %v6503 = vadd.f32 %v6283, %v6502
    %v6504 = vpop.f32.mrb[0].mxu0
    %v6505 = vpop.f32.mrb[0].mxu0
    %v6506 = vadd.f32 %v6283, %v6505
    %v6507 = vpop.f32.mrb[0].mxu0
    %6508 = vmatprep.mubr.bf16.mxu0 %v6395
    %6509 = vmatmul.mubr.bf16.gmra.mrb[0].mxu0 %v6066
    %v6510 = vpop.f32.mrb[0].mxu0
    %v6511 = vadd.f32 %v6283, %v6510
    %v6512 = vpop.f32.mrb[0].mxu0
    %v6513 = vpop.f32.mrb[0].mxu0
    %v6514 = vadd.f32 %v6283, %v6513
    %v6515 = vpop.f32.mrb[0].mxu0
    %6516 = vmatprep.mubr.bf16.mxu0 %v6397
    %6517 = vmatmul.mubr.bf16.gmra.mrb[0].mxu0 %v6069
    %v6518 = vpop.f32.mrb[0].mxu0
    %v6519 = vadd.f32 %v6283, %v6518
    %v6520 = vpop.f32.mrb[0].mxu0
    %v6521 = vpop.f32.mrb[0].mxu0
    %v6522 = vadd.f32 %v6283, %v6521
    %v6523 = vpop.f32.mrb[0].mxu0
    %6524 = vmatprep.mubr.bf16.mxu0 %v6399
    %6525 = vmatmul.mubr.bf16.gmra.mrb[0].mxu0 %v6072
    %v6526 = vpop.f32.mrb[0].mxu0
    %v6527 = vadd.f32 %v6283, %v6526
    %v6528 = vpop.f32.mrb[0].mxu0
    %v6529 = vpop.f32.mrb[0].mxu0
    %v6530 = vadd.f32 %v6283, %v6529
    %v6531 = vpop.f32.mrb[0].mxu0
    %6532 = vmatprep.mubr.bf16.mxu0 %v6401
    %6533 = vmatmul.mubr.bf16.gmra.mrb[0].mxu0 %v6075
    %v6534 = vpop.f32.mrb[0].mxu0
    %v6535 = vadd.f32 %v6283, %v6534
    %v6536 = vpop.f32.mrb[0].mxu0
    %v6537 = vpop.f32.mrb[0].mxu0
    %v6538 = vadd.f32 %v6283, %v6537
    %v6539 = vpop.f32.mrb[0].mxu0
    %6540 = vmatprep.mubr.bf16.mxu0 %v6403
    %6541 = vmatmul.mubr.bf16.gmra.mrb[0].mxu0 %v6078
    %v6542 = vpop.f32.mrb[0].mxu0
    %v6543 = vadd.f32 %v6283, %v6542
    %v6544 = vpop.f32.mrb[0].mxu0
    %v6545 = vpop.f32.mrb[0].mxu0
    %v6546 = vadd.f32 %v6283, %v6545
    %v6547 = vpop.f32.mrb[0].mxu0
    %6548 = vmatprep.mubr.bf16.mxu0 %v6405
    %6549 = vmatmul.mubr.bf16.gmra.mrb[0].mxu0 %v6081
    %v6550 = vpop.f32.mrb[0].mxu0
    %v6551 = vadd.f32 %v6283, %v6550
    %v6552 = vpop.f32.mrb[0].mxu0
    %v6553 = vpop.f32.mrb[0].mxu0
    %v6554 = vadd.f32 %v6283, %v6553
    %v6555 = vpop.f32.mrb[0].mxu0
    %6556 = vmatprep.mubr.bf16.mxu0 %v6407
    %6557 = vmatmul.mubr.bf16.gmra.mrb[0].mxu0 %v6084
    %v6558 = vpop.f32.mrb[0].mxu0
    %v6559 = vadd.f32 %v6283, %v6558
    %v6560 = vpop.f32.mrb[0].mxu0
    %v6561 = vpop.f32.mrb[0].mxu0
    %v6562 = vadd.f32 %v6283, %v6561
    %v6563 = vpop.f32.mrb[0].mxu0
    %6564 = vmatprep.mubr.bf16.mxu0 %v6409
    %6565 = vmatmul.mubr.bf16.gmra.mrb[0].mxu0 %v6087
    %v6566 = vpop.f32.mrb[0].mxu0
    %v6567 = vadd.f32 %v6283, %v6566
    %v6568 = vpop.f32.mrb[0].mxu0
    %v6569 = vpop.f32.mrb[0].mxu0
    %v6570 = vadd.f32 %v6283, %v6569
    %v6571 = vpop.f32.mrb[0].mxu0
    %6572 = vmatprep.mubr.bf16.mxu0 %v6411
    %6573 = vmatmul.mubr.bf16.gmra.mrb[0].mxu0 %v6090
    %v6574 = vpop.f32.mrb[0].mxu0
    %v6575 = vadd.f32 %v6283, %v6574
    %v6576 = vpop.f32.mrb[0].mxu0
    %v6577 = vpop.f32.mrb[0].mxu0
    %v6578 = vadd.f32 %v6283, %v6577
    %v6579 = vpop.f32.mrb[0].mxu0
    %6580 = vmatprep.mubr.bf16.mxu0 %v6413
    %6581 = vmatmul.mubr.bf16.gmra.mrb[0].mxu0 %v6093
    %v6582 = vpop.f32.mrb[0].mxu0
    %v6583 = vadd.f32 %v6283, %v6582
    %v6584 = vpop.f32.mrb[0].mxu0
    %v6585 = vpop.f32.mrb[0].mxu0
    %v6586 = vadd.f32 %v6283, %v6585
    %v6587 = vpop.f32.mrb[0].mxu0
    %6588 = vmatprep.mubr.bf16.mxu0 %v6415
    %6589 = vmatmul.mubr.bf16.gmra.mrb[0].mxu0 %v6096
    %v6590 = vpop.f32.mrb[0].mxu0
    %v6591 = vadd.f32 %v6283, %v6590
    %v6592 = vpop.f32.mrb[0].mxu0
    %v6593 = vpop.f32.mrb[0].mxu0
    %v6594 = vadd.f32 %v6283, %v6593
    %v6595 = vpop.f32.mrb[0].mxu0
    %6596 = vdwg.mxu0
    %vm6597 = vcmp.ge.f32.partialorder %v6455, 0.0
    %vm6598 = vcmp.ge.f32.partialorder %v6458, 0.0
    %vm6599 = vcmp.ge.f32.partialorder %v6463, 0.0
    %vm6600 = vcmp.ge.f32.partialorder %v6466, 0.0
    %vm6601 = vcmp.ge.f32.partialorder %v6471, 0.0
    %vm6602 = vcmp.ge.f32.partialorder %v6474, 0.0
    %vm6603 = vcmp.ge.f32.partialorder %v6479, 0.0
    %vm6604 = vcmp.ge.f32.partialorder %v6482, 0.0
    %vm6605 = vcmp.ge.f32.partialorder %v6487, 0.0
    %vm6606 = vcmp.ge.f32.partialorder %v6490, 0.0
    %vm6607 = vcmp.ge.f32.partialorder %v6495, 0.0
    %vm6608 = vcmp.ge.f32.partialorder %v6498, 0.0
    %vm6609 = vcmp.ge.f32.partialorder %v6503, 0.0
    %vm6610 = vcmp.ge.f32.partialorder %v6506, 0.0
    %vm6611 = vcmp.ge.f32.partialorder %v6511, 0.0
    %vm6612 = vcmp.ge.f32.partialorder %v6514, 0.0
    %vm6613 = vcmp.ge.f32.partialorder %v6519, 0.0
    %vm6614 = vcmp.ge.f32.partialorder %v6522, 0.0
    %vm6615 = vcmp.ge.f32.partialorder %v6527, 0.0
    %vm6616 = vcmp.ge.f32.partialorder %v6530, 0.0
    %vm6617 = vcmp.ge.f32.partialorder %v6535, 0.0
    %vm6618 = vcmp.ge.f32.partialorder %v6538, 0.0
    %vm6619 = vcmp.ge.f32.partialorder %v6543, 0.0
    %vm6620 = vcmp.ge.f32.partialorder %v6546, 0.0
    %vm6621 = vcmp.ge.f32.partialorder %v6551, 0.0
    %vm6622 = vcmp.ge.f32.partialorder %v6554, 0.0
    %vm6623 = vcmp.ge.f32.partialorder %v6559, 0.0
    %vm6624 = vcmp.ge.f32.partialorder %v6562, 0.0
    %vm6625 = vcmp.ge.f32.partialorder %v6567, 0.0
    %vm6626 = vcmp.ge.f32.partialorder %v6570, 0.0
    %vm6627 = vcmp.ge.f32.partialorder %v6575, 0.0
    %vm6628 = vcmp.ge.f32.partialorder %v6578, 0.0
    %vm6629 = vcmp.ge.f32.partialorder %v6583, 0.0
    %vm6630 = vcmp.ge.f32.partialorder %v6586, 0.0
    %vm6631 = vcmp.ge.f32.partialorder %v6591, 0.0
    %vm6632 = vcmp.ge.f32.partialorder %v6594, 0.0
    %v6633 = vstv %s57
    %v6634 = vmul.f32 %v6633, %v6455
    %v6635 = vmul.f32 %v6633, %v6458
    %v6636 = vmul.f32 %v6633, %v6463
    %v6637 = vmul.f32 %v6633, %v6466
    %v6638 = vmul.f32 %v6633, %v6471
    %v6639 = vmul.f32 %v6633, %v6474
    %v6640 = vmul.f32 %v6633, %v6479
    %v6641 = vmul.f32 %v6633, %v6482
    %v6642 = vmul.f32 %v6633, %v6487
    %v6643 = vmul.f32 %v6633, %v6490
    %v6644 = vmul.f32 %v6633, %v6495
    %v6645 = vmul.f32 %v6633, %v6498
    %v6646 = vmul.f32 %v6633, %v6503
    %v6647 = vmul.f32 %v6633, %v6506
    %v6648 = vmul.f32 %v6633, %v6511
    %v6649 = vmul.f32 %v6633, %v6514
    %v6650 = vmul.f32 %v6633, %v6519
    %v6651 = vmul.f32 %v6633, %v6522
    %v6652 = vmul.f32 %v6633, %v6527
    %v6653 = vmul.f32 %v6633, %v6530
    %v6654 = vmul.f32 %v6633, %v6535
    %v6655 = vmul.f32 %v6633, %v6538
    %v6656 = vmul.f32 %v6633, %v6543
    %v6657 = vmul.f32 %v6633, %v6546
    %v6658 = vmul.f32 %v6633, %v6551
    %v6659 = vmul.f32 %v6633, %v6554
    %v6660 = vmul.f32 %v6633, %v6559
    %v6661 = vmul.f32 %v6633, %v6562
    %v6662 = vmul.f32 %v6633, %v6567
    %v6663 = vmul.f32 %v6633, %v6570
    %v6664 = vmul.f32 %v6633, %v6575
    %v6665 = vmul.f32 %v6633, %v6578
    %v6666 = vmul.f32 %v6633, %v6583
    %v6667 = vmul.f32 %v6633, %v6586
    %v6668 = vmul.f32 %v6633, %v6591
    %v6669 = vmul.f32 %v6633, %v6594
    %v6670 = vsel %vm6597, %v6455, %v6634
    %v6671 = vsel %vm6598, %v6458, %v6635
    %v6672 = vsel %vm6599, %v6463, %v6636
    %v6673 = vsel %vm6600, %v6466, %v6637
    %v6674 = vsel %vm6601, %v6471, %v6638
    %v6675 = vsel %vm6602, %v6474, %v6639
    %v6676 = vsel %vm6603, %v6479, %v6640
    %v6677 = vsel %vm6604, %v6482, %v6641
    %v6678 = vsel %vm6605, %v6487, %v6642
    %v6679 = vsel %vm6606, %v6490, %v6643
    %v6680 = vsel %vm6607, %v6495, %v6644
    %v6681 = vsel %vm6608, %v6498, %v6645
    %v6682 = vsel %vm6609, %v6503, %v6646
    %v6683 = vsel %vm6610, %v6506, %v6647
    %v6684 = vsel %vm6611, %v6511, %v6648
    %v6685 = vsel %vm6612, %v6514, %v6649
    %v6686 = vsel %vm6613, %v6519, %v6650
    %v6687 = vsel %vm6614, %v6522, %v6651
    %v6688 = vsel %vm6615, %v6527, %v6652
    %v6689 = vsel %vm6616, %v6530, %v6653
    %v6690 = vsel %vm6617, %v6535, %v6654
    %v6691 = vsel %vm6618, %v6538, %v6655
    %v6692 = vsel %vm6619, %v6543, %v6656
    %v6693 = vsel %vm6620, %v6546, %v6657
    %v6694 = vsel %vm6621, %v6551, %v6658
    %v6695 = vsel %vm6622, %v6554, %v6659
    %v6696 = vsel %vm6623, %v6559, %v6660
    %v6697 = vsel %vm6624, %v6562, %v6661
    %v6698 = vsel %vm6625, %v6567, %v6662
    %v6699 = vsel %vm6626, %v6570, %v6663
    %v6700 = vsel %vm6627, %v6575, %v6664
    %v6701 = vsel %vm6628, %v6578, %v6665
    %v6702 = vsel %vm6629, %v6583, %v6666
    %v6703 = vsel %vm6630, %v6586, %v6667
    %v6704 = vsel %vm6631, %v6591, %v6668
    %v6705 = vsel %vm6632, %v6594, %v6669
    %v6706 = vpack.c.bf16 %v6671, %v6670
    %v6707 = vpack.c.bf16 %v6673, %v6672
    %v6708 = vpack.c.bf16 %v6675, %v6674
    %v6709 = vpack.c.bf16 %v6677, %v6676
    %v6710 = vpack.c.bf16 %v6679, %v6678
    %v6711 = vpack.c.bf16 %v6681, %v6680
    %v6712 = vpack.c.bf16 %v6683, %v6682
    %v6713 = vpack.c.bf16 %v6685, %v6684
    %v6714 = vpack.c.bf16 %v6687, %v6686
    %v6715 = vpack.c.bf16 %v6689, %v6688
    %v6716 = vpack.c.bf16 %v6691, %v6690
    %v6717 = vpack.c.bf16 %v6693, %v6692
    %v6718 = vpack.c.bf16 %v6695, %v6694
    %v6719 = vpack.c.bf16 %v6697, %v6696
    %v6720 = vpack.c.bf16 %v6699, %v6698
    %v6721 = vpack.c.bf16 %v6701, %v6700
    %v6722 = vpack.c.bf16 %v6703, %v6702
    %v6723 = vpack.c.bf16 %v6705, %v6704
    %v6724 = vmax.bf16 %v6706, %v6707
    %v6725 = vmax.bf16 %v6708, %v6709
    %v6726 = vmax.bf16 %v6710, %v6711
    %v6727 = vmax.bf16 %v6712, %v6713
    %v6728 = vmax.bf16 %v6715, %v6716
    %v6729 = vmax.bf16 %v6717, %v6718
    %v6730 = vmax.bf16 %v6719, %v6720
    %v6731 = vmax.bf16 %v6721, %v6722
    %v6732 = vmax.bf16 %v6724, %v6708
    %v6733 = vmax.bf16 %v6725, %v6710
    %v6734 = vmax.bf16 %v6726, %v6712
    %v6735 = vmax.bf16 %v6727, %v6714
    %v6736 = vmax.bf16 %v6728, %v6717
    %v6737 = vmax.bf16 %v6729, %v6719
    %v6738 = vmax.bf16 %v6730, %v6721
    %v6739 = vmax.bf16 %v6731, %v6723
    %v6741 = vshrl.u32 %v6732, 16
    %v6743 = vshll.u32 %v6732, 16
    %v6745 = vrot.slane %v6743, 1
    %v6746 = vor.u32 %v6741, %v6745
    %v6748 = vshrl.u32 %v6733, 16
    %v6750 = vshll.u32 %v6733, 16
    %v6752 = vrot.slane %v6750, 1
    %v6753 = vor.u32 %v6748, %v6752
    %v6755 = vshrl.u32 %v6734, 16
    %v6757 = vshll.u32 %v6734, 16
    %v6759 = vrot.slane %v6757, 1
    %v6760 = vor.u32 %v6755, %v6759
    %v6762 = vshrl.u32 %v6735, 16
    %v6764 = vshll.u32 %v6735, 16
    %v6766 = vrot.slane %v6764, 1
    %v6767 = vor.u32 %v6762, %v6766
    %v6769 = vshrl.u32 %v6736, 16
    %v6771 = vshll.u32 %v6736, 16
    %v6773 = vrot.slane %v6771, 1
    %v6774 = vor.u32 %v6769, %v6773
    %v6776 = vshrl.u32 %v6737, 16
    %v6778 = vshll.u32 %v6737, 16
    %v6780 = vrot.slane %v6778, 1
    %v6781 = vor.u32 %v6776, %v6780
    %v6783 = vshrl.u32 %v6738, 16
    %v6785 = vshll.u32 %v6738, 16
    %v6787 = vrot.slane %v6785, 1
    %v6788 = vor.u32 %v6783, %v6787
    %v6790 = vshrl.u32 %v6739, 16
    %v6792 = vshll.u32 %v6739, 16
    %v6794 = vrot.slane %v6792, 1
    %v6795 = vor.u32 %v6790, %v6794
    %v6804 = vmax.bf16 %v6732, %v6746
    %v6805 = vmax.bf16 %v6733, %v6753
    %v6806 = vmax.bf16 %v6734, %v6760
    %v6807 = vmax.bf16 %v6735, %v6767
    %v6808 = vmax.bf16 %v6736, %v6774
    %v6809 = vmax.bf16 %v6737, %v6781
    %v6810 = vmax.bf16 %v6738, %v6788
    %v6811 = vmax.bf16 %v6739, %v6795
    %v6820 = vrot.slane %v6732, 1
    %v6821 = vrot.slane %v6733, 1
    %v6822 = vrot.slane %v6734, 1
    %v6823 = vrot.slane %v6735, 1
    %v6824 = vrot.slane %v6736, 1
    %v6825 = vrot.slane %v6737, 1
    %v6826 = vrot.slane %v6738, 1
    %v6827 = vrot.slane %v6739, 1
    %v6836 = vmax.bf16 %v6804, %v6820
    %v6837 = vmax.bf16 %v6805, %v6821
    %v6838 = vmax.bf16 %v6806, %v6822
    %v6839 = vmax.bf16 %v6807, %v6823
    %v6840 = vmax.bf16 %v6808, %v6824
    %v6841 = vmax.bf16 %v6809, %v6825
    %v6842 = vmax.bf16 %v6810, %v6826
    %v6843 = vmax.bf16 %v6811, %v6827
    %v6845 = vshll.u32 %v6836, 16
    %v6847 = vrot.slane %v6845, 1
    %v6849 = vshll.u32 %v6837, 16
    %v6851 = vrot.slane %v6849, 1
    %v6853 = vshll.u32 %v6838, 16
    %v6855 = vrot.slane %v6853, 1
    %v6857 = vshll.u32 %v6839, 16
    %v6859 = vrot.slane %v6857, 1
    %v6861 = vshll.u32 %v6840, 16
    %v6863 = vrot.slane %v6861, 1
    %v6865 = vshll.u32 %v6841, 16
    %v6867 = vrot.slane %v6865, 1
    %v6869 = vshll.u32 %v6842, 16
    %v6871 = vrot.slane %v6869, 1
    %v6873 = vshll.u32 %v6843, 16
    %v6875 = vrot.slane %v6873, 1
    %v6892 = vrot.slane %v6836, 1
    %v6893 = vrot.slane %v6837, 1
    %v6894 = vrot.slane %v6838, 1
    %v6895 = vrot.slane %v6839, 1
    %v6896 = vrot.slane %v6840, 1
    %v6897 = vrot.slane %v6841, 1
    %v6898 = vrot.slane %v6842, 1
    %v6899 = vrot.slane %v6843, 1
    %v6900 = vrot.slane %v6845, 2
    %v6901 = vrot.slane %v6849, 2
    %v6902 = vrot.slane %v6853, 2
    %v6903 = vrot.slane %v6857, 2
    %v6904 = vrot.slane %v6861, 2
    %v6905 = vrot.slane %v6865, 2
    %v6906 = vrot.slane %v6869, 2
    %v6907 = vrot.slane %v6873, 2
    %v6916 = vsel %vm3230, %v6836, %v6847
    %v6917 = vsel %vm3230, %v6837, %v6851
    %v6918 = vsel %vm3230, %v6838, %v6855
    %v6919 = vsel %vm3230, %v6839, %v6859
    %v6920 = vsel %vm3230, %v6840, %v6863
    %v6921 = vsel %vm3230, %v6841, %v6867
    %v6922 = vsel %vm3230, %v6842, %v6871
    %v6923 = vsel %vm3230, %v6843, %v6875
    %v6926 = vsel %vm3253, %v6916, %v6892
    %v6930 = vsel %vm3253, %v6917, %v6893
    %v6934 = vsel %vm3253, %v6918, %v6894
    %v6938 = vsel %vm3253, %v6919, %v6895
    %v6942 = vsel %vm3253, %v6920, %v6896
    %v6946 = vsel %vm3253, %v6921, %v6897
    %v6950 = vsel %vm3253, %v6922, %v6898
    %v6954 = vsel %vm3253, %v6923, %v6899
    %v6956 = vsel %vm3344, %v6926, %v6900
    %v6957 = vsel %vm3344, %v6930, %v6901
    %v6958 = vsel %vm3344, %v6934, %v6902
    %v6959 = vsel %vm3344, %v6938, %v6903
    %v6960 = vsel %vm3344, %v6942, %v6904
    %v6961 = vsel %vm3344, %v6946, %v6905
    %v6962 = vsel %vm3344, %v6950, %v6906
    %v6963 = vsel %vm3344, %v6954, %v6907
    %vm6964 = vcmask 386048
    %6965 = vst.msk [vmem:[#allocation3] sm:$0x3] %vm6964, %v6956
    %6966 = vst.msk [vmem:[#allocation3 + $0xc] sm:$0x3] %vm6964, %v6957
    %6967 = vst.msk [vmem:[#allocation3 + $0x18] sm:$0x3] %vm6964, %v6958
    %6968 = vst.msk [vmem:[#allocation3 + $0x24] sm:$0x3] %vm6964, %v6959
    %6969 = vst.msk [vmem:[#allocation3 + $0x30] sm:$0x3] %vm6964, %v6960
    %6970 = vst.msk [vmem:[#allocation3 + $0x3c] sm:$0x3] %vm6964, %v6961
    %6971 = vst.msk [vmem:[#allocation3 + $0x48] sm:$0x3] %vm6964, %v6962
    %6972 = vst.msk [vmem:[#allocation3 + $0x54] sm:$0x3] %vm6964, %v6963
    %v6973 = vld [vmem:[#allocation3] sm:$0xf]
    %v6974 = vld [vmem:[#allocation3 + $0x4] sm:$0xf]
    %v6975 = vld [vmem:[#allocation3 + $0xc] sm:$0xf]
    %v6976 = vld [vmem:[#allocation3 + $0x10] sm:$0xf]
    %v6977 = vld [vmem:[#allocation3 + $0x18] sm:$0xf]
    %v6978 = vld [vmem:[#allocation3 + $0x1c] sm:$0xf]
    %v6979 = vld [vmem:[#allocation3 + $0x30] sm:$0xf]
    %v6980 = vld [vmem:[#allocation3 + $0x34] sm:$0xf]
    %v6981 = vld [vmem:[#allocation3 + $0x3c] sm:$0xf]
    %v6982 = vld [vmem:[#allocation3 + $0x40] sm:$0xf]
    %v6983 = vld [vmem:[#allocation3 + $0x48] sm:$0xf]
    %v6984 = vld [vmem:[#allocation3 + $0x4c] sm:$0xf]
    %v6985 = vld [vmem:[#allocation3 + $0x8] sm:$0x1]
    %v6986 = vld [vmem:[#allocation3 + $0x14] sm:$0x1]
    %v6987 = vld [vmem:[#allocation3 + $0x20] sm:$0x1]
    %v6988 = vld [vmem:[#allocation3 + $0x38] sm:$0x1]
    %v6989 = vld [vmem:[#allocation3 + $0x44] sm:$0x1]
    %v6990 = vld [vmem:[#allocation3 + $0x50] sm:$0x1]
    %s6991 = scalar_lea.vmem [#allocation3], 12
    %v6992 = vld [vmem:[%s6991] sm:$0xf]
    %v6993 = vld [vmem:[%s6991 + $0x4] sm:$0xf]
    %v6994 = vld [vmem:[%s6991 + $0xc] sm:$0xf]
    %v6995 = vld [vmem:[%s6991 + $0x10] sm:$0xf]
    %v6996 = vld [vmem:[%s6991 + $0x18] sm:$0xf]
    %v6997 = vld [vmem:[%s6991 + $0x1c] sm:$0xf]
    %v6998 = vld [vmem:[%s6991 + $0x30] sm:$0xf]
    %v6999 = vld [vmem:[%s6991 + $0x34] sm:$0xf]
    %v7000 = vld [vmem:[%s6991 + $0x3c] sm:$0xf]
    %v7001 = vld [vmem:[%s6991 + $0x40] sm:$0xf]
    %v7002 = vld [vmem:[%s6991 + $0x48] sm:$0xf]
    %v7003 = vld [vmem:[%s6991 + $0x4c] sm:$0xf]
    %v7004 = vld [vmem:[%s6991 + $0x8] sm:$0x1]
    %v7005 = vld [vmem:[%s6991 + $0x14] sm:$0x1]
    %v7006 = vld [vmem:[%s6991 + $0x20] sm:$0x1]
    %v7007 = vld [vmem:[%s6991 + $0x38] sm:$0x1]
    %v7008 = vld [vmem:[%s6991 + $0x44] sm:$0x1]
    %v7009 = vld [vmem:[%s6991 + $0x50] sm:$0x1]
    %v7022 = vunpack.c.l.b16 %v6973
    %v7023 = vunpack.c.l.b16 %v6974
    %v7024 = vunpack.c.l.b16 %v6975
    %v7025 = vunpack.c.l.b16 %v6976
    %v7026 = vunpack.c.l.b16 %v6977
    %v7027 = vunpack.c.l.b16 %v6978
    %v7028 = vunpack.c.l.b16 %v6979
    %v7029 = vunpack.c.l.b16 %v6980
    %v7030 = vunpack.c.l.b16 %v6981
    %v7031 = vunpack.c.l.b16 %v6982
    %v7032 = vunpack.c.l.b16 %v6983
    %v7033 = vunpack.c.l.b16 %v6984
    %v7034 = vpack.c.b16 %v7023, %v7022
    %v7035 = vpack.c.b16 %v7025, %v7024
    %v7036 = vpack.c.b16 %v7027, %v7026
    %v7037 = vpack.c.b16 %v7029, %v7028
    %v7038 = vpack.c.b16 %v7031, %v7030
    %v7039 = vpack.c.b16 %v7033, %v7032
    %v7046 = vunpack.c.l.b16 %v6985
    %v7047 = vunpack.c.l.b16 %v6986
    %v7048 = vunpack.c.l.b16 %v6987
    %v7049 = vunpack.c.l.b16 %v6988
    %v7050 = vunpack.c.l.b16 %v6989
    %v7051 = vunpack.c.l.b16 %v6990
    %v7052 = vpack.c.b16 %v7046, %v7046
    %v7053 = vpack.c.b16 %v7047, %v7047
    %v7054 = vpack.c.b16 %v7048, %v7048
    %v7055 = vpack.c.b16 %v7049, %v7049
    %v7056 = vpack.c.b16 %v7050, %v7050
    %v7057 = vpack.c.b16 %v7051, %v7051
    %v7059 = vshrl.u32 %v7034, 16
    %v7061 = vshll.u32 %v7034, 16
    %v7063 = vrot.slane %v7061, 1
    %v7064 = vor.u32 %v7059, %v7063
    %v7066 = vshll.u32 %v7052, 16
    %v7068 = vrot.slane %v7066, 1
    %v7069 = vsel %vm2104, %v7064, %v7068
    %v7071 = vshrl.u32 %v7035, 16
    %v7073 = vshll.u32 %v7035, 16
    %v7075 = vrot.slane %v7073, 1
    %v7076 = vor.u32 %v7071, %v7075
    %v7078 = vshll.u32 %v7053, 16
    %v7080 = vrot.slane %v7078, 1
    %v7081 = vsel %vm2104, %v7076, %v7080
    %v7083 = vshrl.u32 %v7036, 16
    %v7085 = vshll.u32 %v7036, 16
    %v7087 = vrot.slane %v7085, 1
    %v7088 = vor.u32 %v7083, %v7087
    %v7090 = vshll.u32 %v7054, 16
    %v7092 = vrot.slane %v7090, 1
    %v7093 = vsel %vm2104, %v7088, %v7092
    %v7095 = vshrl.u32 %v7037, 16
    %v7097 = vshll.u32 %v7037, 16
    %v7099 = vrot.slane %v7097, 1
    %v7100 = vor.u32 %v7095, %v7099
    %v7102 = vshll.u32 %v7055, 16
    %v7104 = vrot.slane %v7102, 1
    %v7105 = vsel %vm2104, %v7100, %v7104
    %v7107 = vshrl.u32 %v7038, 16
    %v7109 = vshll.u32 %v7038, 16
    %v7111 = vrot.slane %v7109, 1
    %v7112 = vor.u32 %v7107, %v7111
    %v7114 = vshll.u32 %v7056, 16
    %v7116 = vrot.slane %v7114, 1
    %v7117 = vsel %vm2104, %v7112, %v7116
    %v7119 = vshrl.u32 %v7039, 16
    %v7121 = vshll.u32 %v7039, 16
    %v7123 = vrot.slane %v7121, 1
    %v7124 = vor.u32 %v7119, %v7123
    %v7126 = vshll.u32 %v7057, 16
    %v7128 = vrot.slane %v7126, 1
    %v7129 = vsel %vm2104, %v7124, %v7128
    %7130 = vrot.lane.b32.xlu0 %v7069, 48
    %v7131 = vpop.permute.xlu0 %7130
    %7132 = vrot.lane.b32.xlu0 %v7081, 48
    %v7133 = vpop.permute.xlu0 %7132
    %7134 = vrot.lane.b32.xlu0 %v7093, 48
    %v7135 = vpop.permute.xlu0 %7134
    %7136 = vrot.lane.b32.xlu0 %v7105, 48
    %v7137 = vpop.permute.xlu0 %7136
    %7138 = vrot.lane.b32.xlu0 %v7117, 48
    %v7139 = vpop.permute.xlu0 %7138
    %7140 = vrot.lane.b32.xlu0 %v7129, 48
    %v7141 = vpop.permute.xlu0 %7140
    %v7154 = vunpack.c.l.b16 %v6992
    %v7155 = vunpack.c.l.b16 %v6993
    %v7156 = vunpack.c.l.b16 %v6994
    %v7157 = vunpack.c.l.b16 %v6995
    %v7158 = vunpack.c.l.b16 %v6996
    %v7159 = vunpack.c.l.b16 %v6997
    %v7160 = vunpack.c.l.b16 %v6998
    %v7161 = vunpack.c.l.b16 %v6999
    %v7162 = vunpack.c.l.b16 %v7000
    %v7163 = vunpack.c.l.b16 %v7001
    %v7164 = vunpack.c.l.b16 %v7002
    %v7165 = vunpack.c.l.b16 %v7003
    %v7166 = vpack.c.b16 %v7155, %v7154
    %v7167 = vpack.c.b16 %v7157, %v7156
    %v7168 = vpack.c.b16 %v7159, %v7158
    %v7169 = vpack.c.b16 %v7161, %v7160
    %v7170 = vpack.c.b16 %v7163, %v7162
    %v7171 = vpack.c.b16 %v7165, %v7164
    %7172 = vrot.lane.b32.xlu0 %v7166, 96
    %v7173 = vpop.permute.xlu0 %7172
    %7174 = vrot.lane.b32.xlu0 %v7167, 96
    %v7175 = vpop.permute.xlu0 %7174
    %7176 = vrot.lane.b32.xlu0 %v7168, 96
    %v7177 = vpop.permute.xlu0 %7176
    %7178 = vrot.lane.b32.xlu0 %v7169, 96
    %v7179 = vpop.permute.xlu0 %7178
    %7180 = vrot.lane.b32.xlu0 %v7170, 96
    %v7181 = vpop.permute.xlu0 %7180
    %7182 = vrot.lane.b32.xlu0 %v7171, 96
    %v7183 = vpop.permute.xlu0 %7182
    %v7190 = vunpack.c.l.b16 %v7004
    %v7191 = vunpack.c.l.b16 %v7005
    %v7192 = vunpack.c.l.b16 %v7006
    %v7193 = vunpack.c.l.b16 %v7007
    %v7194 = vunpack.c.l.b16 %v7008
    %v7195 = vunpack.c.l.b16 %v7009
    %v7196 = vpack.c.b16 %v7190, %v7190
    %v7197 = vpack.c.b16 %v7191, %v7191
    %v7198 = vpack.c.b16 %v7192, %v7192
    %v7199 = vpack.c.b16 %v7193, %v7193
    %v7200 = vpack.c.b16 %v7194, %v7194
    %v7201 = vpack.c.b16 %v7195, %v7195
    %v7203 = vshrl.u32 %v7166, 16
    %v7205 = vshll.u32 %v7166, 16
    %v7207 = vrot.slane %v7205, 1
    %v7208 = vor.u32 %v7203, %v7207
    %v7210 = vshll.u32 %v7196, 16
    %v7212 = vrot.slane %v7210, 1
    %v7213 = vsel %vm2104, %v7208, %v7212
    %v7215 = vshrl.u32 %v7167, 16
    %v7217 = vshll.u32 %v7167, 16
    %v7219 = vrot.slane %v7217, 1
    %v7220 = vor.u32 %v7215, %v7219
    %v7222 = vshll.u32 %v7197, 16
    %v7224 = vrot.slane %v7222, 1
    %v7225 = vsel %vm2104, %v7220, %v7224
    %v7227 = vshrl.u32 %v7168, 16
    %v7229 = vshll.u32 %v7168, 16
    %v7231 = vrot.slane %v7229, 1
    %v7232 = vor.u32 %v7227, %v7231
    %v7234 = vshll.u32 %v7198, 16
    %v7236 = vrot.slane %v7234, 1
    %v7237 = vsel %vm2104, %v7232, %v7236
    %v7239 = vshrl.u32 %v7169, 16
    %v7241 = vshll.u32 %v7169, 16
    %v7243 = vrot.slane %v7241, 1
    %v7244 = vor.u32 %v7239, %v7243
    %v7246 = vshll.u32 %v7199, 16
    %v7248 = vrot.slane %v7246, 1
    %v7249 = vsel %vm2104, %v7244, %v7248
    %v7251 = vshrl.u32 %v7170, 16
    %v7253 = vshll.u32 %v7170, 16
    %v7255 = vrot.slane %v7253, 1
    %v7256 = vor.u32 %v7251, %v7255
    %v7258 = vshll.u32 %v7200, 16
    %v7260 = vrot.slane %v7258, 1
    %v7261 = vsel %vm2104, %v7256, %v7260
    %v7263 = vshrl.u32 %v7171, 16
    %v7265 = vshll.u32 %v7171, 16
    %v7267 = vrot.slane %v7265, 1
    %v7268 = vor.u32 %v7263, %v7267
    %v7270 = vshll.u32 %v7201, 16
    %v7272 = vrot.slane %v7270, 1
    %v7273 = vsel %vm2104, %v7268, %v7272
    %7274 = vrot.lane.b32.xlu0 %v7213, 16
    %v7275 = vpop.permute.xlu0 %7274
    %7276 = vrot.lane.b32.xlu0 %v7225, 16
    %v7277 = vpop.permute.xlu0 %7276
    %7278 = vrot.lane.b32.xlu0 %v7237, 16
    %v7279 = vpop.permute.xlu0 %7278
    %7280 = vrot.lane.b32.xlu0 %v7249, 16
    %v7281 = vpop.permute.xlu0 %7280
    %7282 = vrot.lane.b32.xlu0 %v7261, 16
    %v7283 = vpop.permute.xlu0 %7282
    %7284 = vrot.lane.b32.xlu0 %v7273, 16
    %v7285 = vpop.permute.xlu0 %7284
    %vm7286 = vcmask 392192
    %v7288 = vsel %vm7286, %v7034, %v7131
    %v7290 = vsel %vm7286, %v7035, %v7133
    %v7292 = vsel %vm7286, %v7036, %v7135
    %v7294 = vsel %vm7286, %v7037, %v7137
    %v7296 = vsel %vm7286, %v7038, %v7139
    %v7298 = vsel %vm7286, %v7039, %v7141
    %v7300 = vsel %vm6209, %v7288, %v7173
    %v7303 = vsel %vm6209, %v7290, %v7175
    %v7306 = vsel %vm6209, %v7292, %v7177
    %v7309 = vsel %vm6209, %v7294, %v7179
    %v7312 = vsel %vm6209, %v7296, %v7181
    %v7315 = vsel %vm6209, %v7298, %v7183
    %vm7317 = vcmask 130048
    %v7319 = vsel %vm7317, %v7173, %v7275
    %v7321 = vsel %vm7317, %v7175, %v7277
    %v7323 = vsel %vm7317, %v7177, %v7279
    %v7325 = vsel %vm7317, %v7179, %v7281
    %v7327 = vsel %vm7317, %v7181, %v7283
    %v7329 = vsel %vm7317, %v7183, %v7285
    %v7330 = vld [vmem:[%s6] sm:$0xf]
    %v7331 = vld [vmem:[%s6 + $0x4] sm:$0xf]
    %v7332 = vld [vmem:[%s6 + $0x8] sm:$0xf]
    %v7333 = vld [vmem:[%s6 + $0xc] sm:$0xf]
    %v7334 = vld [vmem:[%s6 + $0x10] sm:$0xf]
    %v7335 = vld [vmem:[%s6 + $0x14] sm:$0xf]
    %v7336 = vld [vmem:[%s6 + $0x18] sm:$0xf]
    %v7337 = vld [vmem:[%s6 + $0x1c] sm:$0xf]
    %v7338 = vld [vmem:[%s6 + $0x20] sm:$0xf]
    %v7339 = vld [vmem:[%s6 + $0x24] sm:$0xf]
    %v7340 = vld [vmem:[%s6 + $0x28] sm:$0xf]
    %v7341 = vld [vmem:[%s6 + $0x2c] sm:$0xf]
    %v7342 = vld [vmem:[%s6 + $0x30] sm:$0xf]
    %v7343 = vld [vmem:[%s6 + $0x34] sm:$0xf]
    %v7344 = vld [vmem:[%s6 + $0x38] sm:$0xf]
    %v7345 = vld [vmem:[%s6 + $0x3c] sm:$0xf]
    %v7346 = vld [vmem:[%s6 + $0x40] sm:$0xf]
    %v7347 = vld [vmem:[%s6 + $0x44] sm:$0xf]
    %v7348 = vld [vmem:[%s6 + $0x48] sm:$0xf]
    %v7349 = vld [vmem:[%s6 + $0x4c] sm:$0xf]
    %v7350 = vld [vmem:[%s6 + $0x50] sm:$0xf]
    %v7351 = vld [vmem:[%s6 + $0x54] sm:$0xf]
    %v7352 = vld [vmem:[%s6 + $0x58] sm:$0xf]
    %v7353 = vld [vmem:[%s6 + $0x5c] sm:$0xf]
    %v7354 = vld [vmem:[%s7] sm:$0x1]
    %v7356 = vlaneseq
    %v7357 = vshrl.u32 %v7356, 7
    %v7358 = vsub.s32 0, %v7357
    %v7359 = vrot.slane %v7354, %v7358
    %v7385 = vunpack.c.l.b16 %v7330
    %v7386 = vunpack.c.l.b16 %v7331
    %v7387 = vunpack.c.l.b16 %v7332
    %v7388 = vunpack.c.l.b16 %v7333
    %v7389 = vunpack.c.l.b16 %v7334
    %v7390 = vunpack.c.l.b16 %v7335
    %v7391 = vunpack.c.l.b16 %v7336
    %v7392 = vunpack.c.l.b16 %v7337
    %v7393 = vunpack.c.l.b16 %v7338
    %v7394 = vunpack.c.l.b16 %v7339
    %v7395 = vunpack.c.l.b16 %v7340
    %v7396 = vunpack.c.l.b16 %v7341
    %v7397 = vunpack.c.l.b16 %v7342
    %v7398 = vunpack.c.l.b16 %v7343
    %v7399 = vunpack.c.l.b16 %v7344
    %v7400 = vunpack.c.l.b16 %v7345
    %v7401 = vunpack.c.l.b16 %v7346
    %v7402 = vunpack.c.l.b16 %v7347
    %v7403 = vunpack.c.l.b16 %v7348
    %v7404 = vunpack.c.l.b16 %v7349
    %v7405 = vunpack.c.l.b16 %v7350
    %v7406 = vunpack.c.l.b16 %v7351
    %v7407 = vunpack.c.l.b16 %v7352
    %v7408 = vunpack.c.l.b16 %v7353
    %v7409 = vpack.c.b16 %v7386, %v7385
    %v7410 = vpack.c.b16 %v7388, %v7387
    %v7411 = vpack.c.b16 %v7390, %v7389
    %v7412 = vpack.c.b16 %v7392, %v7391
    %v7413 = vpack.c.b16 %v7394, %v7393
    %v7414 = vpack.c.b16 %v7396, %v7395
    %v7415 = vpack.c.b16 %v7398, %v7397
    %v7416 = vpack.c.b16 %v7400, %v7399
    %v7417 = vpack.c.b16 %v7402, %v7401
    %v7418 = vpack.c.b16 %v7404, %v7403
    %v7419 = vpack.c.b16 %v7406, %v7405
    %v7420 = vpack.c.b16 %v7408, %v7407
    %vm7433 = vcmask 523264
    %v7434 = vsel %vm7433, %v7319, 0
    %v7436 = vsel %vm7433, %v7321, 0
    %v7438 = vsel %vm7433, %v7323, 0
    %v7440 = vsel %vm7433, %v7325, 0
    %v7442 = vsel %vm7433, %v7327, 0
    %v7444 = vsel %vm7433, %v7329, 0
    %7446 = vmatprep.subr.bf16.mxu0 0
    %7447 = vmatpush1.bf16.msra.mxu0 %v7409
    %7448 = vmatprep.subr.bf16.mxu0 0
    %7449 = vmatpush1.bf16.msra.mxu0 %v7410
    %7450 = vmatprep.subr.bf16.mxu0 0
    %7451 = vmatpush1.bf16.msra.mxu0 %v7411
    %7452 = vmatprep.subr.bf16.mxu0 0
    %7453 = vmatpush1.bf16.msra.mxu0 %v7412
    %7454 = vmatprep.subr.bf16.mxu0 0
    %7455 = vmatpush1.bf16.msra.mxu0 %v7413
    %7456 = vmatprep.subr.bf16.mxu0 0
    %7457 = vmatpush1.bf16.msra.mxu0 %v7414
    %7458 = vmatprep.subr.bf16.mxu0 0
    %7459 = vmatpush1.bf16.msra.mxu0 %v7415
    %7460 = vmatprep.subr.bf16.mxu0 0
    %7461 = vmatpush1.bf16.msra.mxu0 %v7416
    %7462 = vmatprep.subr.bf16.mxu0 0
    %7463 = vmatpush1.bf16.msra.mxu0 %v7417
    %7464 = vmatprep.subr.bf16.mxu0 0
    %7465 = vmatpush1.bf16.msra.mxu0 %v7418
    %7466 = vmatprep.subr.bf16.mxu0 0
    %7467 = vmatpush1.bf16.msra.mxu0 %v7419
    %7468 = vmatprep.subr.bf16.mxu0 0
    %7469 = vmatpush1.bf16.msra.mxu0 %v7420
    %7470 = vmatprep.subr.bf16.mxu0 0
    %7471 = vmatpush1.bf16.msra.mxu0 0
    %7472 = vmatprep.subr.bf16.mxu0 0
    %7473 = vmatpush1.bf16.msra.mxu0 0
    %7474 = vmatprep.subr.bf16.mxu0 0
    %7475 = vmatpush1.bf16.msra.mxu0 0
    %7476 = vmatprep.subr.bf16.mxu0 0
    %7477 = vmatpush1.bf16.msra.mxu0 0
    %7478 = vmatprep.mubr.bf16.mxu0 %v7434
    %7479 = vmatmul.mubr.bf16.gmra.mrb[0].mxu0 %v7300
    %v7480 = vpop.f32.mrb[0].mxu0
    %v7481 = vadd.f32 %v7359, %v7480
    %v7482 = vpop.f32.mrb[0].mxu0
    %v7483 = vpop.f32.mrb[0].mxu0
    %v7484 = vadd.f32 %v7359, %v7483
    %v7485 = vpop.f32.mrb[0].mxu0
    %7486 = vmatprep.mubr.bf16.mxu0 %v7436
    %7487 = vmatmul.mubr.bf16.gmra.mrb[0].mxu0 %v7303
    %v7488 = vpop.f32.mrb[0].mxu0
    %v7489 = vadd.f32 %v7359, %v7488
    %v7490 = vpop.f32.mrb[0].mxu0
    %v7491 = vpop.f32.mrb[0].mxu0
    %v7492 = vadd.f32 %v7359, %v7491
    %v7493 = vpop.f32.mrb[0].mxu0
    %7494 = vmatprep.mubr.bf16.mxu0 %v7438
    %7495 = vmatmul.mubr.bf16.gmra.mrb[0].mxu0 %v7306
    %v7496 = vpop.f32.mrb[0].mxu0
    %v7497 = vadd.f32 %v7359, %v7496
    %v7498 = vpop.f32.mrb[0].mxu0
    %v7499 = vpop.f32.mrb[0].mxu0
    %v7500 = vadd.f32 %v7359, %v7499
    %v7501 = vpop.f32.mrb[0].mxu0
    %7502 = vmatprep.mubr.bf16.mxu0 %v7440
    %7503 = vmatmul.mubr.bf16.gmra.mrb[0].mxu0 %v7309
    %v7504 = vpop.f32.mrb[0].mxu0
    %v7505 = vadd.f32 %v7359, %v7504
    %v7506 = vpop.f32.mrb[0].mxu0
    %v7507 = vpop.f32.mrb[0].mxu0
    %v7508 = vadd.f32 %v7359, %v7507
    %v7509 = vpop.f32.mrb[0].mxu0
    %7510 = vmatprep.mubr.bf16.mxu0 %v7442
    %7511 = vmatmul.mubr.bf16.gmra.mrb[0].mxu0 %v7312
    %v7512 = vpop.f32.mrb[0].mxu0
    %v7513 = vadd.f32 %v7359, %v7512
    %v7514 = vpop.f32.mrb[0].mxu0
    %v7515 = vpop.f32.mrb[0].mxu0
    %v7516 = vadd.f32 %v7359, %v7515
    %v7517 = vpop.f32.mrb[0].mxu0
    %7518 = vmatprep.mubr.bf16.mxu0 %v7444
    %7519 = vmatmul.mubr.bf16.gmra.mrb[0].mxu0 %v7315
    %v7520 = vpop.f32.mrb[0].mxu0
    %v7521 = vadd.f32 %v7359, %v7520
    %v7522 = vpop.f32.mrb[0].mxu0
    %v7523 = vpop.f32.mrb[0].mxu0
    %v7524 = vadd.f32 %v7359, %v7523
    %v7525 = vpop.f32.mrb[0].mxu0
    %7526 = vdwg.mxu0
    %vm7527 = vcmp.ge.f32.partialorder %v7481, 0.0
    %vm7528 = vcmp.ge.f32.partialorder %v7484, 0.0
    %vm7529 = vcmp.ge.f32.partialorder %v7489, 0.0
    %vm7530 = vcmp.ge.f32.partialorder %v7492, 0.0
    %vm7531 = vcmp.ge.f32.partialorder %v7497, 0.0
    %vm7532 = vcmp.ge.f32.partialorder %v7500, 0.0
    %vm7533 = vcmp.ge.f32.partialorder %v7505, 0.0
    %vm7534 = vcmp.ge.f32.partialorder %v7508, 0.0
    %vm7535 = vcmp.ge.f32.partialorder %v7513, 0.0
    %vm7536 = vcmp.ge.f32.partialorder %v7516, 0.0
    %vm7537 = vcmp.ge.f32.partialorder %v7521, 0.0
    %vm7538 = vcmp.ge.f32.partialorder %v7524, 0.0
    %v7539 = vstv %s58
    %v7540 = vmul.f32 %v7539, %v7481
    %v7541 = vmul.f32 %v7539, %v7484
    %v7542 = vmul.f32 %v7539, %v7489
    %v7543 = vmul.f32 %v7539, %v7492
    %v7544 = vmul.f32 %v7539, %v7497
    %v7545 = vmul.f32 %v7539, %v7500
    %v7546 = vmul.f32 %v7539, %v7505
    %v7547 = vmul.f32 %v7539, %v7508
    %v7548 = vmul.f32 %v7539, %v7513
    %v7549 = vmul.f32 %v7539, %v7516
    %v7550 = vmul.f32 %v7539, %v7521
    %v7551 = vmul.f32 %v7539, %v7524
    %v7552 = vsel %vm7527, %v7481, %v7540
    %v7553 = vsel %vm7528, %v7484, %v7541
    %v7554 = vsel %vm7529, %v7489, %v7542
    %v7555 = vsel %vm7530, %v7492, %v7543
    %v7556 = vsel %vm7531, %v7497, %v7544
    %v7557 = vsel %vm7532, %v7500, %v7545
    %v7558 = vsel %vm7533, %v7505, %v7546
    %v7559 = vsel %vm7534, %v7508, %v7547
    %v7560 = vsel %vm7535, %v7513, %v7548
    %v7561 = vsel %vm7536, %v7516, %v7549
    %v7562 = vsel %vm7537, %v7521, %v7550
    %v7563 = vsel %vm7538, %v7524, %v7551
    %v7564 = vpack.c.bf16 %v7553, %v7552
    %v7565 = vpack.c.bf16 %v7555, %v7554
    %v7566 = vpack.c.bf16 %v7557, %v7556
    %v7567 = vpack.c.bf16 %v7559, %v7558
    %v7568 = vpack.c.bf16 %v7561, %v7560
    %v7569 = vpack.c.bf16 %v7563, %v7562
    %v7572 = vunpack.c.l.b16 %v7564
    %v7573 = vunpack.c.l.b16 %v7567
    %v7574 = vrot.slane %v7573, 7
    %vm7575 = vcmask 1041409
    %v7576 = vsel %vm7575, %v7574, %v7572
    %v7577 = vpack.c.b16 %v7576, %v7576
    %v7578 = vrot.slane %v7572, 1
    %v7579 = vsel %vm7575, %v7573, %v7578
    %v7580 = vpack.c.b16 %v7579, %v7579
    %7581 = vrot.lane.b32.xlu0 %v7580, 64
    %v7582 = vpop.permute.xlu0 %7581
    %v7583 = vrot.slane %v7572, 2
    %v7584 = vrot.slane %v7573, 1
    %v7585 = vsel %vm7575, %v7584, %v7583
    %v7586 = vpack.c.b16 %v7585, %v7585
    %v7589 = vunpack.c.l.b16 %v7565
    %v7590 = vunpack.c.l.b16 %v7568
    %v7591 = vrot.slane %v7590, 7
    %v7592 = vsel %vm7575, %v7591, %v7589
    %v7593 = vpack.c.b16 %v7592, %v7592
    %7594 = vrot.lane.b32.xlu0 %v7593, 64
    %v7595 = vpop.permute.xlu0 %7594
    %v7596 = vrot.slane %v7589, 1
    %v7597 = vsel %vm7575, %v7590, %v7596
    %v7598 = vpack.c.b16 %v7597, %v7597
    %v7599 = vrot.slane %v7589, 2
    %v7600 = vrot.slane %v7590, 1
    %v7601 = vsel %vm7575, %v7600, %v7599
    %v7602 = vpack.c.b16 %v7601, %v7601
    %7603 = vrot.lane.b32.xlu0 %v7602, 64
    %v7604 = vpop.permute.xlu0 %7603
    %v7607 = vunpack.c.l.b16 %v7566
    %v7608 = vunpack.c.l.b16 %v7569
    %v7609 = vrot.slane %v7608, 7
    %v7610 = vsel %vm7575, %v7609, %v7607
    %v7611 = vpack.c.b16 %v7610, %v7610
    %v7612 = vrot.slane %v7607, 1
    %v7613 = vsel %vm7575, %v7608, %v7612
    %v7614 = vpack.c.b16 %v7613, %v7613
    %7615 = vrot.lane.b32.xlu0 %v7614, 64
    %v7616 = vpop.permute.xlu0 %7615
    %v7617 = vrot.slane %v7607, 2
    %v7618 = vrot.slane %v7608, 1
    %v7619 = vsel %vm7575, %v7618, %v7617
    %v7620 = vpack.c.b16 %v7619, %v7619
    %v7623 = vsel %vm7433, %v7577, %v7582
    %v7627 = vsel %vm7433, %v7586, %v7595
    %v7631 = vsel %vm7433, %v7598, %v7604
    %v7635 = vsel %vm7433, %v7611, %v7616
    %v7637 = vld [vmem:[%s8] sm:$0xf]
    %v7638 = vld [vmem:[%s8 + $0x4] sm:$0xf]
    %v7639 = vld [vmem:[%s8 + $0x8] sm:$0xf]
    %v7640 = vld [vmem:[%s8 + $0xc] sm:$0xf]
    %v7641 = vld [vmem:[%s8 + $0x10] sm:$0xf]
    %v7642 = vld [vmem:[%s8 + $0x14] sm:$0xf]
    %v7643 = vld [vmem:[%s8 + $0x18] sm:$0xf]
    %v7644 = vld [vmem:[%s8 + $0x1c] sm:$0xf]
    %v7645 = vld [vmem:[%s8 + $0x20] sm:$0xf]
    %v7646 = vld [vmem:[%s8 + $0x24] sm:$0xf]
    %v7647 = vld [vmem:[%s8 + $0x28] sm:$0xf]
    %v7648 = vld [vmem:[%s8 + $0x2c] sm:$0xf]
    %v7649 = vld [vmem:[%s8 + $0x30] sm:$0xf]
    %v7650 = vld [vmem:[%s8 + $0x34] sm:$0xf]
    %v7651 = vld [vmem:[%s8 + $0x38] sm:$0xf]
    %v7652 = vld [vmem:[%s8 + $0x3c] sm:$0xf]
    %v7653 = vld [vmem:[%s8 + $0x40] sm:$0xf]
    %v7654 = vld [vmem:[%s8 + $0x44] sm:$0xf]
    %v7655 = vld [vmem:[%s8 + $0x48] sm:$0xf]
    %v7656 = vld [vmem:[%s8 + $0x4c] sm:$0xf]
    %v7657 = vld [vmem:[%s8 + $0x50] sm:$0xf]
    %v7658 = vld [vmem:[%s8 + $0x54] sm:$0xf]
    %v7659 = vld [vmem:[%s8 + $0x58] sm:$0xf]
    %v7660 = vld [vmem:[%s8 + $0x5c] sm:$0xf]
    %v7661 = vld [vmem:[%s8 + $0x60] sm:$0xf]
    %v7662 = vld [vmem:[%s8 + $0x64] sm:$0xf]
    %v7663 = vld [vmem:[%s8 + $0x68] sm:$0xf]
    %v7664 = vld [vmem:[%s8 + $0x6c] sm:$0xf]
    %v7665 = vld [vmem:[%s8 + $0x70] sm:$0xf]
    %v7666 = vld [vmem:[%s8 + $0x74] sm:$0xf]
    %v7667 = vld [vmem:[%s8 + $0x78] sm:$0xf]
    %v7668 = vld [vmem:[%s8 + $0x7c] sm:$0xf]
    %v7669 = vld [vmem:[%s8 + $0x80] sm:$0xf]
    %v7670 = vld [vmem:[%s8 + $0x84] sm:$0xf]
    %v7671 = vld [vmem:[%s8 + $0x88] sm:$0xf]
    %v7672 = vld [vmem:[%s8 + $0x8c] sm:$0xf]
    %v7673 = vld [vmem:[%s8 + $0x90] sm:$0xf]
    %v7674 = vld [vmem:[%s8 + $0x94] sm:$0xf]
    %v7675 = vld [vmem:[%s8 + $0x98] sm:$0xf]
    %v7676 = vld [vmem:[%s8 + $0x9c] sm:$0xf]
    %v7677 = vld [vmem:[%s8 + $0xa0] sm:$0xf]
    %v7678 = vld [vmem:[%s8 + $0xa4] sm:$0xf]
    %v7679 = vld [vmem:[%s8 + $0xa8] sm:$0xf]
    %v7680 = vld [vmem:[%s8 + $0xac] sm:$0xf]
    %v7681 = vld [vmem:[%s8 + $0xb0] sm:$0xf]
    %v7682 = vld [vmem:[%s8 + $0xb4] sm:$0xf]
    %v7683 = vld [vmem:[%s8 + $0xb8] sm:$0xf]
    %v7684 = vld [vmem:[%s8 + $0xbc] sm:$0xf]
    %v7685 = vld [vmem:[%s8 + $0xc0] sm:$0xf]
    %v7686 = vld [vmem:[%s8 + $0xc4] sm:$0xf]
    %v7687 = vld [vmem:[%s8 + $0xc8] sm:$0xf]
    %v7688 = vld [vmem:[%s8 + $0xcc] sm:$0xf]
    %v7689 = vld [vmem:[%s8 + $0xd0] sm:$0xf]
    %v7690 = vld [vmem:[%s8 + $0xd4] sm:$0xf]
    %v7691 = vld [vmem:[%s8 + $0xd8] sm:$0xf]
    %v7692 = vld [vmem:[%s8 + $0xdc] sm:$0xf]
    %v7693 = vld [vmem:[%s8 + $0xe0] sm:$0xf]
    %v7694 = vld [vmem:[%s8 + $0xe4] sm:$0xf]
    %v7695 = vld [vmem:[%s8 + $0xe8] sm:$0xf]
    %v7696 = vld [vmem:[%s8 + $0xec] sm:$0xf]
    %v7697 = vld [vmem:[%s8 + $0xf0] sm:$0xf]
    %v7698 = vld [vmem:[%s8 + $0xf4] sm:$0xf]
    %v7699 = vld [vmem:[%s8 + $0xf8] sm:$0xf]
    %v7700 = vld [vmem:[%s8 + $0xfc] sm:$0xf]
    %v7701 = vld [vmem:[%s8 + $0x100] sm:$0xf]
    %v7702 = vld [vmem:[%s8 + $0x104] sm:$0xf]
    %v7703 = vld [vmem:[%s8 + $0x108] sm:$0xf]
    %v7704 = vld [vmem:[%s8 + $0x10c] sm:$0xf]
    %v7705 = vld [vmem:[%s8 + $0x110] sm:$0xf]
    %v7706 = vld [vmem:[%s8 + $0x114] sm:$0xf]
    %v7707 = vld [vmem:[%s8 + $0x118] sm:$0xf]
    %v7708 = vld [vmem:[%s8 + $0x11c] sm:$0xf]
    %v7709 = vld [vmem:[%s9] sm:$0x1]
    %v7711 = vlaneseq
    %v7712 = vshrl.u32 %v7711, 7
    %v7713 = vsub.s32 0, %v7712
    %v7714 = vrot.slane %v7709, %v7713
    %v7788 = vunpack.c.l.b16 %v7637
    %v7789 = vunpack.c.l.b16 %v7638
    %v7790 = vunpack.c.l.b16 %v7639
    %v7791 = vunpack.c.l.b16 %v7640
    %v7792 = vunpack.c.l.b16 %v7641
    %v7793 = vunpack.c.l.b16 %v7642
    %v7794 = vunpack.c.l.b16 %v7643
    %v7795 = vunpack.c.l.b16 %v7644
    %v7796 = vunpack.c.l.b16 %v7645
    %v7797 = vunpack.c.l.b16 %v7646
    %v7798 = vunpack.c.l.b16 %v7647
    %v7799 = vunpack.c.l.b16 %v7648
    %v7800 = vunpack.c.l.b16 %v7649
    %v7801 = vunpack.c.l.b16 %v7650
    %v7802 = vunpack.c.l.b16 %v7651
    %v7803 = vunpack.c.l.b16 %v7652
    %v7804 = vunpack.c.l.b16 %v7653
    %v7805 = vunpack.c.l.b16 %v7654
    %v7806 = vunpack.c.l.b16 %v7655
    %v7807 = vunpack.c.l.b16 %v7656
    %v7808 = vunpack.c.l.b16 %v7657
    %v7809 = vunpack.c.l.b16 %v7658
    %v7810 = vunpack.c.l.b16 %v7659
    %v7811 = vunpack.c.l.b16 %v7660
    %v7812 = vunpack.c.l.b16 %v7661
    %v7813 = vunpack.c.l.b16 %v7662
    %v7814 = vunpack.c.l.b16 %v7663
    %v7815 = vunpack.c.l.b16 %v7664
    %v7816 = vunpack.c.l.b16 %v7665
    %v7817 = vunpack.c.l.b16 %v7666
    %v7818 = vunpack.c.l.b16 %v7667
    %v7819 = vunpack.c.l.b16 %v7668
    %v7820 = vunpack.c.l.b16 %v7669
    %v7821 = vunpack.c.l.b16 %v7670
    %v7822 = vunpack.c.l.b16 %v7671
    %v7823 = vunpack.c.l.b16 %v7672
    %v7824 = vunpack.c.l.b16 %v7673
    %v7825 = vunpack.c.l.b16 %v7674
    %v7826 = vunpack.c.l.b16 %v7675
    %v7827 = vunpack.c.l.b16 %v7676
    %v7828 = vunpack.c.l.b16 %v7677
    %v7829 = vunpack.c.l.b16 %v7678
    %v7830 = vunpack.c.l.b16 %v7679
    %v7831 = vunpack.c.l.b16 %v7680
    %v7832 = vunpack.c.l.b16 %v7681
    %v7833 = vunpack.c.l.b16 %v7682
    %v7834 = vunpack.c.l.b16 %v7683
    %v7835 = vunpack.c.l.b16 %v7684
    %v7836 = vunpack.c.l.b16 %v7685
    %v7837 = vunpack.c.l.b16 %v7686
    %v7838 = vunpack.c.l.b16 %v7687
    %v7839 = vunpack.c.l.b16 %v7688
    %v7840 = vunpack.c.l.b16 %v7689
    %v7841 = vunpack.c.l.b16 %v7690
    %v7842 = vunpack.c.l.b16 %v7691
    %v7843 = vunpack.c.l.b16 %v7692
    %v7844 = vunpack.c.l.b16 %v7693
    %v7845 = vunpack.c.l.b16 %v7694
    %v7846 = vunpack.c.l.b16 %v7695
    %v7847 = vunpack.c.l.b16 %v7696
    %v7848 = vunpack.c.l.b16 %v7697
    %v7849 = vunpack.c.l.b16 %v7698
    %v7850 = vunpack.c.l.b16 %v7699
    %v7851 = vunpack.c.l.b16 %v7700
    %v7852 = vunpack.c.l.b16 %v7701
    %v7853 = vunpack.c.l.b16 %v7702
    %v7854 = vunpack.c.l.b16 %v7703
    %v7855 = vunpack.c.l.b16 %v7704
    %v7856 = vunpack.c.l.b16 %v7705
    %v7857 = vunpack.c.l.b16 %v7706
    %v7858 = vunpack.c.l.b16 %v7707
    %v7859 = vunpack.c.l.b16 %v7708
    %v7860 = vpack.c.b16 %v7789, %v7788
    %v7861 = vpack.c.b16 %v7791, %v7790
    %v7862 = vpack.c.b16 %v7793, %v7792
    %v7863 = vpack.c.b16 %v7795, %v7794
    %v7864 = vpack.c.b16 %v7797, %v7796
    %v7865 = vpack.c.b16 %v7799, %v7798
    %v7866 = vpack.c.b16 %v7801, %v7800
    %v7867 = vpack.c.b16 %v7803, %v7802
    %v7868 = vpack.c.b16 %v7805, %v7804
    %v7869 = vpack.c.b16 %v7807, %v7806
    %v7870 = vpack.c.b16 %v7809, %v7808
    %v7871 = vpack.c.b16 %v7811, %v7810
    %v7872 = vpack.c.b16 %v7813, %v7812
    %v7873 = vpack.c.b16 %v7815, %v7814
    %v7874 = vpack.c.b16 %v7817, %v7816
    %v7875 = vpack.c.b16 %v7819, %v7818
    %v7876 = vpack.c.b16 %v7821, %v7820
    %v7877 = vpack.c.b16 %v7823, %v7822
    %v7878 = vpack.c.b16 %v7825, %v7824
    %v7879 = vpack.c.b16 %v7827, %v7826
    %v7880 = vpack.c.b16 %v7829, %v7828
    %v7881 = vpack.c.b16 %v7831, %v7830
    %v7882 = vpack.c.b16 %v7833, %v7832
    %v7883 = vpack.c.b16 %v7835, %v7834
    %v7884 = vpack.c.b16 %v7837, %v7836
    %v7885 = vpack.c.b16 %v7839, %v7838
    %v7886 = vpack.c.b16 %v7841, %v7840
    %v7887 = vpack.c.b16 %v7843, %v7842
    %v7888 = vpack.c.b16 %v7845, %v7844
    %v7889 = vpack.c.b16 %v7847, %v7846
    %v7890 = vpack.c.b16 %v7849, %v7848
    %v7891 = vpack.c.b16 %v7851, %v7850
    %v7892 = vpack.c.b16 %v7853, %v7852
    %v7893 = vpack.c.b16 %v7855, %v7854
    %v7894 = vpack.c.b16 %v7857, %v7856
    %v7895 = vpack.c.b16 %v7859, %v7858
    %v7933 = vsel %vm7433, %v7620, 0
    %7935 = vmatprep.subr.bf16.mxu0 0
    %7936 = vmatpush1.bf16.msra.mxu0 %v7860
    %7937 = vmatprep.subr.bf16.mxu0 0
    %7938 = vmatpush1.bf16.msra.mxu0 %v7861
    %7939 = vmatprep.subr.bf16.mxu0 0
    %7940 = vmatpush1.bf16.msra.mxu0 %v7862
    %7941 = vmatprep.subr.bf16.mxu0 0
    %7942 = vmatpush1.bf16.msra.mxu0 %v7863
    %7943 = vmatprep.subr.bf16.mxu0 0
    %7944 = vmatpush1.bf16.msra.mxu0 %v7864
    %7945 = vmatprep.subr.bf16.mxu0 0
    %7946 = vmatpush1.bf16.msra.mxu0 %v7865
    %7947 = vmatprep.subr.bf16.mxu0 0
    %7948 = vmatpush1.bf16.msra.mxu0 %v7866
    %7949 = vmatprep.subr.bf16.mxu0 0
    %7950 = vmatpush1.bf16.msra.mxu0 %v7867
    %7951 = vmatprep.subr.bf16.mxu0 0
    %7952 = vmatpush1.bf16.msra.mxu0 %v7868
    %7953 = vmatprep.subr.bf16.mxu0 0
    %7954 = vmatpush1.bf16.msra.mxu0 %v7869
    %7955 = vmatprep.subr.bf16.mxu0 0
    %7956 = vmatpush1.bf16.msra.mxu0 %v7870
    %7957 = vmatprep.subr.bf16.mxu0 0
    %7958 = vmatpush1.bf16.msra.mxu0 %v7871
    %7959 = vmatprep.subr.bf16.mxu0 0
    %7960 = vmatpush1.bf16.msra.mxu0 %v7872
    %7961 = vmatprep.subr.bf16.mxu0 0
    %7962 = vmatpush1.bf16.msra.mxu0 %v7873
    %7963 = vmatprep.subr.bf16.mxu0 0
    %7964 = vmatpush1.bf16.msra.mxu0 %v7874
    %7965 = vmatprep.subr.bf16.mxu0 0
    %7966 = vmatpush1.bf16.msra.mxu0 %v7875
    %7967 = vmatprep.mubr.bf16.mxu0 %v7627
    %7968 = vmatmul.mubr.bf16.gmra.mrb[0].mxu0 %v7623
    %v7969 = vpop.f32.mrb[0].mxu0
    %v7970 = vadd.f32 %v7714, %v7969
    %v7971 = vpop.f32.mrb[0].mxu0
    %v7972 = vpop.f32.mrb[0].mxu0
    %v7973 = vpop.f32.mrb[0].mxu0
    %7974 = vdwg.mxu0
    %7975 = vmatprep.subr.bf16.mxu0 0
    %7976 = vmatpush1.bf16.msra.mxu0 %v7876
    %7977 = vmatprep.subr.bf16.mxu0 0
    %7978 = vmatpush1.bf16.msra.mxu0 %v7877
    %7979 = vmatprep.subr.bf16.mxu0 0
    %7980 = vmatpush1.bf16.msra.mxu0 %v7878
    %7981 = vmatprep.subr.bf16.mxu0 0
    %7982 = vmatpush1.bf16.msra.mxu0 %v7879
    %7983 = vmatprep.subr.bf16.mxu0 0
    %7984 = vmatpush1.bf16.msra.mxu0 %v7880
    %7985 = vmatprep.subr.bf16.mxu0 0
    %7986 = vmatpush1.bf16.msra.mxu0 %v7881
    %7987 = vmatprep.subr.bf16.mxu0 0
    %7988 = vmatpush1.bf16.msra.mxu0 %v7882
    %7989 = vmatprep.subr.bf16.mxu0 0
    %7990 = vmatpush1.bf16.msra.mxu0 %v7883
    %7991 = vmatprep.subr.bf16.mxu0 0
    %7992 = vmatpush1.bf16.msra.mxu0 %v7884
    %7993 = vmatprep.subr.bf16.mxu0 0
    %7994 = vmatpush1.bf16.msra.mxu0 %v7885
    %7995 = vmatprep.subr.bf16.mxu0 0
    %7996 = vmatpush1.bf16.msra.mxu0 %v7886
    %7997 = vmatprep.subr.bf16.mxu0 0
    %7998 = vmatpush1.bf16.msra.mxu0 %v7887
    %7999 = vmatprep.subr.bf16.mxu0 0
    %8000 = vmatpush1.bf16.msra.mxu0 %v7888
    %8001 = vmatprep.subr.bf16.mxu0 0
    %8002 = vmatpush1.bf16.msra.mxu0 %v7889
    %8003 = vmatprep.subr.bf16.mxu0 0
    %8004 = vmatpush1.bf16.msra.mxu0 %v7890
    %8005 = vmatprep.subr.bf16.mxu0 0
    %8006 = vmatpush1.bf16.msra.mxu0 %v7891
    %8007 = vmatprep.mubr.bf16.mxu0 %v7635
    %8008 = vmatmul.mubr.bf16.gmra.mrb[0].mxu0 %v7631
    %v8009 = vpop.f32.mrb[0].mxu0
    %v8010 = vadd.f32 %v7970, %v8009
    %v8011 = vpop.f32.mrb[0].mxu0
    %v8012 = vpop.f32.mrb[0].mxu0
    %v8013 = vpop.f32.mrb[0].mxu0
    %8014 = vdwg.mxu0
    %8015 = vmatprep.subr.bf16.mxu0 0
    %8016 = vmatpush1.bf16.msra.mxu0 %v7892
    %8017 = vmatprep.subr.bf16.mxu0 0
    %8018 = vmatpush1.bf16.msra.mxu0 %v7893
    %8019 = vmatprep.subr.bf16.mxu0 0
    %8020 = vmatpush1.bf16.msra.mxu0 %v7894
    %8021 = vmatprep.subr.bf16.mxu0 0
    %8022 = vmatpush1.bf16.msra.mxu0 %v7895
    %8023 = vmatprep.subr.bf16.mxu0 0
    %8024 = vmatpush1.bf16.msra.mxu0 0
    %8025 = vmatprep.subr.bf16.mxu0 0
    %8026 = vmatpush1.bf16.msra.mxu0 0
    %8027 = vmatprep.subr.bf16.mxu0 0
    %8028 = vmatpush1.bf16.msra.mxu0 0
    %8029 = vmatprep.subr.bf16.mxu0 0
    %8030 = vmatpush1.bf16.msra.mxu0 0
    %8031 = vmatprep.subr.bf16.mxu0 0
    %8032 = vmatpush1.bf16.msra.mxu0 0
    %8033 = vmatprep.subr.bf16.mxu0 0
    %8034 = vmatpush1.bf16.msra.mxu0 0
    %8035 = vmatprep.subr.bf16.mxu0 0
    %8036 = vmatpush1.bf16.msra.mxu0 0
    %8037 = vmatprep.subr.bf16.mxu0 0
    %8038 = vmatpush1.bf16.msra.mxu0 0
    %8039 = vmatprep.subr.bf16.mxu0 0
    %8040 = vmatpush1.bf16.msra.mxu0 0
    %8041 = vmatprep.subr.bf16.mxu0 0
    %8042 = vmatpush1.bf16.msra.mxu0 0
    %8043 = vmatprep.subr.bf16.mxu0 0
    %8044 = vmatpush1.bf16.msra.mxu0 0
    %8045 = vmatprep.subr.bf16.mxu0 0
    %8046 = vmatpush1.bf16.msra.mxu0 0
    %8047 = vmatprep.mubr.bf16.mxu0 0
    %8048 = vmatmul.mubr.bf16.gmra.mrb[0].mxu0 %v7933
    %v8049 = vpop.f32.mrb[0].mxu0
    %v8050 = vadd.f32 %v8010, %v8049
    %v8051 = vpop.f32.mrb[0].mxu0
    %v8052 = vpop.f32.mrb[0].mxu0
    %v8053 = vpop.f32.mrb[0].mxu0
    %8054 = vdwg.mxu0
    %vm8055 = vcmp.ge.f32.partialorder %v8050, 0.0
    %v8056 = vstv %s59
    %v8057 = vmul.f32 %v8056, %v8050
    %v8058 = vsel %vm8055, %v8050, %v8057
    %v8059 = vpack.c.bf16 %v8058, %v8058
    %v8060 = vld [vmem:[%s10] sm:$0xf]
    %v8061 = vld [vmem:[%s10 + $0x4] sm:$0xf]
    %v8062 = vld [vmem:[%s10 + $0x8] sm:$0xf]
    %v8063 = vld [vmem:[%s10 + $0xc] sm:$0xf]
    %v8064 = vld [vmem:[%s10 + $0x10] sm:$0xf]
    %v8065 = vld [vmem:[%s10 + $0x14] sm:$0xf]
    %v8066 = vld [vmem:[%s10 + $0x18] sm:$0xf]
    %v8067 = vld [vmem:[%s10 + $0x1c] sm:$0xf]
    %v8068 = vld [vmem:[%s10 + $0x20] sm:$0xf]
    %v8069 = vld [vmem:[%s10 + $0x24] sm:$0xf]
    %v8070 = vld [vmem:[%s10 + $0x28] sm:$0xf]
    %v8071 = vld [vmem:[%s10 + $0x2c] sm:$0xf]
    %v8072 = vld [vmem:[%s10 + $0x30] sm:$0xf]
    %v8073 = vld [vmem:[%s10 + $0x34] sm:$0xf]
    %v8074 = vld [vmem:[%s10 + $0x38] sm:$0xf]
    %v8075 = vld [vmem:[%s10 + $0x3c] sm:$0xf]
    %v8076 = vld [vmem:[%s11] sm:$0x1]
    %v8078 = vlaneseq
    %v8079 = vshrl.u32 %v8078, 7
    %v8080 = vsub.s32 0, %v8079
    %v8081 = vrot.slane %v8076, %v8080
    %v8099 = vunpack.c.l.b16 %v8060
    %v8100 = vunpack.c.l.b16 %v8061
    %v8101 = vunpack.c.l.b16 %v8062
    %v8102 = vunpack.c.l.b16 %v8063
    %v8103 = vunpack.c.l.b16 %v8064
    %v8104 = vunpack.c.l.b16 %v8065
    %v8105 = vunpack.c.l.b16 %v8066
    %v8106 = vunpack.c.l.b16 %v8067
    %v8107 = vunpack.c.l.b16 %v8068
    %v8108 = vunpack.c.l.b16 %v8069
    %v8109 = vunpack.c.l.b16 %v8070
    %v8110 = vunpack.c.l.b16 %v8071
    %v8111 = vunpack.c.l.b16 %v8072
    %v8112 = vunpack.c.l.b16 %v8073
    %v8113 = vunpack.c.l.b16 %v8074
    %v8114 = vunpack.c.l.b16 %v8075
    %v8115 = vpack.c.b16 %v8100, %v8099
    %v8116 = vpack.c.b16 %v8102, %v8101
    %v8117 = vpack.c.b16 %v8104, %v8103
    %v8118 = vpack.c.b16 %v8106, %v8105
    %v8119 = vpack.c.b16 %v8108, %v8107
    %v8120 = vpack.c.b16 %v8110, %v8109
    %v8121 = vpack.c.b16 %v8112, %v8111
    %v8122 = vpack.c.b16 %v8114, %v8113
    %8131 = vmatprep.subr.bf16.mxu0 0
    %8132 = vmatpush1.bf16.msra.mxu0 %v8115
    %8133 = vmatprep.subr.bf16.mxu0 0
    %8134 = vmatpush1.bf16.msra.mxu0 %v8116
    %8135 = vmatprep.subr.bf16.mxu0 0
    %8136 = vmatpush1.bf16.msra.mxu0 %v8117
    %8137 = vmatprep.subr.bf16.mxu0 0
    %8138 = vmatpush1.bf16.msra.mxu0 %v8118
    %8139 = vmatprep.subr.bf16.mxu0 0
    %8140 = vmatpush1.bf16.msra.mxu0 %v8119
    %8141 = vmatprep.subr.bf16.mxu0 0
    %8142 = vmatpush1.bf16.msra.mxu0 %v8120
    %8143 = vmatprep.subr.bf16.mxu0 0
    %8144 = vmatpush1.bf16.msra.mxu0 %v8121
    %8145 = vmatprep.subr.bf16.mxu0 0
    %8146 = vmatpush1.bf16.msra.mxu0 %v8122
    %8147 = vmatprep.subr.bf16.mxu0 0
    %8148 = vmatpush1.bf16.msra.mxu0 0
    %8149 = vmatprep.subr.bf16.mxu0 0
    %8150 = vmatpush1.bf16.msra.mxu0 0
    %8151 = vmatprep.subr.bf16.mxu0 0
    %8152 = vmatpush1.bf16.msra.mxu0 0
    %8153 = vmatprep.subr.bf16.mxu0 0
    %8154 = vmatpush1.bf16.msra.mxu0 0
    %8155 = vmatprep.subr.bf16.mxu0 0
    %8156 = vmatpush1.bf16.msra.mxu0 0
    %8157 = vmatprep.subr.bf16.mxu0 0
    %8158 = vmatpush1.bf16.msra.mxu0 0
    %8159 = vmatprep.subr.bf16.mxu0 0
    %8160 = vmatpush1.bf16.msra.mxu0 0
    %8161 = vmatprep.subr.bf16.mxu0 0
    %8162 = vmatpush1.bf16.msra.mxu0 0
    %8163 = vmatprep.mubr.bf16.mxu0 0
    %8164 = vmatmul.mubr.bf16.gmra.mrb[0].mxu0 %v8059
    %v8165 = vpop.f32.mrb[0].mxu0
    %v8166 = vadd.f32 %v8081, %v8165
    %v8167 = vpop.f32.mrb[0].mxu0
    %v8168 = vpop.f32.mrb[0].mxu0
    %v8169 = vpop.f32.mrb[0].mxu0
    %8170 = vdwg.mxu0
    %v8171 = vlaneseq
    %v8172 = vand.u32 %v8171, 127
    %vm8173 = vcmp.eq.s32.totalorder %v8172, 0
    %v8174 = vxor.u32 %v8166, 2147483648
    %v8175 = vmul.f32 %v8174, 1.442695
    %v8176 = vpow.pop %v8175
    %v8177 = vadd.f32 %v8176, 1.0
    %v8178 = vrcp.pop %v8177
    %v8179 = vmul.f32 1.0, %v8178
    %v8180 = vsel %vm8173, %v8179, %v8166
    %vm8181 = vcmask 58368
    %8182 = vst.msk [vmem:[#allocation7] sm:$0x3] %vm8181, %v8180
    // Predicated region
    $region58: #{tpu_custom_call.1} parent=1 // pred_check
      _
    $region59: #{tpu_custom_call.1} parent=1 // pred_check_branch
      %8184 = sbr.rel (0) target = $region61
    $region60: #{tpu_custom_call.1} parent=1 // pred_region
      %s8186 = ssub.s32 32, 32
      %8187 = vsyncadd [#allocation5], %s8186
      %s8189 = sshll.u32 [#allocation7], 4
      %s8190 = int_to_ptr.vmem [resolvable:$true] %s8189
      %8192 = dma.vmem_to_hbm [thread:$0]  %s8190, 32, %s12, [#allocation5]
    $region61: #{tpu_custom_call.1} parent=1 // pred_fallthru
      _
    // Predicated region
    $region62: #{tpu_custom_call.1} parent=1 // pred_check
      _
    $region63: #{tpu_custom_call.1} parent=1 // pred_check_branch
      %8194 = sbr.rel (0) target = $region65
    $region64: #{tpu_custom_call.1} parent=1 // pred_region
      %8195 = dma.done [#allocation5], 32
    $region65: #{tpu_custom_call.1} parent=1 // pred_fallthru
      _
    %8196 = vsyncpa [#allocation5], 1
    %8197 = vsyncpa [#allocation6], 1

</llo_original>
